<compile_context>
chip_gen: v7x
topology: tpu7x:2x2x1
jax: 0.10.0
libtpu: 0.0.40
codegen_flags: <defaults>
</compile_context>

<pallas_src>
import functools

import jax
import jax.numpy as jnp
from jax.experimental import pallas as pl
from jax.experimental.pallas import tpu as pltpu

COMPUTE_DTYPE = jnp.bfloat16        # MXU inputs / stored activations
ACC_DTYPE = jnp.float32             # MXU accumulation / epilogue math

_PAD = 4                            # halo rows per side inside a stage (>= 3 conv taps)

_CONV_CPARAMS = pltpu.CompilerParams(
    dimension_semantics=("parallel",),       # batch axis -> megacore on v7x
    vmem_limit_bytes=48 * 1024 * 1024,       # explicit, fits v5e/v6e/v7x
)


# ---------------------------------------------------------------------------
# Kernels
# ---------------------------------------------------------------------------
def _stem_kernel(x0_ref, x1_ref, x2_ref, w_ref, b_ref, o_ref, *, conv_len):
    """Fused stem: Conv1d(Cin->C0, k=7, s=2, p=3) + BN + ReLU + MaxPool(3, s=2, p=1).

    x{d}_ref holds (per batch element) the im2col rows of the conv window that
    feeds max-pool tap d (conv index j = 2*i - 1 + d).  BN scale is folded into
    w.  Out-of-range pool taps are masked to 0, which is neutral for the max
    because values are post-ReLU (>= 0)."""
    w = w_ref[...]
    b = b_ref[...]
    taps = []
    for d, x_ref in enumerate((x0_ref, x1_ref, x2_ref)):
        y = jnp.dot(x_ref[0], w, preferred_element_type=ACC_DTYPE) + b
        y = jnp.maximum(y, 0.0)
        i = jax.lax.broadcasted_iota(jnp.int32, y.shape, 0)
        j = 2 * i - 1 + d
        y = jnp.where((j >= 0) & (j < conv_len), y, 0.0)
        taps.append(y)
    out = jnp.maximum(jnp.maximum(taps[0], taps[1]), taps[2])
    o_ref[0] = out.astype(o_ref.dtype)


def _stage_kernel(xp_ref, w1_ref, wbot_ref, wbr_ref, b_ref, o_ref, xs_ref, *, seq_len):
    """Three chained BaseBlocks + stage residual, fully resident in VMEM.

      xp_ref  : (1, L+2P, C)  stage input padded by P zero rows per side
                              (post-ReLU activation)
      w1_ref  : (3, C, C)     maxpool->conv1 weight, BN-scaled, in cols [0:C/4]
      wbot_ref: (3, C, C/4)   bottleneck weight (unscaled, BN is after branches)
      wbr_ref : (3, 7, C/4, C) conv2/3/4 taps zero-padded to 7 taps, BN-scaled,
                              embedded in cols [C/4:2C/4], [2C/4:3C/4], [3C/4:C]
      b_ref   : (3, 1, C)     folded BN bias (concat order pool,conv2,conv3,conv4)
      o_ref   : (1, L, C)     relu(bn(block3)) + stage_input  (PyTorch order)
      xs_ref  : (L+2P, C)     VMEM scratch holding the padded intermediate
                              activation between blocks (halo rows stay zero).
    """
    L = seq_len
    P = _PAD

    def base_block(xp_bf, j):
        # xp_bf: (L+2P, C) bf16 post-ReLU activation; data rows [P:P+L], halos zero.
        xpf = xp_bf.astype(ACC_DTYPE)
        # MaxPool1d(k=3, s=1, p=1): inputs are post-ReLU so zero-pad == -inf pad.
        m = jnp.maximum(jnp.maximum(xpf[P - 1:P - 1 + L], xpf[P:P + L]),
                        xpf[P + 1:P + 1 + L])
        acc = jnp.dot(m.astype(COMPUTE_DTYPE), w1_ref[j],
                      preferred_element_type=ACC_DTYPE)          # (L, C), cols [0:C/4]
        # Bottleneck on the padded window: zero halo rows are exactly the conv
        # zero-padding the k=3/5/7 branches need (pointwise conv of 0 is 0).
        bott = jnp.dot(xp_bf, wbot_ref[j],
                       preferred_element_type=ACC_DTYPE)         # (L+2P, C/4)
        for k in range(7):                                       # in-VMEM im2col
            acc = acc + jnp.dot(
                bott[P - 3 + k:P - 3 + k + L].astype(COMPUTE_DTYPE),
                wbr_ref[j, k], preferred_element_type=ACC_DTYPE)
        return jnp.maximum(acc + b_ref[j], 0.0)                  # (L, C) f32, >= 0

    xp0 = xp_ref[0]                                              # (L+2P, C) bf16
    xs_ref[...] = jnp.zeros_like(xs_ref)                         # zero halos once

    y = base_block(xp0, 0)
    xs_ref[P:P + L, :] = y.astype(COMPUTE_DTYPE)
    y = base_block(xs_ref[...], 1)
    xs_ref[P:P + L, :] = y.astype(COMPUTE_DTYPE)
    y = base_block(xs_ref[...], 2)

    # Residual is added AFTER the last block's ReLU (PyTorch: x + output).
    y = y + xp0[P:P + L].astype(ACC_DTYPE)
    o_ref[0] = y.astype(o_ref.dtype)


def _downsample_kernel(z_ref, wa_ref, wb_ref, b_ref, o_ref, *, out_len):
    """Conv1d(k=3, s=2, p=1) + BN + ReLU on a space-to-depth input.

    z[j] = [x_pad[2j], x_pad[2j+1]]  ->  out[i] = z[i]@[w0;w1] + z[i+1]@[w2;0]."""
    z = z_ref[0].astype(ACC_DTYPE)                     # (L/2+1, 2C)
    za = z[0:out_len].astype(COMPUTE_DTYPE)
    zb = z[1:1 + out_len].astype(COMPUTE_DTYPE)
    acc = jnp.dot(za, wa_ref[...], preferred_element_type=ACC_DTYPE)
    acc = acc + jnp.dot(zb, wb_ref[...], preferred_element_type=ACC_DTYPE)
    out = jnp.maximum(acc + b_ref[...], 0.0)
    o_ref[0] = out.astype(o_ref.dtype)


def _head_kernel(x_ref, w_ref, b_ref, o_ref):
    """AdaptiveAvgPool1d(1) over L followed by the Linear head."""
    x = x_ref[...].astype(ACC_DTYPE)                   # (B, L, C)
    m = jnp.mean(x, axis=1)                            # (B, C)
    o_ref[...] = jnp.dot(m, w_ref[...], preferred_element_type=ACC_DTYPE) + b_ref[...]


# ---------------------------------------------------------------------------
# Wrappers (JAX glue: padding / space-to-depth / tiny stem im2col)
# ---------------------------------------------------------------------------
def _stem_im2col(x_lc, pool_len, kc_pad):
    """Three im2col slabs (one per max-pool tap), each (B, pool_len, kc_pad)."""
    B, L, c_in = x_lc.shape
    back = max(0, 4 * pool_len + 2 - L)
    xp = jnp.pad(x_lc, ((0, 0), (5, back), (0, 0)))
    slabs = []
    for d in range(3):
        taps = []
        for k in range(7):
            start = 2 * d + k
            taps.append(jax.lax.slice_in_dim(
                xp, start, start + 4 * (pool_len - 1) + 1, stride=4, axis=1))
        slab = jnp.stack(taps, axis=2).reshape(B, pool_len, 7 * c_in)
        slab = jnp.pad(slab, ((0, 0), (0, 0), (0, kc_pad - 7 * c_in)))
        slabs.append(slab.astype(COMPUTE_DTYPE))
    return slabs


def stem_call(x_ncl, sp):
    B, c_in, L = x_ncl.shape
    kc_pad, c0 = sp["w"].shape
    conv_len = (L + 2 * 3 - 7) // 2 + 1
    pool_len = (conv_len + 2 * 1 - 3) // 2 + 1
    x_lc = jnp.transpose(x_ncl, (0, 2, 1)).astype(jnp.float32)
    slabs = _stem_im2col(x_lc, pool_len, kc_pad)
    slab_spec = pl.BlockSpec((1, pool_len, kc_pad), lambda b: (b, 0, 0))
    return pl.pallas_call(
        functools.partial(_stem_kernel, conv_len=conv_len),
        out_shape=jax.ShapeDtypeStruct((B, pool_len, c0), COMPUTE_DTYPE),
        grid=(B,),
        in_specs=[slab_spec, slab_spec, slab_spec,
                  pl.BlockSpec((kc_pad, c0), lambda b: (0, 0)),
                  pl.BlockSpec((1, c0), lambda b: (0, 0))],
        out_specs=pl.BlockSpec((1, pool_len, c0), lambda b: (b, 0, 0)),
        compiler_params=_CONV_CPARAMS,
    )(*slabs, sp["w"], sp["bias"])


def stage_call(x, sp):
    """Three BaseBlocks + residual in one pallas_call (per-sample sequence in VMEM)."""
    B, L, C = x.shape
    C4 = C // 4
    Lp = L + 2 * _PAD
    xp = jnp.pad(x, ((0, 0), (_PAD, _PAD), (0, 0)))    # zero halos (post-ReLU input)
    return pl.pallas_call(
        functools.partial(_stage_kernel, seq_len=L),
        out_shape=jax.ShapeDtypeStruct((B, L, C), COMPUTE_DTYPE),
        grid=(B,),
        in_specs=[
            pl.BlockSpec((1, Lp, C), lambda b: (b, 0, 0)),
            pl.BlockSpec((3, C, C), lambda b: (0, 0, 0)),
            pl.BlockSpec((3, C, C4), lambda b: (0, 0, 0)),
            pl.BlockSpec((3, 7, C4, C), lambda b: (0, 0, 0, 0)),
            pl.BlockSpec((3, 1, C), lambda b: (0, 0, 0)),
        ],
        out_specs=pl.BlockSpec((1, L, C), lambda b: (b, 0, 0)),
        scratch_shapes=[pltpu.VMEM((Lp, C), COMPUTE_DTYPE)],
        compiler_params=_CONV_CPARAMS,
    )(xp, sp["w1"], sp["wbot"], sp["wbr"], sp["bias"])


def downsample_call(x, dp):
    B, L, C = x.shape
    C_out = dp["wa"].shape[1]
    L_out = (L + 2 - 3) // 2 + 1
    xp = jnp.pad(x, ((0, 0), (1, 1), (0, 0)))
    Lp = xp.shape[1]
    if Lp % 2:
        xp = jnp.pad(xp, ((0, 0), (0, 1), (0, 0)))
        Lp += 1
    z = xp.reshape(B, Lp // 2, 2 * C)                   # space-to-depth pairs
    Lh = Lp // 2
    return pl.pallas_call(
        functools.partial(_downsample_kernel, out_len=L_out),
        out_shape=jax.ShapeDtypeStruct((B, L_out, C_out), COMPUTE_DTYPE),
        grid=(B,),
        in_specs=[
            pl.BlockSpec((1, Lh, 2 * C), lambda b: (b, 0, 0)),
            pl.BlockSpec((2 * C, C_out), lambda b: (0, 0)),
            pl.BlockSpec((2 * C, C_out), lambda b: (0, 0)),
            pl.BlockSpec((1, C_out), lambda b: (0, 0)),
        ],
        out_specs=pl.BlockSpec((1, L_out, C_out), lambda b: (b, 0, 0)),
        compiler_params=_CONV_CPARAMS,
    )(z, dp["wa"], dp["wb"], dp["bias"])


def head_call(x, fc_w, fc_b):
    # TODO(synk): for very large B*L, tile this over batch; trivial at demo size.
    B, L, C = x.shape
    N = fc_w.shape[1]
    vmem = pl.BlockSpec(memory_space=pltpu.MemorySpace.VMEM)
    return pl.pallas_call(
        _head_kernel,
        out_shape=jax.ShapeDtypeStruct((B, N), jnp.float32),
        in_specs=[vmem, vmem, vmem],
        out_specs=vmem,
    )(x, fc_w, fc_b.reshape(1, N))


# ---------------------------------------------------------------------------
# Forward
# ---------------------------------------------------------------------------
def forward(x_ncl, kp):
    """x_ncl: (B, C_in, L) like PyTorch."""
    x = stem_call(x_ncl, kp["stem"])                    # (B, L/4, 64) bf16
    o = stage_call(x, kp["stage1"])                     # 3 BaseBlocks + residual
    o = downsample_call(o, kp["down0"])                 # (B, L/8, 96)
    o = stage_call(o, kp["stage2"])                     # 3 BaseBlocks + residual
    o = downsample_call(o, kp["down1"])                 # (B, L/16, 128)
    return head_call(o, kp["fc_w"], kp["fc_b"])         # (B, num_classes)


# ---------------------------------------------------------------------------
# Parameters: PyTorch-layout init + kernel-layout preparation (BN folded)
# ---------------------------------------------------------------------------
def init_params(key, input_channels=1, num_classes=4, channels=(64, 96, 128)):
    keys = iter(jax.random.split(key, 256))

    def conv_w(c_out, c_in, k):
        fan_in = c_in * k
        return (jax.random.normal(next(keys), (c_out, c_in, k), jnp.float32)
                / jnp.sqrt(jnp.float32(fan_in)))

    def bn(c):
        gamma = 1.0 + 0.1 * jax.random.normal(next(keys), (c,), jnp.float32)
        beta = 0.1 * jax.random.normal(next(keys), (c,), jnp.float32)
        mean = 0.1 * jax.random.normal(next(keys), (c,), jnp.float32)
        var = 1.0 + 0.1 * jax.random.uniform(next(keys), (c,), jnp.float32)
        scale = gamma / jnp.sqrt(var + 1e-5)
        bias = beta - mean * scale
        return scale, bias

    def make_base_block(c):
        c4 = c // 4
        s, b = bn(c)
        return dict(bottleneck=conv_w(c4, c, 1), conv4=conv_w(c4, c4, 7),
                    conv3=conv_w(c4, c4, 5), conv2=conv_w(c4, c4, 3),
                    conv1=conv_w(c4, c, 1), bn_scale=s, bn_bias=b)

    def make_stem():
        s, b = bn(channels[0])
        return dict(w=conv_w(channels[0], input_channels, 7), bn_scale=s, bn_bias=b)

    def make_down(ci, co):
        s, b = bn(co)
        return dict(w=conv_w(co, ci, 3), bn_scale=s, bn_bias=b)

    params = dict(
        stem=make_stem(),
        block1=[make_base_block(channels[0]) for _ in range(3)],
        block2=[make_base_block(channels[1]) for _ in range(3)],
        down0=make_down(channels[0], channels[1]),
        down1=make_down(channels[1], channels[2]),
        fc_w=(jax.random.normal(next(keys), (channels[2], num_classes), jnp.float32)
              / jnp.sqrt(jnp.float32(channels[2]))),
        fc_b=0.01 * jax.random.normal(next(keys), (num_classes,), jnp.float32),
    )
    # TODO(synk): transformer1/2, pe1/pe2, segment_pos_embedding and
    # inter_segment_transformer are declared in __init__ but unused by
    # forward(), so they are intentionally not instantiated.
    return params


def prepare_params(p):
    """Fold inference-mode BN into the conv weights and lay them out for the kernels."""
    def cvt(a):
        return a.astype(COMPUTE_DTYPE)

    def prep_stem(sp):
        c_out, c_in, k = sp["w"].shape
        w2d = jnp.transpose(sp["w"], (2, 1, 0)).reshape(k * c_in, c_out)
        w2d = w2d * sp["bn_scale"][None, :]
        kc = k * c_in
        kc_pad = ((kc + 7) // 8) * 8
        w2d = jnp.pad(w2d, ((0, kc_pad - kc), (0, 0)))
        return dict(w=cvt(w2d),
                    bias=sp["bn_bias"].reshape(1, c_out).astype(jnp.float32))

    def prep_base(bp):
        c = bp["bn_scale"].shape[0]
        c4 = c // 4
        s = bp["bn_scale"]
        # Concat order in the reference: [maxpool->conv1, conv2, conv3, conv4].
        w1 = jnp.transpose(bp["conv1"], (2, 1, 0))[0] * s[:c4][None, :]          # (C, C4)
        w1_full = jnp.zeros((c, c), jnp.float32).at[:, :c4].set(w1)
        wbot = jnp.transpose(bp["bottleneck"], (2, 1, 0))[0]                     # (C, C4)
        w2 = jnp.transpose(bp["conv2"], (2, 1, 0)) * s[c4:2 * c4][None, None, :]
        w3 = jnp.transpose(bp["conv3"], (2, 1, 0)) * s[2 * c4:3 * c4][None, None, :]
        w4 = jnp.transpose(bp["conv4"], (2, 1, 0)) * s[3 * c4:][None, None, :]
        wbr = jnp.zeros((7, c4, c), jnp.float32)
        wbr = wbr.at[2:5, :, c4:2 * c4].set(w2)      # k=3 conv centered in 7 taps
        wbr = wbr.at[1:6, :, 2 * c4:3 * c4].set(w3)  # k=5 conv centered in 7 taps
        wbr = wbr.at[:, :, 3 * c4:].set(w4)          # k=7 conv
        return dict(w1=cvt(w1_full), wbot=cvt(wbot), wbr=cvt(wbr),
                    bias=bp["bn_bias"].reshape(1, c).astype(jnp.float32))

    def prep_stage(blocks):
        preps = [prep_base(bp) for bp in blocks]
        return dict(w1=jnp.stack([q["w1"] for q in preps]),      # (3, C, C)
                    wbot=jnp.stack([q["wbot"] for q in preps]),  # (3, C, C/4)
                    wbr=jnp.stack([q["wbr"] for q in preps]),    # (3, 7, C/4, C)
                    bias=jnp.stack([q["bias"] for q in preps]))  # (3, 1, C)

    def prep_down(dp):
        c_out, _, _ = dp["w"].shape
        s = dp["bn_scale"]
        wt = jnp.transpose(dp["w"], (2, 1, 0))                                   # (3, Cin, Cout)
        wa = jnp.concatenate([wt[0], wt[1]], axis=0) * s[None, :]                # (2Cin, Cout)
        wb = jnp.concatenate([wt[2], jnp.zeros_like(wt[2])], axis=0) * s[None, :]
        return dict(wa=cvt(wa), wb=cvt(wb),
                    bias=dp["bn_bias"].reshape(1, c_out).astype(jnp.float32))

    return dict(
        stem=prep_stem(p["stem"]),
        stage1=prep_stage(p["block1"]),
        stage2=prep_stage(p["block2"]),
        down0=prep_down(p["down0"]),
        down1=prep_down(p["down1"]),
        fc_w=p["fc_w"].astype(jnp.float32),
        fc_b=p["fc_b"].astype(jnp.float32),
    )


if __name__ == "__main__":
    key = jax.random.PRNGKey(0)
    pkey, xkey = jax.random.split(key)
    params = init_params(pkey)
    kparams = prepare_params(params)

    # PyTorch Conv1d layout (N, C_in, L): small deterministic input.
    x = jax.random.normal(xkey, (2, 1, 64), dtype=jnp.float32)

    out = jax.jit(forward)(x, kparams)
    out = jax.block_until_ready(out)
    assert out.shape == (2, 4), out.shape
    assert bool(jnp.all(jnp.isfinite(out)))
    print("KERNEL_OK")
</pallas_src>

<mosaic_0001>
module attributes {stable_mosaic.version = 11 : i64} {
  func.func @_stem_kernel(%arg0: i32, %arg1: memref<1x16x8xbf16, #tpu.memory_space<vmem>>, %arg2: memref<1x16x8xbf16, #tpu.memory_space<vmem>>, %arg3: memref<1x16x8xbf16, #tpu.memory_space<vmem>>, %arg4: memref<8x64xbf16, #tpu.memory_space<vmem>>, %arg5: memref<1x64xf32, #tpu.memory_space<vmem>>, %arg6: memref<1x16x64xbf16, #tpu.memory_space<vmem>>) attributes {dimension_semantics = [#tpu.dimension_semantics<parallel>], iteration_bounds = array<i64: 2>, scalar_prefetch = 0 : i64, scratch_operands = 0 : i64, tpu.core_type = #tpu.core_type<tc>, window_params = [{transform_indices = @transform_0, window_bounds = array<i64: 1, 16, 8>}, {transform_indices = @transform_1, window_bounds = array<i64: 1, 16, 8>}, {transform_indices = @transform_2, window_bounds = array<i64: 1, 16, 8>}, {pipeline_mode = #tpu.pipeline_mode<synchronous>, transform_indices = @transform_3, window_bounds = array<i64: 8, 64>}, {pipeline_mode = #tpu.pipeline_mode<synchronous>, transform_indices = @transform_4, window_bounds = array<i64: 1, 64>}, {transform_indices = @transform_5, window_bounds = array<i64: 1, 16, 64>}]} {
    %c0 = arith.constant 0 : index
    %c0_0 = arith.constant 0 : index
    %0 = vector.load %arg4[%c0, %c0_0] : memref<8x64xbf16, #tpu.memory_space<vmem>>, vector<8x64xbf16>
    %c0_1 = arith.constant 0 : index
    %c0_2 = arith.constant 0 : index
    %1 = vector.load %arg5[%c0_1, %c0_2] : memref<1x64xf32, #tpu.memory_space<vmem>>, vector<1x64xf32>
    %c0_3 = arith.constant 0 : index
    %c0_4 = arith.constant 0 : index
    %c0_5 = arith.constant 0 : index
    %2 = vector.load %arg1[%c0_3, %c0_4, %c0_5] : memref<1x16x8xbf16, #tpu.memory_space<vmem>>, vector<1x16x8xbf16>
    %3 = vector.shape_cast %2 : vector<1x16x8xbf16> to vector<16x8xbf16>
    %cst = arith.constant dense<0.000000e+00> : vector<16x64xf32>
    %4 = tpu.matmul %3, %0, %cst {dimension_numbers = #tpu.dot_dimension_numbers<[1], [0], [0], [1], [0, 0, 1, 1], [], []>} : vector<16x8xbf16>, vector<8x64xbf16>, vector<16x64xf32> -> vector<16x64xf32>
    %5 = vector.broadcast %1 : vector<1x64xf32> to vector<16x64xf32>
    %6 = arith.addf %4, %5 : vector<16x64xf32>
    %cst_6 = arith.constant 0.000000e+00 : f32
    %7 = vector.broadcast %cst_6 : f32 to vector<16x64xf32>
    %8 = arith.maximumf %6, %7 : vector<16x64xf32>
    %9 = tpu.iota {dimensions = array<i32: 0>} : vector<16x64xi32>
    %c2_i32 = arith.constant 2 : i32
    %10 = vector.broadcast %c2_i32 : i32 to vector<16x64xi32>
    %11 = arith.muli %10, %9 : vector<16x64xi32>
    %c1_i32 = arith.constant 1 : i32
    %12 = vector.broadcast %c1_i32 : i32 to vector<16x64xi32>
    %13 = arith.subi %11, %12 : vector<16x64xi32>
    %c0_i32 = arith.constant 0 : i32
    %14 = vector.broadcast %c0_i32 : i32 to vector<16x64xi32>
    %15 = arith.addi %13, %14 : vector<16x64xi32>
    %c0_i32_7 = arith.constant 0 : i32
    %16 = vector.broadcast %c0_i32_7 : i32 to vector<16x64xi32>
    %17 = arith.cmpi sge, %15, %16 : vector<16x64xi32>
    %c32_i32 = arith.constant 32 : i32
    %18 = vector.broadcast %c32_i32 : i32 to vector<16x64xi32>
    %19 = arith.cmpi slt, %15, %18 : vector<16x64xi32>
    %20 = arith.andi %17, %19 : vector<16x64xi1>
    %cst_8 = arith.constant 0.000000e+00 : f32
    %21 = vector.broadcast %cst_8 : f32 to vector<16x64xf32>
    %22 = arith.select %20, %8, %21 : vector<16x64xi1>, vector<16x64xf32>
    %c0_9 = arith.constant 0 : index
    %c0_10 = arith.constant 0 : index
    %c0_11 = arith.constant 0 : index
    %23 = vector.load %arg2[%c0_9, %c0_10, %c0_11] : memref<1x16x8xbf16, #tpu.memory_space<vmem>>, vector<1x16x8xbf16>
    %24 = vector.shape_cast %23 : vector<1x16x8xbf16> to vector<16x8xbf16>
    %cst_12 = arith.constant dense<0.000000e+00> : vector<16x64xf32>
    %25 = tpu.matmul %24, %0, %cst_12 {dimension_numbers = #tpu.dot_dimension_numbers<[1], [0], [0], [1], [0, 0, 1, 1], [], []>} : vector<16x8xbf16>, vector<8x64xbf16>, vector<16x64xf32> -> vector<16x64xf32>
    %26 = vector.broadcast %1 : vector<1x64xf32> to vector<16x64xf32>
    %27 = arith.addf %25, %26 : vector<16x64xf32>
    %cst_13 = arith.constant 0.000000e+00 : f32
    %28 = vector.broadcast %cst_13 : f32 to vector<16x64xf32>
    %29 = arith.maximumf %27, %28 : vector<16x64xf32>
    %30 = tpu.iota {dimensions = array<i32: 0>} : vector<16x64xi32>
    %c2_i32_14 = arith.constant 2 : i32
    %31 = vector.broadcast %c2_i32_14 : i32 to vector<16x64xi32>
    %32 = arith.muli %31, %30 : vector<16x64xi32>
    %c1_i32_15 = arith.constant 1 : i32
    %33 = vector.broadcast %c1_i32_15 : i32 to vector<16x64xi32>
    %34 = arith.subi %32, %33 : vector<16x64xi32>
    %c1_i32_16 = arith.constant 1 : i32
    %35 = vector.broadcast %c1_i32_16 : i32 to vector<16x64xi32>
    %36 = arith.addi %34, %35 : vector<16x64xi32>
    %c0_i32_17 = arith.constant 0 : i32
    %37 = vector.broadcast %c0_i32_17 : i32 to vector<16x64xi32>
    %38 = arith.cmpi sge, %36, %37 : vector<16x64xi32>
    %c32_i32_18 = arith.constant 32 : i32
    %39 = vector.broadcast %c32_i32_18 : i32 to vector<16x64xi32>
    %40 = arith.cmpi slt, %36, %39 : vector<16x64xi32>
    %41 = arith.andi %38, %40 : vector<16x64xi1>
    %cst_19 = arith.constant 0.000000e+00 : f32
    %42 = vector.broadcast %cst_19 : f32 to vector<16x64xf32>
    %43 = arith.select %41, %29, %42 : vector<16x64xi1>, vector<16x64xf32>
    %c0_20 = arith.constant 0 : index
    %c0_21 = arith.constant 0 : index
    %c0_22 = arith.constant 0 : index
    %44 = vector.load %arg3[%c0_20, %c0_21, %c0_22] : memref<1x16x8xbf16, #tpu.memory_space<vmem>>, vector<1x16x8xbf16>
    %45 = vector.shape_cast %44 : vector<1x16x8xbf16> to vector<16x8xbf16>
    %cst_23 = arith.constant dense<0.000000e+00> : vector<16x64xf32>
    %46 = tpu.matmul %45, %0, %cst_23 {dimension_numbers = #tpu.dot_dimension_numbers<[1], [0], [0], [1], [0, 0, 1, 1], [], []>} : vector<16x8xbf16>, vector<8x64xbf16>, vector<16x64xf32> -> vector<16x64xf32>
    %47 = vector.broadcast %1 : vector<1x64xf32> to vector<16x64xf32>
    %48 = arith.addf %46, %47 : vector<16x64xf32>
    %cst_24 = arith.constant 0.000000e+00 : f32
    %49 = vector.broadcast %cst_24 : f32 to vector<16x64xf32>
    %50 = arith.maximumf %48, %49 : vector<16x64xf32>
    %51 = tpu.iota {dimensions = array<i32: 0>} : vector<16x64xi32>
    %c2_i32_25 = arith.constant 2 : i32
    %52 = vector.broadcast %c2_i32_25 : i32 to vector<16x64xi32>
    %53 = arith.muli %52, %51 : vector<16x64xi32>
    %c1_i32_26 = arith.constant 1 : i32
    %54 = vector.broadcast %c1_i32_26 : i32 to vector<16x64xi32>
    %55 = arith.subi %53, %54 : vector<16x64xi32>
    %c2_i32_27 = arith.constant 2 : i32
    %56 = vector.broadcast %c2_i32_27 : i32 to vector<16x64xi32>
    %57 = arith.addi %55, %56 : vector<16x64xi32>
    %c0_i32_28 = arith.constant 0 : i32
    %58 = vector.broadcast %c0_i32_28 : i32 to vector<16x64xi32>
    %59 = arith.cmpi sge, %57, %58 : vector<16x64xi32>
    %c32_i32_29 = arith.constant 32 : i32
    %60 = vector.broadcast %c32_i32_29 : i32 to vector<16x64xi32>
    %61 = arith.cmpi slt, %57, %60 : vector<16x64xi32>
    %62 = arith.andi %59, %61 : vector<16x64xi1>
    %cst_30 = arith.constant 0.000000e+00 : f32
    %63 = vector.broadcast %cst_30 : f32 to vector<16x64xf32>
    %64 = arith.select %62, %50, %63 : vector<16x64xi1>, vector<16x64xf32>
    %65 = arith.maximumf %22, %43 : vector<16x64xf32>
    %66 = arith.maximumf %65, %64 : vector<16x64xf32>
    %67 = arith.truncf %66 : vector<16x64xf32> to vector<16x64xbf16>
    %c0_31 = arith.constant 0 : index
    %c0_32 = arith.constant 0 : index
    %c0_33 = arith.constant 0 : index
    %68 = vector.load %arg6[%c0_31, %c0_32, %c0_33] : memref<1x16x64xbf16, #tpu.memory_space<vmem>>, vector<1x16x64xbf16>
    %69 = vector.shape_cast %68 : vector<1x16x64xbf16> to vector<16x64xbf16>
    %70 = vector.shape_cast %67 : vector<16x64xbf16> to vector<1x16x64xbf16>
    tpu.vector_store %arg6[%c0_31, %c0_32, %c0_33], %70 {strides = array<i32>} : memref<1x16x64xbf16, #tpu.memory_space<vmem>>, vector<1x16x64xbf16>,
    return
  }
  func.func @transform_0(%arg0: i32) -> (i32, i32, i32) {
    %c0_i32 = arith.constant 0 : i32
    %c0_i32_0 = arith.constant 0 : i32
    %c0_i32_1 = arith.constant 0 : i32
    return %arg0, %c0_i32, %c0_i32_0 : i32, i32, i32
  }
  func.func @transform_1(%arg0: i32) -> (i32, i32, i32) {
    %c0_i32 = arith.constant 0 : i32
    %c0_i32_0 = arith.constant 0 : i32
    %c0_i32_1 = arith.constant 0 : i32
    return %arg0, %c0_i32, %c0_i32_0 : i32, i32, i32
  }
  func.func @transform_2(%arg0: i32) -> (i32, i32, i32) {
    %c0_i32 = arith.constant 0 : i32
    %c0_i32_0 = arith.constant 0 : i32
    %c0_i32_1 = arith.constant 0 : i32
    return %arg0, %c0_i32, %c0_i32_0 : i32, i32, i32
  }
  func.func @transform_3(%arg0: i32) -> (i32, i32) {
    %c0_i32 = arith.constant 0 : i32
    %c0_i32_0 = arith.constant 0 : i32
    %c0_i32_1 = arith.constant 0 : i32
    return %c0_i32, %c0_i32_0 : i32, i32
  }
  func.func @transform_4(%arg0: i32) -> (i32, i32) {
    %c0_i32 = arith.constant 0 : i32
    %c0_i32_0 = arith.constant 0 : i32
    %c0_i32_1 = arith.constant 0 : i32
    return %c0_i32, %c0_i32_0 : i32, i32
  }
  func.func @transform_5(%arg0: i32) -> (i32, i32, i32) {
    %c0_i32 = arith.constant 0 : i32
    %c0_i32_0 = arith.constant 0 : i32
    %c0_i32_1 = arith.constant 0 : i32
    return %arg0, %c0_i32, %c0_i32_0 : i32, i32, i32
  }
}

module attributes {stable_mosaic.version = 11 : i64} {
  func.func @_stage_kernel(%arg0: i32, %arg1: memref<1x24x64xbf16, #tpu.memory_space<vmem>>, %arg2: memref<3x64x64xbf16, #tpu.memory_space<vmem>>, %arg3: memref<3x64x16xbf16, #tpu.memory_space<vmem>>, %arg4: memref<3x7x16x64xbf16, #tpu.memory_space<vmem>>, %arg5: memref<3x1x64xf32, #tpu.memory_space<vmem>>, %arg6: memref<1x16x64xbf16, #tpu.memory_space<vmem>>, %arg7: memref<24x64xbf16, #tpu.memory_space<vmem>>) attributes {dimension_semantics = [#tpu.dimension_semantics<parallel>], iteration_bounds = array<i64: 2>, scalar_prefetch = 0 : i64, scratch_operands = 1 : i64, tpu.core_type = #tpu.core_type<tc>, window_params = [{transform_indices = @transform_0, window_bounds = array<i64: 1, 24, 64>}, {pipeline_mode = #tpu.pipeline_mode<synchronous>, transform_indices = @transform_1, window_bounds = array<i64: 3, 64, 64>}, {pipeline_mode = #tpu.pipeline_mode<synchronous>, transform_indices = @transform_2, window_bounds = array<i64: 3, 64, 16>}, {pipeline_mode = #tpu.pipeline_mode<synchronous>, transform_indices = @transform_3, window_bounds = array<i64: 3, 7, 16, 64>}, {pipeline_mode = #tpu.pipeline_mode<synchronous>, transform_indices = @transform_4, window_bounds = array<i64: 3, 1, 64>}, {transform_indices = @transform_5, window_bounds = array<i64: 1, 16, 64>}]} {
    %c0 = arith.constant 0 : index
    %c0_0 = arith.constant 0 : index
    %c0_1 = arith.constant 0 : index
    %0 = vector.load %arg1[%c0, %c0_0, %c0_1] : memref<1x24x64xbf16, #tpu.memory_space<vmem>>, vector<1x24x64xbf16>
    %1 = vector.shape_cast %0 : vector<1x24x64xbf16> to vector<24x64xbf16>
    %cst = arith.constant 0.000000e+00 : bf16
    %2 = vector.broadcast %cst : bf16 to vector<24x64xbf16>
    %c0_2 = arith.constant 0 : index
    %c0_3 = arith.constant 0 : index
    %3 = vector.load %arg7[%c0_2, %c0_3] : memref<24x64xbf16, #tpu.memory_space<vmem>>, vector<24x64xbf16>
    tpu.vector_store %arg7[%c0_2, %c0_3], %2 {strides = array<i32>} : memref<24x64xbf16, #tpu.memory_space<vmem>>, vector<24x64xbf16>,
    %4 = arith.extf %1 : vector<24x64xbf16> to vector<24x64xf32>
    %5 = vector.extract_strided_slice %4 {offsets = [3, 0], sizes = [16, 64], strides = [1, 1]} : vector<24x64xf32> to vector<16x64xf32>
    %6 = vector.extract_strided_slice %4 {offsets = [4, 0], sizes = [16, 64], strides = [1, 1]} : vector<24x64xf32> to vector<16x64xf32>
    %7 = arith.maximumf %5, %6 : vector<16x64xf32>
    %8 = vector.extract_strided_slice %4 {offsets = [5, 0], sizes = [16, 64], strides = [1, 1]} : vector<24x64xf32> to vector<16x64xf32>
    %9 = arith.maximumf %7, %8 : vector<16x64xf32>
    %10 = arith.truncf %9 : vector<16x64xf32> to vector<16x64xbf16>
    %c0_4 = arith.constant 0 : index
    %c0_5 = arith.constant 0 : index
    %c0_6 = arith.constant 0 : index
    %11 = vector.load %arg2[%c0_4, %c0_5, %c0_6] : memref<3x64x64xbf16, #tpu.memory_space<vmem>>, vector<1x64x64xbf16>
    %12 = vector.shape_cast %11 : vector<1x64x64xbf16> to vector<64x64xbf16>
    %cst_7 = arith.constant dense<0.000000e+00> : vector<16x64xf32>
    %13 = tpu.matmul %10, %12, %cst_7 {dimension_numbers = #tpu.dot_dimension_numbers<[1], [0], [0], [1], [0, 0, 1, 1], [], []>} : vector<16x64xbf16>, vector<64x64xbf16>, vector<16x64xf32> -> vector<16x64xf32>
    %c0_8 = arith.constant 0 : index
    %c0_9 = arith.constant 0 : index
    %c0_10 = arith.constant 0 : index
    %14 = vector.load %arg3[%c0_8, %c0_9, %c0_10] : memref<3x64x16xbf16, #tpu.memory_space<vmem>>, vector<1x64x16xbf16>
    %15 = vector.shape_cast %14 : vector<1x64x16xbf16> to vector<64x16xbf16>
    %cst_11 = arith.constant dense<0.000000e+00> : vector<24x16xf32>
    %16 = tpu.matmul %1, %15, %cst_11 {dimension_numbers = #tpu.dot_dimension_numbers<[1], [0], [0], [1], [0, 0, 1, 1], [], []>} : vector<24x64xbf16>, vector<64x16xbf16>, vector<24x16xf32> -> vector<24x16xf32>
    %17 = vector.extract_strided_slice %16 {offsets = [1, 0], sizes = [16, 16], strides = [1, 1]} : vector<24x16xf32> to vector<16x16xf32>
    %18 = arith.truncf %17 : vector<16x16xf32> to vector<16x16xbf16>
    %c0_12 = arith.constant 0 : index
    %c0_13 = arith.constant 0 : index
    %c0_14 = arith.constant 0 : index
    %c0_15 = arith.constant 0 : index
    %19 = vector.load %arg4[%c0_12, %c0_13, %c0_14, %c0_15] : memref<3x7x16x64xbf16, #tpu.memory_space<vmem>>, vector<1x1x16x64xbf16>
    %20 = vector.shape_cast %19 : vector<1x1x16x64xbf16> to vector<16x64xbf16>
    %cst_16 = arith.constant dense<0.000000e+00> : vector<16x64xf32>
    %21 = tpu.matmul %18, %20, %cst_16 {dimension_numbers = #tpu.dot_dimension_numbers<[1], [0], [0], [1], [0, 0, 1, 1], [], []>} : vector<16x16xbf16>, vector<16x64xbf16>, vector<16x64xf32> -> vector<16x64xf32>
    %22 = arith.addf %13, %21 : vector<16x64xf32>
    %23 = vector.extract_strided_slice %16 {offsets = [2, 0], sizes = [16, 16], strides = [1, 1]} : vector<24x16xf32> to vector<16x16xf32>
    %24 = arith.truncf %23 : vector<16x16xf32> to vector<16x16xbf16>
    %c0_17 = arith.constant 0 : index
    %c1 = arith.constant 1 : index
    %c0_18 = arith.constant 0 : index
    %c0_19 = arith.constant 0 : index
    %25 = vector.load %arg4[%c0_17, %c1, %c0_18, %c0_19] : memref<3x7x16x64xbf16, #tpu.memory_space<vmem>>, vector<1x1x16x64xbf16>
    %26 = vector.shape_cast %25 : vector<1x1x16x64xbf16> to vector<16x64xbf16>
    %cst_20 = arith.constant dense<0.000000e+00> : vector<16x64xf32>
    %27 = tpu.matmul %24, %26, %cst_20 {dimension_numbers = #tpu.dot_dimension_numbers<[1], [0], [0], [1], [0, 0, 1, 1], [], []>} : vector<16x16xbf16>, vector<16x64xbf16>, vector<16x64xf32> -> vector<16x64xf32>
    %28 = arith.addf %22, %27 : vector<16x64xf32>
    %29 = vector.extract_strided_slice %16 {offsets = [3, 0], sizes = [16, 16], strides = [1, 1]} : vector<24x16xf32> to vector<16x16xf32>
    %30 = arith.truncf %29 : vector<16x16xf32> to vector<16x16xbf16>
    %c0_21 = arith.constant 0 : index
    %c2 = arith.constant 2 : index
    %c0_22 = arith.constant 0 : index
    %c0_23 = arith.constant 0 : index
    %31 = vector.load %arg4[%c0_21, %c2, %c0_22, %c0_23] : memref<3x7x16x64xbf16, #tpu.memory_space<vmem>>, vector<1x1x16x64xbf16>
    %32 = vector.shape_cast %31 : vector<1x1x16x64xbf16> to vector<16x64xbf16>
    %cst_24 = arith.constant dense<0.000000e+00> : vector<16x64xf32>
    %33 = tpu.matmul %30, %32, %cst_24 {dimension_numbers = #tpu.dot_dimension_numbers<[1], [0], [0], [1], [0, 0, 1, 1], [], []>} : vector<16x16xbf16>, vector<16x64xbf16>, vector<16x64xf32> -> vector<16x64xf32>
    %34 = arith.addf %28, %33 : vector<16x64xf32>
    %35 = vector.extract_strided_slice %16 {offsets = [4, 0], sizes = [16, 16], strides = [1, 1]} : vector<24x16xf32> to vector<16x16xf32>
    %36 = arith.truncf %35 : vector<16x16xf32> to vector<16x16xbf16>
    %c0_25 = arith.constant 0 : index
    %c3 = arith.constant 3 : index
    %c0_26 = arith.constant 0 : index
    %c0_27 = arith.constant 0 : index
    %37 = vector.load %arg4[%c0_25, %c3, %c0_26, %c0_27] : memref<3x7x16x64xbf16, #tpu.memory_space<vmem>>, vector<1x1x16x64xbf16>
    %38 = vector.shape_cast %37 : vector<1x1x16x64xbf16> to vector<16x64xbf16>
    %cst_28 = arith.constant dense<0.000000e+00> : vector<16x64xf32>
    %39 = tpu.matmul %36, %38, %cst_28 {dimension_numbers = #tpu.dot_dimension_numbers<[1], [0], [0], [1], [0, 0, 1, 1], [], []>} : vector<16x16xbf16>, vector<16x64xbf16>, vector<16x64xf32> -> vector<16x64xf32>
    %40 = arith.addf %34, %39 : vector<16x64xf32>
    %41 = vector.extract_strided_slice %16 {offsets = [5, 0], sizes = [16, 16], strides = [1, 1]} : vector<24x16xf32> to vector<16x16xf32>
    %42 = arith.truncf %41 : vector<16x16xf32> to vector<16x16xbf16>
    %c0_29 = arith.constant 0 : index
    %c4 = arith.constant 4 : index
    %c0_30 = arith.constant 0 : index
    %c0_31 = arith.constant 0 : index
    %43 = vector.load %arg4[%c0_29, %c4, %c0_30, %c0_31] : memref<3x7x16x64xbf16, #tpu.memory_space<vmem>>, vector<1x1x16x64xbf16>
    %44 = vector.shape_cast %43 : vector<1x1x16x64xbf16> to vector<16x64xbf16>
    %cst_32 = arith.constant dense<0.000000e+00> : vector<16x64xf32>
    %45 = tpu.matmul %42, %44, %cst_32 {dimension_numbers = #tpu.dot_dimension_numbers<[1], [0], [0], [1], [0, 0, 1, 1], [], []>} : vector<16x16xbf16>, vector<16x64xbf16>, vector<16x64xf32> -> vector<16x64xf32>
    %46 = arith.addf %40, %45 : vector<16x64xf32>
    %47 = vector.extract_strided_slice %16 {offsets = [6, 0], sizes = [16, 16], strides = [1, 1]} : vector<24x16xf32> to vector<16x16xf32>
    %48 = arith.truncf %47 : vector<16x16xf32> to vector<16x16xbf16>
    %c0_33 = arith.constant 0 : index
    %c5 = arith.constant 5 : index
    %c0_34 = arith.constant 0 : index
    %c0_35 = arith.constant 0 : index
    %49 = vector.load %arg4[%c0_33, %c5, %c0_34, %c0_35] : memref<3x7x16x64xbf16, #tpu.memory_space<vmem>>, vector<1x1x16x64xbf16>
    %50 = vector.shape_cast %49 : vector<1x1x16x64xbf16> to vector<16x64xbf16>
    %cst_36 = arith.constant dense<0.000000e+00> : vector<16x64xf32>
    %51 = tpu.matmul %48, %50, %cst_36 {dimension_numbers = #tpu.dot_dimension_numbers<[1], [0], [0], [1], [0, 0, 1, 1], [], []>} : vector<16x16xbf16>, vector<16x64xbf16>, vector<16x64xf32> -> vector<16x64xf32>
    %52 = arith.addf %46, %51 : vector<16x64xf32>
    %53 = vector.extract_strided_slice %16 {offsets = [7, 0], sizes = [16, 16], strides = [1, 1]} : vector<24x16xf32> to vector<16x16xf32>
    %54 = arith.truncf %53 : vector<16x16xf32> to vector<16x16xbf16>
    %c0_37 = arith.constant 0 : index
    %c6 = arith.constant 6 : index
    %c0_38 = arith.constant 0 : index
    %c0_39 = arith.constant 0 : index
    %55 = vector.load %arg4[%c0_37, %c6, %c0_38, %c0_39] : memref<3x7x16x64xbf16, #tpu.memory_space<vmem>>, vector<1x1x16x64xbf16>
    %56 = vector.shape_cast %55 : vector<1x1x16x64xbf16> to vector<16x64xbf16>
    %cst_40 = arith.constant dense<0.000000e+00> : vector<16x64xf32>
    %57 = tpu.matmul %54, %56, %cst_40 {dimension_numbers = #tpu.dot_dimension_numbers<[1], [0], [0], [1], [0, 0, 1, 1], [], []>} : vector<16x16xbf16>, vector<16x64xbf16>, vector<16x64xf32> -> vector<16x64xf32>
    %58 = arith.addf %52, %57 : vector<16x64xf32>
    %c0_41 = arith.constant 0 : index
    %c0_42 = arith.constant 0 : index
    %c0_43 = arith.constant 0 : index
    %59 = vector.load %arg5[%c0_41, %c0_42, %c0_43] : memref<3x1x64xf32, #tpu.memory_space<vmem>>, vector<1x1x64xf32>
    %60 = vector.shape_cast %59 : vector<1x1x64xf32> to vector<1x64xf32>
    %61 = vector.broadcast %60 : vector<1x64xf32> to vector<16x64xf32>
    %62 = arith.addf %58, %61 : vector<16x64xf32>
    %cst_44 = arith.constant 0.000000e+00 : f32
    %63 = vector.broadcast %cst_44 : f32 to vector<16x64xf32>
    %64 = arith.maximumf %62, %63 : vector<16x64xf32>
    %65 = arith.truncf %64 : vector<16x64xf32> to vector<16x64xbf16>
    %c4_45 = arith.constant 4 : index
    %c0_46 = arith.constant 0 : index
    %66 = vector.load %arg7[%c4_45, %c0_46] : memref<24x64xbf16, #tpu.memory_space<vmem>>, vector<16x64xbf16>
    tpu.vector_store %arg7[%c4_45, %c0_46], %65 {strides = array<i32>} : memref<24x64xbf16, #tpu.memory_space<vmem>>, vector<16x64xbf16>,
    %c0_47 = arith.constant 0 : index
    %c0_48 = arith.constant 0 : index
    %67 = vector.load %arg7[%c0_47, %c0_48] : memref<24x64xbf16, #tpu.memory_space<vmem>>, vector<24x64xbf16>
    %68 = arith.extf %67 : vector<24x64xbf16> to vector<24x64xf32>
    %69 = vector.extract_strided_slice %68 {offsets = [3, 0], sizes = [16, 64], strides = [1, 1]} : vector<24x64xf32> to vector<16x64xf32>
    %70 = vector.extract_strided_slice %68 {offsets = [4, 0], sizes = [16, 64], strides = [1, 1]} : vector<24x64xf32> to vector<16x64xf32>
    %71 = arith.maximumf %69, %70 : vector<16x64xf32>
    %72 = vector.extract_strided_slice %68 {offsets = [5, 0], sizes = [16, 64], strides = [1, 1]} : vector<24x64xf32> to vector<16x64xf32>
    %73 = arith.maximumf %71, %72 : vector<16x64xf32>
    %74 = arith.truncf %73 : vector<16x64xf32> to vector<16x64xbf16>
    %c1_49 = arith.constant 1 : index
    %c0_50 = arith.constant 0 : index
    %c0_51 = arith.constant 0 : index
    %75 = vector.load %arg2[%c1_49, %c0_50, %c0_51] : memref<3x64x64xbf16, #tpu.memory_space<vmem>>, vector<1x64x64xbf16>
    %76 = vector.shape_cast %75 : vector<1x64x64xbf16> to vector<64x64xbf16>
    %cst_52 = arith.constant dense<0.000000e+00> : vector<16x64xf32>
    %77 = tpu.matmul %74, %76, %cst_52 {dimension_numbers = #tpu.dot_dimension_numbers<[1], [0], [0], [1], [0, 0, 1, 1], [], []>} : vector<16x64xbf16>, vector<64x64xbf16>, vector<16x64xf32> -> vector<16x64xf32>
    %c1_53 = arith.constant 1 : index
    %c0_54 = arith.constant 0 : index
    %c0_55 = arith.constant 0 : index
    %78 = vector.load %arg3[%c1_53, %c0_54, %c0_55] : memref<3x64x16xbf16, #tpu.memory_space<vmem>>, vector<1x64x16xbf16>
    %79 = vector.shape_cast %78 : vector<1x64x16xbf16> to vector<64x16xbf16>
    %cst_56 = arith.constant dense<0.000000e+00> : vector<24x16xf32>
    %80 = tpu.matmul %67, %79, %cst_56 {dimension_numbers = #tpu.dot_dimension_numbers<[1], [0], [0], [1], [0, 0, 1, 1], [], []>} : vector<24x64xbf16>, vector<64x16xbf16>, vector<24x16xf32> -> vector<24x16xf32>
    %81 = vector.extract_strided_slice %80 {offsets = [1, 0], sizes = [16, 16], strides = [1, 1]} : vector<24x16xf32> to vector<16x16xf32>
    %82 = arith.truncf %81 : vector<16x16xf32> to vector<16x16xbf16>
    %c1_57 = arith.constant 1 : index
    %c0_58 = arith.constant 0 : index
    %c0_59 = arith.constant 0 : index
    %c0_60 = arith.constant 0 : index
    %83 = vector.load %arg4[%c1_57, %c0_58, %c0_59, %c0_60] : memref<3x7x16x64xbf16, #tpu.memory_space<vmem>>, vector<1x1x16x64xbf16>
    %84 = vector.shape_cast %83 : vector<1x1x16x64xbf16> to vector<16x64xbf16>
    %cst_61 = arith.constant dense<0.000000e+00> : vector<16x64xf32>
    %85 = tpu.matmul %82, %84, %cst_61 {dimension_numbers = #tpu.dot_dimension_numbers<[1], [0], [0], [1], [0, 0, 1, 1], [], []>} : vector<16x16xbf16>, vector<16x64xbf16>, vector<16x64xf32> -> vector<16x64xf32>
    %86 = arith.addf %77, %85 : vector<16x64xf32>
    %87 = vector.extract_strided_slice %80 {offsets = [2, 0], sizes = [16, 16], strides = [1, 1]} : vector<24x16xf32> to vector<16x16xf32>
    %88 = arith.truncf %87 : vector<16x16xf32> to vector<16x16xbf16>
    %c1_62 = arith.constant 1 : index
    %c1_63 = arith.constant 1 : index
    %c0_64 = arith.constant 0 : index
    %c0_65 = arith.constant 0 : index
    %89 = vector.load %arg4[%c1_62, %c1_63, %c0_64, %c0_65] : memref<3x7x16x64xbf16, #tpu.memory_space<vmem>>, vector<1x1x16x64xbf16>
    %90 = vector.shape_cast %89 : vector<1x1x16x64xbf16> to vector<16x64xbf16>
    %cst_66 = arith.constant dense<0.000000e+00> : vector<16x64xf32>
    %91 = tpu.matmul %88, %90, %cst_66 {dimension_numbers = #tpu.dot_dimension_numbers<[1], [0], [0], [1], [0, 0, 1, 1], [], []>} : vector<16x16xbf16>, vector<16x64xbf16>, vector<16x64xf32> -> vector<16x64xf32>
    %92 = arith.addf %86, %91 : vector<16x64xf32>
    %93 = vector.extract_strided_slice %80 {offsets = [3, 0], sizes = [16, 16], strides = [1, 1]} : vector<24x16xf32> to vector<16x16xf32>
    %94 = arith.truncf %93 : vector<16x16xf32> to vector<16x16xbf16>
    %c1_67 = arith.constant 1 : index
    %c2_68 = arith.constant 2 : index
    %c0_69 = arith.constant 0 : index
    %c0_70 = arith.constant 0 : index
    %95 = vector.load %arg4[%c1_67, %c2_68, %c0_69, %c0_70] : memref<3x7x16x64xbf16, #tpu.memory_space<vmem>>, vector<1x1x16x64xbf16>
    %96 = vector.shape_cast %95 : vector<1x1x16x64xbf16> to vector<16x64xbf16>
    %cst_71 = arith.constant dense<0.000000e+00> : vector<16x64xf32>
    %97 = tpu.matmul %94, %96, %cst_71 {dimension_numbers = #tpu.dot_dimension_numbers<[1], [0], [0], [1], [0, 0, 1, 1], [], []>} : vector<16x16xbf16>, vector<16x64xbf16>, vector<16x64xf32> -> vector<16x64xf32>
    %98 = arith.addf %92, %97 : vector<16x64xf32>
    %99 = vector.extract_strided_slice %80 {offsets = [4, 0], sizes = [16, 16], strides = [1, 1]} : vector<24x16xf32> to vector<16x16xf32>
    %100 = arith.truncf %99 : vector<16x16xf32> to vector<16x16xbf16>
    %c1_72 = arith.constant 1 : index
    %c3_73 = arith.constant 3 : index
    %c0_74 = arith.constant 0 : index
    %c0_75 = arith.constant 0 : index
    %101 = vector.load %arg4[%c1_72, %c3_73, %c0_74, %c0_75] : memref<3x7x16x64xbf16, #tpu.memory_space<vmem>>, vector<1x1x16x64xbf16>
    %102 = vector.shape_cast %101 : vector<1x1x16x64xbf16> to vector<16x64xbf16>
    %cst_76 = arith.constant dense<0.000000e+00> : vector<16x64xf32>
    %103 = tpu.matmul %100, %102, %cst_76 {dimension_numbers = #tpu.dot_dimension_numbers<[1], [0], [0], [1], [0, 0, 1, 1], [], []>} : vector<16x16xbf16>, vector<16x64xbf16>, vector<16x64xf32> -> vector<16x64xf32>
    %104 = arith.addf %98, %103 : vector<16x64xf32>
    %105 = vector.extract_strided_slice %80 {offsets = [5, 0], sizes = [16, 16], strides = [1, 1]} : vector<24x16xf32> to vector<16x16xf32>
    %106 = arith.truncf %105 : vector<16x16xf32> to vector<16x16xbf16>
    %c1_77 = arith.constant 1 : index
    %c4_78 = arith.constant 4 : index
    %c0_79 = arith.constant 0 : index
    %c0_80 = arith.constant 0 : index
    %107 = vector.load %arg4[%c1_77, %c4_78, %c0_79, %c0_80] : memref<3x7x16x64xbf16, #tpu.memory_space<vmem>>, vector<1x1x16x64xbf16>
    %108 = vector.shape_cast %107 : vector<1x1x16x64xbf16> to vector<16x64xbf16>
    %cst_81 = arith.constant dense<0.000000e+00> : vector<16x64xf32>
    %109 = tpu.matmul %106, %108, %cst_81 {dimension_numbers = #tpu.dot_dimension_numbers<[1], [0], [0], [1], [0, 0, 1, 1], [], []>} : vector<16x16xbf16>, vector<16x64xbf16>, vector<16x64xf32> -> vector<16x64xf32>
    %110 = arith.addf %104, %109 : vector<16x64xf32>
    %111 = vector.extract_strided_slice %80 {offsets = [6, 0], sizes = [16, 16], strides = [1, 1]} : vector<24x16xf32> to vector<16x16xf32>
    %112 = arith.truncf %111 : vector<16x16xf32> to vector<16x16xbf16>
    %c1_82 = arith.constant 1 : index
    %c5_83 = arith.constant 5 : index
    %c0_84 = arith.constant 0 : index
    %c0_85 = arith.constant 0 : index
    %113 = vector.load %arg4[%c1_82, %c5_83, %c0_84, %c0_85] : memref<3x7x16x64xbf16, #tpu.memory_space<vmem>>, vector<1x1x16x64xbf16>
    %114 = vector.shape_cast %113 : vector<1x1x16x64xbf16> to vector<16x64xbf16>
    %cst_86 = arith.constant dense<0.000000e+00> : vector<16x64xf32>
    %115 = tpu.matmul %112, %114, %cst_86 {dimension_numbers = #tpu.dot_dimension_numbers<[1], [0], [0], [1], [0, 0, 1, 1], [], []>} : vector<16x16xbf16>, vector<16x64xbf16>, vector<16x64xf32> -> vector<16x64xf32>
    %116 = arith.addf %110, %115 : vector<16x64xf32>
    %117 = vector.extract_strided_slice %80 {offsets = [7, 0], sizes = [16, 16], strides = [1, 1]} : vector<24x16xf32> to vector<16x16xf32>
    %118 = arith.truncf %117 : vector<16x16xf32> to vector<16x16xbf16>
    %c1_87 = arith.constant 1 : index
    %c6_88 = arith.constant 6 : index
    %c0_89 = arith.constant 0 : index
    %c0_90 = arith.constant 0 : index
    %119 = vector.load %arg4[%c1_87, %c6_88, %c0_89, %c0_90] : memref<3x7x16x64xbf16, #tpu.memory_space<vmem>>, vector<1x1x16x64xbf16>
    %120 = vector.shape_cast %119 : vector<1x1x16x64xbf16> to vector<16x64xbf16>
    %cst_91 = arith.constant dense<0.000000e+00> : vector<16x64xf32>
    %121 = tpu.matmul %118, %120, %cst_91 {dimension_numbers = #tpu.dot_dimension_numbers<[1], [0], [0], [1], [0, 0, 1, 1], [], []>} : vector<16x16xbf16>, vector<16x64xbf16>, vector<16x64xf32> -> vector<16x64xf32>
    %122 = arith.addf %116, %121 : vector<16x64xf32>
    %c1_92 = arith.constant 1 : index
    %c0_93 = arith.constant 0 : index
    %c0_94 = arith.constant 0 : index
    %123 = vector.load %arg5[%c1_92, %c0_93, %c0_94] : memref<3x1x64xf32, #tpu.memory_space<vmem>>, vector<1x1x64xf32>
    %124 = vector.shape_cast %123 : vector<1x1x64xf32> to vector<1x64xf32>
    %125 = vector.broadcast %124 : vector<1x64xf32> to vector<16x64xf32>
    %126 = arith.addf %122, %125 : vector<16x64xf32>
    %cst_95 = arith.constant 0.000000e+00 : f32
    %127 = vector.broadcast %cst_95 : f32 to vector<16x64xf32>
    %128 = arith.maximumf %126, %127 : vector<16x64xf32>
    %129 = arith.truncf %128 : vector<16x64xf32> to vector<16x64xbf16>
    %c4_96 = arith.constant 4 : index
    %c0_97 = arith.constant 0 : index
    %130 = vector.load %arg7[%c4_96, %c0_97] : memref<24x64xbf16, #tpu.memory_space<vmem>>, vector<16x64xbf16>
    tpu.vector_store %arg7[%c4_96, %c0_97], %129 {strides = array<i32>} : memref<24x64xbf16, #tpu.memory_space<vmem>>, vector<16x64xbf16>,
    %c0_98 = arith.constant 0 : index
    %c0_99 = arith.constant 0 : index
    %131 = vector.load %arg7[%c0_98, %c0_99] : memref<24x64xbf16, #tpu.memory_space<vmem>>, vector<24x64xbf16>
    %132 = arith.extf %131 : vector<24x64xbf16> to vector<24x64xf32>
    %133 = vector.extract_strided_slice %132 {offsets = [3, 0], sizes = [16, 64], strides = [1, 1]} : vector<24x64xf32> to vector<16x64xf32>
    %134 = vector.extract_strided_slice %132 {offsets = [4, 0], sizes = [16, 64], strides = [1, 1]} : vector<24x64xf32> to vector<16x64xf32>
    %135 = arith.maximumf %133, %134 : vector<16x64xf32>
    %136 = vector.extract_strided_slice %132 {offsets = [5, 0], sizes = [16, 64], strides = [1, 1]} : vector<24x64xf32> to vector<16x64xf32>
    %137 = arith.maximumf %135, %136 : vector<16x64xf32>
    %138 = arith.truncf %137 : vector<16x64xf32> to vector<16x64xbf16>
    %c2_100 = arith.constant 2 : index
    %c0_101 = arith.constant 0 : index
    %c0_102 = arith.constant 0 : index
    %139 = vector.load %arg2[%c2_100, %c0_101, %c0_102] : memref<3x64x64xbf16, #tpu.memory_space<vmem>>, vector<1x64x64xbf16>
    %140 = vector.shape_cast %139 : vector<1x64x64xbf16> to vector<64x64xbf16>
    %cst_103 = arith.constant dense<0.000000e+00> : vector<16x64xf32>
    %141 = tpu.matmul %138, %140, %cst_103 {dimension_numbers = #tpu.dot_dimension_numbers<[1], [0], [0], [1], [0, 0, 1, 1], [], []>} : vector<16x64xbf16>, vector<64x64xbf16>, vector<16x64xf32> -> vector<16x64xf32>
    %c2_104 = arith.constant 2 : index
    %c0_105 = arith.constant 0 : index
    %c0_106 = arith.constant 0 : index
    %142 = vector.load %arg3[%c2_104, %c0_105, %c0_106] : memref<3x64x16xbf16, #tpu.memory_space<vmem>>, vector<1x64x16xbf16>
    %143 = vector.shape_cast %142 : vector<1x64x16xbf16> to vector<64x16xbf16>
    %cst_107 = arith.constant dense<0.000000e+00> : vector<24x16xf32>
    %144 = tpu.matmul %131, %143, %cst_107 {dimension_numbers = #tpu.dot_dimension_numbers<[1], [0], [0], [1], [0, 0, 1, 1], [], []>} : vector<24x64xbf16>, vector<64x16xbf16>, vector<24x16xf32> -> vector<24x16xf32>
    %145 = vector.extract_strided_slice %144 {offsets = [1, 0], sizes = [16, 16], strides = [1, 1]} : vector<24x16xf32> to vector<16x16xf32>
    %146 = arith.truncf %145 : vector<16x16xf32> to vector<16x16xbf16>
    %c2_108 = arith.constant 2 : index
    %c0_109 = arith.constant 0 : index
    %c0_110 = arith.constant 0 : index
    %c0_111 = arith.constant 0 : index
    %147 = vector.load %arg4[%c2_108, %c0_109, %c0_110, %c0_111] : memref<3x7x16x64xbf16, #tpu.memory_space<vmem>>, vector<1x1x16x64xbf16>
    %148 = vector.shape_cast %147 : vector<1x1x16x64xbf16> to vector<16x64xbf16>
    %cst_112 = arith.constant dense<0.000000e+00> : vector<16x64xf32>
    %149 = tpu.matmul %146, %148, %cst_112 {dimension_numbers = #tpu.dot_dimension_numbers<[1], [0], [0], [1], [0, 0, 1, 1], [], []>} : vector<16x16xbf16>, vector<16x64xbf16>, vector<16x64xf32> -> vector<16x64xf32>
    %150 = arith.addf %141, %149 : vector<16x64xf32>
    %151 = vector.extract_strided_slice %144 {offsets = [2, 0], sizes = [16, 16], strides = [1, 1]} : vector<24x16xf32> to vector<16x16xf32>
    %152 = arith.truncf %151 : vector<16x16xf32> to vector<16x16xbf16>
    %c2_113 = arith.constant 2 : index
    %c1_114 = arith.constant 1 : index
    %c0_115 = arith.constant 0 : index
    %c0_116 = arith.constant 0 : index
    %153 = vector.load %arg4[%c2_113, %c1_114, %c0_115, %c0_116] : memref<3x7x16x64xbf16, #tpu.memory_space<vmem>>, vector<1x1x16x64xbf16>
    %154 = vector.shape_cast %153 : vector<1x1x16x64xbf16> to vector<16x64xbf16>
    %cst_117 = arith.constant dense<0.000000e+00> : vector<16x64xf32>
    %155 = tpu.matmul %152, %154, %cst_117 {dimension_numbers = #tpu.dot_dimension_numbers<[1], [0], [0], [1], [0, 0, 1, 1], [], []>} : vector<16x16xbf16>, vector<16x64xbf16>, vector<16x64xf32> -> vector<16x64xf32>
    %156 = arith.addf %150, %155 : vector<16x64xf32>
    %157 = vector.extract_strided_slice %144 {offsets = [3, 0], sizes = [16, 16], strides = [1, 1]} : vector<24x16xf32> to vector<16x16xf32>
    %158 = arith.truncf %157 : vector<16x16xf32> to vector<16x16xbf16>
    %c2_118 = arith.constant 2 : index
    %c2_119 = arith.constant 2 : index
    %c0_120 = arith.constant 0 : index
    %c0_121 = arith.constant 0 : index
    %159 = vector.load %arg4[%c2_118, %c2_119, %c0_120, %c0_121] : memref<3x7x16x64xbf16, #tpu.memory_space<vmem>>, vector<1x1x16x64xbf16>
    %160 = vector.shape_cast %159 : vector<1x1x16x64xbf16> to vector<16x64xbf16>
    %cst_122 = arith.constant dense<0.000000e+00> : vector<16x64xf32>
    %161 = tpu.matmul %158, %160, %cst_122 {dimension_numbers = #tpu.dot_dimension_numbers<[1], [0], [0], [1], [0, 0, 1, 1], [], []>} : vector<16x16xbf16>, vector<16x64xbf16>, vector<16x64xf32> -> vector<16x64xf32>
    %162 = arith.addf %156, %161 : vector<16x64xf32>
    %163 = vector.extract_strided_slice %144 {offsets = [4, 0], sizes = [16, 16], strides = [1, 1]} : vector<24x16xf32> to vector<16x16xf32>
    %164 = arith.truncf %163 : vector<16x16xf32> to vector<16x16xbf16>
    %c2_123 = arith.constant 2 : index
    %c3_124 = arith.constant 3 : index
    %c0_125 = arith.constant 0 : index
    %c0_126 = arith.constant 0 : index
    %165 = vector.load %arg4[%c2_123, %c3_124, %c0_125, %c0_126] : memref<3x7x16x64xbf16, #tpu.memory_space<vmem>>, vector<1x1x16x64xbf16>
    %166 = vector.shape_cast %165 : vector<1x1x16x64xbf16> to vector<16x64xbf16>
    %cst_127 = arith.constant dense<0.000000e+00> : vector<16x64xf32>
    %167 = tpu.matmul %164, %166, %cst_127 {dimension_numbers = #tpu.dot_dimension_numbers<[1], [0], [0], [1], [0, 0, 1, 1], [], []>} : vector<16x16xbf16>, vector<16x64xbf16>, vector<16x64xf32> -> vector<16x64xf32>
    %168 = arith.addf %162, %167 : vector<16x64xf32>
    %169 = vector.extract_strided_slice %144 {offsets = [5, 0], sizes = [16, 16], strides = [1, 1]} : vector<24x16xf32> to vector<16x16xf32>
    %170 = arith.truncf %169 : vector<16x16xf32> to vector<16x16xbf16>
    %c2_128 = arith.constant 2 : index
    %c4_129 = arith.constant 4 : index
    %c0_130 = arith.constant 0 : index
    %c0_131 = arith.constant 0 : index
    %171 = vector.load %arg4[%c2_128, %c4_129, %c0_130, %c0_131] : memref<3x7x16x64xbf16, #tpu.memory_space<vmem>>, vector<1x1x16x64xbf16>
    %172 = vector.shape_cast %171 : vector<1x1x16x64xbf16> to vector<16x64xbf16>
    %cst_132 = arith.constant dense<0.000000e+00> : vector<16x64xf32>
    %173 = tpu.matmul %170, %172, %cst_132 {dimension_numbers = #tpu.dot_dimension_numbers<[1], [0], [0], [1], [0, 0, 1, 1], [], []>} : vector<16x16xbf16>, vector<16x64xbf16>, vector<16x64xf32> -> vector<16x64xf32>
    %174 = arith.addf %168, %173 : vector<16x64xf32>
    %175 = vector.extract_strided_slice %144 {offsets = [6, 0], sizes = [16, 16], strides = [1, 1]} : vector<24x16xf32> to vector<16x16xf32>
    %176 = arith.truncf %175 : vector<16x16xf32> to vector<16x16xbf16>
    %c2_133 = arith.constant 2 : index
    %c5_134 = arith.constant 5 : index
    %c0_135 = arith.constant 0 : index
    %c0_136 = arith.constant 0 : index
    %177 = vector.load %arg4[%c2_133, %c5_134, %c0_135, %c0_136] : memref<3x7x16x64xbf16, #tpu.memory_space<vmem>>, vector<1x1x16x64xbf16>
    %178 = vector.shape_cast %177 : vector<1x1x16x64xbf16> to vector<16x64xbf16>
    %cst_137 = arith.constant dense<0.000000e+00> : vector<16x64xf32>
    %179 = tpu.matmul %176, %178, %cst_137 {dimension_numbers = #tpu.dot_dimension_numbers<[1], [0], [0], [1], [0, 0, 1, 1], [], []>} : vector<16x16xbf16>, vector<16x64xbf16>, vector<16x64xf32> -> vector<16x64xf32>
    %180 = arith.addf %174, %179 : vector<16x64xf32>
    %181 = vector.extract_strided_slice %144 {offsets = [7, 0], sizes = [16, 16], strides = [1, 1]} : vector<24x16xf32> to vector<16x16xf32>
    %182 = arith.truncf %181 : vector<16x16xf32> to vector<16x16xbf16>
    %c2_138 = arith.constant 2 : index
    %c6_139 = arith.constant 6 : index
    %c0_140 = arith.constant 0 : index
    %c0_141 = arith.constant 0 : index
    %183 = vector.load %arg4[%c2_138, %c6_139, %c0_140, %c0_141] : memref<3x7x16x64xbf16, #tpu.memory_space<vmem>>, vector<1x1x16x64xbf16>
    %184 = vector.shape_cast %183 : vector<1x1x16x64xbf16> to vector<16x64xbf16>
    %cst_142 = arith.constant dense<0.000000e+00> : vector<16x64xf32>
    %185 = tpu.matmul %182, %184, %cst_142 {dimension_numbers = #tpu.dot_dimension_numbers<[1], [0], [0], [1], [0, 0, 1, 1], [], []>} : vector<16x16xbf16>, vector<16x64xbf16>, vector<16x64xf32> -> vector<16x64xf32>
    %186 = arith.addf %180, %185 : vector<16x64xf32>
    %c2_143 = arith.constant 2 : index
    %c0_144 = arith.constant 0 : index
    %c0_145 = arith.constant 0 : index
    %187 = vector.load %arg5[%c2_143, %c0_144, %c0_145] : memref<3x1x64xf32, #tpu.memory_space<vmem>>, vector<1x1x64xf32>
    %188 = vector.shape_cast %187 : vector<1x1x64xf32> to vector<1x64xf32>
    %189 = vector.broadcast %188 : vector<1x64xf32> to vector<16x64xf32>
    %190 = arith.addf %186, %189 : vector<16x64xf32>
    %cst_146 = arith.constant 0.000000e+00 : f32
    %191 = vector.broadcast %cst_146 : f32 to vector<16x64xf32>
    %192 = arith.maximumf %190, %191 : vector<16x64xf32>
    %193 = vector.extract_strided_slice %1 {offsets = [4, 0], sizes = [16, 64], strides = [1, 1]} : vector<24x64xbf16> to vector<16x64xbf16>
    %194 = arith.extf %193 : vector<16x64xbf16> to vector<16x64xf32>
    %195 = arith.addf %192, %194 : vector<16x64xf32>
    %196 = arith.truncf %195 : vector<16x64xf32> to vector<16x64xbf16>
    %c0_147 = arith.constant 0 : index
    %c0_148 = arith.constant 0 : index
    %c0_149 = arith.constant 0 : index
    %197 = vector.load %arg6[%c0_147, %c0_148, %c0_149] : memref<1x16x64xbf16, #tpu.memory_space<vmem>>, vector<1x16x64xbf16>
    %198 = vector.shape_cast %197 : vector<1x16x64xbf16> to vector<16x64xbf16>
    %199 = vector.shape_cast %196 : vector<16x64xbf16> to vector<1x16x64xbf16>
    tpu.vector_store %arg6[%c0_147, %c0_148, %c0_149], %199 {strides = array<i32>} : memref<1x16x64xbf16, #tpu.memory_space<vmem>>, vector<1x16x64xbf16>,
    return
  }
  func.func @transform_0(%arg0: i32) -> (i32, i32, i32) {
    %c0_i32 = arith.constant 0 : i32
    %c0_i32_0 = arith.constant 0 : i32
    %c0_i32_1 = arith.constant 0 : i32
    return %arg0, %c0_i32, %c0_i32_0 : i32, i32, i32
  }
  func.func @transform_1(%arg0: i32) -> (i32, i32, i32) {
    %c0_i32 = arith.constant 0 : i32
    %c0_i32_0 = arith.constant 0 : i32
    %c0_i32_1 = arith.constant 0 : i32
    %c0_i32_2 = arith.constant 0 : i32
    return %c0_i32, %c0_i32_0, %c0_i32_1 : i32, i32, i32
  }
  func.func @transform_2(%arg0: i32) -> (i32, i32, i32) {
    %c0_i32 = arith.constant 0 : i32
    %c0_i32_0 = arith.constant 0 : i32
    %c0_i32_1 = arith.constant 0 : i32
    %c0_i32_2 = arith.constant 0 : i32
    return %c0_i32, %c0_i32_0, %c0_i32_1 : i32, i32, i32
  }
  func.func @transform_3(%arg0: i32) -> (i32, i32, i32, i32) {
    %c0_i32 = arith.constant 0 : i32
    %c0_i32_0 = arith.constant 0 : i32
    %c0_i32_1 = arith.constant 0 : i32
    %c0_i32_2 = arith.constant 0 : i32
    %c0_i32_3 = arith.constant 0 : i32
    return %c0_i32, %c0_i32_0, %c0_i32_1, %c0_i32_2 : i32, i32, i32, i32
  }
  func.func @transform_4(%arg0: i32) -> (i32, i32, i32) {
    %c0_i32 = arith.constant 0 : i32
    %c0_i32_0 = arith.constant 0 : i32
    %c0_i32_1 = arith.constant 0 : i32
    %c0_i32_2 = arith.constant 0 : i32
    return %c0_i32, %c0_i32_0, %c0_i32_1 : i32, i32, i32
  }
  func.func @transform_5(%arg0: i32) -> (i32, i32, i32) {
    %c0_i32 = arith.constant 0 : i32
    %c0_i32_0 = arith.constant 0 : i32
    %c0_i32_1 = arith.constant 0 : i32
    return %arg0, %c0_i32, %c0_i32_0 : i32, i32, i32
  }
}

module attributes {stable_mosaic.version = 11 : i64} {
  func.func @_downsample_kernel(%arg0: i32, %arg1: memref<1x9x128xbf16, #tpu.memory_space<vmem>>, %arg2: memref<128x96xbf16, #tpu.memory_space<vmem>>, %arg3: memref<128x96xbf16, #tpu.memory_space<vmem>>, %arg4: memref<1x96xf32, #tpu.memory_space<vmem>>, %arg5: memref<1x8x96xbf16, #tpu.memory_space<vmem>>) attributes {dimension_semantics = [#tpu.dimension_semantics<parallel>], iteration_bounds = array<i64: 2>, scalar_prefetch = 0 : i64, scratch_operands = 0 : i64, tpu.core_type = #tpu.core_type<tc>, window_params = [{transform_indices = @transform_0, window_bounds = array<i64: 1, 9, 128>}, {pipeline_mode = #tpu.pipeline_mode<synchronous>, transform_indices = @transform_1, window_bounds = array<i64: 128, 96>}, {pipeline_mode = #tpu.pipeline_mode<synchronous>, transform_indices = @transform_2, window_bounds = array<i64: 128, 96>}, {pipeline_mode = #tpu.pipeline_mode<synchronous>, transform_indices = @transform_3, window_bounds = array<i64: 1, 96>}, {transform_indices = @transform_4, window_bounds = array<i64: 1, 8, 96>}]} {
    %c0 = arith.constant 0 : index
    %c0_0 = arith.constant 0 : index
    %c0_1 = arith.constant 0 : index
    %0 = vector.load %arg1[%c0, %c0_0, %c0_1] : memref<1x9x128xbf16, #tpu.memory_space<vmem>>, vector<1x9x128xbf16>
    %1 = vector.shape_cast %0 : vector<1x9x128xbf16> to vector<9x128xbf16>
    %2 = arith.extf %1 : vector<9x128xbf16> to vector<9x128xf32>
    %3 = vector.extract_strided_slice %2 {offsets = [0, 0], sizes = [8, 128], strides = [1, 1]} : vector<9x128xf32> to vector<8x128xf32>
    %4 = arith.truncf %3 : vector<8x128xf32> to vector<8x128xbf16>
    %5 = vector.extract_strided_slice %2 {offsets = [1, 0], sizes = [8, 128], strides = [1, 1]} : vector<9x128xf32> to vector<8x128xf32>
    %6 = arith.truncf %5 : vector<8x128xf32> to vector<8x128xbf16>
    %c0_2 = arith.constant 0 : index
    %c0_3 = arith.constant 0 : index
    %7 = vector.load %arg2[%c0_2, %c0_3] : memref<128x96xbf16, #tpu.memory_space<vmem>>, vector<128x96xbf16>
    %cst = arith.constant dense<0.000000e+00> : vector<8x96xf32>
    %8 = tpu.matmul %4, %7, %cst {dimension_numbers = #tpu.dot_dimension_numbers<[1], [0], [0], [1], [0, 0, 1, 1], [], []>} : vector<8x128xbf16>, vector<128x96xbf16>, vector<8x96xf32> -> vector<8x96xf32>
    %c0_4 = arith.constant 0 : index
    %c0_5 = arith.constant 0 : index
    %9 = vector.load %arg3[%c0_4, %c0_5] : memref<128x96xbf16, #tpu.memory_space<vmem>>, vector<128x96xbf16>
    %cst_6 = arith.constant dense<0.000000e+00> : vector<8x96xf32>
    %10 = tpu.matmul %6, %9, %cst_6 {dimension_numbers = #tpu.dot_dimension_numbers<[1], [0], [0], [1], [0, 0, 1, 1], [], []>} : vector<8x128xbf16>, vector<128x96xbf16>, vector<8x96xf32> -> vector<8x96xf32>
    %11 = arith.addf %8, %10 : vector<8x96xf32>
    %c0_7 = arith.constant 0 : index
    %c0_8 = arith.constant 0 : index
    %12 = vector.load %arg4[%c0_7, %c0_8] : memref<1x96xf32, #tpu.memory_space<vmem>>, vector<1x96xf32>
    %13 = vector.broadcast %12 : vector<1x96xf32> to vector<8x96xf32>
    %14 = arith.addf %11, %13 : vector<8x96xf32>
    %cst_9 = arith.constant 0.000000e+00 : f32
    %15 = vector.broadcast %cst_9 : f32 to vector<8x96xf32>
    %16 = arith.maximumf %14, %15 : vector<8x96xf32>
    %17 = arith.truncf %16 : vector<8x96xf32> to vector<8x96xbf16>
    %c0_10 = arith.constant 0 : index
    %c0_11 = arith.constant 0 : index
    %c0_12 = arith.constant 0 : index
    %18 = vector.load %arg5[%c0_10, %c0_11, %c0_12] : memref<1x8x96xbf16, #tpu.memory_space<vmem>>, vector<1x8x96xbf16>
    %19 = vector.shape_cast %18 : vector<1x8x96xbf16> to vector<8x96xbf16>
    %20 = vector.shape_cast %17 : vector<8x96xbf16> to vector<1x8x96xbf16>
    tpu.vector_store %arg5[%c0_10, %c0_11, %c0_12], %20 {strides = array<i32>} : memref<1x8x96xbf16, #tpu.memory_space<vmem>>, vector<1x8x96xbf16>,
    return
  }
  func.func @transform_0(%arg0: i32) -> (i32, i32, i32) {
    %c0_i32 = arith.constant 0 : i32
    %c0_i32_0 = arith.constant 0 : i32
    %c0_i32_1 = arith.constant 0 : i32
    return %arg0, %c0_i32, %c0_i32_0 : i32, i32, i32
  }
  func.func @transform_1(%arg0: i32) -> (i32, i32) {
    %c0_i32 = arith.constant 0 : i32
    %c0_i32_0 = arith.constant 0 : i32
    %c0_i32_1 = arith.constant 0 : i32
    return %c0_i32, %c0_i32_0 : i32, i32
  }
  func.func @transform_2(%arg0: i32) -> (i32, i32) {
    %c0_i32 = arith.constant 0 : i32
    %c0_i32_0 = arith.constant 0 : i32
    %c0_i32_1 = arith.constant 0 : i32
    return %c0_i32, %c0_i32_0 : i32, i32
  }
  func.func @transform_3(%arg0: i32) -> (i32, i32) {
    %c0_i32 = arith.constant 0 : i32
    %c0_i32_0 = arith.constant 0 : i32
    %c0_i32_1 = arith.constant 0 : i32
    return %c0_i32, %c0_i32_0 : i32, i32
  }
  func.func @transform_4(%arg0: i32) -> (i32, i32, i32) {
    %c0_i32 = arith.constant 0 : i32
    %c0_i32_0 = arith.constant 0 : i32
    %c0_i32_1 = arith.constant 0 : i32
    return %arg0, %c0_i32, %c0_i32_0 : i32, i32, i32
  }
}

module attributes {stable_mosaic.version = 11 : i64} {
  func.func @_stage_kernel(%arg0: i32, %arg1: memref<1x16x96xbf16, #tpu.memory_space<vmem>>, %arg2: memref<3x96x96xbf16, #tpu.memory_space<vmem>>, %arg3: memref<3x96x24xbf16, #tpu.memory_space<vmem>>, %arg4: memref<3x7x24x96xbf16, #tpu.memory_space<vmem>>, %arg5: memref<3x1x96xf32, #tpu.memory_space<vmem>>, %arg6: memref<1x8x96xbf16, #tpu.memory_space<vmem>>, %arg7: memref<16x96xbf16, #tpu.memory_space<vmem>>) attributes {dimension_semantics = [#tpu.dimension_semantics<parallel>], iteration_bounds = array<i64: 2>, scalar_prefetch = 0 : i64, scratch_operands = 1 : i64, tpu.core_type = #tpu.core_type<tc>, window_params = [{transform_indices = @transform_0, window_bounds = array<i64: 1, 16, 96>}, {pipeline_mode = #tpu.pipeline_mode<synchronous>, transform_indices = @transform_1, window_bounds = array<i64: 3, 96, 96>}, {pipeline_mode = #tpu.pipeline_mode<synchronous>, transform_indices = @transform_2, window_bounds = array<i64: 3, 96, 24>}, {pipeline_mode = #tpu.pipeline_mode<synchronous>, transform_indices = @transform_3, window_bounds = array<i64: 3, 7, 24, 96>}, {pipeline_mode = #tpu.pipeline_mode<synchronous>, transform_indices = @transform_4, window_bounds = array<i64: 3, 1, 96>}, {transform_indices = @transform_5, window_bounds = array<i64: 1, 8, 96>}]} {
    %c0 = arith.constant 0 : index
    %c0_0 = arith.constant 0 : index
    %c0_1 = arith.constant 0 : index
    %0 = vector.load %arg1[%c0, %c0_0, %c0_1] : memref<1x16x96xbf16, #tpu.memory_space<vmem>>, vector<1x16x96xbf16>
    %1 = vector.shape_cast %0 : vector<1x16x96xbf16> to vector<16x96xbf16>
    %cst = arith.constant 0.000000e+00 : bf16
    %2 = vector.broadcast %cst : bf16 to vector<16x96xbf16>
    %c0_2 = arith.constant 0 : index
    %c0_3 = arith.constant 0 : index
    %3 = vector.load %arg7[%c0_2, %c0_3] : memref<16x96xbf16, #tpu.memory_space<vmem>>, vector<16x96xbf16>
    tpu.vector_store %arg7[%c0_2, %c0_3], %2 {strides = array<i32>} : memref<16x96xbf16, #tpu.memory_space<vmem>>, vector<16x96xbf16>,
    %4 = arith.extf %1 : vector<16x96xbf16> to vector<16x96xf32>
    %5 = vector.extract_strided_slice %4 {offsets = [3, 0], sizes = [8, 96], strides = [1, 1]} : vector<16x96xf32> to vector<8x96xf32>
    %6 = vector.extract_strided_slice %4 {offsets = [4, 0], sizes = [8, 96], strides = [1, 1]} : vector<16x96xf32> to vector<8x96xf32>
    %7 = arith.maximumf %5, %6 : vector<8x96xf32>
    %8 = vector.extract_strided_slice %4 {offsets = [5, 0], sizes = [8, 96], strides = [1, 1]} : vector<16x96xf32> to vector<8x96xf32>
    %9 = arith.maximumf %7, %8 : vector<8x96xf32>
    %10 = arith.truncf %9 : vector<8x96xf32> to vector<8x96xbf16>
    %c0_4 = arith.constant 0 : index
    %c0_5 = arith.constant 0 : index
    %c0_6 = arith.constant 0 : index
    %11 = vector.load %arg2[%c0_4, %c0_5, %c0_6] : memref<3x96x96xbf16, #tpu.memory_space<vmem>>, vector<1x96x96xbf16>
    %12 = vector.shape_cast %11 : vector<1x96x96xbf16> to vector<96x96xbf16>
    %cst_7 = arith.constant dense<0.000000e+00> : vector<8x96xf32>
    %13 = tpu.matmul %10, %12, %cst_7 {dimension_numbers = #tpu.dot_dimension_numbers<[1], [0], [0], [1], [0, 0, 1, 1], [], []>} : vector<8x96xbf16>, vector<96x96xbf16>, vector<8x96xf32> -> vector<8x96xf32>
    %c0_8 = arith.constant 0 : index
    %c0_9 = arith.constant 0 : index
    %c0_10 = arith.constant 0 : index
    %14 = vector.load %arg3[%c0_8, %c0_9, %c0_10] : memref<3x96x24xbf16, #tpu.memory_space<vmem>>, vector<1x96x24xbf16>
    %15 = vector.shape_cast %14 : vector<1x96x24xbf16> to vector<96x24xbf16>
    %cst_11 = arith.constant dense<0.000000e+00> : vector<16x24xf32>
    %16 = tpu.matmul %1, %15, %cst_11 {dimension_numbers = #tpu.dot_dimension_numbers<[1], [0], [0], [1], [0, 0, 1, 1], [], []>} : vector<16x96xbf16>, vector<96x24xbf16>, vector<16x24xf32> -> vector<16x24xf32>
    %17 = vector.extract_strided_slice %16 {offsets = [1, 0], sizes = [8, 24], strides = [1, 1]} : vector<16x24xf32> to vector<8x24xf32>
    %18 = arith.truncf %17 : vector<8x24xf32> to vector<8x24xbf16>
    %c0_12 = arith.constant 0 : index
    %c0_13 = arith.constant 0 : index
    %c0_14 = arith.constant 0 : index
    %c0_15 = arith.constant 0 : index
    %19 = vector.load %arg4[%c0_12, %c0_13, %c0_14, %c0_15] : memref<3x7x24x96xbf16, #tpu.memory_space<vmem>>, vector<1x1x24x96xbf16>
    %20 = vector.shape_cast %19 : vector<1x1x24x96xbf16> to vector<24x96xbf16>
    %cst_16 = arith.constant dense<0.000000e+00> : vector<8x96xf32>
    %21 = tpu.matmul %18, %20, %cst_16 {dimension_numbers = #tpu.dot_dimension_numbers<[1], [0], [0], [1], [0, 0, 1, 1], [], []>} : vector<8x24xbf16>, vector<24x96xbf16>, vector<8x96xf32> -> vector<8x96xf32>
    %22 = arith.addf %13, %21 : vector<8x96xf32>
    %23 = vector.extract_strided_slice %16 {offsets = [2, 0], sizes = [8, 24], strides = [1, 1]} : vector<16x24xf32> to vector<8x24xf32>
    %24 = arith.truncf %23 : vector<8x24xf32> to vector<8x24xbf16>
    %c0_17 = arith.constant 0 : index
    %c1 = arith.constant 1 : index
    %c0_18 = arith.constant 0 : index
    %c0_19 = arith.constant 0 : index
    %25 = vector.load %arg4[%c0_17, %c1, %c0_18, %c0_19] : memref<3x7x24x96xbf16, #tpu.memory_space<vmem>>, vector<1x1x24x96xbf16>
    %26 = vector.shape_cast %25 : vector<1x1x24x96xbf16> to vector<24x96xbf16>
    %cst_20 = arith.constant dense<0.000000e+00> : vector<8x96xf32>
    %27 = tpu.matmul %24, %26, %cst_20 {dimension_numbers = #tpu.dot_dimension_numbers<[1], [0], [0], [1], [0, 0, 1, 1], [], []>} : vector<8x24xbf16>, vector<24x96xbf16>, vector<8x96xf32> -> vector<8x96xf32>
    %28 = arith.addf %22, %27 : vector<8x96xf32>
    %29 = vector.extract_strided_slice %16 {offsets = [3, 0], sizes = [8, 24], strides = [1, 1]} : vector<16x24xf32> to vector<8x24xf32>
    %30 = arith.truncf %29 : vector<8x24xf32> to vector<8x24xbf16>
    %c0_21 = arith.constant 0 : index
    %c2 = arith.constant 2 : index
    %c0_22 = arith.constant 0 : index
    %c0_23 = arith.constant 0 : index
    %31 = vector.load %arg4[%c0_21, %c2, %c0_22, %c0_23] : memref<3x7x24x96xbf16, #tpu.memory_space<vmem>>, vector<1x1x24x96xbf16>
    %32 = vector.shape_cast %31 : vector<1x1x24x96xbf16> to vector<24x96xbf16>
    %cst_24 = arith.constant dense<0.000000e+00> : vector<8x96xf32>
    %33 = tpu.matmul %30, %32, %cst_24 {dimension_numbers = #tpu.dot_dimension_numbers<[1], [0], [0], [1], [0, 0, 1, 1], [], []>} : vector<8x24xbf16>, vector<24x96xbf16>, vector<8x96xf32> -> vector<8x96xf32>
    %34 = arith.addf %28, %33 : vector<8x96xf32>
    %35 = vector.extract_strided_slice %16 {offsets = [4, 0], sizes = [8, 24], strides = [1, 1]} : vector<16x24xf32> to vector<8x24xf32>
    %36 = arith.truncf %35 : vector<8x24xf32> to vector<8x24xbf16>
    %c0_25 = arith.constant 0 : index
    %c3 = arith.constant 3 : index
    %c0_26 = arith.constant 0 : index
    %c0_27 = arith.constant 0 : index
    %37 = vector.load %arg4[%c0_25, %c3, %c0_26, %c0_27] : memref<3x7x24x96xbf16, #tpu.memory_space<vmem>>, vector<1x1x24x96xbf16>
    %38 = vector.shape_cast %37 : vector<1x1x24x96xbf16> to vector<24x96xbf16>
    %cst_28 = arith.constant dense<0.000000e+00> : vector<8x96xf32>
    %39 = tpu.matmul %36, %38, %cst_28 {dimension_numbers = #tpu.dot_dimension_numbers<[1], [0], [0], [1], [0, 0, 1, 1], [], []>} : vector<8x24xbf16>, vector<24x96xbf16>, vector<8x96xf32> -> vector<8x96xf32>
    %40 = arith.addf %34, %39 : vector<8x96xf32>
    %41 = vector.extract_strided_slice %16 {offsets = [5, 0], sizes = [8, 24], strides = [1, 1]} : vector<16x24xf32> to vector<8x24xf32>
    %42 = arith.truncf %41 : vector<8x24xf32> to vector<8x24xbf16>
    %c0_29 = arith.constant 0 : index
    %c4 = arith.constant 4 : index
    %c0_30 = arith.constant 0 : index
    %c0_31 = arith.constant 0 : index
    %43 = vector.load %arg4[%c0_29, %c4, %c0_30, %c0_31] : memref<3x7x24x96xbf16, #tpu.memory_space<vmem>>, vector<1x1x24x96xbf16>
    %44 = vector.shape_cast %43 : vector<1x1x24x96xbf16> to vector<24x96xbf16>
    %cst_32 = arith.constant dense<0.000000e+00> : vector<8x96xf32>
    %45 = tpu.matmul %42, %44, %cst_32 {dimension_numbers = #tpu.dot_dimension_numbers<[1], [0], [0], [1], [0, 0, 1, 1], [], []>} : vector<8x24xbf16>, vector<24x96xbf16>, vector<8x96xf32> -> vector<8x96xf32>
    %46 = arith.addf %40, %45 : vector<8x96xf32>
    %47 = vector.extract_strided_slice %16 {offsets = [6, 0], sizes = [8, 24], strides = [1, 1]} : vector<16x24xf32> to vector<8x24xf32>
    %48 = arith.truncf %47 : vector<8x24xf32> to vector<8x24xbf16>
    %c0_33 = arith.constant 0 : index
    %c5 = arith.constant 5 : index
    %c0_34 = arith.constant 0 : index
    %c0_35 = arith.constant 0 : index
    %49 = vector.load %arg4[%c0_33, %c5, %c0_34, %c0_35] : memref<3x7x24x96xbf16, #tpu.memory_space<vmem>>, vector<1x1x24x96xbf16>
    %50 = vector.shape_cast %49 : vector<1x1x24x96xbf16> to vector<24x96xbf16>
    %cst_36 = arith.constant dense<0.000000e+00> : vector<8x96xf32>
    %51 = tpu.matmul %48, %50, %cst_36 {dimension_numbers = #tpu.dot_dimension_numbers<[1], [0], [0], [1], [0, 0, 1, 1], [], []>} : vector<8x24xbf16>, vector<24x96xbf16>, vector<8x96xf32> -> vector<8x96xf32>
    %52 = arith.addf %46, %51 : vector<8x96xf32>
    %53 = vector.extract_strided_slice %16 {offsets = [7, 0], sizes = [8, 24], strides = [1, 1]} : vector<16x24xf32> to vector<8x24xf32>
    %54 = arith.truncf %53 : vector<8x24xf32> to vector<8x24xbf16>
    %c0_37 = arith.constant 0 : index
    %c6 = arith.constant 6 : index
    %c0_38 = arith.constant 0 : index
    %c0_39 = arith.constant 0 : index
    %55 = vector.load %arg4[%c0_37, %c6, %c0_38, %c0_39] : memref<3x7x24x96xbf16, #tpu.memory_space<vmem>>, vector<1x1x24x96xbf16>
    %56 = vector.shape_cast %55 : vector<1x1x24x96xbf16> to vector<24x96xbf16>
    %cst_40 = arith.constant dense<0.000000e+00> : vector<8x96xf32>
    %57 = tpu.matmul %54, %56, %cst_40 {dimension_numbers = #tpu.dot_dimension_numbers<[1], [0], [0], [1], [0, 0, 1, 1], [], []>} : vector<8x24xbf16>, vector<24x96xbf16>, vector<8x96xf32> -> vector<8x96xf32>
    %58 = arith.addf %52, %57 : vector<8x96xf32>
    %c0_41 = arith.constant 0 : index
    %c0_42 = arith.constant 0 : index
    %c0_43 = arith.constant 0 : index
    %59 = vector.load %arg5[%c0_41, %c0_42, %c0_43] : memref<3x1x96xf32, #tpu.memory_space<vmem>>, vector<1x1x96xf32>
    %60 = vector.shape_cast %59 : vector<1x1x96xf32> to vector<1x96xf32>
    %61 = vector.broadcast %60 : vector<1x96xf32> to vector<8x96xf32>
    %62 = arith.addf %58, %61 : vector<8x96xf32>
    %cst_44 = arith.constant 0.000000e+00 : f32
    %63 = vector.broadcast %cst_44 : f32 to vector<8x96xf32>
    %64 = arith.maximumf %62, %63 : vector<8x96xf32>
    %65 = arith.truncf %64 : vector<8x96xf32> to vector<8x96xbf16>
    %c4_45 = arith.constant 4 : index
    %c0_46 = arith.constant 0 : index
    %66 = vector.load %arg7[%c4_45, %c0_46] : memref<16x96xbf16, #tpu.memory_space<vmem>>, vector<8x96xbf16>
    tpu.vector_store %arg7[%c4_45, %c0_46], %65 {strides = array<i32>} : memref<16x96xbf16, #tpu.memory_space<vmem>>, vector<8x96xbf16>,
    %c0_47 = arith.constant 0 : index
    %c0_48 = arith.constant 0 : index
    %67 = vector.load %arg7[%c0_47, %c0_48] : memref<16x96xbf16, #tpu.memory_space<vmem>>, vector<16x96xbf16>
    %68 = arith.extf %67 : vector<16x96xbf16> to vector<16x96xf32>
    %69 = vector.extract_strided_slice %68 {offsets = [3, 0], sizes = [8, 96], strides = [1, 1]} : vector<16x96xf32> to vector<8x96xf32>
    %70 = vector.extract_strided_slice %68 {offsets = [4, 0], sizes = [8, 96], strides = [1, 1]} : vector<16x96xf32> to vector<8x96xf32>
    %71 = arith.maximumf %69, %70 : vector<8x96xf32>
    %72 = vector.extract_strided_slice %68 {offsets = [5, 0], sizes = [8, 96], strides = [1, 1]} : vector<16x96xf32> to vector<8x96xf32>
    %73 = arith.maximumf %71, %72 : vector<8x96xf32>
    %74 = arith.truncf %73 : vector<8x96xf32> to vector<8x96xbf16>
    %c1_49 = arith.constant 1 : index
    %c0_50 = arith.constant 0 : index
    %c0_51 = arith.constant 0 : index
    %75 = vector.load %arg2[%c1_49, %c0_50, %c0_51] : memref<3x96x96xbf16, #tpu.memory_space<vmem>>, vector<1x96x96xbf16>
    %76 = vector.shape_cast %75 : vector<1x96x96xbf16> to vector<96x96xbf16>
    %cst_52 = arith.constant dense<0.000000e+00> : vector<8x96xf32>
    %77 = tpu.matmul %74, %76, %cst_52 {dimension_numbers = #tpu.dot_dimension_numbers<[1], [0], [0], [1], [0, 0, 1, 1], [], []>} : vector<8x96xbf16>, vector<96x96xbf16>, vector<8x96xf32> -> vector<8x96xf32>
    %c1_53 = arith.constant 1 : index
    %c0_54 = arith.constant 0 : index
    %c0_55 = arith.constant 0 : index
    %78 = vector.load %arg3[%c1_53, %c0_54, %c0_55] : memref<3x96x24xbf16, #tpu.memory_space<vmem>>, vector<1x96x24xbf16>
    %79 = vector.shape_cast %78 : vector<1x96x24xbf16> to vector<96x24xbf16>
    %cst_56 = arith.constant dense<0.000000e+00> : vector<16x24xf32>
    %80 = tpu.matmul %67, %79, %cst_56 {dimension_numbers = #tpu.dot_dimension_numbers<[1], [0], [0], [1], [0, 0, 1, 1], [], []>} : vector<16x96xbf16>, vector<96x24xbf16>, vector<16x24xf32> -> vector<16x24xf32>
    %81 = vector.extract_strided_slice %80 {offsets = [1, 0], sizes = [8, 24], strides = [1, 1]} : vector<16x24xf32> to vector<8x24xf32>
    %82 = arith.truncf %81 : vector<8x24xf32> to vector<8x24xbf16>
    %c1_57 = arith.constant 1 : index
    %c0_58 = arith.constant 0 : index
    %c0_59 = arith.constant 0 : index
    %c0_60 = arith.constant 0 : index
    %83 = vector.load %arg4[%c1_57, %c0_58, %c0_59, %c0_60] : memref<3x7x24x96xbf16, #tpu.memory_space<vmem>>, vector<1x1x24x96xbf16>
    %84 = vector.shape_cast %83 : vector<1x1x24x96xbf16> to vector<24x96xbf16>
    %cst_61 = arith.constant dense<0.000000e+00> : vector<8x96xf32>
    %85 = tpu.matmul %82, %84, %cst_61 {dimension_numbers = #tpu.dot_dimension_numbers<[1], [0], [0], [1], [0, 0, 1, 1], [], []>} : vector<8x24xbf16>, vector<24x96xbf16>, vector<8x96xf32> -> vector<8x96xf32>
    %86 = arith.addf %77, %85 : vector<8x96xf32>
    %87 = vector.extract_strided_slice %80 {offsets = [2, 0], sizes = [8, 24], strides = [1, 1]} : vector<16x24xf32> to vector<8x24xf32>
    %88 = arith.truncf %87 : vector<8x24xf32> to vector<8x24xbf16>
    %c1_62 = arith.constant 1 : index
    %c1_63 = arith.constant 1 : index
    %c0_64 = arith.constant 0 : index
    %c0_65 = arith.constant 0 : index
    %89 = vector.load %arg4[%c1_62, %c1_63, %c0_64, %c0_65] : memref<3x7x24x96xbf16, #tpu.memory_space<vmem>>, vector<1x1x24x96xbf16>
    %90 = vector.shape_cast %89 : vector<1x1x24x96xbf16> to vector<24x96xbf16>
    %cst_66 = arith.constant dense<0.000000e+00> : vector<8x96xf32>
    %91 = tpu.matmul %88, %90, %cst_66 {dimension_numbers = #tpu.dot_dimension_numbers<[1], [0], [0], [1], [0, 0, 1, 1], [], []>} : vector<8x24xbf16>, vector<24x96xbf16>, vector<8x96xf32> -> vector<8x96xf32>
    %92 = arith.addf %86, %91 : vector<8x96xf32>
    %93 = vector.extract_strided_slice %80 {offsets = [3, 0], sizes = [8, 24], strides = [1, 1]} : vector<16x24xf32> to vector<8x24xf32>
    %94 = arith.truncf %93 : vector<8x24xf32> to vector<8x24xbf16>
    %c1_67 = arith.constant 1 : index
    %c2_68 = arith.constant 2 : index
    %c0_69 = arith.constant 0 : index
    %c0_70 = arith.constant 0 : index
    %95 = vector.load %arg4[%c1_67, %c2_68, %c0_69, %c0_70] : memref<3x7x24x96xbf16, #tpu.memory_space<vmem>>, vector<1x1x24x96xbf16>
    %96 = vector.shape_cast %95 : vector<1x1x24x96xbf16> to vector<24x96xbf16>
    %cst_71 = arith.constant dense<0.000000e+00> : vector<8x96xf32>
    %97 = tpu.matmul %94, %96, %cst_71 {dimension_numbers = #tpu.dot_dimension_numbers<[1], [0], [0], [1], [0, 0, 1, 1], [], []>} : vector<8x24xbf16>, vector<24x96xbf16>, vector<8x96xf32> -> vector<8x96xf32>
    %98 = arith.addf %92, %97 : vector<8x96xf32>
    %99 = vector.extract_strided_slice %80 {offsets = [4, 0], sizes = [8, 24], strides = [1, 1]} : vector<16x24xf32> to vector<8x24xf32>
    %100 = arith.truncf %99 : vector<8x24xf32> to vector<8x24xbf16>
    %c1_72 = arith.constant 1 : index
    %c3_73 = arith.constant 3 : index
    %c0_74 = arith.constant 0 : index
    %c0_75 = arith.constant 0 : index
    %101 = vector.load %arg4[%c1_72, %c3_73, %c0_74, %c0_75] : memref<3x7x24x96xbf16, #tpu.memory_space<vmem>>, vector<1x1x24x96xbf16>
    %102 = vector.shape_cast %101 : vector<1x1x24x96xbf16> to vector<24x96xbf16>
    %cst_76 = arith.constant dense<0.000000e+00> : vector<8x96xf32>
    %103 = tpu.matmul %100, %102, %cst_76 {dimension_numbers = #tpu.dot_dimension_numbers<[1], [0], [0], [1], [0, 0, 1, 1], [], []>} : vector<8x24xbf16>, vector<24x96xbf16>, vector<8x96xf32> -> vector<8x96xf32>
    %104 = arith.addf %98, %103 : vector<8x96xf32>
    %105 = vector.extract_strided_slice %80 {offsets = [5, 0], sizes = [8, 24], strides = [1, 1]} : vector<16x24xf32> to vector<8x24xf32>
    %106 = arith.truncf %105 : vector<8x24xf32> to vector<8x24xbf16>
    %c1_77 = arith.constant 1 : index
    %c4_78 = arith.constant 4 : index
    %c0_79 = arith.constant 0 : index
    %c0_80 = arith.constant 0 : index
    %107 = vector.load %arg4[%c1_77, %c4_78, %c0_79, %c0_80] : memref<3x7x24x96xbf16, #tpu.memory_space<vmem>>, vector<1x1x24x96xbf16>
    %108 = vector.shape_cast %107 : vector<1x1x24x96xbf16> to vector<24x96xbf16>
    %cst_81 = arith.constant dense<0.000000e+00> : vector<8x96xf32>
    %109 = tpu.matmul %106, %108, %cst_81 {dimension_numbers = #tpu.dot_dimension_numbers<[1], [0], [0], [1], [0, 0, 1, 1], [], []>} : vector<8x24xbf16>, vector<24x96xbf16>, vector<8x96xf32> -> vector<8x96xf32>
    %110 = arith.addf %104, %109 : vector<8x96xf32>
    %111 = vector.extract_strided_slice %80 {offsets = [6, 0], sizes = [8, 24], strides = [1, 1]} : vector<16x24xf32> to vector<8x24xf32>
    %112 = arith.truncf %111 : vector<8x24xf32> to vector<8x24xbf16>
    %c1_82 = arith.constant 1 : index
    %c5_83 = arith.constant 5 : index
    %c0_84 = arith.constant 0 : index
    %c0_85 = arith.constant 0 : index
    %113 = vector.load %arg4[%c1_82, %c5_83, %c0_84, %c0_85] : memref<3x7x24x96xbf16, #tpu.memory_space<vmem>>, vector<1x1x24x96xbf16>
    %114 = vector.shape_cast %113 : vector<1x1x24x96xbf16> to vector<24x96xbf16>
    %cst_86 = arith.constant dense<0.000000e+00> : vector<8x96xf32>
    %115 = tpu.matmul %112, %114, %cst_86 {dimension_numbers = #tpu.dot_dimension_numbers<[1], [0], [0], [1], [0, 0, 1, 1], [], []>} : vector<8x24xbf16>, vector<24x96xbf16>, vector<8x96xf32> -> vector<8x96xf32>
    %116 = arith.addf %110, %115 : vector<8x96xf32>
    %117 = vector.extract_strided_slice %80 {offsets = [7, 0], sizes = [8, 24], strides = [1, 1]} : vector<16x24xf32> to vector<8x24xf32>
    %118 = arith.truncf %117 : vector<8x24xf32> to vector<8x24xbf16>
    %c1_87 = arith.constant 1 : index
    %c6_88 = arith.constant 6 : index
    %c0_89 = arith.constant 0 : index
    %c0_90 = arith.constant 0 : index
    %119 = vector.load %arg4[%c1_87, %c6_88, %c0_89, %c0_90] : memref<3x7x24x96xbf16, #tpu.memory_space<vmem>>, vector<1x1x24x96xbf16>
    %120 = vector.shape_cast %119 : vector<1x1x24x96xbf16> to vector<24x96xbf16>
    %cst_91 = arith.constant dense<0.000000e+00> : vector<8x96xf32>
    %121 = tpu.matmul %118, %120, %cst_91 {dimension_numbers = #tpu.dot_dimension_numbers<[1], [0], [0], [1], [0, 0, 1, 1], [], []>} : vector<8x24xbf16>, vector<24x96xbf16>, vector<8x96xf32> -> vector<8x96xf32>
    %122 = arith.addf %116, %121 : vector<8x96xf32>
    %c1_92 = arith.constant 1 : index
    %c0_93 = arith.constant 0 : index
    %c0_94 = arith.constant 0 : index
    %123 = vector.load %arg5[%c1_92, %c0_93, %c0_94] : memref<3x1x96xf32, #tpu.memory_space<vmem>>, vector<1x1x96xf32>
    %124 = vector.shape_cast %123 : vector<1x1x96xf32> to vector<1x96xf32>
    %125 = vector.broadcast %124 : vector<1x96xf32> to vector<8x96xf32>
    %126 = arith.addf %122, %125 : vector<8x96xf32>
    %cst_95 = arith.constant 0.000000e+00 : f32
    %127 = vector.broadcast %cst_95 : f32 to vector<8x96xf32>
    %128 = arith.maximumf %126, %127 : vector<8x96xf32>
    %129 = arith.truncf %128 : vector<8x96xf32> to vector<8x96xbf16>
    %c4_96 = arith.constant 4 : index
    %c0_97 = arith.constant 0 : index
    %130 = vector.load %arg7[%c4_96, %c0_97] : memref<16x96xbf16, #tpu.memory_space<vmem>>, vector<8x96xbf16>
    tpu.vector_store %arg7[%c4_96, %c0_97], %129 {strides = array<i32>} : memref<16x96xbf16, #tpu.memory_space<vmem>>, vector<8x96xbf16>,
    %c0_98 = arith.constant 0 : index
    %c0_99 = arith.constant 0 : index
    %131 = vector.load %arg7[%c0_98, %c0_99] : memref<16x96xbf16, #tpu.memory_space<vmem>>, vector<16x96xbf16>
    %132 = arith.extf %131 : vector<16x96xbf16> to vector<16x96xf32>
    %133 = vector.extract_strided_slice %132 {offsets = [3, 0], sizes = [8, 96], strides = [1, 1]} : vector<16x96xf32> to vector<8x96xf32>
    %134 = vector.extract_strided_slice %132 {offsets = [4, 0], sizes = [8, 96], strides = [1, 1]} : vector<16x96xf32> to vector<8x96xf32>
    %135 = arith.maximumf %133, %134 : vector<8x96xf32>
    %136 = vector.extract_strided_slice %132 {offsets = [5, 0], sizes = [8, 96], strides = [1, 1]} : vector<16x96xf32> to vector<8x96xf32>
    %137 = arith.maximumf %135, %136 : vector<8x96xf32>
    %138 = arith.truncf %137 : vector<8x96xf32> to vector<8x96xbf16>
    %c2_100 = arith.constant 2 : index
    %c0_101 = arith.constant 0 : index
    %c0_102 = arith.constant 0 : index
    %139 = vector.load %arg2[%c2_100, %c0_101, %c0_102] : memref<3x96x96xbf16, #tpu.memory_space<vmem>>, vector<1x96x96xbf16>
    %140 = vector.shape_cast %139 : vector<1x96x96xbf16> to vector<96x96xbf16>
    %cst_103 = arith.constant dense<0.000000e+00> : vector<8x96xf32>
    %141 = tpu.matmul %138, %140, %cst_103 {dimension_numbers = #tpu.dot_dimension_numbers<[1], [0], [0], [1], [0, 0, 1, 1], [], []>} : vector<8x96xbf16>, vector<96x96xbf16>, vector<8x96xf32> -> vector<8x96xf32>
    %c2_104 = arith.constant 2 : index
    %c0_105 = arith.constant 0 : index
    %c0_106 = arith.constant 0 : index
    %142 = vector.load %arg3[%c2_104, %c0_105, %c0_106] : memref<3x96x24xbf16, #tpu.memory_space<vmem>>, vector<1x96x24xbf16>
    %143 = vector.shape_cast %142 : vector<1x96x24xbf16> to vector<96x24xbf16>
    %cst_107 = arith.constant dense<0.000000e+00> : vector<16x24xf32>
    %144 = tpu.matmul %131, %143, %cst_107 {dimension_numbers = #tpu.dot_dimension_numbers<[1], [0], [0], [1], [0, 0, 1, 1], [], []>} : vector<16x96xbf16>, vector<96x24xbf16>, vector<16x24xf32> -> vector<16x24xf32>
    %145 = vector.extract_strided_slice %144 {offsets = [1, 0], sizes = [8, 24], strides = [1, 1]} : vector<16x24xf32> to vector<8x24xf32>
    %146 = arith.truncf %145 : vector<8x24xf32> to vector<8x24xbf16>
    %c2_108 = arith.constant 2 : index
    %c0_109 = arith.constant 0 : index
    %c0_110 = arith.constant 0 : index
    %c0_111 = arith.constant 0 : index
    %147 = vector.load %arg4[%c2_108, %c0_109, %c0_110, %c0_111] : memref<3x7x24x96xbf16, #tpu.memory_space<vmem>>, vector<1x1x24x96xbf16>
    %148 = vector.shape_cast %147 : vector<1x1x24x96xbf16> to vector<24x96xbf16>
    %cst_112 = arith.constant dense<0.000000e+00> : vector<8x96xf32>
    %149 = tpu.matmul %146, %148, %cst_112 {dimension_numbers = #tpu.dot_dimension_numbers<[1], [0], [0], [1], [0, 0, 1, 1], [], []>} : vector<8x24xbf16>, vector<24x96xbf16>, vector<8x96xf32> -> vector<8x96xf32>
    %150 = arith.addf %141, %149 : vector<8x96xf32>
    %151 = vector.extract_strided_slice %144 {offsets = [2, 0], sizes = [8, 24], strides = [1, 1]} : vector<16x24xf32> to vector<8x24xf32>
    %152 = arith.truncf %151 : vector<8x24xf32> to vector<8x24xbf16>
    %c2_113 = arith.constant 2 : index
    %c1_114 = arith.constant 1 : index
    %c0_115 = arith.constant 0 : index
    %c0_116 = arith.constant 0 : index
    %153 = vector.load %arg4[%c2_113, %c1_114, %c0_115, %c0_116] : memref<3x7x24x96xbf16, #tpu.memory_space<vmem>>, vector<1x1x24x96xbf16>
    %154 = vector.shape_cast %153 : vector<1x1x24x96xbf16> to vector<24x96xbf16>
    %cst_117 = arith.constant dense<0.000000e+00> : vector<8x96xf32>
    %155 = tpu.matmul %152, %154, %cst_117 {dimension_numbers = #tpu.dot_dimension_numbers<[1], [0], [0], [1], [0, 0, 1, 1], [], []>} : vector<8x24xbf16>, vector<24x96xbf16>, vector<8x96xf32> -> vector<8x96xf32>
    %156 = arith.addf %150, %155 : vector<8x96xf32>
    %157 = vector.extract_strided_slice %144 {offsets = [3, 0], sizes = [8, 24], strides = [1, 1]} : vector<16x24xf32> to vector<8x24xf32>
    %158 = arith.truncf %157 : vector<8x24xf32> to vector<8x24xbf16>
    %c2_118 = arith.constant 2 : index
    %c2_119 = arith.constant 2 : index
    %c0_120 = arith.constant 0 : index
    %c0_121 = arith.constant 0 : index
    %159 = vector.load %arg4[%c2_118, %c2_119, %c0_120, %c0_121] : memref<3x7x24x96xbf16, #tpu.memory_space<vmem>>, vector<1x1x24x96xbf16>
    %160 = vector.shape_cast %159 : vector<1x1x24x96xbf16> to vector<24x96xbf16>
    %cst_122 = arith.constant dense<0.000000e+00> : vector<8x96xf32>
    %161 = tpu.matmul %158, %160, %cst_122 {dimension_numbers = #tpu.dot_dimension_numbers<[1], [0], [0], [1], [0, 0, 1, 1], [], []>} : vector<8x24xbf16>, vector<24x96xbf16>, vector<8x96xf32> -> vector<8x96xf32>
    %162 = arith.addf %156, %161 : vector<8x96xf32>
    %163 = vector.extract_strided_slice %144 {offsets = [4, 0], sizes = [8, 24], strides = [1, 1]} : vector<16x24xf32> to vector<8x24xf32>
    %164 = arith.truncf %163 : vector<8x24xf32> to vector<8x24xbf16>
    %c2_123 = arith.constant 2 : index
    %c3_124 = arith.constant 3 : index
    %c0_125 = arith.constant 0 : index
    %c0_126 = arith.constant 0 : index
    %165 = vector.load %arg4[%c2_123, %c3_124, %c0_125, %c0_126] : memref<3x7x24x96xbf16, #tpu.memory_space<vmem>>, vector<1x1x24x96xbf16>
    %166 = vector.shape_cast %165 : vector<1x1x24x96xbf16> to vector<24x96xbf16>
    %cst_127 = arith.constant dense<0.000000e+00> : vector<8x96xf32>
    %167 = tpu.matmul %164, %166, %cst_127 {dimension_numbers = #tpu.dot_dimension_numbers<[1], [0], [0], [1], [0, 0, 1, 1], [], []>} : vector<8x24xbf16>, vector<24x96xbf16>, vector<8x96xf32> -> vector<8x96xf32>
    %168 = arith.addf %162, %167 : vector<8x96xf32>
    %169 = vector.extract_strided_slice %144 {offsets = [5, 0], sizes = [8, 24], strides = [1, 1]} : vector<16x24xf32> to vector<8x24xf32>
    %170 = arith.truncf %169 : vector<8x24xf32> to vector<8x24xbf16>
    %c2_128 = arith.constant 2 : index
    %c4_129 = arith.constant 4 : index
    %c0_130 = arith.constant 0 : index
    %c0_131 = arith.constant 0 : index
    %171 = vector.load %arg4[%c2_128, %c4_129, %c0_130, %c0_131] : memref<3x7x24x96xbf16, #tpu.memory_space<vmem>>, vector<1x1x24x96xbf16>
    %172 = vector.shape_cast %171 : vector<1x1x24x96xbf16> to vector<24x96xbf16>
    %cst_132 = arith.constant dense<0.000000e+00> : vector<8x96xf32>
    %173 = tpu.matmul %170, %172, %cst_132 {dimension_numbers = #tpu.dot_dimension_numbers<[1], [0], [0], [1], [0, 0, 1, 1], [], []>} : vector<8x24xbf16>, vector<24x96xbf16>, vector<8x96xf32> -> vector<8x96xf32>
    %174 = arith.addf %168, %173 : vector<8x96xf32>
    %175 = vector.extract_strided_slice %144 {offsets = [6, 0], sizes = [8, 24], strides = [1, 1]} : vector<16x24xf32> to vector<8x24xf32>
    %176 = arith.truncf %175 : vector<8x24xf32> to vector<8x24xbf16>
    %c2_133 = arith.constant 2 : index
    %c5_134 = arith.constant 5 : index
    %c0_135 = arith.constant 0 : index
    %c0_136 = arith.constant 0 : index
    %177 = vector.load %arg4[%c2_133, %c5_134, %c0_135, %c0_136] : memref<3x7x24x96xbf16, #tpu.memory_space<vmem>>, vector<1x1x24x96xbf16>
    %178 = vector.shape_cast %177 : vector<1x1x24x96xbf16> to vector<24x96xbf16>
    %cst_137 = arith.constant dense<0.000000e+00> : vector<8x96xf32>
    %179 = tpu.matmul %176, %178, %cst_137 {dimension_numbers = #tpu.dot_dimension_numbers<[1], [0], [0], [1], [0, 0, 1, 1], [], []>} : vector<8x24xbf16>, vector<24x96xbf16>, vector<8x96xf32> -> vector<8x96xf32>
    %180 = arith.addf %174, %179 : vector<8x96xf32>
    %181 = vector.extract_strided_slice %144 {offsets = [7, 0], sizes = [8, 24], strides = [1, 1]} : vector<16x24xf32> to vector<8x24xf32>
    %182 = arith.truncf %181 : vector<8x24xf32> to vector<8x24xbf16>
    %c2_138 = arith.constant 2 : index
    %c6_139 = arith.constant 6 : index
    %c0_140 = arith.constant 0 : index
    %c0_141 = arith.constant 0 : index
    %183 = vector.load %arg4[%c2_138, %c6_139, %c0_140, %c0_141] : memref<3x7x24x96xbf16, #tpu.memory_space<vmem>>, vector<1x1x24x96xbf16>
    %184 = vector.shape_cast %183 : vector<1x1x24x96xbf16> to vector<24x96xbf16>
    %cst_142 = arith.constant dense<0.000000e+00> : vector<8x96xf32>
    %185 = tpu.matmul %182, %184, %cst_142 {dimension_numbers = #tpu.dot_dimension_numbers<[1], [0], [0], [1], [0, 0, 1, 1], [], []>} : vector<8x24xbf16>, vector<24x96xbf16>, vector<8x96xf32> -> vector<8x96xf32>
    %186 = arith.addf %180, %185 : vector<8x96xf32>
    %c2_143 = arith.constant 2 : index
    %c0_144 = arith.constant 0 : index
    %c0_145 = arith.constant 0 : index
    %187 = vector.load %arg5[%c2_143, %c0_144, %c0_145] : memref<3x1x96xf32, #tpu.memory_space<vmem>>, vector<1x1x96xf32>
    %188 = vector.shape_cast %187 : vector<1x1x96xf32> to vector<1x96xf32>
    %189 = vector.broadcast %188 : vector<1x96xf32> to vector<8x96xf32>
    %190 = arith.addf %186, %189 : vector<8x96xf32>
    %cst_146 = arith.constant 0.000000e+00 : f32
    %191 = vector.broadcast %cst_146 : f32 to vector<8x96xf32>
    %192 = arith.maximumf %190, %191 : vector<8x96xf32>
    %193 = vector.extract_strided_slice %1 {offsets = [4, 0], sizes = [8, 96], strides = [1, 1]} : vector<16x96xbf16> to vector<8x96xbf16>
    %194 = arith.extf %193 : vector<8x96xbf16> to vector<8x96xf32>
    %195 = arith.addf %192, %194 : vector<8x96xf32>
    %196 = arith.truncf %195 : vector<8x96xf32> to vector<8x96xbf16>
    %c0_147 = arith.constant 0 : index
    %c0_148 = arith.constant 0 : index
    %c0_149 = arith.constant 0 : index
    %197 = vector.load %arg6[%c0_147, %c0_148, %c0_149] : memref<1x8x96xbf16, #tpu.memory_space<vmem>>, vector<1x8x96xbf16>
    %198 = vector.shape_cast %197 : vector<1x8x96xbf16> to vector<8x96xbf16>
    %199 = vector.shape_cast %196 : vector<8x96xbf16> to vector<1x8x96xbf16>
    tpu.vector_store %arg6[%c0_147, %c0_148, %c0_149], %199 {strides = array<i32>} : memref<1x8x96xbf16, #tpu.memory_space<vmem>>, vector<1x8x96xbf16>,
    return
  }
  func.func @transform_0(%arg0: i32) -> (i32, i32, i32) {
    %c0_i32 = arith.constant 0 : i32
    %c0_i32_0 = arith.constant 0 : i32
    %c0_i32_1 = arith.constant 0 : i32
    return %arg0, %c0_i32, %c0_i32_0 : i32, i32, i32
  }
  func.func @transform_1(%arg0: i32) -> (i32, i32, i32) {
    %c0_i32 = arith.constant 0 : i32
    %c0_i32_0 = arith.constant 0 : i32
    %c0_i32_1 = arith.constant 0 : i32
    %c0_i32_2 = arith.constant 0 : i32
    return %c0_i32, %c0_i32_0, %c0_i32_1 : i32, i32, i32
  }
  func.func @transform_2(%arg0: i32) -> (i32, i32, i32) {
    %c0_i32 = arith.constant 0 : i32
    %c0_i32_0 = arith.constant 0 : i32
    %c0_i32_1 = arith.constant 0 : i32
    %c0_i32_2 = arith.constant 0 : i32
    return %c0_i32, %c0_i32_0, %c0_i32_1 : i32, i32, i32
  }
  func.func @transform_3(%arg0: i32) -> (i32, i32, i32, i32) {
    %c0_i32 = arith.constant 0 : i32
    %c0_i32_0 = arith.constant 0 : i32
    %c0_i32_1 = arith.constant 0 : i32
    %c0_i32_2 = arith.constant 0 : i32
    %c0_i32_3 = arith.constant 0 : i32
    return %c0_i32, %c0_i32_0, %c0_i32_1, %c0_i32_2 : i32, i32, i32, i32
  }
  func.func @transform_4(%arg0: i32) -> (i32, i32, i32) {
    %c0_i32 = arith.constant 0 : i32
    %c0_i32_0 = arith.constant 0 : i32
    %c0_i32_1 = arith.constant 0 : i32
    %c0_i32_2 = arith.constant 0 : i32
    return %c0_i32, %c0_i32_0, %c0_i32_1 : i32, i32, i32
  }
  func.func @transform_5(%arg0: i32) -> (i32, i32, i32) {
    %c0_i32 = arith.constant 0 : i32
    %c0_i32_0 = arith.constant 0 : i32
    %c0_i32_1 = arith.constant 0 : i32
    return %arg0, %c0_i32, %c0_i32_0 : i32, i32, i32
  }
}

module attributes {stable_mosaic.version = 11 : i64} {
  func.func @_downsample_kernel(%arg0: i32, %arg1: memref<1x5x192xbf16, #tpu.memory_space<vmem>>, %arg2: memref<192x128xbf16, #tpu.memory_space<vmem>>, %arg3: memref<192x128xbf16, #tpu.memory_space<vmem>>, %arg4: memref<1x128xf32, #tpu.memory_space<vmem>>, %arg5: memref<1x4x128xbf16, #tpu.memory_space<vmem>>) attributes {dimension_semantics = [#tpu.dimension_semantics<parallel>], iteration_bounds = array<i64: 2>, scalar_prefetch = 0 : i64, scratch_operands = 0 : i64, tpu.core_type = #tpu.core_type<tc>, window_params = [{transform_indices = @transform_0, window_bounds = array<i64: 1, 5, 192>}, {pipeline_mode = #tpu.pipeline_mode<synchronous>, transform_indices = @transform_1, window_bounds = array<i64: 192, 128>}, {pipeline_mode = #tpu.pipeline_mode<synchronous>, transform_indices = @transform_2, window_bounds = array<i64: 192, 128>}, {pipeline_mode = #tpu.pipeline_mode<synchronous>, transform_indices = @transform_3, window_bounds = array<i64: 1, 128>}, {transform_indices = @transform_4, window_bounds = array<i64: 1, 4, 128>}]} {
    %c0 = arith.constant 0 : index
    %c0_0 = arith.constant 0 : index
    %c0_1 = arith.constant 0 : index
    %0 = vector.load %arg1[%c0, %c0_0, %c0_1] : memref<1x5x192xbf16, #tpu.memory_space<vmem>>, vector<1x5x192xbf16>
    %1 = vector.shape_cast %0 : vector<1x5x192xbf16> to vector<5x192xbf16>
    %2 = arith.extf %1 : vector<5x192xbf16> to vector<5x192xf32>
    %3 = vector.extract_strided_slice %2 {offsets = [0, 0], sizes = [4, 192], strides = [1, 1]} : vector<5x192xf32> to vector<4x192xf32>
    %4 = arith.truncf %3 : vector<4x192xf32> to vector<4x192xbf16>
    %5 = vector.extract_strided_slice %2 {offsets = [1, 0], sizes = [4, 192], strides = [1, 1]} : vector<5x192xf32> to vector<4x192xf32>
    %6 = arith.truncf %5 : vector<4x192xf32> to vector<4x192xbf16>
    %c0_2 = arith.constant 0 : index
    %c0_3 = arith.constant 0 : index
    %7 = vector.load %arg2[%c0_2, %c0_3] : memref<192x128xbf16, #tpu.memory_space<vmem>>, vector<192x128xbf16>
    %cst = arith.constant dense<0.000000e+00> : vector<4x128xf32>
    %8 = tpu.matmul %4, %7, %cst {dimension_numbers = #tpu.dot_dimension_numbers<[1], [0], [0], [1], [0, 0, 1, 1], [], []>} : vector<4x192xbf16>, vector<192x128xbf16>, vector<4x128xf32> -> vector<4x128xf32>
    %c0_4 = arith.constant 0 : index
    %c0_5 = arith.constant 0 : index
    %9 = vector.load %arg3[%c0_4, %c0_5] : memref<192x128xbf16, #tpu.memory_space<vmem>>, vector<192x128xbf16>
    %cst_6 = arith.constant dense<0.000000e+00> : vector<4x128xf32>
    %10 = tpu.matmul %6, %9, %cst_6 {dimension_numbers = #tpu.dot_dimension_numbers<[1], [0], [0], [1], [0, 0, 1, 1], [], []>} : vector<4x192xbf16>, vector<192x128xbf16>, vector<4x128xf32> -> vector<4x128xf32>
    %11 = arith.addf %8, %10 : vector<4x128xf32>
    %c0_7 = arith.constant 0 : index
    %c0_8 = arith.constant 0 : index
    %12 = vector.load %arg4[%c0_7, %c0_8] : memref<1x128xf32, #tpu.memory_space<vmem>>, vector<1x128xf32>
    %13 = vector.broadcast %12 : vector<1x128xf32> to vector<4x128xf32>
    %14 = arith.addf %11, %13 : vector<4x128xf32>
    %cst_9 = arith.constant 0.000000e+00 : f32
    %15 = vector.broadcast %cst_9 : f32 to vector<4x128xf32>
    %16 = arith.maximumf %14, %15 : vector<4x128xf32>
    %17 = arith.truncf %16 : vector<4x128xf32> to vector<4x128xbf16>
    %c0_10 = arith.constant 0 : index
    %c0_11 = arith.constant 0 : index
    %c0_12 = arith.constant 0 : index
    %18 = vector.load %arg5[%c0_10, %c0_11, %c0_12] : memref<1x4x128xbf16, #tpu.memory_space<vmem>>, vector<1x4x128xbf16>
    %19 = vector.shape_cast %18 : vector<1x4x128xbf16> to vector<4x128xbf16>
    %20 = vector.shape_cast %17 : vector<4x128xbf16> to vector<1x4x128xbf16>
    tpu.vector_store %arg5[%c0_10, %c0_11, %c0_12], %20 {strides = array<i32>} : memref<1x4x128xbf16, #tpu.memory_space<vmem>>, vector<1x4x128xbf16>,
    return
  }
  func.func @transform_0(%arg0: i32) -> (i32, i32, i32) {
    %c0_i32 = arith.constant 0 : i32
    %c0_i32_0 = arith.constant 0 : i32
    %c0_i32_1 = arith.constant 0 : i32
    return %arg0, %c0_i32, %c0_i32_0 : i32, i32, i32
  }
  func.func @transform_1(%arg0: i32) -> (i32, i32) {
    %c0_i32 = arith.constant 0 : i32
    %c0_i32_0 = arith.constant 0 : i32
    %c0_i32_1 = arith.constant 0 : i32
    return %c0_i32, %c0_i32_0 : i32, i32
  }
  func.func @transform_2(%arg0: i32) -> (i32, i32) {
    %c0_i32 = arith.constant 0 : i32
    %c0_i32_0 = arith.constant 0 : i32
    %c0_i32_1 = arith.constant 0 : i32
    return %c0_i32, %c0_i32_0 : i32, i32
  }
  func.func @transform_3(%arg0: i32) -> (i32, i32) {
    %c0_i32 = arith.constant 0 : i32
    %c0_i32_0 = arith.constant 0 : i32
    %c0_i32_1 = arith.constant 0 : i32
    return %c0_i32, %c0_i32_0 : i32, i32
  }
  func.func @transform_4(%arg0: i32) -> (i32, i32, i32) {
    %c0_i32 = arith.constant 0 : i32
    %c0_i32_0 = arith.constant 0 : i32
    %c0_i32_1 = arith.constant 0 : i32
    return %arg0, %c0_i32, %c0_i32_0 : i32, i32, i32
  }
}

module attributes {stable_mosaic.version = 11 : i64} {
  func.func @_head_kernel(%arg0: memref<2x4x128xbf16, #tpu.memory_space<vmem>>, %arg1: memref<128x4xf32, #tpu.memory_space<vmem>>, %arg2: memref<1x4xf32, #tpu.memory_space<vmem>>, %arg3: memref<2x4xf32, #tpu.memory_space<vmem>>) attributes {dimension_semantics = [], scalar_prefetch = 0 : i64, scratch_operands = 0 : i64, tpu.core_type = #tpu.core_type<tc>} {
    %c0 = arith.constant 0 : index
    %c0_0 = arith.constant 0 : index
    %c0_1 = arith.constant 0 : index
    %0 = vector.load %arg0[%c0, %c0_0, %c0_1] : memref<2x4x128xbf16, #tpu.memory_space<vmem>>, vector<2x4x128xbf16>
    %1 = arith.extf %0 : vector<2x4x128xbf16> to vector<2x4x128xf32>
    %cst = arith.constant dense<0.000000e+00> : vector<2x128xf32>
    %2 = vector.multi_reduction <add>, %1, %cst [1] : vector<2x4x128xf32> to vector<2x128xf32>
    %cst_2 = arith.constant 4.000000e+00 : f32
    %3 = vector.broadcast %cst_2 : f32 to vector<2x128xf32>
    %4 = arith.divf %2, %3 : vector<2x128xf32>
    %c0_3 = arith.constant 0 : index
    %c0_4 = arith.constant 0 : index
    %5 = vector.load %arg1[%c0_3, %c0_4] : memref<128x4xf32, #tpu.memory_space<vmem>>, vector<128x4xf32>
    %cst_5 = arith.constant dense<0.000000e+00> : vector<2x4xf32>
    %6 = tpu.matmul %4, %5, %cst_5 {dimension_numbers = #tpu.dot_dimension_numbers<[1], [0], [0], [1], [0, 0, 1, 1], [], []>} : vector<2x128xf32>, vector<128x4xf32>, vector<2x4xf32> -> vector<2x4xf32>
    %c0_6 = arith.constant 0 : index
    %c0_7 = arith.constant 0 : index
    %7 = vector.load %arg2[%c0_6, %c0_7] : memref<1x4xf32, #tpu.memory_space<vmem>>, vector<1x4xf32>
    %8 = vector.broadcast %7 : vector<1x4xf32> to vector<2x4xf32>
    %9 = arith.addf %6, %8 : vector<2x4xf32>
    %c0_8 = arith.constant 0 : index
    %c0_9 = arith.constant 0 : index
    %10 = vector.load %arg3[%c0_8, %c0_9] : memref<2x4xf32, #tpu.memory_space<vmem>>, vector<2x4xf32>
    tpu.vector_store %arg3[%c0_8, %c0_9], %9 {strides = array<i32>} : memref<2x4xf32, #tpu.memory_space<vmem>>, vector<2x4xf32>,
    return
  }
}

</mosaic_0001>

<llo_original>
// kernel: forward.8
$region0: #{forward.8}
  #allocation0 [shape = 'u32[]', space=smem, size = 0x4, offset = 0x4, fixed_abs, tag = 'smem constant byte address 0x4 - core index']
  #allocation1 [shape = 'u32[144,128]{1,0:T(1,128)}', space=vmem, size = 0x12000, scoped, tag = 'internal scratch']
  %s0 = inlined_call_operand.vmem [shape: bf16[2,9,128], index: 0, kind: input, shape index: {}]
  %s1 = inlined_call_operand.vmem [shape: bf16[128,96], index: 1, kind: input, shape index: {}]
  %s2 = inlined_call_operand.vmem [shape: bf16[128,96], index: 2, kind: input, shape index: {}]
  %s3 = inlined_call_operand.vmem [shape: f32[1,96], index: 3, kind: input, shape index: {}]
  %s4 = inlined_call_operand.vmem [shape: bf16[2,8,96], index: 4, kind: output, shape index: {}]
  %s5 = sld [smem:[#allocation0]]
  $region49: #{forward.8} parent=0
    _
  %s7 = ssub.s32 1, %s5
  %s8 = scalar_select 0, %s7, %s5
  loop: start=0, step=1, limit=4
  $region2: #{forward.8} parent=0 // loop_pre_header
    _
  $region3: #{forward.8} parent=0 // loop_header
    %s10 = sphi 0, %s14
    %p11 = scmp.ge.s32.totalorder %s10, 4
    %s20 = sphi 0, %s22
    %s23 = sphi 0, %s20
    %s24 = sphi 0, %s23
    %s40 = sphi 0, %s24
    %s44 = sphi 0, %s44
    %s46 = sphi 0, %s44
    %s47 = sphi 0, %s46
    %s61 = sphi 0, %s47
    %s65 = sphi 0, %s65
    %s67 = sphi 0, %s65
    %s68 = sphi 0, %s67
    %s82 = sphi 0, %s68
    %s86 = sphi 0, %s86
    %s88 = sphi 0, %s86
    %s89 = sphi 0, %s88
    %s103 = sphi 0, %s89
    %s109 = sphi 0, %s111
    %s112 = sphi 0, %s109
    %s113 = sphi 0, %s112
    %s129 = sphi 0, %s113
  $region4: #{forward.8} parent=0 // loop_header_branch
    %13 = sbr.rel (%p11) target = $region8
  $region5: #{forward.8} parent=0 // loop_body
    %s15 = ssub.s32 %s10, 1
    %s16 = ssub.s32 %s10, 2
    %s17 = sadd.s32 %s10, 1
    %s18 = ssub.s32 %s10, %s17
    %p19 = scmp.eq.s32.totalorder %s18, 0
    %s21 = sadd.s32 %s20, 1
    %s22 = scalar_select %p19, %s20, %s21
    %p25 = pneg %p19
    %p26 = scmp.eq.s32.totalorder %s10, 1
    %p27 = por %p25, %p26
    %p28 = scmp.ne.s32.totalorder %s20, %s23
    %p29 = scmp.eq.s32.totalorder %s10, 0
    %p30 = por %p28, %p29
    %p31 = scmp.ne.s32.totalorder %s20, %s23
    %p32 = scmp.eq.s32.totalorder %s15, 1
    %p33 = por %p31, %p32
    %p34 = scmp.ne.s32.totalorder %s23, %s24
    %p35 = scmp.eq.s32.totalorder %s15, 0
    %p36 = por %p34, %p35
    %p37 = scmp.ne.s32.totalorder %s23, %s24
    %p38 = scmp.eq.s32.totalorder %s16, 1
    %p39 = por %p37, %p38
    %p41 = scmp.ne.s32.totalorder %s24, %s40
    %p42 = scmp.eq.s32.totalorder %s16, 0
    %p43 = por %p41, %p42
    %s45 = sadd.s32 %s44, 1
    %p48 = scmp.eq.s32.totalorder %s10, 1
    %p49 = scmp.ne.s32.totalorder %s44, %s46
    %p50 = scmp.eq.s32.totalorder %s10, 0
    %p51 = por %p49, %p50
    %p52 = scmp.ne.s32.totalorder %s44, %s46
    %p53 = scmp.eq.s32.totalorder %s15, 1
    %p54 = por %p52, %p53
    %p55 = scmp.ne.s32.totalorder %s46, %s47
    %p56 = scmp.eq.s32.totalorder %s15, 0
    %p57 = por %p55, %p56
    %p58 = scmp.ne.s32.totalorder %s46, %s47
    %p59 = scmp.eq.s32.totalorder %s16, 1
    %p60 = por %p58, %p59
    %p62 = scmp.ne.s32.totalorder %s47, %s61
    %p63 = scmp.eq.s32.totalorder %s16, 0
    %p64 = por %p62, %p63
    %s66 = sadd.s32 %s65, 1
    %p69 = scmp.eq.s32.totalorder %s10, 1
    %p70 = scmp.ne.s32.totalorder %s65, %s67
    %p71 = scmp.eq.s32.totalorder %s10, 0
    %p72 = por %p70, %p71
    %p73 = scmp.ne.s32.totalorder %s65, %s67
    %p74 = scmp.eq.s32.totalorder %s15, 1
    %p75 = por %p73, %p74
    %p76 = scmp.ne.s32.totalorder %s67, %s68
    %p77 = scmp.eq.s32.totalorder %s15, 0
    %p78 = por %p76, %p77
    %p79 = scmp.ne.s32.totalorder %s67, %s68
    %p80 = scmp.eq.s32.totalorder %s16, 1
    %p81 = por %p79, %p80
    %p83 = scmp.ne.s32.totalorder %s68, %s82
    %p84 = scmp.eq.s32.totalorder %s16, 0
    %p85 = por %p83, %p84
    %s87 = sadd.s32 %s86, 1
    %p90 = scmp.eq.s32.totalorder %s10, 1
    %p91 = scmp.ne.s32.totalorder %s86, %s88
    %p92 = scmp.eq.s32.totalorder %s10, 0
    %p93 = por %p91, %p92
    %p94 = scmp.ne.s32.totalorder %s86, %s88
    %p95 = scmp.eq.s32.totalorder %s15, 1
    %p96 = por %p94, %p95
    %p97 = scmp.ne.s32.totalorder %s88, %s89
    %p98 = scmp.eq.s32.totalorder %s15, 0
    %p99 = por %p97, %p98
    %p100 = scmp.ne.s32.totalorder %s88, %s89
    %p101 = scmp.eq.s32.totalorder %s16, 1
    %p102 = por %p100, %p101
    %p104 = scmp.ne.s32.totalorder %s89, %s103
    %p105 = scmp.eq.s32.totalorder %s16, 0
    %p106 = por %p104, %p105
    %s107 = ssub.s32 %s10, %s17
    %p108 = scmp.eq.s32.totalorder %s107, 0
    %s110 = sadd.s32 %s109, 1
    %s111 = scalar_select %p108, %s109, %s110
    %p114 = pneg %p108
    %p115 = scmp.eq.s32.totalorder %s10, 1
    %p116 = por %p114, %p115
    %p117 = scmp.ne.s32.totalorder %s109, %s112
    %p118 = scmp.eq.s32.totalorder %s10, 0
    %p119 = por %p117, %p118
    %p120 = scmp.ne.s32.totalorder %s109, %s112
    %p121 = scmp.eq.s32.totalorder %s15, 1
    %p122 = por %p120, %p121
    %p123 = scmp.ne.s32.totalorder %s112, %s113
    %p124 = scmp.eq.s32.totalorder %s15, 0
    %p125 = por %p123, %p124
    %p126 = scmp.ne.s32.totalorder %s112, %s113
    %p127 = scmp.eq.s32.totalorder %s16, 1
    %p128 = por %p126, %p127
    %p130 = scmp.ne.s32.totalorder %s113, %s129
    %p131 = scmp.eq.s32.totalorder %s16, 0
    %p132 = por %p130, %p131
    %p133 = scmp.le.s32.totalorder 1, %s10
    %p134 = scmp.lt.s32.totalorder %s10, 3
    %p135 = pnand %p133, %p134
    %p136 = pneg %p135
    // Predicated region
    $region9: #{forward.8} parent=5 // pred_check
      _
    $region10: #{forward.8} parent=5 // pred_check_branch
      %138 = sbr.rel (%p135) target = $region12
    $region11: #{forward.8} parent=5 // pred_region
      %s139 = ssub.s32 %s10, 1
      // Predicated region
      $region13: #{forward.8} parent=11 // pred_check
        %p140 = pneg %p57
      $region14: #{forward.8} parent=11 // pred_check_branch
        %142 = sbr.rel (%p140) target = $region16
      $region15: #{forward.8} parent=11 // pred_region
        _
      $region16: #{forward.8} parent=11 // pred_fallthru
        _
      // Predicated region
      $region17: #{forward.8} parent=11 // pred_check
        %p143 = pneg %p78
      $region18: #{forward.8} parent=11 // pred_check_branch
        %145 = sbr.rel (%p143) target = $region20
      $region19: #{forward.8} parent=11 // pred_region
        _
      $region20: #{forward.8} parent=11 // pred_fallthru
        _
      // Predicated region
      $region21: #{forward.8} parent=11 // pred_check
        %p146 = pneg %p99
      $region22: #{forward.8} parent=11 // pred_check_branch
        %148 = sbr.rel (%p146) target = $region24
      $region23: #{forward.8} parent=11 // pred_region
        _
      $region24: #{forward.8} parent=11 // pred_fallthru
        _
    $region12: #{forward.8} parent=5 // pred_fallthru
      _
    %p149 = scmp.lt.s32.totalorder %s10, 2
    // Predicated region
    $region25: #{forward.8} parent=5 // pred_check
      %p150 = pneg %p149
    $region26: #{forward.8} parent=5 // pred_check_branch
      %152 = sbr.rel (%p150) target = $region28
    $region27: #{forward.8} parent=5 // pred_region
      // Predicated region
      $region29: #{forward.8} parent=27 // pred_check
        %p153 = pneg %p30
      $region30: #{forward.8} parent=27 // pred_check_branch
        %155 = sbr.rel (%p153) target = $region32
      $region31: #{forward.8} parent=27 // pred_region
        %p156 = scmp.lt.s32.totalorder %s10, 1
        %s157 = scalar_select %p156, %s10, 1
        %s158 = smul.addr %s157, 2
        %s159 = smul.addr %s158, 4
        %s160 = scalar_lea.vmem %s0, %s159
      $region32: #{forward.8} parent=27 // pred_fallthru
        _
    $region28: #{forward.8} parent=5 // pred_fallthru
      _
    %p161 = scmp.le.s32.totalorder 1, %s10
    %p162 = scmp.lt.s32.totalorder %s10, 3
    %p163 = pnand %p161, %p162
    %p164 = pneg %p163
    // Predicated region
    $region33: #{forward.8} parent=5 // pred_check
      _
    $region34: #{forward.8} parent=5 // pred_check_branch
      %166 = sbr.rel (%p163) target = $region36
    $region35: #{forward.8} parent=5 // pred_region
      %s167 = ssub.s32 %s10, 1
      %p168 = scmp.lt.s32.totalorder %s15, 1
      %s169 = scalar_select %p168, %s15, 1
      %s170 = smul.addr %s169, 2
      %s171 = smul.addr %s170, 4
      %s172 = scalar_lea.vmem %s0, %s171
      %p173 = pneg %p36
      %p174 = pneg %p33
      %p175 = pneg %p57
      %p176 = pneg %p54
      %p177 = pneg %p78
      %p178 = pneg %p75
      %p179 = pneg %p99
      %p180 = pneg %p96
      %p181 = pneg %p125
      %p182 = pneg %p122
      %p183 = scmp.lt.s32.totalorder %s15, 1
      %s184 = scalar_select %p183, %s15, 1
      %s185 = smul.addr %s184, 4
      %s186 = scalar_lea.vmem %s4, %s185
      %p187 = scmp.lt.s32.totalorder %s15, 1
      %s188 = scalar_select %p187, %s15, 1
      %s189 = smul.addr %s188, 2
      %s190 = smul.addr %s189, 4
      %s191 = scalar_lea.vmem %s0, %s190
      %p192 = scmp.lt.s32.totalorder %s15, 1
      %s193 = scalar_select %p192, %s15, 1
      %s194 = smul.addr %s193, 4
      %s195 = scalar_lea.vmem %s4, %s194
      %v197 = vld [vmem:[%s191] sm:$0xf]
      %v198 = vld [vmem:[%s191 + $0x4] sm:$0x1]
      %v199 = vunpack.c.l.bf16 %v197
      %v200 = vunpack.c.l.bf16 %v198
      %v201 = vpack.c.bf16 %v199, %v199
      %v202 = vpack.c.bf16 %v200, %v199
      %v203 = vld [vmem:[%s1] sm:$0xf]
      %v204 = vld [vmem:[%s1 + $0x4] sm:$0xf]
      %v205 = vld [vmem:[%s1 + $0x8] sm:$0xf]
      %v206 = vld [vmem:[%s1 + $0xc] sm:$0xf]
      %v207 = vld [vmem:[%s1 + $0x10] sm:$0xf]
      %v208 = vld [vmem:[%s1 + $0x14] sm:$0xf]
      %v209 = vld [vmem:[%s1 + $0x18] sm:$0xf]
      %v210 = vld [vmem:[%s1 + $0x1c] sm:$0xf]
      %v211 = vld [vmem:[%s1 + $0x20] sm:$0xf]
      %v212 = vld [vmem:[%s1 + $0x24] sm:$0xf]
      %v213 = vld [vmem:[%s1 + $0x28] sm:$0xf]
      %v214 = vld [vmem:[%s1 + $0x2c] sm:$0xf]
      %v215 = vld [vmem:[%s1 + $0x30] sm:$0xf]
      %v216 = vld [vmem:[%s1 + $0x34] sm:$0xf]
      %v217 = vld [vmem:[%s1 + $0x38] sm:$0xf]
      %v218 = vld [vmem:[%s1 + $0x3c] sm:$0xf]
      %v219 = vld [vmem:[%s2] sm:$0xf]
      %v220 = vld [vmem:[%s2 + $0x4] sm:$0xf]
      %v221 = vld [vmem:[%s2 + $0x8] sm:$0xf]
      %v222 = vld [vmem:[%s2 + $0xc] sm:$0xf]
      %v223 = vld [vmem:[%s2 + $0x10] sm:$0xf]
      %v224 = vld [vmem:[%s2 + $0x14] sm:$0xf]
      %v225 = vld [vmem:[%s2 + $0x18] sm:$0xf]
      %v226 = vld [vmem:[%s2 + $0x1c] sm:$0xf]
      %v227 = vld [vmem:[%s2 + $0x20] sm:$0xf]
      %v228 = vld [vmem:[%s2 + $0x24] sm:$0xf]
      %v229 = vld [vmem:[%s2 + $0x28] sm:$0xf]
      %v230 = vld [vmem:[%s2 + $0x2c] sm:$0xf]
      %v231 = vld [vmem:[%s2 + $0x30] sm:$0xf]
      %v232 = vld [vmem:[%s2 + $0x34] sm:$0xf]
      %v233 = vld [vmem:[%s2 + $0x38] sm:$0xf]
      %v234 = vld [vmem:[%s2 + $0x3c] sm:$0xf]
      %v236 = vshrl.u32 %v202, 16
      %v238 = vshll.u32 %v202, 16
      %v240 = vrot.slane %v238, 1
      %v241 = vor.u32 %v236, %v240
      %v259 = vunpack.c.l.b16 %v219
      %v260 = vunpack.c.l.b16 %v220
      %v261 = vunpack.c.l.b16 %v221
      %v262 = vunpack.c.l.b16 %v222
      %v263 = vunpack.c.l.b16 %v223
      %v264 = vunpack.c.l.b16 %v224
      %v265 = vunpack.c.l.b16 %v225
      %v266 = vunpack.c.l.b16 %v226
      %v267 = vunpack.c.l.b16 %v227
      %v268 = vunpack.c.l.b16 %v228
      %v269 = vunpack.c.l.b16 %v229
      %v270 = vunpack.c.l.b16 %v230
      %v271 = vunpack.c.l.b16 %v231
      %v272 = vunpack.c.l.b16 %v232
      %v273 = vunpack.c.l.b16 %v233
      %v274 = vunpack.c.l.b16 %v234
      %v275 = vpack.c.b16 %v260, %v259
      %v276 = vpack.c.b16 %v262, %v261
      %v277 = vpack.c.b16 %v264, %v263
      %v278 = vpack.c.b16 %v266, %v265
      %v279 = vpack.c.b16 %v268, %v267
      %v280 = vpack.c.b16 %v270, %v269
      %v281 = vpack.c.b16 %v272, %v271
      %v282 = vpack.c.b16 %v274, %v273
      %291 = vmatprep.subr.bf16.mxu0 0
      %292 = vmatpush1.bf16.msra.mxu0 %v275
      %293 = vmatprep.subr.bf16.mxu0 0
      %294 = vmatpush1.bf16.msra.mxu0 %v276
      %295 = vmatprep.subr.bf16.mxu0 0
      %296 = vmatpush1.bf16.msra.mxu0 %v277
      %297 = vmatprep.subr.bf16.mxu0 0
      %298 = vmatpush1.bf16.msra.mxu0 %v278
      %299 = vmatprep.subr.bf16.mxu0 0
      %300 = vmatpush1.bf16.msra.mxu0 %v279
      %301 = vmatprep.subr.bf16.mxu0 0
      %302 = vmatpush1.bf16.msra.mxu0 %v280
      %303 = vmatprep.subr.bf16.mxu0 0
      %304 = vmatpush1.bf16.msra.mxu0 %v281
      %305 = vmatprep.subr.bf16.mxu0 0
      %306 = vmatpush1.bf16.msra.mxu0 %v282
      %307 = vmatprep.subr.bf16.mxu0 0
      %308 = vmatpush1.bf16.msra.mxu0 0
      %309 = vmatprep.subr.bf16.mxu0 0
      %310 = vmatpush1.bf16.msra.mxu0 0
      %311 = vmatprep.subr.bf16.mxu0 0
      %312 = vmatpush1.bf16.msra.mxu0 0
      %313 = vmatprep.subr.bf16.mxu0 0
      %314 = vmatpush1.bf16.msra.mxu0 0
      %315 = vmatprep.subr.bf16.mxu0 0
      %316 = vmatpush1.bf16.msra.mxu0 0
      %317 = vmatprep.subr.bf16.mxu0 0
      %318 = vmatpush1.bf16.msra.mxu0 0
      %319 = vmatprep.subr.bf16.mxu0 0
      %320 = vmatpush1.bf16.msra.mxu0 0
      %321 = vmatprep.subr.bf16.mxu0 0
      %322 = vmatpush1.bf16.msra.mxu0 0
      %323 = vmatprep.mubr.bf16.mxu0 0
      %324 = vmatmul.mubr.bf16.gmra.mrb[0].mxu0 %v241
      %v325 = vpop.f32.mrb[0].mxu0
      %v326 = vadd.f32 0.0, %v325
      %v327 = vpop.f32.mrb[0].mxu0
      %v328 = vpop.f32.mrb[0].mxu0
      %v329 = vpop.f32.mrb[0].mxu0
      %330 = vdwg.mxu0
      %v347 = vunpack.c.l.b16 %v203
      %v348 = vunpack.c.l.b16 %v204
      %v349 = vunpack.c.l.b16 %v205
      %v350 = vunpack.c.l.b16 %v206
      %v351 = vunpack.c.l.b16 %v207
      %v352 = vunpack.c.l.b16 %v208
      %v353 = vunpack.c.l.b16 %v209
      %v354 = vunpack.c.l.b16 %v210
      %v355 = vunpack.c.l.b16 %v211
      %v356 = vunpack.c.l.b16 %v212
      %v357 = vunpack.c.l.b16 %v213
      %v358 = vunpack.c.l.b16 %v214
      %v359 = vunpack.c.l.b16 %v215
      %v360 = vunpack.c.l.b16 %v216
      %v361 = vunpack.c.l.b16 %v217
      %v362 = vunpack.c.l.b16 %v218
      %v363 = vpack.c.b16 %v348, %v347
      %v364 = vpack.c.b16 %v350, %v349
      %v365 = vpack.c.b16 %v352, %v351
      %v366 = vpack.c.b16 %v354, %v353
      %v367 = vpack.c.b16 %v356, %v355
      %v368 = vpack.c.b16 %v358, %v357
      %v369 = vpack.c.b16 %v360, %v359
      %v370 = vpack.c.b16 %v362, %v361
      %379 = vmatprep.subr.bf16.mxu0 0
      %380 = vmatpush1.bf16.msra.mxu0 %v363
      %381 = vmatprep.subr.bf16.mxu0 0
      %382 = vmatpush1.bf16.msra.mxu0 %v364
      %383 = vmatprep.subr.bf16.mxu0 0
      %384 = vmatpush1.bf16.msra.mxu0 %v365
      %385 = vmatprep.subr.bf16.mxu0 0
      %386 = vmatpush1.bf16.msra.mxu0 %v366
      %387 = vmatprep.subr.bf16.mxu0 0
      %388 = vmatpush1.bf16.msra.mxu0 %v367
      %389 = vmatprep.subr.bf16.mxu0 0
      %390 = vmatpush1.bf16.msra.mxu0 %v368
      %391 = vmatprep.subr.bf16.mxu0 0
      %392 = vmatpush1.bf16.msra.mxu0 %v369
      %393 = vmatprep.subr.bf16.mxu0 0
      %394 = vmatpush1.bf16.msra.mxu0 %v370
      %395 = vmatprep.subr.bf16.mxu0 0
      %396 = vmatpush1.bf16.msra.mxu0 0
      %397 = vmatprep.subr.bf16.mxu0 0
      %398 = vmatpush1.bf16.msra.mxu0 0
      %399 = vmatprep.subr.bf16.mxu0 0
      %400 = vmatpush1.bf16.msra.mxu0 0
      %401 = vmatprep.subr.bf16.mxu0 0
      %402 = vmatpush1.bf16.msra.mxu0 0
      %403 = vmatprep.subr.bf16.mxu0 0
      %404 = vmatpush1.bf16.msra.mxu0 0
      %405 = vmatprep.subr.bf16.mxu0 0
      %406 = vmatpush1.bf16.msra.mxu0 0
      %407 = vmatprep.subr.bf16.mxu0 0
      %408 = vmatpush1.bf16.msra.mxu0 0
      %409 = vmatprep.subr.bf16.mxu0 0
      %410 = vmatpush1.bf16.msra.mxu0 0
      %411 = vmatprep.mubr.bf16.mxu0 0
      %412 = vmatmul.mubr.bf16.gmra.mrb[0].mxu0 %v201
      %v413 = vpop.f32.mrb[0].mxu0
      %v414 = vadd.f32 %v326, %v413
      %v415 = vpop.f32.mrb[0].mxu0
      %v416 = vpop.f32.mrb[0].mxu0
      %v417 = vpop.f32.mrb[0].mxu0
      %418 = vdwg.mxu0
      %v419 = vld [vmem:[%s3] sm:$0x1]
      %v421 = vlaneseq
      %v422 = vshrl.u32 %v421, 7
      %v423 = vsub.s32 0, %v422
      %v424 = vrot.slane %v419, %v423
      %v426 = vadd.f32 %v414, %v424
      %v427 = vmax.f32 %v426, 0.0
      %v428 = vpack.c.bf16 %v427, %v427
      %vm429 = vcmask 781312
      %430 = vst.msk [vmem:[%s195] sm:$0xf] %vm429, %v428
      %p431 = scmp.lt.s32.totalorder %s15, 1
      %s432 = scalar_select %p431, %s15, 1
      %s433 = smul.addr %s432, 4
      %s434 = scalar_lea.vmem %s4, %s433
      // Predicated region
      $region37: #{forward.8} parent=35 // pred_check
        %p435 = pneg %p122
      $region38: #{forward.8} parent=35 // pred_check_branch
        %437 = sbr.rel (%p435) target = $region40
      $region39: #{forward.8} parent=35 // pred_region
        _
      $region40: #{forward.8} parent=35 // pred_fallthru
        _
    $region36: #{forward.8} parent=5 // pred_fallthru
      _
    %p438 = scmp.le.s32.totalorder 2, %s10
    // Predicated region
    $region41: #{forward.8} parent=5 // pred_check
      %p439 = pneg %p438
    $region42: #{forward.8} parent=5 // pred_check_branch
      %441 = sbr.rel (%p439) target = $region44
    $region43: #{forward.8} parent=5 // pred_region
      %s442 = ssub.s32 %s10, 2
      // Predicated region
      $region45: #{forward.8} parent=43 // pred_check
        %p443 = pneg %p128
      $region46: #{forward.8} parent=43 // pred_check_branch
        %445 = sbr.rel (%p443) target = $region48
      $region47: #{forward.8} parent=43 // pred_region
        %p446 = scmp.lt.s32.totalorder %s16, 1
        %s447 = scalar_select %p446, %s16, 1
        %s448 = smul.addr %s447, 4
        %s449 = scalar_lea.vmem %s4, %s448
      $region48: #{forward.8} parent=43 // pred_fallthru
        _
    $region44: #{forward.8} parent=5 // pred_fallthru
      _
  $region6: #{forward.8} parent=0 // loop_footer
    %s14 = sadd.s32 1, %s10
  $region7: #{forward.8} parent=0 // loop_footer_branch
    %9 = sbr.rel target = $region3
  $region8: #{forward.8} parent=0 // loop_exit
    _

// kernel: forward.6
$region0: #{forward.6}
  #allocation0 [shape = 'u32[]', space=smem, size = 0x4, offset = 0x4, fixed_abs, tag = 'smem constant byte address 0x4 - core index']
  #allocation1 [shape = 'u32[144,128]{1,0:T(1,128)}', space=vmem, size = 0x12000, scoped, tag = 'internal scratch']
  %s0 = inlined_call_operand.vmem [shape: bf16[2,16,8], index: 0, kind: input, shape index: {}]
  %s1 = inlined_call_operand.vmem [shape: bf16[2,16,8], index: 1, kind: input, shape index: {}]
  %s2 = inlined_call_operand.vmem [shape: bf16[2,16,8], index: 2, kind: input, shape index: {}]
  %s3 = inlined_call_operand.vmem [shape: bf16[8,64], index: 3, kind: input, shape index: {}]
  %s4 = inlined_call_operand.vmem [shape: f32[1,64], index: 4, kind: input, shape index: {}]
  %s5 = inlined_call_operand.vmem [shape: bf16[2,16,64], index: 5, kind: output, shape index: {}]
  %s6 = sld [smem:[#allocation0]]
  $region53: #{forward.6} parent=0
    _
  %s8 = ssub.s32 1, %s6
  %s9 = scalar_select 0, %s8, %s6
  loop: start=0, step=1, limit=4
  $region2: #{forward.6} parent=0 // loop_pre_header
    _
  $region3: #{forward.6} parent=0 // loop_header
    %s11 = sphi 0, %s15
    %p12 = scmp.ge.s32.totalorder %s11, 4
    %s21 = sphi 0, %s23
    %s24 = sphi 0, %s21
    %s25 = sphi 0, %s24
    %s41 = sphi 0, %s25
    %s47 = sphi 0, %s49
    %s50 = sphi 0, %s47
    %s51 = sphi 0, %s50
    %s67 = sphi 0, %s51
    %s73 = sphi 0, %s75
    %s76 = sphi 0, %s73
    %s77 = sphi 0, %s76
    %s93 = sphi 0, %s77
    %s97 = sphi 0, %s97
    %s99 = sphi 0, %s97
    %s100 = sphi 0, %s99
    %s114 = sphi 0, %s100
    %s118 = sphi 0, %s118
    %s120 = sphi 0, %s118
    %s121 = sphi 0, %s120
    %s135 = sphi 0, %s121
    %s141 = sphi 0, %s143
    %s144 = sphi 0, %s141
    %s145 = sphi 0, %s144
    %s161 = sphi 0, %s145
  $region4: #{forward.6} parent=0 // loop_header_branch
    %14 = sbr.rel (%p12) target = $region8
  $region5: #{forward.6} parent=0 // loop_body
    %s16 = ssub.s32 %s11, 1
    %s17 = ssub.s32 %s11, 2
    %s18 = sadd.s32 %s11, 1
    %s19 = ssub.s32 %s11, %s18
    %p20 = scmp.eq.s32.totalorder %s19, 0
    %s22 = sadd.s32 %s21, 1
    %s23 = scalar_select %p20, %s21, %s22
    %p26 = pneg %p20
    %p27 = scmp.eq.s32.totalorder %s11, 1
    %p28 = por %p26, %p27
    %p29 = scmp.ne.s32.totalorder %s21, %s24
    %p30 = scmp.eq.s32.totalorder %s11, 0
    %p31 = por %p29, %p30
    %p32 = scmp.ne.s32.totalorder %s21, %s24
    %p33 = scmp.eq.s32.totalorder %s16, 1
    %p34 = por %p32, %p33
    %p35 = scmp.ne.s32.totalorder %s24, %s25
    %p36 = scmp.eq.s32.totalorder %s16, 0
    %p37 = por %p35, %p36
    %p38 = scmp.ne.s32.totalorder %s24, %s25
    %p39 = scmp.eq.s32.totalorder %s17, 1
    %p40 = por %p38, %p39
    %p42 = scmp.ne.s32.totalorder %s25, %s41
    %p43 = scmp.eq.s32.totalorder %s17, 0
    %p44 = por %p42, %p43
    %s45 = ssub.s32 %s11, %s18
    %p46 = scmp.eq.s32.totalorder %s45, 0
    %s48 = sadd.s32 %s47, 1
    %s49 = scalar_select %p46, %s47, %s48
    %p52 = pneg %p46
    %p53 = scmp.eq.s32.totalorder %s11, 1
    %p54 = por %p52, %p53
    %p55 = scmp.ne.s32.totalorder %s47, %s50
    %p56 = scmp.eq.s32.totalorder %s11, 0
    %p57 = por %p55, %p56
    %p58 = scmp.ne.s32.totalorder %s47, %s50
    %p59 = scmp.eq.s32.totalorder %s16, 1
    %p60 = por %p58, %p59
    %p61 = scmp.ne.s32.totalorder %s50, %s51
    %p62 = scmp.eq.s32.totalorder %s16, 0
    %p63 = por %p61, %p62
    %p64 = scmp.ne.s32.totalorder %s50, %s51
    %p65 = scmp.eq.s32.totalorder %s17, 1
    %p66 = por %p64, %p65
    %p68 = scmp.ne.s32.totalorder %s51, %s67
    %p69 = scmp.eq.s32.totalorder %s17, 0
    %p70 = por %p68, %p69
    %s71 = ssub.s32 %s11, %s18
    %p72 = scmp.eq.s32.totalorder %s71, 0
    %s74 = sadd.s32 %s73, 1
    %s75 = scalar_select %p72, %s73, %s74
    %p78 = pneg %p72
    %p79 = scmp.eq.s32.totalorder %s11, 1
    %p80 = por %p78, %p79
    %p81 = scmp.ne.s32.totalorder %s73, %s76
    %p82 = scmp.eq.s32.totalorder %s11, 0
    %p83 = por %p81, %p82
    %p84 = scmp.ne.s32.totalorder %s73, %s76
    %p85 = scmp.eq.s32.totalorder %s16, 1
    %p86 = por %p84, %p85
    %p87 = scmp.ne.s32.totalorder %s76, %s77
    %p88 = scmp.eq.s32.totalorder %s16, 0
    %p89 = por %p87, %p88
    %p90 = scmp.ne.s32.totalorder %s76, %s77
    %p91 = scmp.eq.s32.totalorder %s17, 1
    %p92 = por %p90, %p91
    %p94 = scmp.ne.s32.totalorder %s77, %s93
    %p95 = scmp.eq.s32.totalorder %s17, 0
    %p96 = por %p94, %p95
    %s98 = sadd.s32 %s97, 1
    %p101 = scmp.eq.s32.totalorder %s11, 1
    %p102 = scmp.ne.s32.totalorder %s97, %s99
    %p103 = scmp.eq.s32.totalorder %s11, 0
    %p104 = por %p102, %p103
    %p105 = scmp.ne.s32.totalorder %s97, %s99
    %p106 = scmp.eq.s32.totalorder %s16, 1
    %p107 = por %p105, %p106
    %p108 = scmp.ne.s32.totalorder %s99, %s100
    %p109 = scmp.eq.s32.totalorder %s16, 0
    %p110 = por %p108, %p109
    %p111 = scmp.ne.s32.totalorder %s99, %s100
    %p112 = scmp.eq.s32.totalorder %s17, 1
    %p113 = por %p111, %p112
    %p115 = scmp.ne.s32.totalorder %s100, %s114
    %p116 = scmp.eq.s32.totalorder %s17, 0
    %p117 = por %p115, %p116
    %s119 = sadd.s32 %s118, 1
    %p122 = scmp.eq.s32.totalorder %s11, 1
    %p123 = scmp.ne.s32.totalorder %s118, %s120
    %p124 = scmp.eq.s32.totalorder %s11, 0
    %p125 = por %p123, %p124
    %p126 = scmp.ne.s32.totalorder %s118, %s120
    %p127 = scmp.eq.s32.totalorder %s16, 1
    %p128 = por %p126, %p127
    %p129 = scmp.ne.s32.totalorder %s120, %s121
    %p130 = scmp.eq.s32.totalorder %s16, 0
    %p131 = por %p129, %p130
    %p132 = scmp.ne.s32.totalorder %s120, %s121
    %p133 = scmp.eq.s32.totalorder %s17, 1
    %p134 = por %p132, %p133
    %p136 = scmp.ne.s32.totalorder %s121, %s135
    %p137 = scmp.eq.s32.totalorder %s17, 0
    %p138 = por %p136, %p137
    %s139 = ssub.s32 %s11, %s18
    %p140 = scmp.eq.s32.totalorder %s139, 0
    %s142 = sadd.s32 %s141, 1
    %s143 = scalar_select %p140, %s141, %s142
    %p146 = pneg %p140
    %p147 = scmp.eq.s32.totalorder %s11, 1
    %p148 = por %p146, %p147
    %p149 = scmp.ne.s32.totalorder %s141, %s144
    %p150 = scmp.eq.s32.totalorder %s11, 0
    %p151 = por %p149, %p150
    %p152 = scmp.ne.s32.totalorder %s141, %s144
    %p153 = scmp.eq.s32.totalorder %s16, 1
    %p154 = por %p152, %p153
    %p155 = scmp.ne.s32.totalorder %s144, %s145
    %p156 = scmp.eq.s32.totalorder %s16, 0
    %p157 = por %p155, %p156
    %p158 = scmp.ne.s32.totalorder %s144, %s145
    %p159 = scmp.eq.s32.totalorder %s17, 1
    %p160 = por %p158, %p159
    %p162 = scmp.ne.s32.totalorder %s145, %s161
    %p163 = scmp.eq.s32.totalorder %s17, 0
    %p164 = por %p162, %p163
    %p165 = scmp.le.s32.totalorder 1, %s11
    %p166 = scmp.lt.s32.totalorder %s11, 3
    %p167 = pnand %p165, %p166
    %p168 = pneg %p167
    // Predicated region
    $region9: #{forward.6} parent=5 // pred_check
      _
    $region10: #{forward.6} parent=5 // pred_check_branch
      %170 = sbr.rel (%p167) target = $region12
    $region11: #{forward.6} parent=5 // pred_region
      %s171 = ssub.s32 %s11, 1
      // Predicated region
      $region13: #{forward.6} parent=11 // pred_check
        %p172 = pneg %p110
      $region14: #{forward.6} parent=11 // pred_check_branch
        %174 = sbr.rel (%p172) target = $region16
      $region15: #{forward.6} parent=11 // pred_region
        _
      $region16: #{forward.6} parent=11 // pred_fallthru
        _
      // Predicated region
      $region17: #{forward.6} parent=11 // pred_check
        %p175 = pneg %p131
      $region18: #{forward.6} parent=11 // pred_check_branch
        %177 = sbr.rel (%p175) target = $region20
      $region19: #{forward.6} parent=11 // pred_region
        _
      $region20: #{forward.6} parent=11 // pred_fallthru
        _
    $region12: #{forward.6} parent=5 // pred_fallthru
      _
    %p178 = scmp.lt.s32.totalorder %s11, 2
    // Predicated region
    $region21: #{forward.6} parent=5 // pred_check
      %p179 = pneg %p178
    $region22: #{forward.6} parent=5 // pred_check_branch
      %181 = sbr.rel (%p179) target = $region24
    $region23: #{forward.6} parent=5 // pred_region
      // Predicated region
      $region25: #{forward.6} parent=23 // pred_check
        %p182 = pneg %p31
      $region26: #{forward.6} parent=23 // pred_check_branch
        %184 = sbr.rel (%p182) target = $region28
      $region27: #{forward.6} parent=23 // pred_region
        %p185 = scmp.lt.s32.totalorder %s11, 1
        %s186 = scalar_select %p185, %s11, 1
        %s187 = smul.addr %s186, 2
        %s188 = smul.addr %s187, 4
        %s189 = scalar_lea.vmem %s0, %s188
      $region28: #{forward.6} parent=23 // pred_fallthru
        _
      // Predicated region
      $region29: #{forward.6} parent=23 // pred_check
        %p190 = pneg %p57
      $region30: #{forward.6} parent=23 // pred_check_branch
        %192 = sbr.rel (%p190) target = $region32
      $region31: #{forward.6} parent=23 // pred_region
        %p193 = scmp.lt.s32.totalorder %s11, 1
        %s194 = scalar_select %p193, %s11, 1
        %s195 = smul.addr %s194, 2
        %s196 = smul.addr %s195, 4
        %s197 = scalar_lea.vmem %s1, %s196
      $region32: #{forward.6} parent=23 // pred_fallthru
        _
      // Predicated region
      $region33: #{forward.6} parent=23 // pred_check
        %p198 = pneg %p83
      $region34: #{forward.6} parent=23 // pred_check_branch
        %200 = sbr.rel (%p198) target = $region36
      $region35: #{forward.6} parent=23 // pred_region
        %p201 = scmp.lt.s32.totalorder %s11, 1
        %s202 = scalar_select %p201, %s11, 1
        %s203 = smul.addr %s202, 2
        %s204 = smul.addr %s203, 4
        %s205 = scalar_lea.vmem %s2, %s204
      $region36: #{forward.6} parent=23 // pred_fallthru
        _
    $region24: #{forward.6} parent=5 // pred_fallthru
      _
    %p206 = scmp.le.s32.totalorder 1, %s11
    %p207 = scmp.lt.s32.totalorder %s11, 3
    %p208 = pnand %p206, %p207
    %p209 = pneg %p208
    // Predicated region
    $region37: #{forward.6} parent=5 // pred_check
      _
    $region38: #{forward.6} parent=5 // pred_check_branch
      %211 = sbr.rel (%p208) target = $region40
    $region39: #{forward.6} parent=5 // pred_region
      %s212 = ssub.s32 %s11, 1
      %p213 = scmp.lt.s32.totalorder %s16, 1
      %s214 = scalar_select %p213, %s16, 1
      %s215 = smul.addr %s214, 2
      %s216 = smul.addr %s215, 4
      %s217 = scalar_lea.vmem %s0, %s216
      %p218 = pneg %p37
      %p219 = pneg %p34
      %p220 = scmp.lt.s32.totalorder %s16, 1
      %s221 = scalar_select %p220, %s16, 1
      %s222 = smul.addr %s221, 2
      %s223 = smul.addr %s222, 4
      %s224 = scalar_lea.vmem %s1, %s223
      %p225 = pneg %p63
      %p226 = pneg %p60
      %p227 = scmp.lt.s32.totalorder %s16, 1
      %s228 = scalar_select %p227, %s16, 1
      %s229 = smul.addr %s228, 2
      %s230 = smul.addr %s229, 4
      %s231 = scalar_lea.vmem %s2, %s230
      %p232 = pneg %p89
      %p233 = pneg %p86
      %p234 = pneg %p110
      %p235 = pneg %p107
      %p236 = pneg %p131
      %p237 = pneg %p128
      %p238 = pneg %p157
      %p239 = pneg %p154
      %p240 = scmp.lt.s32.totalorder %s16, 1
      %s241 = scalar_select %p240, %s16, 1
      %s242 = smul.addr %s241, 2
      %s243 = smul.addr %s242, 4
      %s244 = scalar_lea.vmem %s5, %s243
      %p245 = scmp.lt.s32.totalorder %s16, 1
      %s246 = scalar_select %p245, %s16, 1
      %s247 = smul.addr %s246, 2
      %s248 = smul.addr %s247, 4
      %s249 = scalar_lea.vmem %s0, %s248
      %p250 = scmp.lt.s32.totalorder %s16, 1
      %s251 = scalar_select %p250, %s16, 1
      %s252 = smul.addr %s251, 2
      %s253 = smul.addr %s252, 4
      %s254 = scalar_lea.vmem %s1, %s253
      %p255 = scmp.lt.s32.totalorder %s16, 1
      %s256 = scalar_select %p255, %s16, 1
      %s257 = smul.addr %s256, 2
      %s258 = smul.addr %s257, 4
      %s259 = scalar_lea.vmem %s2, %s258
      %p260 = scmp.lt.s32.totalorder %s16, 1
      %s261 = scalar_select %p260, %s16, 1
      %s262 = smul.addr %s261, 2
      %s263 = smul.addr %s262, 4
      %s264 = scalar_lea.vmem %s5, %s263
      %v266 = vld [vmem:[%s3] sm:$0xf]
      %v267 = vld [vmem:[%s4] sm:$0x1]
      %v268 = vld [vmem:[%s249] sm:$0xf]
      %v269 = vld [vmem:[%s249 + $0x4] sm:$0xf]
      %v271 = vlaneseq
      %v272 = vshrl.u32 %v271, 7
      %v273 = vsub.s32 0, %v272
      %v274 = vrot.slane %v267, %v273
      %v278 = vunpack.c.l.b16 %v268
      %v279 = vunpack.c.l.b16 %v269
      %v280 = vpack.c.b16 %v279, %v278
      %vm281 = vcmask 64512
      %v283 = vsel %vm281, %v280, 0
      %vm285 = vcmask 1043456
      %v287 = vsel %vm285, %v266, 0
      %289 = vmatprep.subr.bf16.mxu0 0
      %290 = vmatpush1.bf16.msra.mxu0 %v287
      %291 = vmatprep.subr.bf16.mxu0 0
      %292 = vmatpush1.bf16.msra.mxu0 0
      %293 = vmatprep.subr.bf16.mxu0 0
      %294 = vmatpush1.bf16.msra.mxu0 0
      %295 = vmatprep.subr.bf16.mxu0 0
      %296 = vmatpush1.bf16.msra.mxu0 0
      %297 = vmatprep.subr.bf16.mxu0 0
      %298 = vmatpush1.bf16.msra.mxu0 0
      %299 = vmatprep.subr.bf16.mxu0 0
      %300 = vmatpush1.bf16.msra.mxu0 0
      %301 = vmatprep.subr.bf16.mxu0 0
      %302 = vmatpush1.bf16.msra.mxu0 0
      %303 = vmatprep.subr.bf16.mxu0 0
      %304 = vmatpush1.bf16.msra.mxu0 0
      %305 = vmatprep.subr.bf16.mxu0 0
      %306 = vmatpush1.bf16.msra.mxu0 0
      %307 = vmatprep.subr.bf16.mxu0 0
      %308 = vmatpush1.bf16.msra.mxu0 0
      %309 = vmatprep.subr.bf16.mxu0 0
      %310 = vmatpush1.bf16.msra.mxu0 0
      %311 = vmatprep.subr.bf16.mxu0 0
      %312 = vmatpush1.bf16.msra.mxu0 0
      %313 = vmatprep.subr.bf16.mxu0 0
      %314 = vmatpush1.bf16.msra.mxu0 0
      %315 = vmatprep.subr.bf16.mxu0 0
      %316 = vmatpush1.bf16.msra.mxu0 0
      %317 = vmatprep.subr.bf16.mxu0 0
      %318 = vmatpush1.bf16.msra.mxu0 0
      %319 = vmatprep.subr.bf16.mxu0 0
      %320 = vmatpush1.bf16.msra.mxu0 0
      %321 = vmatprep.mubr.bf16.mxu0 0
      %322 = vmatmul.mubr.bf16.gmra.mrb[0].mxu0 %v283
      %v323 = vpop.f32.mrb[0].mxu0
      %v324 = vadd.f32 %v274, %v323
      %v325 = vpop.f32.mrb[0].mxu0
      %v326 = vpop.f32.mrb[0].mxu0
      %v327 = vadd.f32 %v274, %v326
      %v328 = vpop.f32.mrb[0].mxu0
      %329 = vdwg.mxu0
      %v330 = vmax.f32 %v324, 0.0
      %v331 = vmax.f32 %v327, 0.0
      %v332 = vlaneseq
      %v333 = vshrl.u32 %v332, 7
      %v334 = vadd.s32 %v333, 8
      %v335 = vmul.u32 %v333, 2
      %v336 = vmul.u32 %v334, 2
      %v337 = vsub.s32 %v335, 1
      %v338 = vsub.s32 %v336, 1
      %vm339 = vcmp.ge.s32.totalorder %v337, 0
      %vm340 = vcmp.ge.s32.totalorder %v338, 0
      %vm341 = vcmp.lt.s32.totalorder %v337, 32
      %vm342 = vcmp.lt.s32.totalorder %v338, 32
      %vm343 = vmand %vm339, %vm341
      %vm344 = vmand %vm340, %vm342
      %v345 = vsel %vm343, %v330, 0.0
      %v346 = vsel %vm344, %v331, 0.0
      %v347 = vld [vmem:[%s254] sm:$0xf]
      %v348 = vld [vmem:[%s254 + $0x4] sm:$0xf]
      %v351 = vunpack.c.l.b16 %v347
      %v352 = vunpack.c.l.b16 %v348
      %v353 = vpack.c.b16 %v352, %v351
      %v355 = vsel %vm281, %v353, 0
      %357 = vmatprep.subr.bf16.mxu0 0
      %358 = vmatpush1.bf16.msra.mxu0 %v287
      %359 = vmatprep.subr.bf16.mxu0 0
      %360 = vmatpush1.bf16.msra.mxu0 0
      %361 = vmatprep.subr.bf16.mxu0 0
      %362 = vmatpush1.bf16.msra.mxu0 0
      %363 = vmatprep.subr.bf16.mxu0 0
      %364 = vmatpush1.bf16.msra.mxu0 0
      %365 = vmatprep.subr.bf16.mxu0 0
      %366 = vmatpush1.bf16.msra.mxu0 0
      %367 = vmatprep.subr.bf16.mxu0 0
      %368 = vmatpush1.bf16.msra.mxu0 0
      %369 = vmatprep.subr.bf16.mxu0 0
      %370 = vmatpush1.bf16.msra.mxu0 0
      %371 = vmatprep.subr.bf16.mxu0 0
      %372 = vmatpush1.bf16.msra.mxu0 0
      %373 = vmatprep.subr.bf16.mxu0 0
      %374 = vmatpush1.bf16.msra.mxu0 0
      %375 = vmatprep.subr.bf16.mxu0 0
      %376 = vmatpush1.bf16.msra.mxu0 0
      %377 = vmatprep.subr.bf16.mxu0 0
      %378 = vmatpush1.bf16.msra.mxu0 0
      %379 = vmatprep.subr.bf16.mxu0 0
      %380 = vmatpush1.bf16.msra.mxu0 0
      %381 = vmatprep.subr.bf16.mxu0 0
      %382 = vmatpush1.bf16.msra.mxu0 0
      %383 = vmatprep.subr.bf16.mxu0 0
      %384 = vmatpush1.bf16.msra.mxu0 0
      %385 = vmatprep.subr.bf16.mxu0 0
      %386 = vmatpush1.bf16.msra.mxu0 0
      %387 = vmatprep.subr.bf16.mxu0 0
      %388 = vmatpush1.bf16.msra.mxu0 0
      %389 = vmatprep.mubr.bf16.mxu0 0
      %390 = vmatmul.mubr.bf16.gmra.mrb[0].mxu0 %v355
      %v391 = vpop.f32.mrb[0].mxu0
      %v392 = vadd.f32 %v274, %v391
      %v393 = vpop.f32.mrb[0].mxu0
      %v394 = vpop.f32.mrb[0].mxu0
      %v395 = vadd.f32 %v274, %v394
      %v396 = vpop.f32.mrb[0].mxu0
      %397 = vdwg.mxu0
      %v398 = vmax.f32 %v392, 0.0
      %v399 = vmax.f32 %v395, 0.0
      %vm400 = vcmp.ge.s32.totalorder %v335, 0
      %vm401 = vcmp.ge.s32.totalorder %v336, 0
      %vm402 = vcmp.lt.s32.totalorder %v335, 32
      %vm403 = vcmp.lt.s32.totalorder %v336, 32
      %vm404 = vmand %vm400, %vm402
      %vm405 = vmand %vm401, %vm403
      %v406 = vsel %vm404, %v398, 0.0
      %v407 = vsel %vm405, %v399, 0.0
      %v408 = vld [vmem:[%s259] sm:$0xf]
      %v409 = vld [vmem:[%s259 + $0x4] sm:$0xf]
      %v412 = vunpack.c.l.b16 %v408
      %v413 = vunpack.c.l.b16 %v409
      %v414 = vpack.c.b16 %v413, %v412
      %v416 = vsel %vm281, %v414, 0
      %418 = vmatprep.subr.bf16.mxu0 0
      %419 = vmatpush1.bf16.msra.mxu0 %v287
      %420 = vmatprep.subr.bf16.mxu0 0
      %421 = vmatpush1.bf16.msra.mxu0 0
      %422 = vmatprep.subr.bf16.mxu0 0
      %423 = vmatpush1.bf16.msra.mxu0 0
      %424 = vmatprep.subr.bf16.mxu0 0
      %425 = vmatpush1.bf16.msra.mxu0 0
      %426 = vmatprep.subr.bf16.mxu0 0
      %427 = vmatpush1.bf16.msra.mxu0 0
      %428 = vmatprep.subr.bf16.mxu0 0
      %429 = vmatpush1.bf16.msra.mxu0 0
      %430 = vmatprep.subr.bf16.mxu0 0
      %431 = vmatpush1.bf16.msra.mxu0 0
      %432 = vmatprep.subr.bf16.mxu0 0
      %433 = vmatpush1.bf16.msra.mxu0 0
      %434 = vmatprep.subr.bf16.mxu0 0
      %435 = vmatpush1.bf16.msra.mxu0 0
      %436 = vmatprep.subr.bf16.mxu0 0
      %437 = vmatpush1.bf16.msra.mxu0 0
      %438 = vmatprep.subr.bf16.mxu0 0
      %439 = vmatpush1.bf16.msra.mxu0 0
      %440 = vmatprep.subr.bf16.mxu0 0
      %441 = vmatpush1.bf16.msra.mxu0 0
      %442 = vmatprep.subr.bf16.mxu0 0
      %443 = vmatpush1.bf16.msra.mxu0 0
      %444 = vmatprep.subr.bf16.mxu0 0
      %445 = vmatpush1.bf16.msra.mxu0 0
      %446 = vmatprep.subr.bf16.mxu0 0
      %447 = vmatpush1.bf16.msra.mxu0 0
      %448 = vmatprep.subr.bf16.mxu0 0
      %449 = vmatpush1.bf16.msra.mxu0 0
      %450 = vmatprep.mubr.bf16.mxu0 0
      %451 = vmatmul.mubr.bf16.gmra.mrb[0].mxu0 %v416
      %v452 = vpop.f32.mrb[0].mxu0
      %v453 = vadd.f32 %v274, %v452
      %v454 = vpop.f32.mrb[0].mxu0
      %v455 = vpop.f32.mrb[0].mxu0
      %v456 = vadd.f32 %v274, %v455
      %v457 = vpop.f32.mrb[0].mxu0
      %458 = vdwg.mxu0
      %v459 = vmax.f32 %v453, 0.0
      %v460 = vmax.f32 %v456, 0.0
      %v461 = vadd.s32 %v337, 2
      %v462 = vadd.s32 %v338, 2
      %vm463 = vcmp.ge.s32.totalorder %v461, 0
      %vm464 = vcmp.ge.s32.totalorder %v462, 0
      %vm465 = vcmp.lt.s32.totalorder %v461, 32
      %vm466 = vcmp.lt.s32.totalorder %v462, 32
      %vm467 = vmand %vm463, %vm465
      %vm468 = vmand %vm464, %vm466
      %v469 = vsel %vm467, %v459, 0.0
      %v470 = vsel %vm468, %v460, 0.0
      %v471 = vmax.f32 %v345, %v406
      %v472 = vmax.f32 %v346, %v407
      %v473 = vmax.f32 %v471, %v469
      %v474 = vmax.f32 %v472, %v470
      %v475 = vpack.c.bf16 %v474, %v473
      %v477 = vunpack.c.l.b16 %v475
      %v478 = vunpack.c.h.b16 %v475
      %v479 = vpack.c.b16 %v477, %v477
      %v480 = vpack.c.b16 %v478, %v478
      %vm483 = vcmask 519168
      %484 = vst.msk [vmem:[%s264] sm:$0xf] %vm483, %v479
      %485 = vst.msk [vmem:[%s264 + $0x4] sm:$0xf] %vm483, %v480
      %p486 = scmp.lt.s32.totalorder %s16, 1
      %s487 = scalar_select %p486, %s16, 1
      %s488 = smul.addr %s487, 2
      %s489 = smul.addr %s488, 4
      %s490 = scalar_lea.vmem %s5, %s489
      // Predicated region
      $region41: #{forward.6} parent=39 // pred_check
        %p491 = pneg %p154
      $region42: #{forward.6} parent=39 // pred_check_branch
        %493 = sbr.rel (%p491) target = $region44
      $region43: #{forward.6} parent=39 // pred_region
        _
      $region44: #{forward.6} parent=39 // pred_fallthru
        _
    $region40: #{forward.6} parent=5 // pred_fallthru
      _
    %p494 = scmp.le.s32.totalorder 2, %s11
    // Predicated region
    $region45: #{forward.6} parent=5 // pred_check
      %p495 = pneg %p494
    $region46: #{forward.6} parent=5 // pred_check_branch
      %497 = sbr.rel (%p495) target = $region48
    $region47: #{forward.6} parent=5 // pred_region
      %s498 = ssub.s32 %s11, 2
      // Predicated region
      $region49: #{forward.6} parent=47 // pred_check
        %p499 = pneg %p160
      $region50: #{forward.6} parent=47 // pred_check_branch
        %501 = sbr.rel (%p499) target = $region52
      $region51: #{forward.6} parent=47 // pred_region
        %p502 = scmp.lt.s32.totalorder %s17, 1
        %s503 = scalar_select %p502, %s17, 1
        %s504 = smul.addr %s503, 2
        %s505 = smul.addr %s504, 4
        %s506 = scalar_lea.vmem %s5, %s505
      $region52: #{forward.6} parent=47 // pred_fallthru
        _
    $region48: #{forward.6} parent=5 // pred_fallthru
      _
  $region6: #{forward.6} parent=0 // loop_footer
    %s15 = sadd.s32 1, %s11
  $region7: #{forward.6} parent=0 // loop_footer_branch
    %10 = sbr.rel target = $region3
  $region8: #{forward.6} parent=0 // loop_exit
    _

// kernel: forward.7
$region0: #{forward.7}
  #allocation0 [shape = 'u32[]', space=smem, size = 0x4, offset = 0x4, fixed_abs, tag = 'smem constant byte address 0x4 - core index']
  #allocation1 [shape = 'u32[144,128]{1,0:T(1,128)}', space=vmem, size = 0x12000, scoped, tag = 'internal scratch']
  #allocation2 [shape = 'bf16[24,64]{1,0:T(8,128)(2,1)}', space=vmem, size = 0x1800, scoped, tag = 'scratch operand']
  %s0 = inlined_call_operand.vmem [shape: bf16[2,24,64], index: 0, kind: input, shape index: {}]
  %s1 = inlined_call_operand.vmem [shape: bf16[3,64,64], index: 1, kind: input, shape index: {}]
  %s2 = inlined_call_operand.vmem [shape: bf16[3,64,16], index: 2, kind: input, shape index: {}]
  %s3 = inlined_call_operand.vmem [shape: bf16[3,7,16,64], index: 3, kind: input, shape index: {}]
  %s4 = inlined_call_operand.vmem [shape: f32[3,1,64], index: 4, kind: input, shape index: {}]
  %s5 = inlined_call_operand.vmem [shape: bf16[2,16,64], index: 5, kind: output, shape index: {}]
  %s6 = sld [smem:[#allocation0]]
  $region53: #{forward.7} parent=0
    _
  %s8 = ssub.s32 1, %s6
  %s9 = scalar_select 0, %s8, %s6
  loop: start=0, step=1, limit=4
  $region2: #{forward.7} parent=0 // loop_pre_header
    _
  $region3: #{forward.7} parent=0 // loop_header
    %s11 = sphi 0, %s15
    %p12 = scmp.ge.s32.totalorder %s11, 4
    %s21 = sphi 0, %s23
    %s24 = sphi 0, %s21
    %s25 = sphi 0, %s24
    %s41 = sphi 0, %s25
    %s45 = sphi 0, %s45
    %s47 = sphi 0, %s45
    %s48 = sphi 0, %s47
    %s62 = sphi 0, %s48
    %s66 = sphi 0, %s66
    %s68 = sphi 0, %s66
    %s69 = sphi 0, %s68
    %s83 = sphi 0, %s69
    %s87 = sphi 0, %s87
    %s89 = sphi 0, %s87
    %s90 = sphi 0, %s89
    %s104 = sphi 0, %s90
    %s108 = sphi 0, %s108
    %s110 = sphi 0, %s108
    %s111 = sphi 0, %s110
    %s125 = sphi 0, %s111
    %s131 = sphi 0, %s133
    %s134 = sphi 0, %s131
    %s135 = sphi 0, %s134
    %s151 = sphi 0, %s135
  $region4: #{forward.7} parent=0 // loop_header_branch
    %14 = sbr.rel (%p12) target = $region8
  $region5: #{forward.7} parent=0 // loop_body
    %s16 = ssub.s32 %s11, 1
    %s17 = ssub.s32 %s11, 2
    %s18 = sadd.s32 %s11, 1
    %s19 = ssub.s32 %s11, %s18
    %p20 = scmp.eq.s32.totalorder %s19, 0
    %s22 = sadd.s32 %s21, 1
    %s23 = scalar_select %p20, %s21, %s22
    %p26 = pneg %p20
    %p27 = scmp.eq.s32.totalorder %s11, 1
    %p28 = por %p26, %p27
    %p29 = scmp.ne.s32.totalorder %s21, %s24
    %p30 = scmp.eq.s32.totalorder %s11, 0
    %p31 = por %p29, %p30
    %p32 = scmp.ne.s32.totalorder %s21, %s24
    %p33 = scmp.eq.s32.totalorder %s16, 1
    %p34 = por %p32, %p33
    %p35 = scmp.ne.s32.totalorder %s24, %s25
    %p36 = scmp.eq.s32.totalorder %s16, 0
    %p37 = por %p35, %p36
    %p38 = scmp.ne.s32.totalorder %s24, %s25
    %p39 = scmp.eq.s32.totalorder %s17, 1
    %p40 = por %p38, %p39
    %p42 = scmp.ne.s32.totalorder %s25, %s41
    %p43 = scmp.eq.s32.totalorder %s17, 0
    %p44 = por %p42, %p43
    %s46 = sadd.s32 %s45, 1
    %p49 = scmp.eq.s32.totalorder %s11, 1
    %p50 = scmp.ne.s32.totalorder %s45, %s47
    %p51 = scmp.eq.s32.totalorder %s11, 0
    %p52 = por %p50, %p51
    %p53 = scmp.ne.s32.totalorder %s45, %s47
    %p54 = scmp.eq.s32.totalorder %s16, 1
    %p55 = por %p53, %p54
    %p56 = scmp.ne.s32.totalorder %s47, %s48
    %p57 = scmp.eq.s32.totalorder %s16, 0
    %p58 = por %p56, %p57
    %p59 = scmp.ne.s32.totalorder %s47, %s48
    %p60 = scmp.eq.s32.totalorder %s17, 1
    %p61 = por %p59, %p60
    %p63 = scmp.ne.s32.totalorder %s48, %s62
    %p64 = scmp.eq.s32.totalorder %s17, 0
    %p65 = por %p63, %p64
    %s67 = sadd.s32 %s66, 1
    %p70 = scmp.eq.s32.totalorder %s11, 1
    %p71 = scmp.ne.s32.totalorder %s66, %s68
    %p72 = scmp.eq.s32.totalorder %s11, 0
    %p73 = por %p71, %p72
    %p74 = scmp.ne.s32.totalorder %s66, %s68
    %p75 = scmp.eq.s32.totalorder %s16, 1
    %p76 = por %p74, %p75
    %p77 = scmp.ne.s32.totalorder %s68, %s69
    %p78 = scmp.eq.s32.totalorder %s16, 0
    %p79 = por %p77, %p78
    %p80 = scmp.ne.s32.totalorder %s68, %s69
    %p81 = scmp.eq.s32.totalorder %s17, 1
    %p82 = por %p80, %p81
    %p84 = scmp.ne.s32.totalorder %s69, %s83
    %p85 = scmp.eq.s32.totalorder %s17, 0
    %p86 = por %p84, %p85
    %s88 = sadd.s32 %s87, 1
    %p91 = scmp.eq.s32.totalorder %s11, 1
    %p92 = scmp.ne.s32.totalorder %s87, %s89
    %p93 = scmp.eq.s32.totalorder %s11, 0
    %p94 = por %p92, %p93
    %p95 = scmp.ne.s32.totalorder %s87, %s89
    %p96 = scmp.eq.s32.totalorder %s16, 1
    %p97 = por %p95, %p96
    %p98 = scmp.ne.s32.totalorder %s89, %s90
    %p99 = scmp.eq.s32.totalorder %s16, 0
    %p100 = por %p98, %p99
    %p101 = scmp.ne.s32.totalorder %s89, %s90
    %p102 = scmp.eq.s32.totalorder %s17, 1
    %p103 = por %p101, %p102
    %p105 = scmp.ne.s32.totalorder %s90, %s104
    %p106 = scmp.eq.s32.totalorder %s17, 0
    %p107 = por %p105, %p106
    %s109 = sadd.s32 %s108, 1
    %p112 = scmp.eq.s32.totalorder %s11, 1
    %p113 = scmp.ne.s32.totalorder %s108, %s110
    %p114 = scmp.eq.s32.totalorder %s11, 0
    %p115 = por %p113, %p114
    %p116 = scmp.ne.s32.totalorder %s108, %s110
    %p117 = scmp.eq.s32.totalorder %s16, 1
    %p118 = por %p116, %p117
    %p119 = scmp.ne.s32.totalorder %s110, %s111
    %p120 = scmp.eq.s32.totalorder %s16, 0
    %p121 = por %p119, %p120
    %p122 = scmp.ne.s32.totalorder %s110, %s111
    %p123 = scmp.eq.s32.totalorder %s17, 1
    %p124 = por %p122, %p123
    %p126 = scmp.ne.s32.totalorder %s111, %s125
    %p127 = scmp.eq.s32.totalorder %s17, 0
    %p128 = por %p126, %p127
    %s129 = ssub.s32 %s11, %s18
    %p130 = scmp.eq.s32.totalorder %s129, 0
    %s132 = sadd.s32 %s131, 1
    %s133 = scalar_select %p130, %s131, %s132
    %p136 = pneg %p130
    %p137 = scmp.eq.s32.totalorder %s11, 1
    %p138 = por %p136, %p137
    %p139 = scmp.ne.s32.totalorder %s131, %s134
    %p140 = scmp.eq.s32.totalorder %s11, 0
    %p141 = por %p139, %p140
    %p142 = scmp.ne.s32.totalorder %s131, %s134
    %p143 = scmp.eq.s32.totalorder %s16, 1
    %p144 = por %p142, %p143
    %p145 = scmp.ne.s32.totalorder %s134, %s135
    %p146 = scmp.eq.s32.totalorder %s16, 0
    %p147 = por %p145, %p146
    %p148 = scmp.ne.s32.totalorder %s134, %s135
    %p149 = scmp.eq.s32.totalorder %s17, 1
    %p150 = por %p148, %p149
    %p152 = scmp.ne.s32.totalorder %s135, %s151
    %p153 = scmp.eq.s32.totalorder %s17, 0
    %p154 = por %p152, %p153
    %p155 = scmp.le.s32.totalorder 1, %s11
    %p156 = scmp.lt.s32.totalorder %s11, 3
    %p157 = pnand %p155, %p156
    %p158 = pneg %p157
    // Predicated region
    $region9: #{forward.7} parent=5 // pred_check
      _
    $region10: #{forward.7} parent=5 // pred_check_branch
      %160 = sbr.rel (%p157) target = $region12
    $region11: #{forward.7} parent=5 // pred_region
      %s161 = ssub.s32 %s11, 1
      // Predicated region
      $region13: #{forward.7} parent=11 // pred_check
        %p162 = pneg %p58
      $region14: #{forward.7} parent=11 // pred_check_branch
        %164 = sbr.rel (%p162) target = $region16
      $region15: #{forward.7} parent=11 // pred_region
        _
      $region16: #{forward.7} parent=11 // pred_fallthru
        _
      // Predicated region
      $region17: #{forward.7} parent=11 // pred_check
        %p165 = pneg %p79
      $region18: #{forward.7} parent=11 // pred_check_branch
        %167 = sbr.rel (%p165) target = $region20
      $region19: #{forward.7} parent=11 // pred_region
        _
      $region20: #{forward.7} parent=11 // pred_fallthru
        _
      // Predicated region
      $region21: #{forward.7} parent=11 // pred_check
        %p168 = pneg %p100
      $region22: #{forward.7} parent=11 // pred_check_branch
        %170 = sbr.rel (%p168) target = $region24
      $region23: #{forward.7} parent=11 // pred_region
        _
      $region24: #{forward.7} parent=11 // pred_fallthru
        _
      // Predicated region
      $region25: #{forward.7} parent=11 // pred_check
        %p171 = pneg %p121
      $region26: #{forward.7} parent=11 // pred_check_branch
        %173 = sbr.rel (%p171) target = $region28
      $region27: #{forward.7} parent=11 // pred_region
        _
      $region28: #{forward.7} parent=11 // pred_fallthru
        _
    $region12: #{forward.7} parent=5 // pred_fallthru
      _
    %p174 = scmp.lt.s32.totalorder %s11, 2
    // Predicated region
    $region29: #{forward.7} parent=5 // pred_check
      %p175 = pneg %p174
    $region30: #{forward.7} parent=5 // pred_check_branch
      %177 = sbr.rel (%p175) target = $region32
    $region31: #{forward.7} parent=5 // pred_region
      // Predicated region
      $region33: #{forward.7} parent=31 // pred_check
        %p178 = pneg %p31
      $region34: #{forward.7} parent=31 // pred_check_branch
        %180 = sbr.rel (%p178) target = $region36
      $region35: #{forward.7} parent=31 // pred_region
        %p181 = scmp.lt.s32.totalorder %s11, 1
        %s182 = scalar_select %p181, %s11, 1
        %s183 = smul.addr %s182, 3
        %s184 = smul.addr %s183, 4
        %s185 = scalar_lea.vmem %s0, %s184
      $region36: #{forward.7} parent=31 // pred_fallthru
        _
    $region32: #{forward.7} parent=5 // pred_fallthru
      _
    %p186 = scmp.le.s32.totalorder 1, %s11
    %p187 = scmp.lt.s32.totalorder %s11, 3
    %p188 = pnand %p186, %p187
    %p189 = pneg %p188
    // Predicated region
    $region37: #{forward.7} parent=5 // pred_check
      _
    $region38: #{forward.7} parent=5 // pred_check_branch
      %191 = sbr.rel (%p188) target = $region40
    $region39: #{forward.7} parent=5 // pred_region
      %s192 = ssub.s32 %s11, 1
      %p193 = scmp.lt.s32.totalorder %s16, 1
      %s194 = scalar_select %p193, %s16, 1
      %s195 = smul.addr %s194, 3
      %s196 = smul.addr %s195, 4
      %s197 = scalar_lea.vmem %s0, %s196
      %p198 = pneg %p37
      %p199 = pneg %p34
      %p200 = pneg %p58
      %p201 = pneg %p55
      %p202 = pneg %p79
      %p203 = pneg %p76
      %p204 = pneg %p100
      %p205 = pneg %p97
      %p206 = pneg %p121
      %p207 = pneg %p118
      %p208 = pneg %p147
      %p209 = pneg %p144
      %p210 = scmp.lt.s32.totalorder %s16, 1
      %s211 = scalar_select %p210, %s16, 1
      %s212 = smul.addr %s211, 2
      %s213 = smul.addr %s212, 4
      %s214 = scalar_lea.vmem %s5, %s213
      %p215 = scmp.lt.s32.totalorder %s16, 1
      %s216 = scalar_select %p215, %s16, 1
      %s217 = smul.addr %s216, 3
      %s218 = smul.addr %s217, 4
      %s219 = scalar_lea.vmem %s0, %s218
      %p220 = scmp.lt.s32.totalorder %s16, 1
      %s221 = scalar_select %p220, %s16, 1
      %s222 = smul.addr %s221, 2
      %s223 = smul.addr %s222, 4
      %s224 = scalar_lea.vmem %s5, %s223
      %v226 = vld [vmem:[%s219] sm:$0xf]
      %v227 = vld [vmem:[%s219 + $0x4] sm:$0xf]
      %v228 = vld [vmem:[%s219 + $0x8] sm:$0xf]
      %vm229 = vcmask 519168
      %230 = vst.msk [vmem:[#allocation2] sm:$0xf] %vm229, 0
      %231 = vst.msk [vmem:[#allocation2 + $0x4] sm:$0xf] %vm229, 0
      %232 = vst.msk [vmem:[#allocation2 + $0x8] sm:$0xf] %vm229, 0
      %v233 = vunpack.c.l.bf16 %v226
      %v234 = vunpack.c.l.bf16 %v227
      %v235 = vunpack.c.l.bf16 %v228
      %vm239 = vcmask 1046528
      %v240 = vrot.slane %v233, 1
      %v241 = vrot.slane %v234, 1
      %v242 = vsel %vm239, %v240, %v241
      %v243 = vrot.slane %v235, 1
      %v244 = vsel %vm239, %v241, %v243
      %v248 = vmax.f32 %v233, %v242
      %v249 = vmax.f32 %v234, %v244
      %v250 = vmax.f32 %v235, %v243
      %vm251 = vcmask 1045504
      %v252 = vrot.slane %v233, 2
      %v253 = vrot.slane %v234, 2
      %v254 = vsel %vm251, %v252, %v253
      %v255 = vrot.slane %v235, 2
      %v256 = vsel %vm251, %v253, %v255
      %v260 = vmax.f32 %v248, %v254
      %v261 = vmax.f32 %v249, %v256
      %v262 = vmax.f32 %v250, %v255
      %v263 = vpack.c.bf16 %v261, %v260
      %v264 = vpack.c.bf16 %v262, %v262
      %v265 = vld [vmem:[%s1] sm:$0xf]
      %v266 = vld [vmem:[%s1 + $0x4] sm:$0xf]
      %v267 = vld [vmem:[%s1 + $0x8] sm:$0xf]
      %v268 = vld [vmem:[%s1 + $0xc] sm:$0xf]
      %v269 = vld [vmem:[%s1 + $0x10] sm:$0xf]
      %v270 = vld [vmem:[%s1 + $0x14] sm:$0xf]
      %v271 = vld [vmem:[%s1 + $0x18] sm:$0xf]
      %v272 = vld [vmem:[%s1 + $0x1c] sm:$0xf]
      %v273 = vld [vmem:[%s2] sm:$0xf]
      %v274 = vld [vmem:[%s2 + $0x4] sm:$0xf]
      %v275 = vld [vmem:[%s2 + $0x8] sm:$0xf]
      %v276 = vld [vmem:[%s2 + $0xc] sm:$0xf]
      %v277 = vld [vmem:[%s2 + $0x10] sm:$0xf]
      %v278 = vld [vmem:[%s2 + $0x14] sm:$0xf]
      %v279 = vld [vmem:[%s2 + $0x18] sm:$0xf]
      %v280 = vld [vmem:[%s2 + $0x1c] sm:$0xf]
      %v284 = vunpack.c.l.b16 %v226
      %v285 = vunpack.c.l.b16 %v227
      %v286 = vunpack.c.l.b16 %v228
      %v287 = vpack.c.b16 %v285, %v284
      %v288 = vpack.c.b16 %v286, %v286
      %v297 = vunpack.c.l.b16 %v273
      %v298 = vunpack.c.l.b16 %v274
      %v299 = vunpack.c.l.b16 %v275
      %v300 = vunpack.c.l.b16 %v276
      %v301 = vunpack.c.l.b16 %v277
      %v302 = vunpack.c.l.b16 %v278
      %v303 = vunpack.c.l.b16 %v279
      %v304 = vunpack.c.l.b16 %v280
      %v305 = vpack.c.b16 %v298, %v297
      %v306 = vpack.c.b16 %v300, %v299
      %v307 = vpack.c.b16 %v302, %v301
      %v308 = vpack.c.b16 %v304, %v303
      %vm313 = vcmask 523264
      %v315 = vsel %vm313, %v287, 0
      %v318 = vsel %vm313, %v288, 0
      %320 = vmatprep.subr.bf16.mxu0 0
      %321 = vmatpush1.bf16.msra.mxu0 %v305
      %322 = vmatprep.subr.bf16.mxu0 0
      %323 = vmatpush1.bf16.msra.mxu0 %v306
      %324 = vmatprep.subr.bf16.mxu0 0
      %325 = vmatpush1.bf16.msra.mxu0 %v307
      %326 = vmatprep.subr.bf16.mxu0 0
      %327 = vmatpush1.bf16.msra.mxu0 %v308
      %328 = vmatprep.subr.bf16.mxu0 0
      %329 = vmatpush1.bf16.msra.mxu0 0
      %330 = vmatprep.subr.bf16.mxu0 0
      %331 = vmatpush1.bf16.msra.mxu0 0
      %332 = vmatprep.subr.bf16.mxu0 0
      %333 = vmatpush1.bf16.msra.mxu0 0
      %334 = vmatprep.subr.bf16.mxu0 0
      %335 = vmatpush1.bf16.msra.mxu0 0
      %336 = vmatprep.subr.bf16.mxu0 0
      %337 = vmatpush1.bf16.msra.mxu0 0
      %338 = vmatprep.subr.bf16.mxu0 0
      %339 = vmatpush1.bf16.msra.mxu0 0
      %340 = vmatprep.subr.bf16.mxu0 0
      %341 = vmatpush1.bf16.msra.mxu0 0
      %342 = vmatprep.subr.bf16.mxu0 0
      %343 = vmatpush1.bf16.msra.mxu0 0
      %344 = vmatprep.subr.bf16.mxu0 0
      %345 = vmatpush1.bf16.msra.mxu0 0
      %346 = vmatprep.subr.bf16.mxu0 0
      %347 = vmatpush1.bf16.msra.mxu0 0
      %348 = vmatprep.subr.bf16.mxu0 0
      %349 = vmatpush1.bf16.msra.mxu0 0
      %350 = vmatprep.subr.bf16.mxu0 0
      %351 = vmatpush1.bf16.msra.mxu0 0
      %352 = vmatprep.mubr.bf16.mxu0 0
      %353 = vmatmul.mubr.bf16.gmra.mrb[0].mxu0 %v315
      %v354 = vpop.f32.mrb[0].mxu0
      %v355 = vadd.f32 0.0, %v354
      %v356 = vpop.f32.mrb[0].mxu0
      %v357 = vpop.f32.mrb[0].mxu0
      %v358 = vadd.f32 0.0, %v357
      %v359 = vpop.f32.mrb[0].mxu0
      %360 = vmatprep.mubr.bf16.mxu0 0
      %361 = vmatmul.mubr.bf16.gmra.mrb[0].mxu0 %v318
      %v362 = vpop.f32.mrb[0].mxu0
      %v363 = vadd.f32 0.0, %v362
      %v364 = vpop.f32.mrb[0].mxu0
      %v365 = vpop.f32.mrb[0].mxu0
      %v366 = vpop.f32.mrb[0].mxu0
      %367 = vdwg.mxu0
      %v368 = vpack.c.bf16 %v358, %v355
      %v369 = vpack.c.bf16 %v363, %v363
      %v370 = vld [vmem:[%s3] sm:$0xf]
      %v371 = vld [vmem:[%s3 + $0x4] sm:$0xf]
      %vm372 = vsmask.f32 7424
      %v374 = vshrl.u32 %v368, 16
      %v376 = vshll.u32 %v368, 16
      %v378 = vrot.slane %v376, 1
      %v379 = vor.u32 %v374, %v378
      %v381 = vshll.u32 %v369, 16
      %v383 = vrot.slane %v381, 1
      %v384 = vsel %vm372, %v379, %v383
      %v387 = vunpack.c.l.b16 %v370
      %v388 = vunpack.c.l.b16 %v371
      %v389 = vpack.c.b16 %v388, %v387
      %vm391 = vcmask 130048
      %v393 = vsel %vm391, %v384, 0
      %395 = vmatprep.subr.bf16.mxu0 0
      %396 = vmatpush1.bf16.msra.mxu0 %v389
      %397 = vmatprep.subr.bf16.mxu0 0
      %398 = vmatpush1.bf16.msra.mxu0 0
      %399 = vmatprep.subr.bf16.mxu0 0
      %400 = vmatpush1.bf16.msra.mxu0 0
      %401 = vmatprep.subr.bf16.mxu0 0
      %402 = vmatpush1.bf16.msra.mxu0 0
      %403 = vmatprep.subr.bf16.mxu0 0
      %404 = vmatpush1.bf16.msra.mxu0 0
      %405 = vmatprep.subr.bf16.mxu0 0
      %406 = vmatpush1.bf16.msra.mxu0 0
      %407 = vmatprep.subr.bf16.mxu0 0
      %408 = vmatpush1.bf16.msra.mxu0 0
      %409 = vmatprep.subr.bf16.mxu0 0
      %410 = vmatpush1.bf16.msra.mxu0 0
      %411 = vmatprep.subr.bf16.mxu0 0
      %412 = vmatpush1.bf16.msra.mxu0 0
      %413 = vmatprep.subr.bf16.mxu0 0
      %414 = vmatpush1.bf16.msra.mxu0 0
      %415 = vmatprep.subr.bf16.mxu0 0
      %416 = vmatpush1.bf16.msra.mxu0 0
      %417 = vmatprep.subr.bf16.mxu0 0
      %418 = vmatpush1.bf16.msra.mxu0 0
      %419 = vmatprep.subr.bf16.mxu0 0
      %420 = vmatpush1.bf16.msra.mxu0 0
      %421 = vmatprep.subr.bf16.mxu0 0
      %422 = vmatpush1.bf16.msra.mxu0 0
      %423 = vmatprep.subr.bf16.mxu0 0
      %424 = vmatpush1.bf16.msra.mxu0 0
      %425 = vmatprep.subr.bf16.mxu0 0
      %426 = vmatpush1.bf16.msra.mxu0 0
      %427 = vmatprep.mubr.bf16.mxu0 0
      %428 = vmatmul.mubr.bf16.gmra.mrb[0].mxu0 %v393
      %v429 = vpop.f32.mrb[0].mxu0
      %v430 = vadd.f32 0.0, %v429
      %v431 = vpop.f32.mrb[0].mxu0
      %v432 = vpop.f32.mrb[0].mxu0
      %v433 = vadd.f32 0.0, %v432
      %v434 = vpop.f32.mrb[0].mxu0
      %435 = vdwg.mxu0
      %vm436 = vsmask.f32 6400
      %v438 = vshrl.u32 %v263, 16
      %v440 = vrot.slane %v438, 1
      %v441 = vshll.u32 %v263, 16
      %v443 = vrot.slane %v441, 2
      %v444 = vor.u32 %v440, %v443
      %v446 = vshrl.u32 %v264, 16
      %v448 = vrot.slane %v446, 1
      %v449 = vshll.u32 %v264, 16
      %v451 = vrot.slane %v449, 2
      %v452 = vor.u32 %v448, %v451
      %v453 = vsel %vm436, %v444, %v452
      %v462 = vunpack.c.l.b16 %v265
      %v463 = vunpack.c.l.b16 %v266
      %v464 = vunpack.c.l.b16 %v267
      %v465 = vunpack.c.l.b16 %v268
      %v466 = vunpack.c.l.b16 %v269
      %v467 = vunpack.c.l.b16 %v270
      %v468 = vunpack.c.l.b16 %v271
      %v469 = vunpack.c.l.b16 %v272
      %v470 = vpack.c.b16 %v463, %v462
      %v471 = vpack.c.b16 %v465, %v464
      %v472 = vpack.c.b16 %v467, %v466
      %v473 = vpack.c.b16 %v469, %v468
      %v479 = vsel %vm313, %v453, 0
      %481 = vmatprep.subr.bf16.mxu0 0
      %482 = vmatpush1.bf16.msra.mxu0 %v470
      %483 = vmatprep.subr.bf16.mxu0 0
      %484 = vmatpush1.bf16.msra.mxu0 %v471
      %485 = vmatprep.subr.bf16.mxu0 0
      %486 = vmatpush1.bf16.msra.mxu0 %v472
      %487 = vmatprep.subr.bf16.mxu0 0
      %488 = vmatpush1.bf16.msra.mxu0 %v473
      %489 = vmatprep.subr.bf16.mxu0 0
      %490 = vmatpush1.bf16.msra.mxu0 0
      %491 = vmatprep.subr.bf16.mxu0 0
      %492 = vmatpush1.bf16.msra.mxu0 0
      %493 = vmatprep.subr.bf16.mxu0 0
      %494 = vmatpush1.bf16.msra.mxu0 0
      %495 = vmatprep.subr.bf16.mxu0 0
      %496 = vmatpush1.bf16.msra.mxu0 0
      %497 = vmatprep.subr.bf16.mxu0 0
      %498 = vmatpush1.bf16.msra.mxu0 0
      %499 = vmatprep.subr.bf16.mxu0 0
      %500 = vmatpush1.bf16.msra.mxu0 0
      %501 = vmatprep.subr.bf16.mxu0 0
      %502 = vmatpush1.bf16.msra.mxu0 0
      %503 = vmatprep.subr.bf16.mxu0 0
      %504 = vmatpush1.bf16.msra.mxu0 0
      %505 = vmatprep.subr.bf16.mxu0 0
      %506 = vmatpush1.bf16.msra.mxu0 0
      %507 = vmatprep.subr.bf16.mxu0 0
      %508 = vmatpush1.bf16.msra.mxu0 0
      %509 = vmatprep.subr.bf16.mxu0 0
      %510 = vmatpush1.bf16.msra.mxu0 0
      %511 = vmatprep.subr.bf16.mxu0 0
      %512 = vmatpush1.bf16.msra.mxu0 0
      %513 = vmatprep.mubr.bf16.mxu0 0
      %514 = vmatmul.mubr.bf16.gmra.mrb[0].mxu0 %v479
      %v515 = vpop.f32.mrb[0].mxu0
      %v516 = vadd.f32 %v430, %v515
      %v517 = vpop.f32.mrb[0].mxu0
      %v518 = vpop.f32.mrb[0].mxu0
      %v519 = vadd.f32 %v433, %v518
      %v520 = vpop.f32.mrb[0].mxu0
      %521 = vdwg.mxu0
      %s522 = scalar_lea.vmem %s3, 8
      %v523 = vld [vmem:[%s522] sm:$0xf]
      %v524 = vld [vmem:[%s522 + $0x4] sm:$0xf]
      %vm527 = vcmask 1046528
      %v528 = vrot.slane %v368, 1
      %v529 = vrot.slane %v369, 1
      %v530 = vsel %vm527, %v528, %v529
      %v533 = vunpack.c.l.b16 %v523
      %v534 = vunpack.c.l.b16 %v524
      %v535 = vpack.c.b16 %v534, %v533
      %v538 = vsel %vm391, %v530, 0
      %540 = vmatprep.subr.bf16.mxu0 0
      %541 = vmatpush1.bf16.msra.mxu0 %v535
      %542 = vmatprep.subr.bf16.mxu0 0
      %543 = vmatpush1.bf16.msra.mxu0 0
      %544 = vmatprep.subr.bf16.mxu0 0
      %545 = vmatpush1.bf16.msra.mxu0 0
      %546 = vmatprep.subr.bf16.mxu0 0
      %547 = vmatpush1.bf16.msra.mxu0 0
      %548 = vmatprep.subr.bf16.mxu0 0
      %549 = vmatpush1.bf16.msra.mxu0 0
      %550 = vmatprep.subr.bf16.mxu0 0
      %551 = vmatpush1.bf16.msra.mxu0 0
      %552 = vmatprep.subr.bf16.mxu0 0
      %553 = vmatpush1.bf16.msra.mxu0 0
      %554 = vmatprep.subr.bf16.mxu0 0
      %555 = vmatpush1.bf16.msra.mxu0 0
      %556 = vmatprep.subr.bf16.mxu0 0
      %557 = vmatpush1.bf16.msra.mxu0 0
      %558 = vmatprep.subr.bf16.mxu0 0
      %559 = vmatpush1.bf16.msra.mxu0 0
      %560 = vmatprep.subr.bf16.mxu0 0
      %561 = vmatpush1.bf16.msra.mxu0 0
      %562 = vmatprep.subr.bf16.mxu0 0
      %563 = vmatpush1.bf16.msra.mxu0 0
      %564 = vmatprep.subr.bf16.mxu0 0
      %565 = vmatpush1.bf16.msra.mxu0 0
      %566 = vmatprep.subr.bf16.mxu0 0
      %567 = vmatpush1.bf16.msra.mxu0 0
      %568 = vmatprep.subr.bf16.mxu0 0
      %569 = vmatpush1.bf16.msra.mxu0 0
      %570 = vmatprep.subr.bf16.mxu0 0
      %571 = vmatpush1.bf16.msra.mxu0 0
      %572 = vmatprep.mubr.bf16.mxu0 0
      %573 = vmatmul.mubr.bf16.gmra.mrb[0].mxu0 %v538
      %v574 = vpop.f32.mrb[0].mxu0
      %v575 = vadd.f32 0.0, %v574
      %v576 = vpop.f32.mrb[0].mxu0
      %v577 = vpop.f32.mrb[0].mxu0
      %v578 = vadd.f32 0.0, %v577
      %v579 = vpop.f32.mrb[0].mxu0
      %580 = vdwg.mxu0
      %v581 = vadd.f32 %v516, %v575
      %v582 = vadd.f32 %v519, %v578
      %s583 = scalar_lea.vmem %s3, 16
      %v584 = vld [vmem:[%s583] sm:$0xf]
      %v585 = vld [vmem:[%s583 + $0x4] sm:$0xf]
      %v586 = vrot.slane %v374, 1
      %v587 = vrot.slane %v376, 2
      %v588 = vor.u32 %v586, %v587
      %v589 = vshrl.u32 %v369, 16
      %v591 = vrot.slane %v589, 1
      %v592 = vrot.slane %v381, 2
      %v593 = vor.u32 %v591, %v592
      %v594 = vsel %vm436, %v588, %v593
      %v597 = vunpack.c.l.b16 %v584
      %v598 = vunpack.c.l.b16 %v585
      %v599 = vpack.c.b16 %v598, %v597
      %v602 = vsel %vm391, %v594, 0
      %604 = vmatprep.subr.bf16.mxu0 0
      %605 = vmatpush1.bf16.msra.mxu0 %v599
      %606 = vmatprep.subr.bf16.mxu0 0
      %607 = vmatpush1.bf16.msra.mxu0 0
      %608 = vmatprep.subr.bf16.mxu0 0
      %609 = vmatpush1.bf16.msra.mxu0 0
      %610 = vmatprep.subr.bf16.mxu0 0
      %611 = vmatpush1.bf16.msra.mxu0 0
      %612 = vmatprep.subr.bf16.mxu0 0
      %613 = vmatpush1.bf16.msra.mxu0 0
      %614 = vmatprep.subr.bf16.mxu0 0
      %615 = vmatpush1.bf16.msra.mxu0 0
      %616 = vmatprep.subr.bf16.mxu0 0
      %617 = vmatpush1.bf16.msra.mxu0 0
      %618 = vmatprep.subr.bf16.mxu0 0
      %619 = vmatpush1.bf16.msra.mxu0 0
      %620 = vmatprep.subr.bf16.mxu0 0
      %621 = vmatpush1.bf16.msra.mxu0 0
      %622 = vmatprep.subr.bf16.mxu0 0
      %623 = vmatpush1.bf16.msra.mxu0 0
      %624 = vmatprep.subr.bf16.mxu0 0
      %625 = vmatpush1.bf16.msra.mxu0 0
      %626 = vmatprep.subr.bf16.mxu0 0
      %627 = vmatpush1.bf16.msra.mxu0 0
      %628 = vmatprep.subr.bf16.mxu0 0
      %629 = vmatpush1.bf16.msra.mxu0 0
      %630 = vmatprep.subr.bf16.mxu0 0
      %631 = vmatpush1.bf16.msra.mxu0 0
      %632 = vmatprep.subr.bf16.mxu0 0
      %633 = vmatpush1.bf16.msra.mxu0 0
      %634 = vmatprep.subr.bf16.mxu0 0
      %635 = vmatpush1.bf16.msra.mxu0 0
      %636 = vmatprep.mubr.bf16.mxu0 0
      %637 = vmatmul.mubr.bf16.gmra.mrb[0].mxu0 %v602
      %v638 = vpop.f32.mrb[0].mxu0
      %v639 = vadd.f32 0.0, %v638
      %v640 = vpop.f32.mrb[0].mxu0
      %v641 = vpop.f32.mrb[0].mxu0
      %v642 = vadd.f32 0.0, %v641
      %v643 = vpop.f32.mrb[0].mxu0
      %644 = vdwg.mxu0
      %v645 = vadd.f32 %v581, %v639
      %v646 = vadd.f32 %v582, %v642
      %s647 = scalar_lea.vmem %s3, 24
      %v648 = vld [vmem:[%s647] sm:$0xf]
      %v649 = vld [vmem:[%s647 + $0x4] sm:$0xf]
      %vm650 = vcmask 1045504
      %v651 = vrot.slane %v368, 2
      %v652 = vrot.slane %v369, 2
      %v653 = vsel %vm650, %v651, %v652
      %v656 = vunpack.c.l.b16 %v648
      %v657 = vunpack.c.l.b16 %v649
      %v658 = vpack.c.b16 %v657, %v656
      %v661 = vsel %vm391, %v653, 0
      %663 = vmatprep.subr.bf16.mxu0 0
      %664 = vmatpush1.bf16.msra.mxu0 %v658
      %665 = vmatprep.subr.bf16.mxu0 0
      %666 = vmatpush1.bf16.msra.mxu0 0
      %667 = vmatprep.subr.bf16.mxu0 0
      %668 = vmatpush1.bf16.msra.mxu0 0
      %669 = vmatprep.subr.bf16.mxu0 0
      %670 = vmatpush1.bf16.msra.mxu0 0
      %671 = vmatprep.subr.bf16.mxu0 0
      %672 = vmatpush1.bf16.msra.mxu0 0
      %673 = vmatprep.subr.bf16.mxu0 0
      %674 = vmatpush1.bf16.msra.mxu0 0
      %675 = vmatprep.subr.bf16.mxu0 0
      %676 = vmatpush1.bf16.msra.mxu0 0
      %677 = vmatprep.subr.bf16.mxu0 0
      %678 = vmatpush1.bf16.msra.mxu0 0
      %679 = vmatprep.subr.bf16.mxu0 0
      %680 = vmatpush1.bf16.msra.mxu0 0
      %681 = vmatprep.subr.bf16.mxu0 0
      %682 = vmatpush1.bf16.msra.mxu0 0
      %683 = vmatprep.subr.bf16.mxu0 0
      %684 = vmatpush1.bf16.msra.mxu0 0
      %685 = vmatprep.subr.bf16.mxu0 0
      %686 = vmatpush1.bf16.msra.mxu0 0
      %687 = vmatprep.subr.bf16.mxu0 0
      %688 = vmatpush1.bf16.msra.mxu0 0
      %689 = vmatprep.subr.bf16.mxu0 0
      %690 = vmatpush1.bf16.msra.mxu0 0
      %691 = vmatprep.subr.bf16.mxu0 0
      %692 = vmatpush1.bf16.msra.mxu0 0
      %693 = vmatprep.subr.bf16.mxu0 0
      %694 = vmatpush1.bf16.msra.mxu0 0
      %695 = vmatprep.mubr.bf16.mxu0 0
      %696 = vmatmul.mubr.bf16.gmra.mrb[0].mxu0 %v661
      %v697 = vpop.f32.mrb[0].mxu0
      %v698 = vadd.f32 0.0, %v697
      %v699 = vpop.f32.mrb[0].mxu0
      %v700 = vpop.f32.mrb[0].mxu0
      %v701 = vadd.f32 0.0, %v700
      %v702 = vpop.f32.mrb[0].mxu0
      %703 = vdwg.mxu0
      %v704 = vadd.f32 %v645, %v698
      %v705 = vadd.f32 %v646, %v701
      %s706 = scalar_lea.vmem %s3, 32
      %v707 = vld [vmem:[%s706] sm:$0xf]
      %v708 = vld [vmem:[%s706 + $0x4] sm:$0xf]
      %vm709 = vsmask.f32 5376
      %v710 = vrot.slane %v374, 2
      %v711 = vrot.slane %v376, 3
      %v712 = vor.u32 %v710, %v711
      %v713 = vrot.slane %v589, 2
      %v714 = vrot.slane %v381, 3
      %v715 = vor.u32 %v713, %v714
      %v716 = vsel %vm709, %v712, %v715
      %v719 = vunpack.c.l.b16 %v707
      %v720 = vunpack.c.l.b16 %v708
      %v721 = vpack.c.b16 %v720, %v719
      %v724 = vsel %vm391, %v716, 0
      %726 = vmatprep.subr.bf16.mxu0 0
      %727 = vmatpush1.bf16.msra.mxu0 %v721
      %728 = vmatprep.subr.bf16.mxu0 0
      %729 = vmatpush1.bf16.msra.mxu0 0
      %730 = vmatprep.subr.bf16.mxu0 0
      %731 = vmatpush1.bf16.msra.mxu0 0
      %732 = vmatprep.subr.bf16.mxu0 0
      %733 = vmatpush1.bf16.msra.mxu0 0
      %734 = vmatprep.subr.bf16.mxu0 0
      %735 = vmatpush1.bf16.msra.mxu0 0
      %736 = vmatprep.subr.bf16.mxu0 0
      %737 = vmatpush1.bf16.msra.mxu0 0
      %738 = vmatprep.subr.bf16.mxu0 0
      %739 = vmatpush1.bf16.msra.mxu0 0
      %740 = vmatprep.subr.bf16.mxu0 0
      %741 = vmatpush1.bf16.msra.mxu0 0
      %742 = vmatprep.subr.bf16.mxu0 0
      %743 = vmatpush1.bf16.msra.mxu0 0
      %744 = vmatprep.subr.bf16.mxu0 0
      %745 = vmatpush1.bf16.msra.mxu0 0
      %746 = vmatprep.subr.bf16.mxu0 0
      %747 = vmatpush1.bf16.msra.mxu0 0
      %748 = vmatprep.subr.bf16.mxu0 0
      %749 = vmatpush1.bf16.msra.mxu0 0
      %750 = vmatprep.subr.bf16.mxu0 0
      %751 = vmatpush1.bf16.msra.mxu0 0
      %752 = vmatprep.subr.bf16.mxu0 0
      %753 = vmatpush1.bf16.msra.mxu0 0
      %754 = vmatprep.subr.bf16.mxu0 0
      %755 = vmatpush1.bf16.msra.mxu0 0
      %756 = vmatprep.subr.bf16.mxu0 0
      %757 = vmatpush1.bf16.msra.mxu0 0
      %758 = vmatprep.mubr.bf16.mxu0 0
      %759 = vmatmul.mubr.bf16.gmra.mrb[0].mxu0 %v724
      %v760 = vpop.f32.mrb[0].mxu0
      %v761 = vadd.f32 0.0, %v760
      %v762 = vpop.f32.mrb[0].mxu0
      %v763 = vpop.f32.mrb[0].mxu0
      %v764 = vadd.f32 0.0, %v763
      %v765 = vpop.f32.mrb[0].mxu0
      %766 = vdwg.mxu0
      %v767 = vadd.f32 %v704, %v761
      %v768 = vadd.f32 %v705, %v764
      %s769 = scalar_lea.vmem %s3, 40
      %v770 = vld [vmem:[%s769] sm:$0xf]
      %v771 = vld [vmem:[%s769 + $0x4] sm:$0xf]
      %vm772 = vcmask 1044480
      %v773 = vrot.slane %v368, 3
      %v774 = vrot.slane %v369, 3
      %v775 = vsel %vm772, %v773, %v774
      %v778 = vunpack.c.l.b16 %v770
      %v779 = vunpack.c.l.b16 %v771
      %v780 = vpack.c.b16 %v779, %v778
      %v783 = vsel %vm391, %v775, 0
      %785 = vmatprep.subr.bf16.mxu0 0
      %786 = vmatpush1.bf16.msra.mxu0 %v780
      %787 = vmatprep.subr.bf16.mxu0 0
      %788 = vmatpush1.bf16.msra.mxu0 0
      %789 = vmatprep.subr.bf16.mxu0 0
      %790 = vmatpush1.bf16.msra.mxu0 0
      %791 = vmatprep.subr.bf16.mxu0 0
      %792 = vmatpush1.bf16.msra.mxu0 0
      %793 = vmatprep.subr.bf16.mxu0 0
      %794 = vmatpush1.bf16.msra.mxu0 0
      %795 = vmatprep.subr.bf16.mxu0 0
      %796 = vmatpush1.bf16.msra.mxu0 0
      %797 = vmatprep.subr.bf16.mxu0 0
      %798 = vmatpush1.bf16.msra.mxu0 0
      %799 = vmatprep.subr.bf16.mxu0 0
      %800 = vmatpush1.bf16.msra.mxu0 0
      %801 = vmatprep.subr.bf16.mxu0 0
      %802 = vmatpush1.bf16.msra.mxu0 0
      %803 = vmatprep.subr.bf16.mxu0 0
      %804 = vmatpush1.bf16.msra.mxu0 0
      %805 = vmatprep.subr.bf16.mxu0 0
      %806 = vmatpush1.bf16.msra.mxu0 0
      %807 = vmatprep.subr.bf16.mxu0 0
      %808 = vmatpush1.bf16.msra.mxu0 0
      %809 = vmatprep.subr.bf16.mxu0 0
      %810 = vmatpush1.bf16.msra.mxu0 0
      %811 = vmatprep.subr.bf16.mxu0 0
      %812 = vmatpush1.bf16.msra.mxu0 0
      %813 = vmatprep.subr.bf16.mxu0 0
      %814 = vmatpush1.bf16.msra.mxu0 0
      %815 = vmatprep.subr.bf16.mxu0 0
      %816 = vmatpush1.bf16.msra.mxu0 0
      %817 = vmatprep.mubr.bf16.mxu0 0
      %818 = vmatmul.mubr.bf16.gmra.mrb[0].mxu0 %v783
      %v819 = vpop.f32.mrb[0].mxu0
      %v820 = vadd.f32 0.0, %v819
      %v821 = vpop.f32.mrb[0].mxu0
      %v822 = vpop.f32.mrb[0].mxu0
      %v823 = vadd.f32 0.0, %v822
      %v824 = vpop.f32.mrb[0].mxu0
      %825 = vdwg.mxu0
      %v826 = vadd.f32 %v767, %v820
      %v827 = vadd.f32 %v768, %v823
      %s828 = scalar_lea.vmem %s3, 48
      %v829 = vld [vmem:[%s828] sm:$0xf]
      %v830 = vld [vmem:[%s828 + $0x4] sm:$0xf]
      %vm831 = vsmask.f32 4352
      %v832 = vrot.slane %v374, 3
      %v833 = vrot.slane %v376, 4
      %v834 = vor.u32 %v832, %v833
      %v835 = vrot.slane %v589, 3
      %v836 = vrot.slane %v381, 4
      %v837 = vor.u32 %v835, %v836
      %v838 = vsel %vm831, %v834, %v837
      %v841 = vunpack.c.l.b16 %v829
      %v842 = vunpack.c.l.b16 %v830
      %v843 = vpack.c.b16 %v842, %v841
      %v846 = vsel %vm391, %v838, 0
      %848 = vmatprep.subr.bf16.mxu0 0
      %849 = vmatpush1.bf16.msra.mxu0 %v843
      %850 = vmatprep.subr.bf16.mxu0 0
      %851 = vmatpush1.bf16.msra.mxu0 0
      %852 = vmatprep.subr.bf16.mxu0 0
      %853 = vmatpush1.bf16.msra.mxu0 0
      %854 = vmatprep.subr.bf16.mxu0 0
      %855 = vmatpush1.bf16.msra.mxu0 0
      %856 = vmatprep.subr.bf16.mxu0 0
      %857 = vmatpush1.bf16.msra.mxu0 0
      %858 = vmatprep.subr.bf16.mxu0 0
      %859 = vmatpush1.bf16.msra.mxu0 0
      %860 = vmatprep.subr.bf16.mxu0 0
      %861 = vmatpush1.bf16.msra.mxu0 0
      %862 = vmatprep.subr.bf16.mxu0 0
      %863 = vmatpush1.bf16.msra.mxu0 0
      %864 = vmatprep.subr.bf16.mxu0 0
      %865 = vmatpush1.bf16.msra.mxu0 0
      %866 = vmatprep.subr.bf16.mxu0 0
      %867 = vmatpush1.bf16.msra.mxu0 0
      %868 = vmatprep.subr.bf16.mxu0 0
      %869 = vmatpush1.bf16.msra.mxu0 0
      %870 = vmatprep.subr.bf16.mxu0 0
      %871 = vmatpush1.bf16.msra.mxu0 0
      %872 = vmatprep.subr.bf16.mxu0 0
      %873 = vmatpush1.bf16.msra.mxu0 0
      %874 = vmatprep.subr.bf16.mxu0 0
      %875 = vmatpush1.bf16.msra.mxu0 0
      %876 = vmatprep.subr.bf16.mxu0 0
      %877 = vmatpush1.bf16.msra.mxu0 0
      %878 = vmatprep.subr.bf16.mxu0 0
      %879 = vmatpush1.bf16.msra.mxu0 0
      %880 = vmatprep.mubr.bf16.mxu0 0
      %881 = vmatmul.mubr.bf16.gmra.mrb[0].mxu0 %v846
      %v882 = vpop.f32.mrb[0].mxu0
      %v883 = vadd.f32 0.0, %v882
      %v884 = vpop.f32.mrb[0].mxu0
      %v885 = vpop.f32.mrb[0].mxu0
      %v886 = vadd.f32 0.0, %v885
      %v887 = vpop.f32.mrb[0].mxu0
      %888 = vdwg.mxu0
      %v889 = vadd.f32 %v826, %v883
      %v890 = vadd.f32 %v827, %v886
      %v891 = vld [vmem:[%s4] sm:$0x1]
      %v893 = vlaneseq
      %v894 = vshrl.u32 %v893, 7
      %v895 = vsub.s32 0, %v894
      %v896 = vrot.slane %v891, %v895
      %v898 = vadd.f32 %v889, %v896
      %v899 = vadd.f32 %v890, %v896
      %v900 = vmax.f32 %v898, 0.0
      %v901 = vmax.f32 %v899, 0.0
      %v902 = vpack.c.bf16 %v901, %v900
      %v904 = vunpack.c.l.b16 %v902
      %v905 = vunpack.c.h.b16 %v902
      %v906 = vpack.c.b16 %v904, %v904
      %v907 = vpack.c.b16 %v905, %v905
      %vm908 = vcmask 1041408
      %vm909 = vcmask 1045508
      %vm910 = vmor %vm908, %vm909
      %v911 = vrot.slane %v906, 6
      %v912 = vrot.slane %v911, 4
      %v913 = vrot.slane %v907, 6
      %v914 = vsel %vm910, %v912, %v913
      %v915 = vrot.slane %v913, 4
      %vm919 = vcmask 519170
      %920 = vst.msk [vmem:[#allocation2] sm:$0xc] %vm919, %v911
      %921 = vst.msk [vmem:[#allocation2 + $0x4] sm:$0xf] %vm229, %v914
      %vm922 = vcmask 517120
      %923 = vst.msk [vmem:[#allocation2 + $0x8] sm:$0x3] %vm922, %v915
      %v924 = vld [vmem:[#allocation2] sm:$0xf]
      %v925 = vld [vmem:[#allocation2 + $0x4] sm:$0xf]
      %v926 = vld [vmem:[#allocation2 + $0x8] sm:$0xf]
      %v927 = vunpack.c.l.bf16 %v924
      %v928 = vunpack.c.l.bf16 %v925
      %v929 = vunpack.c.l.bf16 %v926
      %v933 = vrot.slane %v927, 1
      %v934 = vrot.slane %v928, 1
      %v935 = vsel %vm239, %v933, %v934
      %v936 = vrot.slane %v929, 1
      %v937 = vsel %vm239, %v934, %v936
      %v941 = vmax.f32 %v927, %v935
      %v942 = vmax.f32 %v928, %v937
      %v943 = vmax.f32 %v929, %v936
      %v944 = vrot.slane %v927, 2
      %v945 = vrot.slane %v928, 2
      %v946 = vsel %vm251, %v944, %v945
      %v947 = vrot.slane %v929, 2
      %v948 = vsel %vm251, %v945, %v947
      %v952 = vmax.f32 %v941, %v946
      %v953 = vmax.f32 %v942, %v948
      %v954 = vmax.f32 %v943, %v947
      %v955 = vpack.c.bf16 %v953, %v952
      %v956 = vpack.c.bf16 %v954, %v954
      %s957 = scalar_lea.vmem %s1, 32
      %v958 = vld [vmem:[%s957] sm:$0xf]
      %v959 = vld [vmem:[%s957 + $0x4] sm:$0xf]
      %v960 = vld [vmem:[%s957 + $0x8] sm:$0xf]
      %v961 = vld [vmem:[%s957 + $0xc] sm:$0xf]
      %v962 = vld [vmem:[%s957 + $0x10] sm:$0xf]
      %v963 = vld [vmem:[%s957 + $0x14] sm:$0xf]
      %v964 = vld [vmem:[%s957 + $0x18] sm:$0xf]
      %v965 = vld [vmem:[%s957 + $0x1c] sm:$0xf]
      %s966 = scalar_lea.vmem %s2, 32
      %v967 = vld [vmem:[%s966] sm:$0xf]
      %v968 = vld [vmem:[%s966 + $0x4] sm:$0xf]
      %v969 = vld [vmem:[%s966 + $0x8] sm:$0xf]
      %v970 = vld [vmem:[%s966 + $0xc] sm:$0xf]
      %v971 = vld [vmem:[%s966 + $0x10] sm:$0xf]
      %v972 = vld [vmem:[%s966 + $0x14] sm:$0xf]
      %v973 = vld [vmem:[%s966 + $0x18] sm:$0xf]
      %v974 = vld [vmem:[%s966 + $0x1c] sm:$0xf]
      %v978 = vunpack.c.l.b16 %v924
      %v979 = vunpack.c.l.b16 %v925
      %v980 = vunpack.c.l.b16 %v926
      %v981 = vpack.c.b16 %v979, %v978
      %v982 = vpack.c.b16 %v980, %v980
      %v991 = vunpack.c.l.b16 %v967
      %v992 = vunpack.c.l.b16 %v968
      %v993 = vunpack.c.l.b16 %v969
      %v994 = vunpack.c.l.b16 %v970
      %v995 = vunpack.c.l.b16 %v971
      %v996 = vunpack.c.l.b16 %v972
      %v997 = vunpack.c.l.b16 %v973
      %v998 = vunpack.c.l.b16 %v974
      %v999 = vpack.c.b16 %v992, %v991
      %v1000 = vpack.c.b16 %v994, %v993
      %v1001 = vpack.c.b16 %v996, %v995
      %v1002 = vpack.c.b16 %v998, %v997
      %v1008 = vsel %vm313, %v981, 0
      %v1011 = vsel %vm313, %v982, 0
      %1013 = vmatprep.subr.bf16.mxu0 0
      %1014 = vmatpush1.bf16.msra.mxu0 %v999
      %1015 = vmatprep.subr.bf16.mxu0 0
      %1016 = vmatpush1.bf16.msra.mxu0 %v1000
      %1017 = vmatprep.subr.bf16.mxu0 0
      %1018 = vmatpush1.bf16.msra.mxu0 %v1001
      %1019 = vmatprep.subr.bf16.mxu0 0
      %1020 = vmatpush1.bf16.msra.mxu0 %v1002
      %1021 = vmatprep.subr.bf16.mxu0 0
      %1022 = vmatpush1.bf16.msra.mxu0 0
      %1023 = vmatprep.subr.bf16.mxu0 0
      %1024 = vmatpush1.bf16.msra.mxu0 0
      %1025 = vmatprep.subr.bf16.mxu0 0
      %1026 = vmatpush1.bf16.msra.mxu0 0
      %1027 = vmatprep.subr.bf16.mxu0 0
      %1028 = vmatpush1.bf16.msra.mxu0 0
      %1029 = vmatprep.subr.bf16.mxu0 0
      %1030 = vmatpush1.bf16.msra.mxu0 0
      %1031 = vmatprep.subr.bf16.mxu0 0
      %1032 = vmatpush1.bf16.msra.mxu0 0
      %1033 = vmatprep.subr.bf16.mxu0 0
      %1034 = vmatpush1.bf16.msra.mxu0 0
      %1035 = vmatprep.subr.bf16.mxu0 0
      %1036 = vmatpush1.bf16.msra.mxu0 0
      %1037 = vmatprep.subr.bf16.mxu0 0
      %1038 = vmatpush1.bf16.msra.mxu0 0
      %1039 = vmatprep.subr.bf16.mxu0 0
      %1040 = vmatpush1.bf16.msra.mxu0 0
      %1041 = vmatprep.subr.bf16.mxu0 0
      %1042 = vmatpush1.bf16.msra.mxu0 0
      %1043 = vmatprep.subr.bf16.mxu0 0
      %1044 = vmatpush1.bf16.msra.mxu0 0
      %1045 = vmatprep.mubr.bf16.mxu0 0
      %1046 = vmatmul.mubr.bf16.gmra.mrb[0].mxu0 %v1008
      %v1047 = vpop.f32.mrb[0].mxu0
      %v1048 = vadd.f32 0.0, %v1047
      %v1049 = vpop.f32.mrb[0].mxu0
      %v1050 = vpop.f32.mrb[0].mxu0
      %v1051 = vadd.f32 0.0, %v1050
      %v1052 = vpop.f32.mrb[0].mxu0
      %1053 = vmatprep.mubr.bf16.mxu0 0
      %1054 = vmatmul.mubr.bf16.gmra.mrb[0].mxu0 %v1011
      %v1055 = vpop.f32.mrb[0].mxu0
      %v1056 = vadd.f32 0.0, %v1055
      %v1057 = vpop.f32.mrb[0].mxu0
      %v1058 = vpop.f32.mrb[0].mxu0
      %v1059 = vpop.f32.mrb[0].mxu0
      %1060 = vdwg.mxu0
      %v1061 = vpack.c.bf16 %v1051, %v1048
      %v1062 = vpack.c.bf16 %v1056, %v1056
      %s1063 = scalar_lea.vmem %s3, 56
      %v1064 = vld [vmem:[%s1063] sm:$0xf]
      %v1065 = vld [vmem:[%s1063 + $0x4] sm:$0xf]
      %v1067 = vshrl.u32 %v1061, 16
      %v1069 = vshll.u32 %v1061, 16
      %v1071 = vrot.slane %v1069, 1
      %v1072 = vor.u32 %v1067, %v1071
      %v1074 = vshll.u32 %v1062, 16
      %v1076 = vrot.slane %v1074, 1
      %v1077 = vsel %vm372, %v1072, %v1076
      %v1080 = vunpack.c.l.b16 %v1064
      %v1081 = vunpack.c.l.b16 %v1065
      %v1082 = vpack.c.b16 %v1081, %v1080
      %v1085 = vsel %vm391, %v1077, 0
      %1087 = vmatprep.subr.bf16.mxu0 0
      %1088 = vmatpush1.bf16.msra.mxu0 %v1082
      %1089 = vmatprep.subr.bf16.mxu0 0
      %1090 = vmatpush1.bf16.msra.mxu0 0
      %1091 = vmatprep.subr.bf16.mxu0 0
      %1092 = vmatpush1.bf16.msra.mxu0 0
      %1093 = vmatprep.subr.bf16.mxu0 0
      %1094 = vmatpush1.bf16.msra.mxu0 0
      %1095 = vmatprep.subr.bf16.mxu0 0
      %1096 = vmatpush1.bf16.msra.mxu0 0
      %1097 = vmatprep.subr.bf16.mxu0 0
      %1098 = vmatpush1.bf16.msra.mxu0 0
      %1099 = vmatprep.subr.bf16.mxu0 0
      %1100 = vmatpush1.bf16.msra.mxu0 0
      %1101 = vmatprep.subr.bf16.mxu0 0
      %1102 = vmatpush1.bf16.msra.mxu0 0
      %1103 = vmatprep.subr.bf16.mxu0 0
      %1104 = vmatpush1.bf16.msra.mxu0 0
      %1105 = vmatprep.subr.bf16.mxu0 0
      %1106 = vmatpush1.bf16.msra.mxu0 0
      %1107 = vmatprep.subr.bf16.mxu0 0
      %1108 = vmatpush1.bf16.msra.mxu0 0
      %1109 = vmatprep.subr.bf16.mxu0 0
      %1110 = vmatpush1.bf16.msra.mxu0 0
      %1111 = vmatprep.subr.bf16.mxu0 0
      %1112 = vmatpush1.bf16.msra.mxu0 0
      %1113 = vmatprep.subr.bf16.mxu0 0
      %1114 = vmatpush1.bf16.msra.mxu0 0
      %1115 = vmatprep.subr.bf16.mxu0 0
      %1116 = vmatpush1.bf16.msra.mxu0 0
      %1117 = vmatprep.subr.bf16.mxu0 0
      %1118 = vmatpush1.bf16.msra.mxu0 0
      %1119 = vmatprep.mubr.bf16.mxu0 0
      %1120 = vmatmul.mubr.bf16.gmra.mrb[0].mxu0 %v1085
      %v1121 = vpop.f32.mrb[0].mxu0
      %v1122 = vadd.f32 0.0, %v1121
      %v1123 = vpop.f32.mrb[0].mxu0
      %v1124 = vpop.f32.mrb[0].mxu0
      %v1125 = vadd.f32 0.0, %v1124
      %v1126 = vpop.f32.mrb[0].mxu0
      %1127 = vdwg.mxu0
      %v1129 = vshrl.u32 %v955, 16
      %v1131 = vrot.slane %v1129, 1
      %v1132 = vshll.u32 %v955, 16
      %v1134 = vrot.slane %v1132, 2
      %v1135 = vor.u32 %v1131, %v1134
      %v1137 = vshrl.u32 %v956, 16
      %v1139 = vrot.slane %v1137, 1
      %v1140 = vshll.u32 %v956, 16
      %v1142 = vrot.slane %v1140, 2
      %v1143 = vor.u32 %v1139, %v1142
      %v1144 = vsel %vm436, %v1135, %v1143
      %v1153 = vunpack.c.l.b16 %v958
      %v1154 = vunpack.c.l.b16 %v959
      %v1155 = vunpack.c.l.b16 %v960
      %v1156 = vunpack.c.l.b16 %v961
      %v1157 = vunpack.c.l.b16 %v962
      %v1158 = vunpack.c.l.b16 %v963
      %v1159 = vunpack.c.l.b16 %v964
      %v1160 = vunpack.c.l.b16 %v965
      %v1161 = vpack.c.b16 %v1154, %v1153
      %v1162 = vpack.c.b16 %v1156, %v1155
      %v1163 = vpack.c.b16 %v1158, %v1157
      %v1164 = vpack.c.b16 %v1160, %v1159
      %v1170 = vsel %vm313, %v1144, 0
      %1172 = vmatprep.subr.bf16.mxu0 0
      %1173 = vmatpush1.bf16.msra.mxu0 %v1161
      %1174 = vmatprep.subr.bf16.mxu0 0
      %1175 = vmatpush1.bf16.msra.mxu0 %v1162
      %1176 = vmatprep.subr.bf16.mxu0 0
      %1177 = vmatpush1.bf16.msra.mxu0 %v1163
      %1178 = vmatprep.subr.bf16.mxu0 0
      %1179 = vmatpush1.bf16.msra.mxu0 %v1164
      %1180 = vmatprep.subr.bf16.mxu0 0
      %1181 = vmatpush1.bf16.msra.mxu0 0
      %1182 = vmatprep.subr.bf16.mxu0 0
      %1183 = vmatpush1.bf16.msra.mxu0 0
      %1184 = vmatprep.subr.bf16.mxu0 0
      %1185 = vmatpush1.bf16.msra.mxu0 0
      %1186 = vmatprep.subr.bf16.mxu0 0
      %1187 = vmatpush1.bf16.msra.mxu0 0
      %1188 = vmatprep.subr.bf16.mxu0 0
      %1189 = vmatpush1.bf16.msra.mxu0 0
      %1190 = vmatprep.subr.bf16.mxu0 0
      %1191 = vmatpush1.bf16.msra.mxu0 0
      %1192 = vmatprep.subr.bf16.mxu0 0
      %1193 = vmatpush1.bf16.msra.mxu0 0
      %1194 = vmatprep.subr.bf16.mxu0 0
      %1195 = vmatpush1.bf16.msra.mxu0 0
      %1196 = vmatprep.subr.bf16.mxu0 0
      %1197 = vmatpush1.bf16.msra.mxu0 0
      %1198 = vmatprep.subr.bf16.mxu0 0
      %1199 = vmatpush1.bf16.msra.mxu0 0
      %1200 = vmatprep.subr.bf16.mxu0 0
      %1201 = vmatpush1.bf16.msra.mxu0 0
      %1202 = vmatprep.subr.bf16.mxu0 0
      %1203 = vmatpush1.bf16.msra.mxu0 0
      %1204 = vmatprep.mubr.bf16.mxu0 0
      %1205 = vmatmul.mubr.bf16.gmra.mrb[0].mxu0 %v1170
      %v1206 = vpop.f32.mrb[0].mxu0
      %v1207 = vadd.f32 %v1122, %v1206
      %v1208 = vpop.f32.mrb[0].mxu0
      %v1209 = vpop.f32.mrb[0].mxu0
      %v1210 = vadd.f32 %v1125, %v1209
      %v1211 = vpop.f32.mrb[0].mxu0
      %1212 = vdwg.mxu0
      %s1213 = scalar_lea.vmem %s3, 64
      %v1214 = vld [vmem:[%s1213] sm:$0xf]
      %v1215 = vld [vmem:[%s1213 + $0x4] sm:$0xf]
      %v1218 = vrot.slane %v1061, 1
      %v1219 = vrot.slane %v1062, 1
      %v1220 = vsel %vm527, %v1218, %v1219
      %v1223 = vunpack.c.l.b16 %v1214
      %v1224 = vunpack.c.l.b16 %v1215
      %v1225 = vpack.c.b16 %v1224, %v1223
      %v1228 = vsel %vm391, %v1220, 0
      %1230 = vmatprep.subr.bf16.mxu0 0
      %1231 = vmatpush1.bf16.msra.mxu0 %v1225
      %1232 = vmatprep.subr.bf16.mxu0 0
      %1233 = vmatpush1.bf16.msra.mxu0 0
      %1234 = vmatprep.subr.bf16.mxu0 0
      %1235 = vmatpush1.bf16.msra.mxu0 0
      %1236 = vmatprep.subr.bf16.mxu0 0
      %1237 = vmatpush1.bf16.msra.mxu0 0
      %1238 = vmatprep.subr.bf16.mxu0 0
      %1239 = vmatpush1.bf16.msra.mxu0 0
      %1240 = vmatprep.subr.bf16.mxu0 0
      %1241 = vmatpush1.bf16.msra.mxu0 0
      %1242 = vmatprep.subr.bf16.mxu0 0
      %1243 = vmatpush1.bf16.msra.mxu0 0
      %1244 = vmatprep.subr.bf16.mxu0 0
      %1245 = vmatpush1.bf16.msra.mxu0 0
      %1246 = vmatprep.subr.bf16.mxu0 0
      %1247 = vmatpush1.bf16.msra.mxu0 0
      %1248 = vmatprep.subr.bf16.mxu0 0
      %1249 = vmatpush1.bf16.msra.mxu0 0
      %1250 = vmatprep.subr.bf16.mxu0 0
      %1251 = vmatpush1.bf16.msra.mxu0 0
      %1252 = vmatprep.subr.bf16.mxu0 0
      %1253 = vmatpush1.bf16.msra.mxu0 0
      %1254 = vmatprep.subr.bf16.mxu0 0
      %1255 = vmatpush1.bf16.msra.mxu0 0
      %1256 = vmatprep.subr.bf16.mxu0 0
      %1257 = vmatpush1.bf16.msra.mxu0 0
      %1258 = vmatprep.subr.bf16.mxu0 0
      %1259 = vmatpush1.bf16.msra.mxu0 0
      %1260 = vmatprep.subr.bf16.mxu0 0
      %1261 = vmatpush1.bf16.msra.mxu0 0
      %1262 = vmatprep.mubr.bf16.mxu0 0
      %1263 = vmatmul.mubr.bf16.gmra.mrb[0].mxu0 %v1228
      %v1264 = vpop.f32.mrb[0].mxu0
      %v1265 = vadd.f32 0.0, %v1264
      %v1266 = vpop.f32.mrb[0].mxu0
      %v1267 = vpop.f32.mrb[0].mxu0
      %v1268 = vadd.f32 0.0, %v1267
      %v1269 = vpop.f32.mrb[0].mxu0
      %1270 = vdwg.mxu0
      %v1271 = vadd.f32 %v1207, %v1265
      %v1272 = vadd.f32 %v1210, %v1268
      %s1273 = scalar_lea.vmem %s3, 72
      %v1274 = vld [vmem:[%s1273] sm:$0xf]
      %v1275 = vld [vmem:[%s1273 + $0x4] sm:$0xf]
      %v1276 = vrot.slane %v1067, 1
      %v1277 = vrot.slane %v1069, 2
      %v1278 = vor.u32 %v1276, %v1277
      %v1279 = vshrl.u32 %v1062, 16
      %v1281 = vrot.slane %v1279, 1
      %v1282 = vrot.slane %v1074, 2
      %v1283 = vor.u32 %v1281, %v1282
      %v1284 = vsel %vm436, %v1278, %v1283
      %v1287 = vunpack.c.l.b16 %v1274
      %v1288 = vunpack.c.l.b16 %v1275
      %v1289 = vpack.c.b16 %v1288, %v1287
      %v1292 = vsel %vm391, %v1284, 0
      %1294 = vmatprep.subr.bf16.mxu0 0
      %1295 = vmatpush1.bf16.msra.mxu0 %v1289
      %1296 = vmatprep.subr.bf16.mxu0 0
      %1297 = vmatpush1.bf16.msra.mxu0 0
      %1298 = vmatprep.subr.bf16.mxu0 0
      %1299 = vmatpush1.bf16.msra.mxu0 0
      %1300 = vmatprep.subr.bf16.mxu0 0
      %1301 = vmatpush1.bf16.msra.mxu0 0
      %1302 = vmatprep.subr.bf16.mxu0 0
      %1303 = vmatpush1.bf16.msra.mxu0 0
      %1304 = vmatprep.subr.bf16.mxu0 0
      %1305 = vmatpush1.bf16.msra.mxu0 0
      %1306 = vmatprep.subr.bf16.mxu0 0
      %1307 = vmatpush1.bf16.msra.mxu0 0
      %1308 = vmatprep.subr.bf16.mxu0 0
      %1309 = vmatpush1.bf16.msra.mxu0 0
      %1310 = vmatprep.subr.bf16.mxu0 0
      %1311 = vmatpush1.bf16.msra.mxu0 0
      %1312 = vmatprep.subr.bf16.mxu0 0
      %1313 = vmatpush1.bf16.msra.mxu0 0
      %1314 = vmatprep.subr.bf16.mxu0 0
      %1315 = vmatpush1.bf16.msra.mxu0 0
      %1316 = vmatprep.subr.bf16.mxu0 0
      %1317 = vmatpush1.bf16.msra.mxu0 0
      %1318 = vmatprep.subr.bf16.mxu0 0
      %1319 = vmatpush1.bf16.msra.mxu0 0
      %1320 = vmatprep.subr.bf16.mxu0 0
      %1321 = vmatpush1.bf16.msra.mxu0 0
      %1322 = vmatprep.subr.bf16.mxu0 0
      %1323 = vmatpush1.bf16.msra.mxu0 0
      %1324 = vmatprep.subr.bf16.mxu0 0
      %1325 = vmatpush1.bf16.msra.mxu0 0
      %1326 = vmatprep.mubr.bf16.mxu0 0
      %1327 = vmatmul.mubr.bf16.gmra.mrb[0].mxu0 %v1292
      %v1328 = vpop.f32.mrb[0].mxu0
      %v1329 = vadd.f32 0.0, %v1328
      %v1330 = vpop.f32.mrb[0].mxu0
      %v1331 = vpop.f32.mrb[0].mxu0
      %v1332 = vadd.f32 0.0, %v1331
      %v1333 = vpop.f32.mrb[0].mxu0
      %1334 = vdwg.mxu0
      %v1335 = vadd.f32 %v1271, %v1329
      %v1336 = vadd.f32 %v1272, %v1332
      %s1337 = scalar_lea.vmem %s3, 80
      %v1338 = vld [vmem:[%s1337] sm:$0xf]
      %v1339 = vld [vmem:[%s1337 + $0x4] sm:$0xf]
      %v1340 = vrot.slane %v1061, 2
      %v1341 = vrot.slane %v1062, 2
      %v1342 = vsel %vm650, %v1340, %v1341
      %v1345 = vunpack.c.l.b16 %v1338
      %v1346 = vunpack.c.l.b16 %v1339
      %v1347 = vpack.c.b16 %v1346, %v1345
      %v1350 = vsel %vm391, %v1342, 0
      %1352 = vmatprep.subr.bf16.mxu0 0
      %1353 = vmatpush1.bf16.msra.mxu0 %v1347
      %1354 = vmatprep.subr.bf16.mxu0 0
      %1355 = vmatpush1.bf16.msra.mxu0 0
      %1356 = vmatprep.subr.bf16.mxu0 0
      %1357 = vmatpush1.bf16.msra.mxu0 0
      %1358 = vmatprep.subr.bf16.mxu0 0
      %1359 = vmatpush1.bf16.msra.mxu0 0
      %1360 = vmatprep.subr.bf16.mxu0 0
      %1361 = vmatpush1.bf16.msra.mxu0 0
      %1362 = vmatprep.subr.bf16.mxu0 0
      %1363 = vmatpush1.bf16.msra.mxu0 0
      %1364 = vmatprep.subr.bf16.mxu0 0
      %1365 = vmatpush1.bf16.msra.mxu0 0
      %1366 = vmatprep.subr.bf16.mxu0 0
      %1367 = vmatpush1.bf16.msra.mxu0 0
      %1368 = vmatprep.subr.bf16.mxu0 0
      %1369 = vmatpush1.bf16.msra.mxu0 0
      %1370 = vmatprep.subr.bf16.mxu0 0
      %1371 = vmatpush1.bf16.msra.mxu0 0
      %1372 = vmatprep.subr.bf16.mxu0 0
      %1373 = vmatpush1.bf16.msra.mxu0 0
      %1374 = vmatprep.subr.bf16.mxu0 0
      %1375 = vmatpush1.bf16.msra.mxu0 0
      %1376 = vmatprep.subr.bf16.mxu0 0
      %1377 = vmatpush1.bf16.msra.mxu0 0
      %1378 = vmatprep.subr.bf16.mxu0 0
      %1379 = vmatpush1.bf16.msra.mxu0 0
      %1380 = vmatprep.subr.bf16.mxu0 0
      %1381 = vmatpush1.bf16.msra.mxu0 0
      %1382 = vmatprep.subr.bf16.mxu0 0
      %1383 = vmatpush1.bf16.msra.mxu0 0
      %1384 = vmatprep.mubr.bf16.mxu0 0
      %1385 = vmatmul.mubr.bf16.gmra.mrb[0].mxu0 %v1350
      %v1386 = vpop.f32.mrb[0].mxu0
      %v1387 = vadd.f32 0.0, %v1386
      %v1388 = vpop.f32.mrb[0].mxu0
      %v1389 = vpop.f32.mrb[0].mxu0
      %v1390 = vadd.f32 0.0, %v1389
      %v1391 = vpop.f32.mrb[0].mxu0
      %1392 = vdwg.mxu0
      %v1393 = vadd.f32 %v1335, %v1387
      %v1394 = vadd.f32 %v1336, %v1390
      %s1395 = scalar_lea.vmem %s3, 88
      %v1396 = vld [vmem:[%s1395] sm:$0xf]
      %v1397 = vld [vmem:[%s1395 + $0x4] sm:$0xf]
      %v1398 = vrot.slane %v1067, 2
      %v1399 = vrot.slane %v1069, 3
      %v1400 = vor.u32 %v1398, %v1399
      %v1401 = vrot.slane %v1279, 2
      %v1402 = vrot.slane %v1074, 3
      %v1403 = vor.u32 %v1401, %v1402
      %v1404 = vsel %vm709, %v1400, %v1403
      %v1407 = vunpack.c.l.b16 %v1396
      %v1408 = vunpack.c.l.b16 %v1397
      %v1409 = vpack.c.b16 %v1408, %v1407
      %v1412 = vsel %vm391, %v1404, 0
      %1414 = vmatprep.subr.bf16.mxu0 0
      %1415 = vmatpush1.bf16.msra.mxu0 %v1409
      %1416 = vmatprep.subr.bf16.mxu0 0
      %1417 = vmatpush1.bf16.msra.mxu0 0
      %1418 = vmatprep.subr.bf16.mxu0 0
      %1419 = vmatpush1.bf16.msra.mxu0 0
      %1420 = vmatprep.subr.bf16.mxu0 0
      %1421 = vmatpush1.bf16.msra.mxu0 0
      %1422 = vmatprep.subr.bf16.mxu0 0
      %1423 = vmatpush1.bf16.msra.mxu0 0
      %1424 = vmatprep.subr.bf16.mxu0 0
      %1425 = vmatpush1.bf16.msra.mxu0 0
      %1426 = vmatprep.subr.bf16.mxu0 0
      %1427 = vmatpush1.bf16.msra.mxu0 0
      %1428 = vmatprep.subr.bf16.mxu0 0
      %1429 = vmatpush1.bf16.msra.mxu0 0
      %1430 = vmatprep.subr.bf16.mxu0 0
      %1431 = vmatpush1.bf16.msra.mxu0 0
      %1432 = vmatprep.subr.bf16.mxu0 0
      %1433 = vmatpush1.bf16.msra.mxu0 0
      %1434 = vmatprep.subr.bf16.mxu0 0
      %1435 = vmatpush1.bf16.msra.mxu0 0
      %1436 = vmatprep.subr.bf16.mxu0 0
      %1437 = vmatpush1.bf16.msra.mxu0 0
      %1438 = vmatprep.subr.bf16.mxu0 0
      %1439 = vmatpush1.bf16.msra.mxu0 0
      %1440 = vmatprep.subr.bf16.mxu0 0
      %1441 = vmatpush1.bf16.msra.mxu0 0
      %1442 = vmatprep.subr.bf16.mxu0 0
      %1443 = vmatpush1.bf16.msra.mxu0 0
      %1444 = vmatprep.subr.bf16.mxu0 0
      %1445 = vmatpush1.bf16.msra.mxu0 0
      %1446 = vmatprep.mubr.bf16.mxu0 0
      %1447 = vmatmul.mubr.bf16.gmra.mrb[0].mxu0 %v1412
      %v1448 = vpop.f32.mrb[0].mxu0
      %v1449 = vadd.f32 0.0, %v1448
      %v1450 = vpop.f32.mrb[0].mxu0
      %v1451 = vpop.f32.mrb[0].mxu0
      %v1452 = vadd.f32 0.0, %v1451
      %v1453 = vpop.f32.mrb[0].mxu0
      %1454 = vdwg.mxu0
      %v1455 = vadd.f32 %v1393, %v1449
      %v1456 = vadd.f32 %v1394, %v1452
      %s1457 = scalar_lea.vmem %s3, 96
      %v1458 = vld [vmem:[%s1457] sm:$0xf]
      %v1459 = vld [vmem:[%s1457 + $0x4] sm:$0xf]
      %v1460 = vrot.slane %v1061, 3
      %v1461 = vrot.slane %v1062, 3
      %v1462 = vsel %vm772, %v1460, %v1461
      %v1465 = vunpack.c.l.b16 %v1458
      %v1466 = vunpack.c.l.b16 %v1459
      %v1467 = vpack.c.b16 %v1466, %v1465
      %v1470 = vsel %vm391, %v1462, 0
      %1472 = vmatprep.subr.bf16.mxu0 0
      %1473 = vmatpush1.bf16.msra.mxu0 %v1467
      %1474 = vmatprep.subr.bf16.mxu0 0
      %1475 = vmatpush1.bf16.msra.mxu0 0
      %1476 = vmatprep.subr.bf16.mxu0 0
      %1477 = vmatpush1.bf16.msra.mxu0 0
      %1478 = vmatprep.subr.bf16.mxu0 0
      %1479 = vmatpush1.bf16.msra.mxu0 0
      %1480 = vmatprep.subr.bf16.mxu0 0
      %1481 = vmatpush1.bf16.msra.mxu0 0
      %1482 = vmatprep.subr.bf16.mxu0 0
      %1483 = vmatpush1.bf16.msra.mxu0 0
      %1484 = vmatprep.subr.bf16.mxu0 0
      %1485 = vmatpush1.bf16.msra.mxu0 0
      %1486 = vmatprep.subr.bf16.mxu0 0
      %1487 = vmatpush1.bf16.msra.mxu0 0
      %1488 = vmatprep.subr.bf16.mxu0 0
      %1489 = vmatpush1.bf16.msra.mxu0 0
      %1490 = vmatprep.subr.bf16.mxu0 0
      %1491 = vmatpush1.bf16.msra.mxu0 0
      %1492 = vmatprep.subr.bf16.mxu0 0
      %1493 = vmatpush1.bf16.msra.mxu0 0
      %1494 = vmatprep.subr.bf16.mxu0 0
      %1495 = vmatpush1.bf16.msra.mxu0 0
      %1496 = vmatprep.subr.bf16.mxu0 0
      %1497 = vmatpush1.bf16.msra.mxu0 0
      %1498 = vmatprep.subr.bf16.mxu0 0
      %1499 = vmatpush1.bf16.msra.mxu0 0
      %1500 = vmatprep.subr.bf16.mxu0 0
      %1501 = vmatpush1.bf16.msra.mxu0 0
      %1502 = vmatprep.subr.bf16.mxu0 0
      %1503 = vmatpush1.bf16.msra.mxu0 0
      %1504 = vmatprep.mubr.bf16.mxu0 0
      %1505 = vmatmul.mubr.bf16.gmra.mrb[0].mxu0 %v1470
      %v1506 = vpop.f32.mrb[0].mxu0
      %v1507 = vadd.f32 0.0, %v1506
      %v1508 = vpop.f32.mrb[0].mxu0
      %v1509 = vpop.f32.mrb[0].mxu0
      %v1510 = vadd.f32 0.0, %v1509
      %v1511 = vpop.f32.mrb[0].mxu0
      %1512 = vdwg.mxu0
      %v1513 = vadd.f32 %v1455, %v1507
      %v1514 = vadd.f32 %v1456, %v1510
      %s1515 = scalar_lea.vmem %s3, 104
      %v1516 = vld [vmem:[%s1515] sm:$0xf]
      %v1517 = vld [vmem:[%s1515 + $0x4] sm:$0xf]
      %v1518 = vrot.slane %v1067, 3
      %v1519 = vrot.slane %v1069, 4
      %v1520 = vor.u32 %v1518, %v1519
      %v1521 = vrot.slane %v1279, 3
      %v1522 = vrot.slane %v1074, 4
      %v1523 = vor.u32 %v1521, %v1522
      %v1524 = vsel %vm831, %v1520, %v1523
      %v1527 = vunpack.c.l.b16 %v1516
      %v1528 = vunpack.c.l.b16 %v1517
      %v1529 = vpack.c.b16 %v1528, %v1527
      %v1532 = vsel %vm391, %v1524, 0
      %1534 = vmatprep.subr.bf16.mxu0 0
      %1535 = vmatpush1.bf16.msra.mxu0 %v1529
      %1536 = vmatprep.subr.bf16.mxu0 0
      %1537 = vmatpush1.bf16.msra.mxu0 0
      %1538 = vmatprep.subr.bf16.mxu0 0
      %1539 = vmatpush1.bf16.msra.mxu0 0
      %1540 = vmatprep.subr.bf16.mxu0 0
      %1541 = vmatpush1.bf16.msra.mxu0 0
      %1542 = vmatprep.subr.bf16.mxu0 0
      %1543 = vmatpush1.bf16.msra.mxu0 0
      %1544 = vmatprep.subr.bf16.mxu0 0
      %1545 = vmatpush1.bf16.msra.mxu0 0
      %1546 = vmatprep.subr.bf16.mxu0 0
      %1547 = vmatpush1.bf16.msra.mxu0 0
      %1548 = vmatprep.subr.bf16.mxu0 0
      %1549 = vmatpush1.bf16.msra.mxu0 0
      %1550 = vmatprep.subr.bf16.mxu0 0
      %1551 = vmatpush1.bf16.msra.mxu0 0
      %1552 = vmatprep.subr.bf16.mxu0 0
      %1553 = vmatpush1.bf16.msra.mxu0 0
      %1554 = vmatprep.subr.bf16.mxu0 0
      %1555 = vmatpush1.bf16.msra.mxu0 0
      %1556 = vmatprep.subr.bf16.mxu0 0
      %1557 = vmatpush1.bf16.msra.mxu0 0
      %1558 = vmatprep.subr.bf16.mxu0 0
      %1559 = vmatpush1.bf16.msra.mxu0 0
      %1560 = vmatprep.subr.bf16.mxu0 0
      %1561 = vmatpush1.bf16.msra.mxu0 0
      %1562 = vmatprep.subr.bf16.mxu0 0
      %1563 = vmatpush1.bf16.msra.mxu0 0
      %1564 = vmatprep.subr.bf16.mxu0 0
      %1565 = vmatpush1.bf16.msra.mxu0 0
      %1566 = vmatprep.mubr.bf16.mxu0 0
      %1567 = vmatmul.mubr.bf16.gmra.mrb[0].mxu0 %v1532
      %v1568 = vpop.f32.mrb[0].mxu0
      %v1569 = vadd.f32 0.0, %v1568
      %v1570 = vpop.f32.mrb[0].mxu0
      %v1571 = vpop.f32.mrb[0].mxu0
      %v1572 = vadd.f32 0.0, %v1571
      %v1573 = vpop.f32.mrb[0].mxu0
      %1574 = vdwg.mxu0
      %v1575 = vadd.f32 %v1513, %v1569
      %v1576 = vadd.f32 %v1514, %v1572
      %s1577 = scalar_lea.vmem %s4, 1
      %v1578 = vld [vmem:[%s1577] sm:$0x1]
      %v1580 = vlaneseq
      %v1581 = vshrl.u32 %v1580, 7
      %v1582 = vsub.s32 0, %v1581
      %v1583 = vrot.slane %v1578, %v1582
      %v1585 = vadd.f32 %v1575, %v1583
      %v1586 = vadd.f32 %v1576, %v1583
      %v1587 = vmax.f32 %v1585, 0.0
      %v1588 = vmax.f32 %v1586, 0.0
      %v1589 = vpack.c.bf16 %v1588, %v1587
      %v1591 = vunpack.c.l.b16 %v1589
      %v1592 = vunpack.c.h.b16 %v1589
      %v1593 = vpack.c.b16 %v1591, %v1591
      %v1594 = vpack.c.b16 %v1592, %v1592
      %v1595 = vrot.slane %v1593, 6
      %v1596 = vrot.slane %v1595, 4
      %v1597 = vrot.slane %v1594, 6
      %v1598 = vsel %vm910, %v1596, %v1597
      %v1599 = vrot.slane %v1597, 4
      %1603 = vst.msk [vmem:[#allocation2] sm:$0xc] %vm919, %v1595
      %1604 = vst.msk [vmem:[#allocation2 + $0x4] sm:$0xf] %vm229, %v1598
      %1605 = vst.msk [vmem:[#allocation2 + $0x8] sm:$0x3] %vm922, %v1599
      %v1606 = vld [vmem:[#allocation2] sm:$0xf]
      %v1607 = vld [vmem:[#allocation2 + $0x4] sm:$0xf]
      %v1608 = vld [vmem:[#allocation2 + $0x8] sm:$0xf]
      %v1609 = vunpack.c.l.bf16 %v1606
      %v1610 = vunpack.c.l.bf16 %v1607
      %v1611 = vunpack.c.l.bf16 %v1608
      %v1615 = vrot.slane %v1609, 1
      %v1616 = vrot.slane %v1610, 1
      %v1617 = vsel %vm239, %v1615, %v1616
      %v1618 = vrot.slane %v1611, 1
      %v1619 = vsel %vm239, %v1616, %v1618
      %v1623 = vmax.f32 %v1609, %v1617
      %v1624 = vmax.f32 %v1610, %v1619
      %v1625 = vmax.f32 %v1611, %v1618
      %v1626 = vrot.slane %v1609, 2
      %v1627 = vrot.slane %v1610, 2
      %v1628 = vsel %vm251, %v1626, %v1627
      %v1629 = vrot.slane %v1611, 2
      %v1630 = vsel %vm251, %v1627, %v1629
      %v1634 = vmax.f32 %v1623, %v1628
      %v1635 = vmax.f32 %v1624, %v1630
      %v1636 = vmax.f32 %v1625, %v1629
      %v1637 = vpack.c.bf16 %v1635, %v1634
      %v1638 = vpack.c.bf16 %v1636, %v1636
      %s1639 = scalar_lea.vmem %s1, 64
      %v1640 = vld [vmem:[%s1639] sm:$0xf]
      %v1641 = vld [vmem:[%s1639 + $0x4] sm:$0xf]
      %v1642 = vld [vmem:[%s1639 + $0x8] sm:$0xf]
      %v1643 = vld [vmem:[%s1639 + $0xc] sm:$0xf]
      %v1644 = vld [vmem:[%s1639 + $0x10] sm:$0xf]
      %v1645 = vld [vmem:[%s1639 + $0x14] sm:$0xf]
      %v1646 = vld [vmem:[%s1639 + $0x18] sm:$0xf]
      %v1647 = vld [vmem:[%s1639 + $0x1c] sm:$0xf]
      %s1648 = scalar_lea.vmem %s2, 64
      %v1649 = vld [vmem:[%s1648] sm:$0xf]
      %v1650 = vld [vmem:[%s1648 + $0x4] sm:$0xf]
      %v1651 = vld [vmem:[%s1648 + $0x8] sm:$0xf]
      %v1652 = vld [vmem:[%s1648 + $0xc] sm:$0xf]
      %v1653 = vld [vmem:[%s1648 + $0x10] sm:$0xf]
      %v1654 = vld [vmem:[%s1648 + $0x14] sm:$0xf]
      %v1655 = vld [vmem:[%s1648 + $0x18] sm:$0xf]
      %v1656 = vld [vmem:[%s1648 + $0x1c] sm:$0xf]
      %v1660 = vunpack.c.l.b16 %v1606
      %v1661 = vunpack.c.l.b16 %v1607
      %v1662 = vunpack.c.l.b16 %v1608
      %v1663 = vpack.c.b16 %v1661, %v1660
      %v1664 = vpack.c.b16 %v1662, %v1662
      %v1673 = vunpack.c.l.b16 %v1649
      %v1674 = vunpack.c.l.b16 %v1650
      %v1675 = vunpack.c.l.b16 %v1651
      %v1676 = vunpack.c.l.b16 %v1652
      %v1677 = vunpack.c.l.b16 %v1653
      %v1678 = vunpack.c.l.b16 %v1654
      %v1679 = vunpack.c.l.b16 %v1655
      %v1680 = vunpack.c.l.b16 %v1656
      %v1681 = vpack.c.b16 %v1674, %v1673
      %v1682 = vpack.c.b16 %v1676, %v1675
      %v1683 = vpack.c.b16 %v1678, %v1677
      %v1684 = vpack.c.b16 %v1680, %v1679
      %v1690 = vsel %vm313, %v1663, 0
      %v1693 = vsel %vm313, %v1664, 0
      %1695 = vmatprep.subr.bf16.mxu0 0
      %1696 = vmatpush1.bf16.msra.mxu0 %v1681
      %1697 = vmatprep.subr.bf16.mxu0 0
      %1698 = vmatpush1.bf16.msra.mxu0 %v1682
      %1699 = vmatprep.subr.bf16.mxu0 0
      %1700 = vmatpush1.bf16.msra.mxu0 %v1683
      %1701 = vmatprep.subr.bf16.mxu0 0
      %1702 = vmatpush1.bf16.msra.mxu0 %v1684
      %1703 = vmatprep.subr.bf16.mxu0 0
      %1704 = vmatpush1.bf16.msra.mxu0 0
      %1705 = vmatprep.subr.bf16.mxu0 0
      %1706 = vmatpush1.bf16.msra.mxu0 0
      %1707 = vmatprep.subr.bf16.mxu0 0
      %1708 = vmatpush1.bf16.msra.mxu0 0
      %1709 = vmatprep.subr.bf16.mxu0 0
      %1710 = vmatpush1.bf16.msra.mxu0 0
      %1711 = vmatprep.subr.bf16.mxu0 0
      %1712 = vmatpush1.bf16.msra.mxu0 0
      %1713 = vmatprep.subr.bf16.mxu0 0
      %1714 = vmatpush1.bf16.msra.mxu0 0
      %1715 = vmatprep.subr.bf16.mxu0 0
      %1716 = vmatpush1.bf16.msra.mxu0 0
      %1717 = vmatprep.subr.bf16.mxu0 0
      %1718 = vmatpush1.bf16.msra.mxu0 0
      %1719 = vmatprep.subr.bf16.mxu0 0
      %1720 = vmatpush1.bf16.msra.mxu0 0
      %1721 = vmatprep.subr.bf16.mxu0 0
      %1722 = vmatpush1.bf16.msra.mxu0 0
      %1723 = vmatprep.subr.bf16.mxu0 0
      %1724 = vmatpush1.bf16.msra.mxu0 0
      %1725 = vmatprep.subr.bf16.mxu0 0
      %1726 = vmatpush1.bf16.msra.mxu0 0
      %1727 = vmatprep.mubr.bf16.mxu0 0
      %1728 = vmatmul.mubr.bf16.gmra.mrb[0].mxu0 %v1690
      %v1729 = vpop.f32.mrb[0].mxu0
      %v1730 = vadd.f32 0.0, %v1729
      %v1731 = vpop.f32.mrb[0].mxu0
      %v1732 = vpop.f32.mrb[0].mxu0
      %v1733 = vadd.f32 0.0, %v1732
      %v1734 = vpop.f32.mrb[0].mxu0
      %1735 = vmatprep.mubr.bf16.mxu0 0
      %1736 = vmatmul.mubr.bf16.gmra.mrb[0].mxu0 %v1693
      %v1737 = vpop.f32.mrb[0].mxu0
      %v1738 = vadd.f32 0.0, %v1737
      %v1739 = vpop.f32.mrb[0].mxu0
      %v1740 = vpop.f32.mrb[0].mxu0
      %v1741 = vpop.f32.mrb[0].mxu0
      %1742 = vdwg.mxu0
      %v1743 = vpack.c.bf16 %v1733, %v1730
      %v1744 = vpack.c.bf16 %v1738, %v1738
      %s1745 = scalar_lea.vmem %s3, 112
      %v1746 = vld [vmem:[%s1745] sm:$0xf]
      %v1747 = vld [vmem:[%s1745 + $0x4] sm:$0xf]
      %v1749 = vshrl.u32 %v1743, 16
      %v1751 = vshll.u32 %v1743, 16
      %v1753 = vrot.slane %v1751, 1
      %v1754 = vor.u32 %v1749, %v1753
      %v1756 = vshll.u32 %v1744, 16
      %v1758 = vrot.slane %v1756, 1
      %v1759 = vsel %vm372, %v1754, %v1758
      %v1762 = vunpack.c.l.b16 %v1746
      %v1763 = vunpack.c.l.b16 %v1747
      %v1764 = vpack.c.b16 %v1763, %v1762
      %v1767 = vsel %vm391, %v1759, 0
      %1769 = vmatprep.subr.bf16.mxu0 0
      %1770 = vmatpush1.bf16.msra.mxu0 %v1764
      %1771 = vmatprep.subr.bf16.mxu0 0
      %1772 = vmatpush1.bf16.msra.mxu0 0
      %1773 = vmatprep.subr.bf16.mxu0 0
      %1774 = vmatpush1.bf16.msra.mxu0 0
      %1775 = vmatprep.subr.bf16.mxu0 0
      %1776 = vmatpush1.bf16.msra.mxu0 0
      %1777 = vmatprep.subr.bf16.mxu0 0
      %1778 = vmatpush1.bf16.msra.mxu0 0
      %1779 = vmatprep.subr.bf16.mxu0 0
      %1780 = vmatpush1.bf16.msra.mxu0 0
      %1781 = vmatprep.subr.bf16.mxu0 0
      %1782 = vmatpush1.bf16.msra.mxu0 0
      %1783 = vmatprep.subr.bf16.mxu0 0
      %1784 = vmatpush1.bf16.msra.mxu0 0
      %1785 = vmatprep.subr.bf16.mxu0 0
      %1786 = vmatpush1.bf16.msra.mxu0 0
      %1787 = vmatprep.subr.bf16.mxu0 0
      %1788 = vmatpush1.bf16.msra.mxu0 0
      %1789 = vmatprep.subr.bf16.mxu0 0
      %1790 = vmatpush1.bf16.msra.mxu0 0
      %1791 = vmatprep.subr.bf16.mxu0 0
      %1792 = vmatpush1.bf16.msra.mxu0 0
      %1793 = vmatprep.subr.bf16.mxu0 0
      %1794 = vmatpush1.bf16.msra.mxu0 0
      %1795 = vmatprep.subr.bf16.mxu0 0
      %1796 = vmatpush1.bf16.msra.mxu0 0
      %1797 = vmatprep.subr.bf16.mxu0 0
      %1798 = vmatpush1.bf16.msra.mxu0 0
      %1799 = vmatprep.subr.bf16.mxu0 0
      %1800 = vmatpush1.bf16.msra.mxu0 0
      %1801 = vmatprep.mubr.bf16.mxu0 0
      %1802 = vmatmul.mubr.bf16.gmra.mrb[0].mxu0 %v1767
      %v1803 = vpop.f32.mrb[0].mxu0
      %v1804 = vadd.f32 0.0, %v1803
      %v1805 = vpop.f32.mrb[0].mxu0
      %v1806 = vpop.f32.mrb[0].mxu0
      %v1807 = vadd.f32 0.0, %v1806
      %v1808 = vpop.f32.mrb[0].mxu0
      %1809 = vdwg.mxu0
      %v1811 = vshrl.u32 %v1637, 16
      %v1813 = vrot.slane %v1811, 1
      %v1814 = vshll.u32 %v1637, 16
      %v1816 = vrot.slane %v1814, 2
      %v1817 = vor.u32 %v1813, %v1816
      %v1819 = vshrl.u32 %v1638, 16
      %v1821 = vrot.slane %v1819, 1
      %v1822 = vshll.u32 %v1638, 16
      %v1824 = vrot.slane %v1822, 2
      %v1825 = vor.u32 %v1821, %v1824
      %v1826 = vsel %vm436, %v1817, %v1825
      %v1835 = vunpack.c.l.b16 %v1640
      %v1836 = vunpack.c.l.b16 %v1641
      %v1837 = vunpack.c.l.b16 %v1642
      %v1838 = vunpack.c.l.b16 %v1643
      %v1839 = vunpack.c.l.b16 %v1644
      %v1840 = vunpack.c.l.b16 %v1645
      %v1841 = vunpack.c.l.b16 %v1646
      %v1842 = vunpack.c.l.b16 %v1647
      %v1843 = vpack.c.b16 %v1836, %v1835
      %v1844 = vpack.c.b16 %v1838, %v1837
      %v1845 = vpack.c.b16 %v1840, %v1839
      %v1846 = vpack.c.b16 %v1842, %v1841
      %v1852 = vsel %vm313, %v1826, 0
      %1854 = vmatprep.subr.bf16.mxu0 0
      %1855 = vmatpush1.bf16.msra.mxu0 %v1843
      %1856 = vmatprep.subr.bf16.mxu0 0
      %1857 = vmatpush1.bf16.msra.mxu0 %v1844
      %1858 = vmatprep.subr.bf16.mxu0 0
      %1859 = vmatpush1.bf16.msra.mxu0 %v1845
      %1860 = vmatprep.subr.bf16.mxu0 0
      %1861 = vmatpush1.bf16.msra.mxu0 %v1846
      %1862 = vmatprep.subr.bf16.mxu0 0
      %1863 = vmatpush1.bf16.msra.mxu0 0
      %1864 = vmatprep.subr.bf16.mxu0 0
      %1865 = vmatpush1.bf16.msra.mxu0 0
      %1866 = vmatprep.subr.bf16.mxu0 0
      %1867 = vmatpush1.bf16.msra.mxu0 0
      %1868 = vmatprep.subr.bf16.mxu0 0
      %1869 = vmatpush1.bf16.msra.mxu0 0
      %1870 = vmatprep.subr.bf16.mxu0 0
      %1871 = vmatpush1.bf16.msra.mxu0 0
      %1872 = vmatprep.subr.bf16.mxu0 0
      %1873 = vmatpush1.bf16.msra.mxu0 0
      %1874 = vmatprep.subr.bf16.mxu0 0
      %1875 = vmatpush1.bf16.msra.mxu0 0
      %1876 = vmatprep.subr.bf16.mxu0 0
      %1877 = vmatpush1.bf16.msra.mxu0 0
      %1878 = vmatprep.subr.bf16.mxu0 0
      %1879 = vmatpush1.bf16.msra.mxu0 0
      %1880 = vmatprep.subr.bf16.mxu0 0
      %1881 = vmatpush1.bf16.msra.mxu0 0
      %1882 = vmatprep.subr.bf16.mxu0 0
      %1883 = vmatpush1.bf16.msra.mxu0 0
      %1884 = vmatprep.subr.bf16.mxu0 0
      %1885 = vmatpush1.bf16.msra.mxu0 0
      %1886 = vmatprep.mubr.bf16.mxu0 0
      %1887 = vmatmul.mubr.bf16.gmra.mrb[0].mxu0 %v1852
      %v1888 = vpop.f32.mrb[0].mxu0
      %v1889 = vadd.f32 %v1804, %v1888
      %v1890 = vpop.f32.mrb[0].mxu0
      %v1891 = vpop.f32.mrb[0].mxu0
      %v1892 = vadd.f32 %v1807, %v1891
      %v1893 = vpop.f32.mrb[0].mxu0
      %1894 = vdwg.mxu0
      %s1895 = scalar_lea.vmem %s3, 120
      %v1896 = vld [vmem:[%s1895] sm:$0xf]
      %v1897 = vld [vmem:[%s1895 + $0x4] sm:$0xf]
      %v1900 = vrot.slane %v1743, 1
      %v1901 = vrot.slane %v1744, 1
      %v1902 = vsel %vm527, %v1900, %v1901
      %v1905 = vunpack.c.l.b16 %v1896
      %v1906 = vunpack.c.l.b16 %v1897
      %v1907 = vpack.c.b16 %v1906, %v1905
      %v1910 = vsel %vm391, %v1902, 0
      %1912 = vmatprep.subr.bf16.mxu0 0
      %1913 = vmatpush1.bf16.msra.mxu0 %v1907
      %1914 = vmatprep.subr.bf16.mxu0 0
      %1915 = vmatpush1.bf16.msra.mxu0 0
      %1916 = vmatprep.subr.bf16.mxu0 0
      %1917 = vmatpush1.bf16.msra.mxu0 0
      %1918 = vmatprep.subr.bf16.mxu0 0
      %1919 = vmatpush1.bf16.msra.mxu0 0
      %1920 = vmatprep.subr.bf16.mxu0 0
      %1921 = vmatpush1.bf16.msra.mxu0 0
      %1922 = vmatprep.subr.bf16.mxu0 0
      %1923 = vmatpush1.bf16.msra.mxu0 0
      %1924 = vmatprep.subr.bf16.mxu0 0
      %1925 = vmatpush1.bf16.msra.mxu0 0
      %1926 = vmatprep.subr.bf16.mxu0 0
      %1927 = vmatpush1.bf16.msra.mxu0 0
      %1928 = vmatprep.subr.bf16.mxu0 0
      %1929 = vmatpush1.bf16.msra.mxu0 0
      %1930 = vmatprep.subr.bf16.mxu0 0
      %1931 = vmatpush1.bf16.msra.mxu0 0
      %1932 = vmatprep.subr.bf16.mxu0 0
      %1933 = vmatpush1.bf16.msra.mxu0 0
      %1934 = vmatprep.subr.bf16.mxu0 0
      %1935 = vmatpush1.bf16.msra.mxu0 0
      %1936 = vmatprep.subr.bf16.mxu0 0
      %1937 = vmatpush1.bf16.msra.mxu0 0
      %1938 = vmatprep.subr.bf16.mxu0 0
      %1939 = vmatpush1.bf16.msra.mxu0 0
      %1940 = vmatprep.subr.bf16.mxu0 0
      %1941 = vmatpush1.bf16.msra.mxu0 0
      %1942 = vmatprep.subr.bf16.mxu0 0
      %1943 = vmatpush1.bf16.msra.mxu0 0
      %1944 = vmatprep.mubr.bf16.mxu0 0
      %1945 = vmatmul.mubr.bf16.gmra.mrb[0].mxu0 %v1910
      %v1946 = vpop.f32.mrb[0].mxu0
      %v1947 = vadd.f32 0.0, %v1946
      %v1948 = vpop.f32.mrb[0].mxu0
      %v1949 = vpop.f32.mrb[0].mxu0
      %v1950 = vadd.f32 0.0, %v1949
      %v1951 = vpop.f32.mrb[0].mxu0
      %1952 = vdwg.mxu0
      %v1953 = vadd.f32 %v1889, %v1947
      %v1954 = vadd.f32 %v1892, %v1950
      %s1955 = scalar_lea.vmem %s3, 128
      %v1956 = vld [vmem:[%s1955] sm:$0xf]
      %v1957 = vld [vmem:[%s1955 + $0x4] sm:$0xf]
      %v1958 = vrot.slane %v1749, 1
      %v1959 = vrot.slane %v1751, 2
      %v1960 = vor.u32 %v1958, %v1959
      %v1961 = vshrl.u32 %v1744, 16
      %v1963 = vrot.slane %v1961, 1
      %v1964 = vrot.slane %v1756, 2
      %v1965 = vor.u32 %v1963, %v1964
      %v1966 = vsel %vm436, %v1960, %v1965
      %v1969 = vunpack.c.l.b16 %v1956
      %v1970 = vunpack.c.l.b16 %v1957
      %v1971 = vpack.c.b16 %v1970, %v1969
      %v1974 = vsel %vm391, %v1966, 0
      %1976 = vmatprep.subr.bf16.mxu0 0
      %1977 = vmatpush1.bf16.msra.mxu0 %v1971
      %1978 = vmatprep.subr.bf16.mxu0 0
      %1979 = vmatpush1.bf16.msra.mxu0 0
      %1980 = vmatprep.subr.bf16.mxu0 0
      %1981 = vmatpush1.bf16.msra.mxu0 0
      %1982 = vmatprep.subr.bf16.mxu0 0
      %1983 = vmatpush1.bf16.msra.mxu0 0
      %1984 = vmatprep.subr.bf16.mxu0 0
      %1985 = vmatpush1.bf16.msra.mxu0 0
      %1986 = vmatprep.subr.bf16.mxu0 0
      %1987 = vmatpush1.bf16.msra.mxu0 0
      %1988 = vmatprep.subr.bf16.mxu0 0
      %1989 = vmatpush1.bf16.msra.mxu0 0
      %1990 = vmatprep.subr.bf16.mxu0 0
      %1991 = vmatpush1.bf16.msra.mxu0 0
      %1992 = vmatprep.subr.bf16.mxu0 0
      %1993 = vmatpush1.bf16.msra.mxu0 0
      %1994 = vmatprep.subr.bf16.mxu0 0
      %1995 = vmatpush1.bf16.msra.mxu0 0
      %1996 = vmatprep.subr.bf16.mxu0 0
      %1997 = vmatpush1.bf16.msra.mxu0 0
      %1998 = vmatprep.subr.bf16.mxu0 0
      %1999 = vmatpush1.bf16.msra.mxu0 0
      %2000 = vmatprep.subr.bf16.mxu0 0
      %2001 = vmatpush1.bf16.msra.mxu0 0
      %2002 = vmatprep.subr.bf16.mxu0 0
      %2003 = vmatpush1.bf16.msra.mxu0 0
      %2004 = vmatprep.subr.bf16.mxu0 0
      %2005 = vmatpush1.bf16.msra.mxu0 0
      %2006 = vmatprep.subr.bf16.mxu0 0
      %2007 = vmatpush1.bf16.msra.mxu0 0
      %2008 = vmatprep.mubr.bf16.mxu0 0
      %2009 = vmatmul.mubr.bf16.gmra.mrb[0].mxu0 %v1974
      %v2010 = vpop.f32.mrb[0].mxu0
      %v2011 = vadd.f32 0.0, %v2010
      %v2012 = vpop.f32.mrb[0].mxu0
      %v2013 = vpop.f32.mrb[0].mxu0
      %v2014 = vadd.f32 0.0, %v2013
      %v2015 = vpop.f32.mrb[0].mxu0
      %2016 = vdwg.mxu0
      %v2017 = vadd.f32 %v1953, %v2011
      %v2018 = vadd.f32 %v1954, %v2014
      %s2019 = scalar_lea.vmem %s3, 136
      %v2020 = vld [vmem:[%s2019] sm:$0xf]
      %v2021 = vld [vmem:[%s2019 + $0x4] sm:$0xf]
      %v2022 = vrot.slane %v1743, 2
      %v2023 = vrot.slane %v1744, 2
      %v2024 = vsel %vm650, %v2022, %v2023
      %v2027 = vunpack.c.l.b16 %v2020
      %v2028 = vunpack.c.l.b16 %v2021
      %v2029 = vpack.c.b16 %v2028, %v2027
      %v2032 = vsel %vm391, %v2024, 0
      %2034 = vmatprep.subr.bf16.mxu0 0
      %2035 = vmatpush1.bf16.msra.mxu0 %v2029
      %2036 = vmatprep.subr.bf16.mxu0 0
      %2037 = vmatpush1.bf16.msra.mxu0 0
      %2038 = vmatprep.subr.bf16.mxu0 0
      %2039 = vmatpush1.bf16.msra.mxu0 0
      %2040 = vmatprep.subr.bf16.mxu0 0
      %2041 = vmatpush1.bf16.msra.mxu0 0
      %2042 = vmatprep.subr.bf16.mxu0 0
      %2043 = vmatpush1.bf16.msra.mxu0 0
      %2044 = vmatprep.subr.bf16.mxu0 0
      %2045 = vmatpush1.bf16.msra.mxu0 0
      %2046 = vmatprep.subr.bf16.mxu0 0
      %2047 = vmatpush1.bf16.msra.mxu0 0
      %2048 = vmatprep.subr.bf16.mxu0 0
      %2049 = vmatpush1.bf16.msra.mxu0 0
      %2050 = vmatprep.subr.bf16.mxu0 0
      %2051 = vmatpush1.bf16.msra.mxu0 0
      %2052 = vmatprep.subr.bf16.mxu0 0
      %2053 = vmatpush1.bf16.msra.mxu0 0
      %2054 = vmatprep.subr.bf16.mxu0 0
      %2055 = vmatpush1.bf16.msra.mxu0 0
      %2056 = vmatprep.subr.bf16.mxu0 0
      %2057 = vmatpush1.bf16.msra.mxu0 0
      %2058 = vmatprep.subr.bf16.mxu0 0
      %2059 = vmatpush1.bf16.msra.mxu0 0
      %2060 = vmatprep.subr.bf16.mxu0 0
      %2061 = vmatpush1.bf16.msra.mxu0 0
      %2062 = vmatprep.subr.bf16.mxu0 0
      %2063 = vmatpush1.bf16.msra.mxu0 0
      %2064 = vmatprep.subr.bf16.mxu0 0
      %2065 = vmatpush1.bf16.msra.mxu0 0
      %2066 = vmatprep.mubr.bf16.mxu0 0
      %2067 = vmatmul.mubr.bf16.gmra.mrb[0].mxu0 %v2032
      %v2068 = vpop.f32.mrb[0].mxu0
      %v2069 = vadd.f32 0.0, %v2068
      %v2070 = vpop.f32.mrb[0].mxu0
      %v2071 = vpop.f32.mrb[0].mxu0
      %v2072 = vadd.f32 0.0, %v2071
      %v2073 = vpop.f32.mrb[0].mxu0
      %2074 = vdwg.mxu0
      %v2075 = vadd.f32 %v2017, %v2069
      %v2076 = vadd.f32 %v2018, %v2072
      %s2077 = scalar_lea.vmem %s3, 144
      %v2078 = vld [vmem:[%s2077] sm:$0xf]
      %v2079 = vld [vmem:[%s2077 + $0x4] sm:$0xf]
      %v2080 = vrot.slane %v1749, 2
      %v2081 = vrot.slane %v1751, 3
      %v2082 = vor.u32 %v2080, %v2081
      %v2083 = vrot.slane %v1961, 2
      %v2084 = vrot.slane %v1756, 3
      %v2085 = vor.u32 %v2083, %v2084
      %v2086 = vsel %vm709, %v2082, %v2085
      %v2089 = vunpack.c.l.b16 %v2078
      %v2090 = vunpack.c.l.b16 %v2079
      %v2091 = vpack.c.b16 %v2090, %v2089
      %v2094 = vsel %vm391, %v2086, 0
      %2096 = vmatprep.subr.bf16.mxu0 0
      %2097 = vmatpush1.bf16.msra.mxu0 %v2091
      %2098 = vmatprep.subr.bf16.mxu0 0
      %2099 = vmatpush1.bf16.msra.mxu0 0
      %2100 = vmatprep.subr.bf16.mxu0 0
      %2101 = vmatpush1.bf16.msra.mxu0 0
      %2102 = vmatprep.subr.bf16.mxu0 0
      %2103 = vmatpush1.bf16.msra.mxu0 0
      %2104 = vmatprep.subr.bf16.mxu0 0
      %2105 = vmatpush1.bf16.msra.mxu0 0
      %2106 = vmatprep.subr.bf16.mxu0 0
      %2107 = vmatpush1.bf16.msra.mxu0 0
      %2108 = vmatprep.subr.bf16.mxu0 0
      %2109 = vmatpush1.bf16.msra.mxu0 0
      %2110 = vmatprep.subr.bf16.mxu0 0
      %2111 = vmatpush1.bf16.msra.mxu0 0
      %2112 = vmatprep.subr.bf16.mxu0 0
      %2113 = vmatpush1.bf16.msra.mxu0 0
      %2114 = vmatprep.subr.bf16.mxu0 0
      %2115 = vmatpush1.bf16.msra.mxu0 0
      %2116 = vmatprep.subr.bf16.mxu0 0
      %2117 = vmatpush1.bf16.msra.mxu0 0
      %2118 = vmatprep.subr.bf16.mxu0 0
      %2119 = vmatpush1.bf16.msra.mxu0 0
      %2120 = vmatprep.subr.bf16.mxu0 0
      %2121 = vmatpush1.bf16.msra.mxu0 0
      %2122 = vmatprep.subr.bf16.mxu0 0
      %2123 = vmatpush1.bf16.msra.mxu0 0
      %2124 = vmatprep.subr.bf16.mxu0 0
      %2125 = vmatpush1.bf16.msra.mxu0 0
      %2126 = vmatprep.subr.bf16.mxu0 0
      %2127 = vmatpush1.bf16.msra.mxu0 0
      %2128 = vmatprep.mubr.bf16.mxu0 0
      %2129 = vmatmul.mubr.bf16.gmra.mrb[0].mxu0 %v2094
      %v2130 = vpop.f32.mrb[0].mxu0
      %v2131 = vadd.f32 0.0, %v2130
      %v2132 = vpop.f32.mrb[0].mxu0
      %v2133 = vpop.f32.mrb[0].mxu0
      %v2134 = vadd.f32 0.0, %v2133
      %v2135 = vpop.f32.mrb[0].mxu0
      %2136 = vdwg.mxu0
      %v2137 = vadd.f32 %v2075, %v2131
      %v2138 = vadd.f32 %v2076, %v2134
      %s2139 = scalar_lea.vmem %s3, 152
      %v2140 = vld [vmem:[%s2139] sm:$0xf]
      %v2141 = vld [vmem:[%s2139 + $0x4] sm:$0xf]
      %v2142 = vrot.slane %v1743, 3
      %v2143 = vrot.slane %v1744, 3
      %v2144 = vsel %vm772, %v2142, %v2143
      %v2147 = vunpack.c.l.b16 %v2140
      %v2148 = vunpack.c.l.b16 %v2141
      %v2149 = vpack.c.b16 %v2148, %v2147
      %v2152 = vsel %vm391, %v2144, 0
      %2154 = vmatprep.subr.bf16.mxu0 0
      %2155 = vmatpush1.bf16.msra.mxu0 %v2149
      %2156 = vmatprep.subr.bf16.mxu0 0
      %2157 = vmatpush1.bf16.msra.mxu0 0
      %2158 = vmatprep.subr.bf16.mxu0 0
      %2159 = vmatpush1.bf16.msra.mxu0 0
      %2160 = vmatprep.subr.bf16.mxu0 0
      %2161 = vmatpush1.bf16.msra.mxu0 0
      %2162 = vmatprep.subr.bf16.mxu0 0
      %2163 = vmatpush1.bf16.msra.mxu0 0
      %2164 = vmatprep.subr.bf16.mxu0 0
      %2165 = vmatpush1.bf16.msra.mxu0 0
      %2166 = vmatprep.subr.bf16.mxu0 0
      %2167 = vmatpush1.bf16.msra.mxu0 0
      %2168 = vmatprep.subr.bf16.mxu0 0
      %2169 = vmatpush1.bf16.msra.mxu0 0
      %2170 = vmatprep.subr.bf16.mxu0 0
      %2171 = vmatpush1.bf16.msra.mxu0 0
      %2172 = vmatprep.subr.bf16.mxu0 0
      %2173 = vmatpush1.bf16.msra.mxu0 0
      %2174 = vmatprep.subr.bf16.mxu0 0
      %2175 = vmatpush1.bf16.msra.mxu0 0
      %2176 = vmatprep.subr.bf16.mxu0 0
      %2177 = vmatpush1.bf16.msra.mxu0 0
      %2178 = vmatprep.subr.bf16.mxu0 0
      %2179 = vmatpush1.bf16.msra.mxu0 0
      %2180 = vmatprep.subr.bf16.mxu0 0
      %2181 = vmatpush1.bf16.msra.mxu0 0
      %2182 = vmatprep.subr.bf16.mxu0 0
      %2183 = vmatpush1.bf16.msra.mxu0 0
      %2184 = vmatprep.subr.bf16.mxu0 0
      %2185 = vmatpush1.bf16.msra.mxu0 0
      %2186 = vmatprep.mubr.bf16.mxu0 0
      %2187 = vmatmul.mubr.bf16.gmra.mrb[0].mxu0 %v2152
      %v2188 = vpop.f32.mrb[0].mxu0
      %v2189 = vadd.f32 0.0, %v2188
      %v2190 = vpop.f32.mrb[0].mxu0
      %v2191 = vpop.f32.mrb[0].mxu0
      %v2192 = vadd.f32 0.0, %v2191
      %v2193 = vpop.f32.mrb[0].mxu0
      %2194 = vdwg.mxu0
      %v2195 = vadd.f32 %v2137, %v2189
      %v2196 = vadd.f32 %v2138, %v2192
      %s2197 = scalar_lea.vmem %s3, 160
      %v2198 = vld [vmem:[%s2197] sm:$0xf]
      %v2199 = vld [vmem:[%s2197 + $0x4] sm:$0xf]
      %v2200 = vrot.slane %v1749, 3
      %v2201 = vrot.slane %v1751, 4
      %v2202 = vor.u32 %v2200, %v2201
      %v2203 = vrot.slane %v1961, 3
      %v2204 = vrot.slane %v1756, 4
      %v2205 = vor.u32 %v2203, %v2204
      %v2206 = vsel %vm831, %v2202, %v2205
      %v2209 = vunpack.c.l.b16 %v2198
      %v2210 = vunpack.c.l.b16 %v2199
      %v2211 = vpack.c.b16 %v2210, %v2209
      %v2214 = vsel %vm391, %v2206, 0
      %2216 = vmatprep.subr.bf16.mxu0 0
      %2217 = vmatpush1.bf16.msra.mxu0 %v2211
      %2218 = vmatprep.subr.bf16.mxu0 0
      %2219 = vmatpush1.bf16.msra.mxu0 0
      %2220 = vmatprep.subr.bf16.mxu0 0
      %2221 = vmatpush1.bf16.msra.mxu0 0
      %2222 = vmatprep.subr.bf16.mxu0 0
      %2223 = vmatpush1.bf16.msra.mxu0 0
      %2224 = vmatprep.subr.bf16.mxu0 0
      %2225 = vmatpush1.bf16.msra.mxu0 0
      %2226 = vmatprep.subr.bf16.mxu0 0
      %2227 = vmatpush1.bf16.msra.mxu0 0
      %2228 = vmatprep.subr.bf16.mxu0 0
      %2229 = vmatpush1.bf16.msra.mxu0 0
      %2230 = vmatprep.subr.bf16.mxu0 0
      %2231 = vmatpush1.bf16.msra.mxu0 0
      %2232 = vmatprep.subr.bf16.mxu0 0
      %2233 = vmatpush1.bf16.msra.mxu0 0
      %2234 = vmatprep.subr.bf16.mxu0 0
      %2235 = vmatpush1.bf16.msra.mxu0 0
      %2236 = vmatprep.subr.bf16.mxu0 0
      %2237 = vmatpush1.bf16.msra.mxu0 0
      %2238 = vmatprep.subr.bf16.mxu0 0
      %2239 = vmatpush1.bf16.msra.mxu0 0
      %2240 = vmatprep.subr.bf16.mxu0 0
      %2241 = vmatpush1.bf16.msra.mxu0 0
      %2242 = vmatprep.subr.bf16.mxu0 0
      %2243 = vmatpush1.bf16.msra.mxu0 0
      %2244 = vmatprep.subr.bf16.mxu0 0
      %2245 = vmatpush1.bf16.msra.mxu0 0
      %2246 = vmatprep.subr.bf16.mxu0 0
      %2247 = vmatpush1.bf16.msra.mxu0 0
      %2248 = vmatprep.mubr.bf16.mxu0 0
      %2249 = vmatmul.mubr.bf16.gmra.mrb[0].mxu0 %v2214
      %v2250 = vpop.f32.mrb[0].mxu0
      %v2251 = vadd.f32 0.0, %v2250
      %v2252 = vpop.f32.mrb[0].mxu0
      %v2253 = vpop.f32.mrb[0].mxu0
      %v2254 = vadd.f32 0.0, %v2253
      %v2255 = vpop.f32.mrb[0].mxu0
      %2256 = vdwg.mxu0
      %v2257 = vadd.f32 %v2195, %v2251
      %v2258 = vadd.f32 %v2196, %v2254
      %s2259 = scalar_lea.vmem %s4, 2
      %v2260 = vld [vmem:[%s2259] sm:$0x1]
      %v2262 = vlaneseq
      %v2263 = vshrl.u32 %v2262, 7
      %v2264 = vsub.s32 0, %v2263
      %v2265 = vrot.slane %v2260, %v2264
      %v2267 = vadd.f32 %v2257, %v2265
      %v2268 = vadd.f32 %v2258, %v2265
      %v2269 = vmax.f32 %v2267, 0.0
      %v2270 = vmax.f32 %v2268, 0.0
      %vm2271 = vcmask 1043456
      %v2272 = vrot.slane %v233, 4
      %v2273 = vrot.slane %v234, 4
      %v2274 = vsel %vm2271, %v2272, %v2273
      %v2275 = vrot.slane %v235, 4
      %v2276 = vsel %vm2271, %v2273, %v2275
      %v2279 = vadd.f32 %v2269, %v2274
      %v2280 = vadd.f32 %v2270, %v2276
      %v2281 = vpack.c.bf16 %v2280, %v2279
      %v2283 = vunpack.c.l.b16 %v2281
      %v2284 = vunpack.c.h.b16 %v2281
      %v2285 = vpack.c.b16 %v2283, %v2283
      %v2286 = vpack.c.b16 %v2284, %v2284
      %2289 = vst.msk [vmem:[%s224] sm:$0xf] %vm229, %v2285
      %2290 = vst.msk [vmem:[%s224 + $0x4] sm:$0xf] %vm229, %v2286
      %p2291 = scmp.lt.s32.totalorder %s16, 1
      %s2292 = scalar_select %p2291, %s16, 1
      %s2293 = smul.addr %s2292, 2
      %s2294 = smul.addr %s2293, 4
      %s2295 = scalar_lea.vmem %s5, %s2294
      // Predicated region
      $region41: #{forward.7} parent=39 // pred_check
        %p2296 = pneg %p144
      $region42: #{forward.7} parent=39 // pred_check_branch
        %2298 = sbr.rel (%p2296) target = $region44
      $region43: #{forward.7} parent=39 // pred_region
        _
      $region44: #{forward.7} parent=39 // pred_fallthru
        _
    $region40: #{forward.7} parent=5 // pred_fallthru
      _
    %p2299 = scmp.le.s32.totalorder 2, %s11
    // Predicated region
    $region45: #{forward.7} parent=5 // pred_check
      %p2300 = pneg %p2299
    $region46: #{forward.7} parent=5 // pred_check_branch
      %2302 = sbr.rel (%p2300) target = $region48
    $region47: #{forward.7} parent=5 // pred_region
      %s2303 = ssub.s32 %s11, 2
      // Predicated region
      $region49: #{forward.7} parent=47 // pred_check
        %p2304 = pneg %p150
      $region50: #{forward.7} parent=47 // pred_check_branch
        %2306 = sbr.rel (%p2304) target = $region52
      $region51: #{forward.7} parent=47 // pred_region
        %p2307 = scmp.lt.s32.totalorder %s17, 1
        %s2308 = scalar_select %p2307, %s17, 1
        %s2309 = smul.addr %s2308, 2
        %s2310 = smul.addr %s2309, 4
        %s2311 = scalar_lea.vmem %s5, %s2310
      $region52: #{forward.7} parent=47 // pred_fallthru
        _
    $region48: #{forward.7} parent=5 // pred_fallthru
      _
  $region6: #{forward.7} parent=0 // loop_footer
    %s15 = sadd.s32 1, %s11
  $region7: #{forward.7} parent=0 // loop_footer_branch
    %10 = sbr.rel target = $region3
  $region8: #{forward.7} parent=0 // loop_exit
    _

// kernel: forward.10
$region0: #{forward.10}
  #allocation0 [shape = 'u32[]', space=smem, size = 0x4, offset = 0x4, fixed_abs, tag = 'smem constant byte address 0x4 - core index']
  #allocation1 [shape = 'u32[144,128]{1,0:T(1,128)}', space=vmem, size = 0x12000, scoped, tag = 'internal scratch']
  %s0 = inlined_call_operand.vmem [shape: bf16[2,5,192], index: 0, kind: input, shape index: {}]
  %s1 = inlined_call_operand.vmem [shape: bf16[192,128], index: 1, kind: input, shape index: {}]
  %s2 = inlined_call_operand.vmem [shape: bf16[192,128], index: 2, kind: input, shape index: {}]
  %s3 = inlined_call_operand.vmem [shape: f32[1,128], index: 3, kind: input, shape index: {}]
  %s4 = inlined_call_operand.vmem [shape: bf16[2,4,128], index: 4, kind: output, shape index: {}]
  %s5 = sld [smem:[#allocation0]]
  $region49: #{forward.10} parent=0
    _
  %s7 = ssub.s32 1, %s5
  %s8 = scalar_select 0, %s7, %s5
  loop: start=0, step=1, limit=4
  $region2: #{forward.10} parent=0 // loop_pre_header
    _
  $region3: #{forward.10} parent=0 // loop_header
    %s10 = sphi 0, %s14
    %p11 = scmp.ge.s32.totalorder %s10, 4
    %s20 = sphi 0, %s22
    %s23 = sphi 0, %s20
    %s24 = sphi 0, %s23
    %s40 = sphi 0, %s24
    %s44 = sphi 0, %s44
    %s46 = sphi 0, %s44
    %s47 = sphi 0, %s46
    %s61 = sphi 0, %s47
    %s65 = sphi 0, %s65
    %s67 = sphi 0, %s65
    %s68 = sphi 0, %s67
    %s82 = sphi 0, %s68
    %s86 = sphi 0, %s86
    %s88 = sphi 0, %s86
    %s89 = sphi 0, %s88
    %s103 = sphi 0, %s89
    %s109 = sphi 0, %s111
    %s112 = sphi 0, %s109
    %s113 = sphi 0, %s112
    %s129 = sphi 0, %s113
  $region4: #{forward.10} parent=0 // loop_header_branch
    %13 = sbr.rel (%p11) target = $region8
  $region5: #{forward.10} parent=0 // loop_body
    %s15 = ssub.s32 %s10, 1
    %s16 = ssub.s32 %s10, 2
    %s17 = sadd.s32 %s10, 1
    %s18 = ssub.s32 %s10, %s17
    %p19 = scmp.eq.s32.totalorder %s18, 0
    %s21 = sadd.s32 %s20, 1
    %s22 = scalar_select %p19, %s20, %s21
    %p25 = pneg %p19
    %p26 = scmp.eq.s32.totalorder %s10, 1
    %p27 = por %p25, %p26
    %p28 = scmp.ne.s32.totalorder %s20, %s23
    %p29 = scmp.eq.s32.totalorder %s10, 0
    %p30 = por %p28, %p29
    %p31 = scmp.ne.s32.totalorder %s20, %s23
    %p32 = scmp.eq.s32.totalorder %s15, 1
    %p33 = por %p31, %p32
    %p34 = scmp.ne.s32.totalorder %s23, %s24
    %p35 = scmp.eq.s32.totalorder %s15, 0
    %p36 = por %p34, %p35
    %p37 = scmp.ne.s32.totalorder %s23, %s24
    %p38 = scmp.eq.s32.totalorder %s16, 1
    %p39 = por %p37, %p38
    %p41 = scmp.ne.s32.totalorder %s24, %s40
    %p42 = scmp.eq.s32.totalorder %s16, 0
    %p43 = por %p41, %p42
    %s45 = sadd.s32 %s44, 1
    %p48 = scmp.eq.s32.totalorder %s10, 1
    %p49 = scmp.ne.s32.totalorder %s44, %s46
    %p50 = scmp.eq.s32.totalorder %s10, 0
    %p51 = por %p49, %p50
    %p52 = scmp.ne.s32.totalorder %s44, %s46
    %p53 = scmp.eq.s32.totalorder %s15, 1
    %p54 = por %p52, %p53
    %p55 = scmp.ne.s32.totalorder %s46, %s47
    %p56 = scmp.eq.s32.totalorder %s15, 0
    %p57 = por %p55, %p56
    %p58 = scmp.ne.s32.totalorder %s46, %s47
    %p59 = scmp.eq.s32.totalorder %s16, 1
    %p60 = por %p58, %p59
    %p62 = scmp.ne.s32.totalorder %s47, %s61
    %p63 = scmp.eq.s32.totalorder %s16, 0
    %p64 = por %p62, %p63
    %s66 = sadd.s32 %s65, 1
    %p69 = scmp.eq.s32.totalorder %s10, 1
    %p70 = scmp.ne.s32.totalorder %s65, %s67
    %p71 = scmp.eq.s32.totalorder %s10, 0
    %p72 = por %p70, %p71
    %p73 = scmp.ne.s32.totalorder %s65, %s67
    %p74 = scmp.eq.s32.totalorder %s15, 1
    %p75 = por %p73, %p74
    %p76 = scmp.ne.s32.totalorder %s67, %s68
    %p77 = scmp.eq.s32.totalorder %s15, 0
    %p78 = por %p76, %p77
    %p79 = scmp.ne.s32.totalorder %s67, %s68
    %p80 = scmp.eq.s32.totalorder %s16, 1
    %p81 = por %p79, %p80
    %p83 = scmp.ne.s32.totalorder %s68, %s82
    %p84 = scmp.eq.s32.totalorder %s16, 0
    %p85 = por %p83, %p84
    %s87 = sadd.s32 %s86, 1
    %p90 = scmp.eq.s32.totalorder %s10, 1
    %p91 = scmp.ne.s32.totalorder %s86, %s88
    %p92 = scmp.eq.s32.totalorder %s10, 0
    %p93 = por %p91, %p92
    %p94 = scmp.ne.s32.totalorder %s86, %s88
    %p95 = scmp.eq.s32.totalorder %s15, 1
    %p96 = por %p94, %p95
    %p97 = scmp.ne.s32.totalorder %s88, %s89
    %p98 = scmp.eq.s32.totalorder %s15, 0
    %p99 = por %p97, %p98
    %p100 = scmp.ne.s32.totalorder %s88, %s89
    %p101 = scmp.eq.s32.totalorder %s16, 1
    %p102 = por %p100, %p101
    %p104 = scmp.ne.s32.totalorder %s89, %s103
    %p105 = scmp.eq.s32.totalorder %s16, 0
    %p106 = por %p104, %p105
    %s107 = ssub.s32 %s10, %s17
    %p108 = scmp.eq.s32.totalorder %s107, 0
    %s110 = sadd.s32 %s109, 1
    %s111 = scalar_select %p108, %s109, %s110
    %p114 = pneg %p108
    %p115 = scmp.eq.s32.totalorder %s10, 1
    %p116 = por %p114, %p115
    %p117 = scmp.ne.s32.totalorder %s109, %s112
    %p118 = scmp.eq.s32.totalorder %s10, 0
    %p119 = por %p117, %p118
    %p120 = scmp.ne.s32.totalorder %s109, %s112
    %p121 = scmp.eq.s32.totalorder %s15, 1
    %p122 = por %p120, %p121
    %p123 = scmp.ne.s32.totalorder %s112, %s113
    %p124 = scmp.eq.s32.totalorder %s15, 0
    %p125 = por %p123, %p124
    %p126 = scmp.ne.s32.totalorder %s112, %s113
    %p127 = scmp.eq.s32.totalorder %s16, 1
    %p128 = por %p126, %p127
    %p130 = scmp.ne.s32.totalorder %s113, %s129
    %p131 = scmp.eq.s32.totalorder %s16, 0
    %p132 = por %p130, %p131
    %p133 = scmp.le.s32.totalorder 1, %s10
    %p134 = scmp.lt.s32.totalorder %s10, 3
    %p135 = pnand %p133, %p134
    %p136 = pneg %p135
    // Predicated region
    $region9: #{forward.10} parent=5 // pred_check
      _
    $region10: #{forward.10} parent=5 // pred_check_branch
      %138 = sbr.rel (%p135) target = $region12
    $region11: #{forward.10} parent=5 // pred_region
      %s139 = ssub.s32 %s10, 1
      // Predicated region
      $region13: #{forward.10} parent=11 // pred_check
        %p140 = pneg %p57
      $region14: #{forward.10} parent=11 // pred_check_branch
        %142 = sbr.rel (%p140) target = $region16
      $region15: #{forward.10} parent=11 // pred_region
        _
      $region16: #{forward.10} parent=11 // pred_fallthru
        _
      // Predicated region
      $region17: #{forward.10} parent=11 // pred_check
        %p143 = pneg %p78
      $region18: #{forward.10} parent=11 // pred_check_branch
        %145 = sbr.rel (%p143) target = $region20
      $region19: #{forward.10} parent=11 // pred_region
        _
      $region20: #{forward.10} parent=11 // pred_fallthru
        _
      // Predicated region
      $region21: #{forward.10} parent=11 // pred_check
        %p146 = pneg %p99
      $region22: #{forward.10} parent=11 // pred_check_branch
        %148 = sbr.rel (%p146) target = $region24
      $region23: #{forward.10} parent=11 // pred_region
        _
      $region24: #{forward.10} parent=11 // pred_fallthru
        _
    $region12: #{forward.10} parent=5 // pred_fallthru
      _
    %p149 = scmp.lt.s32.totalorder %s10, 2
    // Predicated region
    $region25: #{forward.10} parent=5 // pred_check
      %p150 = pneg %p149
    $region26: #{forward.10} parent=5 // pred_check_branch
      %152 = sbr.rel (%p150) target = $region28
    $region27: #{forward.10} parent=5 // pred_region
      // Predicated region
      $region29: #{forward.10} parent=27 // pred_check
        %p153 = pneg %p30
      $region30: #{forward.10} parent=27 // pred_check_branch
        %155 = sbr.rel (%p153) target = $region32
      $region31: #{forward.10} parent=27 // pred_region
        %p156 = scmp.lt.s32.totalorder %s10, 1
        %s157 = scalar_select %p156, %s10, 1
        %s158 = smul.addr %s157, 2
        %s159 = smul.addr %s158, 4
        %s160 = scalar_lea.vmem %s0, %s159
      $region32: #{forward.10} parent=27 // pred_fallthru
        _
    $region28: #{forward.10} parent=5 // pred_fallthru
      _
    %p161 = scmp.le.s32.totalorder 1, %s10
    %p162 = scmp.lt.s32.totalorder %s10, 3
    %p163 = pnand %p161, %p162
    %p164 = pneg %p163
    // Predicated region
    $region33: #{forward.10} parent=5 // pred_check
      _
    $region34: #{forward.10} parent=5 // pred_check_branch
      %166 = sbr.rel (%p163) target = $region36
    $region35: #{forward.10} parent=5 // pred_region
      %s167 = ssub.s32 %s10, 1
      %p168 = scmp.lt.s32.totalorder %s15, 1
      %s169 = scalar_select %p168, %s15, 1
      %s170 = smul.addr %s169, 2
      %s171 = smul.addr %s170, 4
      %s172 = scalar_lea.vmem %s0, %s171
      %p173 = pneg %p36
      %p174 = pneg %p33
      %p175 = pneg %p57
      %p176 = pneg %p54
      %p177 = pneg %p78
      %p178 = pneg %p75
      %p179 = pneg %p99
      %p180 = pneg %p96
      %p181 = pneg %p125
      %p182 = pneg %p122
      %p183 = scmp.lt.s32.totalorder %s15, 1
      %s184 = scalar_select %p183, %s15, 1
      %s185 = smul.addr %s184, 2
      %s186 = scalar_lea.vmem %s4, %s185
      %p187 = scmp.lt.s32.totalorder %s15, 1
      %s188 = scalar_select %p187, %s15, 1
      %s189 = smul.addr %s188, 2
      %s190 = smul.addr %s189, 4
      %s191 = scalar_lea.vmem %s0, %s190
      %p192 = scmp.lt.s32.totalorder %s15, 1
      %s193 = scalar_select %p192, %s15, 1
      %s194 = smul.addr %s193, 2
      %s195 = scalar_lea.vmem %s4, %s194
      %v197 = vld [vmem:[%s191] sm:$0x77]
      %v198 = vunpack.c.l.bf16 %v197
      %v199 = vunpack.c.h.bf16 %v197
      %v200 = vpack.c.bf16 %v198, %v198
      %v201 = vpack.c.bf16 %v199, %v199
      %v202 = vld [vmem:[%s1] sm:$0xf]
      %v203 = vld [vmem:[%s1 + $0x4] sm:$0xf]
      %v204 = vld [vmem:[%s1 + $0x8] sm:$0xf]
      %v205 = vld [vmem:[%s1 + $0xc] sm:$0xf]
      %v206 = vld [vmem:[%s1 + $0x10] sm:$0xf]
      %v207 = vld [vmem:[%s1 + $0x14] sm:$0xf]
      %v208 = vld [vmem:[%s1 + $0x18] sm:$0xf]
      %v209 = vld [vmem:[%s1 + $0x1c] sm:$0xf]
      %v210 = vld [vmem:[%s1 + $0x20] sm:$0xf]
      %v211 = vld [vmem:[%s1 + $0x24] sm:$0xf]
      %v212 = vld [vmem:[%s1 + $0x28] sm:$0xf]
      %v213 = vld [vmem:[%s1 + $0x2c] sm:$0xf]
      %v214 = vld [vmem:[%s1 + $0x30] sm:$0xf]
      %v215 = vld [vmem:[%s1 + $0x34] sm:$0xf]
      %v216 = vld [vmem:[%s1 + $0x38] sm:$0xf]
      %v217 = vld [vmem:[%s1 + $0x3c] sm:$0xf]
      %v218 = vld [vmem:[%s1 + $0x40] sm:$0xf]
      %v219 = vld [vmem:[%s1 + $0x44] sm:$0xf]
      %v220 = vld [vmem:[%s1 + $0x48] sm:$0xf]
      %v221 = vld [vmem:[%s1 + $0x4c] sm:$0xf]
      %v222 = vld [vmem:[%s1 + $0x50] sm:$0xf]
      %v223 = vld [vmem:[%s1 + $0x54] sm:$0xf]
      %v224 = vld [vmem:[%s1 + $0x58] sm:$0xf]
      %v225 = vld [vmem:[%s1 + $0x5c] sm:$0xf]
      %v226 = vld [vmem:[%s2] sm:$0xf]
      %v227 = vld [vmem:[%s2 + $0x4] sm:$0xf]
      %v228 = vld [vmem:[%s2 + $0x8] sm:$0xf]
      %v229 = vld [vmem:[%s2 + $0xc] sm:$0xf]
      %v230 = vld [vmem:[%s2 + $0x10] sm:$0xf]
      %v231 = vld [vmem:[%s2 + $0x14] sm:$0xf]
      %v232 = vld [vmem:[%s2 + $0x18] sm:$0xf]
      %v233 = vld [vmem:[%s2 + $0x1c] sm:$0xf]
      %v234 = vld [vmem:[%s2 + $0x20] sm:$0xf]
      %v235 = vld [vmem:[%s2 + $0x24] sm:$0xf]
      %v236 = vld [vmem:[%s2 + $0x28] sm:$0xf]
      %v237 = vld [vmem:[%s2 + $0x2c] sm:$0xf]
      %v238 = vld [vmem:[%s2 + $0x30] sm:$0xf]
      %v239 = vld [vmem:[%s2 + $0x34] sm:$0xf]
      %v240 = vld [vmem:[%s2 + $0x38] sm:$0xf]
      %v241 = vld [vmem:[%s2 + $0x3c] sm:$0xf]
      %v242 = vld [vmem:[%s2 + $0x40] sm:$0xf]
      %v243 = vld [vmem:[%s2 + $0x44] sm:$0xf]
      %v244 = vld [vmem:[%s2 + $0x48] sm:$0xf]
      %v245 = vld [vmem:[%s2 + $0x4c] sm:$0xf]
      %v246 = vld [vmem:[%s2 + $0x50] sm:$0xf]
      %v247 = vld [vmem:[%s2 + $0x54] sm:$0xf]
      %v248 = vld [vmem:[%s2 + $0x58] sm:$0xf]
      %v249 = vld [vmem:[%s2 + $0x5c] sm:$0xf]
      %v251 = vshrl.u32 %v200, 16
      %v253 = vshll.u32 %v200, 16
      %v255 = vrot.slane %v253, 1
      %v256 = vor.u32 %v251, %v255
      %v258 = vshrl.u32 %v201, 16
      %v260 = vshll.u32 %v201, 16
      %v262 = vrot.slane %v260, 1
      %v263 = vor.u32 %v258, %v262
      %v289 = vunpack.c.l.b16 %v226
      %v290 = vunpack.c.l.b16 %v227
      %v291 = vunpack.c.l.b16 %v228
      %v292 = vunpack.c.l.b16 %v229
      %v293 = vunpack.c.l.b16 %v230
      %v294 = vunpack.c.l.b16 %v231
      %v295 = vunpack.c.l.b16 %v232
      %v296 = vunpack.c.l.b16 %v233
      %v297 = vunpack.c.l.b16 %v234
      %v298 = vunpack.c.l.b16 %v235
      %v299 = vunpack.c.l.b16 %v236
      %v300 = vunpack.c.l.b16 %v237
      %v301 = vunpack.c.l.b16 %v238
      %v302 = vunpack.c.l.b16 %v239
      %v303 = vunpack.c.l.b16 %v240
      %v304 = vunpack.c.l.b16 %v241
      %v305 = vunpack.c.l.b16 %v242
      %v306 = vunpack.c.l.b16 %v243
      %v307 = vunpack.c.l.b16 %v244
      %v308 = vunpack.c.l.b16 %v245
      %v309 = vunpack.c.l.b16 %v246
      %v310 = vunpack.c.l.b16 %v247
      %v311 = vunpack.c.l.b16 %v248
      %v312 = vunpack.c.l.b16 %v249
      %v313 = vpack.c.b16 %v290, %v289
      %v314 = vpack.c.b16 %v292, %v291
      %v315 = vpack.c.b16 %v294, %v293
      %v316 = vpack.c.b16 %v296, %v295
      %v317 = vpack.c.b16 %v298, %v297
      %v318 = vpack.c.b16 %v300, %v299
      %v319 = vpack.c.b16 %v302, %v301
      %v320 = vpack.c.b16 %v304, %v303
      %v321 = vpack.c.b16 %v306, %v305
      %v322 = vpack.c.b16 %v308, %v307
      %v323 = vpack.c.b16 %v310, %v309
      %v324 = vpack.c.b16 %v312, %v311
      %vm337 = vcmask 523264
      %v339 = vsel %vm337, %v263, 0
      %341 = vmatprep.subr.bf16.mxu0 0
      %342 = vmatpush1.bf16.msra.mxu0 %v313
      %343 = vmatprep.subr.bf16.mxu0 0
      %344 = vmatpush1.bf16.msra.mxu0 %v314
      %345 = vmatprep.subr.bf16.mxu0 0
      %346 = vmatpush1.bf16.msra.mxu0 %v315
      %347 = vmatprep.subr.bf16.mxu0 0
      %348 = vmatpush1.bf16.msra.mxu0 %v316
      %349 = vmatprep.subr.bf16.mxu0 0
      %350 = vmatpush1.bf16.msra.mxu0 %v317
      %351 = vmatprep.subr.bf16.mxu0 0
      %352 = vmatpush1.bf16.msra.mxu0 %v318
      %353 = vmatprep.subr.bf16.mxu0 0
      %354 = vmatpush1.bf16.msra.mxu0 %v319
      %355 = vmatprep.subr.bf16.mxu0 0
      %356 = vmatpush1.bf16.msra.mxu0 %v320
      %357 = vmatprep.subr.bf16.mxu0 0
      %358 = vmatpush1.bf16.msra.mxu0 %v321
      %359 = vmatprep.subr.bf16.mxu0 0
      %360 = vmatpush1.bf16.msra.mxu0 %v322
      %361 = vmatprep.subr.bf16.mxu0 0
      %362 = vmatpush1.bf16.msra.mxu0 %v323
      %363 = vmatprep.subr.bf16.mxu0 0
      %364 = vmatpush1.bf16.msra.mxu0 %v324
      %365 = vmatprep.subr.bf16.mxu0 0
      %366 = vmatpush1.bf16.msra.mxu0 0
      %367 = vmatprep.subr.bf16.mxu0 0
      %368 = vmatpush1.bf16.msra.mxu0 0
      %369 = vmatprep.subr.bf16.mxu0 0
      %370 = vmatpush1.bf16.msra.mxu0 0
      %371 = vmatprep.subr.bf16.mxu0 0
      %372 = vmatpush1.bf16.msra.mxu0 0
      %373 = vmatprep.mubr.bf16.mxu0 %v339
      %374 = vmatmul.mubr.bf16.gmra.mrb[0].mxu0 %v256
      %v375 = vpop.f32.mrb[0].mxu0
      %v376 = vadd.f32 0.0, %v375
      %v377 = vpop.f32.mrb[0].mxu0
      %v378 = vpop.f32.mrb[0].mxu0
      %v379 = vpop.f32.mrb[0].mxu0
      %380 = vdwg.mxu0
      %v405 = vunpack.c.l.b16 %v202
      %v406 = vunpack.c.l.b16 %v203
      %v407 = vunpack.c.l.b16 %v204
      %v408 = vunpack.c.l.b16 %v205
      %v409 = vunpack.c.l.b16 %v206
      %v410 = vunpack.c.l.b16 %v207
      %v411 = vunpack.c.l.b16 %v208
      %v412 = vunpack.c.l.b16 %v209
      %v413 = vunpack.c.l.b16 %v210
      %v414 = vunpack.c.l.b16 %v211
      %v415 = vunpack.c.l.b16 %v212
      %v416 = vunpack.c.l.b16 %v213
      %v417 = vunpack.c.l.b16 %v214
      %v418 = vunpack.c.l.b16 %v215
      %v419 = vunpack.c.l.b16 %v216
      %v420 = vunpack.c.l.b16 %v217
      %v421 = vunpack.c.l.b16 %v218
      %v422 = vunpack.c.l.b16 %v219
      %v423 = vunpack.c.l.b16 %v220
      %v424 = vunpack.c.l.b16 %v221
      %v425 = vunpack.c.l.b16 %v222
      %v426 = vunpack.c.l.b16 %v223
      %v427 = vunpack.c.l.b16 %v224
      %v428 = vunpack.c.l.b16 %v225
      %v429 = vpack.c.b16 %v406, %v405
      %v430 = vpack.c.b16 %v408, %v407
      %v431 = vpack.c.b16 %v410, %v409
      %v432 = vpack.c.b16 %v412, %v411
      %v433 = vpack.c.b16 %v414, %v413
      %v434 = vpack.c.b16 %v416, %v415
      %v435 = vpack.c.b16 %v418, %v417
      %v436 = vpack.c.b16 %v420, %v419
      %v437 = vpack.c.b16 %v422, %v421
      %v438 = vpack.c.b16 %v424, %v423
      %v439 = vpack.c.b16 %v426, %v425
      %v440 = vpack.c.b16 %v428, %v427
      %v453 = vsel %vm337, %v201, 0
      %455 = vmatprep.subr.bf16.mxu0 0
      %456 = vmatpush1.bf16.msra.mxu0 %v429
      %457 = vmatprep.subr.bf16.mxu0 0
      %458 = vmatpush1.bf16.msra.mxu0 %v430
      %459 = vmatprep.subr.bf16.mxu0 0
      %460 = vmatpush1.bf16.msra.mxu0 %v431
      %461 = vmatprep.subr.bf16.mxu0 0
      %462 = vmatpush1.bf16.msra.mxu0 %v432
      %463 = vmatprep.subr.bf16.mxu0 0
      %464 = vmatpush1.bf16.msra.mxu0 %v433
      %465 = vmatprep.subr.bf16.mxu0 0
      %466 = vmatpush1.bf16.msra.mxu0 %v434
      %467 = vmatprep.subr.bf16.mxu0 0
      %468 = vmatpush1.bf16.msra.mxu0 %v435
      %469 = vmatprep.subr.bf16.mxu0 0
      %470 = vmatpush1.bf16.msra.mxu0 %v436
      %471 = vmatprep.subr.bf16.mxu0 0
      %472 = vmatpush1.bf16.msra.mxu0 %v437
      %473 = vmatprep.subr.bf16.mxu0 0
      %474 = vmatpush1.bf16.msra.mxu0 %v438
      %475 = vmatprep.subr.bf16.mxu0 0
      %476 = vmatpush1.bf16.msra.mxu0 %v439
      %477 = vmatprep.subr.bf16.mxu0 0
      %478 = vmatpush1.bf16.msra.mxu0 %v440
      %479 = vmatprep.subr.bf16.mxu0 0
      %480 = vmatpush1.bf16.msra.mxu0 0
      %481 = vmatprep.subr.bf16.mxu0 0
      %482 = vmatpush1.bf16.msra.mxu0 0
      %483 = vmatprep.subr.bf16.mxu0 0
      %484 = vmatpush1.bf16.msra.mxu0 0
      %485 = vmatprep.subr.bf16.mxu0 0
      %486 = vmatpush1.bf16.msra.mxu0 0
      %487 = vmatprep.mubr.bf16.mxu0 %v453
      %488 = vmatmul.mubr.bf16.gmra.mrb[0].mxu0 %v200
      %v489 = vpop.f32.mrb[0].mxu0
      %v490 = vadd.f32 %v376, %v489
      %v491 = vpop.f32.mrb[0].mxu0
      %v492 = vpop.f32.mrb[0].mxu0
      %v493 = vpop.f32.mrb[0].mxu0
      %494 = vdwg.mxu0
      %v495 = vld [vmem:[%s3] sm:$0x1]
      %v497 = vlaneseq
      %v498 = vshrl.u32 %v497, 7
      %v499 = vsub.s32 0, %v498
      %v500 = vrot.slane %v495, %v499
      %v502 = vadd.f32 %v490, %v500
      %v503 = vmax.f32 %v502, 0.0
      %v504 = vpack.c.bf16 %v503, %v503
      %505 = vst [vmem:[%s195] sm:$0x3] %v504
      %p506 = scmp.lt.s32.totalorder %s15, 1
      %s507 = scalar_select %p506, %s15, 1
      %s508 = smul.addr %s507, 2
      %s509 = scalar_lea.vmem %s4, %s508
      // Predicated region
      $region37: #{forward.10} parent=35 // pred_check
        %p510 = pneg %p122
      $region38: #{forward.10} parent=35 // pred_check_branch
        %512 = sbr.rel (%p510) target = $region40
      $region39: #{forward.10} parent=35 // pred_region
        _
      $region40: #{forward.10} parent=35 // pred_fallthru
        _
    $region36: #{forward.10} parent=5 // pred_fallthru
      _
    %p513 = scmp.le.s32.totalorder 2, %s10
    // Predicated region
    $region41: #{forward.10} parent=5 // pred_check
      %p514 = pneg %p513
    $region42: #{forward.10} parent=5 // pred_check_branch
      %516 = sbr.rel (%p514) target = $region44
    $region43: #{forward.10} parent=5 // pred_region
      %s517 = ssub.s32 %s10, 2
      // Predicated region
      $region45: #{forward.10} parent=43 // pred_check
        %p518 = pneg %p128
      $region46: #{forward.10} parent=43 // pred_check_branch
        %520 = sbr.rel (%p518) target = $region48
      $region47: #{forward.10} parent=43 // pred_region
        %p521 = scmp.lt.s32.totalorder %s16, 1
        %s522 = scalar_select %p521, %s16, 1
        %s523 = smul.addr %s522, 2
        %s524 = scalar_lea.vmem %s4, %s523
      $region48: #{forward.10} parent=43 // pred_fallthru
        _
    $region44: #{forward.10} parent=5 // pred_fallthru
      _
  $region6: #{forward.10} parent=0 // loop_footer
    %s14 = sadd.s32 1, %s10
  $region7: #{forward.10} parent=0 // loop_footer_branch
    %9 = sbr.rel target = $region3
  $region8: #{forward.10} parent=0 // loop_exit
    _

// kernel: forward.9
$region0: #{forward.9}
  #allocation0 [shape = 'u32[]', space=smem, size = 0x4, offset = 0x4, fixed_abs, tag = 'smem constant byte address 0x4 - core index']
  #allocation1 [shape = 'u32[144,128]{1,0:T(1,128)}', space=vmem, size = 0x12000, scoped, tag = 'internal scratch']
  #allocation2 [shape = 'bf16[16,96]{1,0:T(16,128)(2,1)}', space=vmem, size = 0x1000, scoped, tag = 'scratch operand']
  %s0 = inlined_call_operand.vmem [shape: bf16[2,16,96], index: 0, kind: input, shape index: {}]
  %s1 = inlined_call_operand.vmem [shape: bf16[3,96,96], index: 1, kind: input, shape index: {}]
  %s2 = inlined_call_operand.vmem [shape: bf16[3,96,24], index: 2, kind: input, shape index: {}]
  %s3 = inlined_call_operand.vmem [shape: bf16[3,7,24,96], index: 3, kind: input, shape index: {}]
  %s4 = inlined_call_operand.vmem [shape: f32[3,1,96], index: 4, kind: input, shape index: {}]
  %s5 = inlined_call_operand.vmem [shape: bf16[2,8,96], index: 5, kind: output, shape index: {}]
  %s6 = sld [smem:[#allocation0]]
  $region53: #{forward.9} parent=0
    _
  %s8 = ssub.s32 1, %s6
  %s9 = scalar_select 0, %s8, %s6
  loop: start=0, step=1, limit=4
  $region2: #{forward.9} parent=0 // loop_pre_header
    _
  $region3: #{forward.9} parent=0 // loop_header
    %s11 = sphi 0, %s15
    %p12 = scmp.ge.s32.totalorder %s11, 4
    %s21 = sphi 0, %s23
    %s24 = sphi 0, %s21
    %s25 = sphi 0, %s24
    %s41 = sphi 0, %s25
    %s45 = sphi 0, %s45
    %s47 = sphi 0, %s45
    %s48 = sphi 0, %s47
    %s62 = sphi 0, %s48
    %s66 = sphi 0, %s66
    %s68 = sphi 0, %s66
    %s69 = sphi 0, %s68
    %s83 = sphi 0, %s69
    %s87 = sphi 0, %s87
    %s89 = sphi 0, %s87
    %s90 = sphi 0, %s89
    %s104 = sphi 0, %s90
    %s108 = sphi 0, %s108
    %s110 = sphi 0, %s108
    %s111 = sphi 0, %s110
    %s125 = sphi 0, %s111
    %s131 = sphi 0, %s133
    %s134 = sphi 0, %s131
    %s135 = sphi 0, %s134
    %s151 = sphi 0, %s135
  $region4: #{forward.9} parent=0 // loop_header_branch
    %14 = sbr.rel (%p12) target = $region8
  $region5: #{forward.9} parent=0 // loop_body
    %s16 = ssub.s32 %s11, 1
    %s17 = ssub.s32 %s11, 2
    %s18 = sadd.s32 %s11, 1
    %s19 = ssub.s32 %s11, %s18
    %p20 = scmp.eq.s32.totalorder %s19, 0
    %s22 = sadd.s32 %s21, 1
    %s23 = scalar_select %p20, %s21, %s22
    %p26 = pneg %p20
    %p27 = scmp.eq.s32.totalorder %s11, 1
    %p28 = por %p26, %p27
    %p29 = scmp.ne.s32.totalorder %s21, %s24
    %p30 = scmp.eq.s32.totalorder %s11, 0
    %p31 = por %p29, %p30
    %p32 = scmp.ne.s32.totalorder %s21, %s24
    %p33 = scmp.eq.s32.totalorder %s16, 1
    %p34 = por %p32, %p33
    %p35 = scmp.ne.s32.totalorder %s24, %s25
    %p36 = scmp.eq.s32.totalorder %s16, 0
    %p37 = por %p35, %p36
    %p38 = scmp.ne.s32.totalorder %s24, %s25
    %p39 = scmp.eq.s32.totalorder %s17, 1
    %p40 = por %p38, %p39
    %p42 = scmp.ne.s32.totalorder %s25, %s41
    %p43 = scmp.eq.s32.totalorder %s17, 0
    %p44 = por %p42, %p43
    %s46 = sadd.s32 %s45, 1
    %p49 = scmp.eq.s32.totalorder %s11, 1
    %p50 = scmp.ne.s32.totalorder %s45, %s47
    %p51 = scmp.eq.s32.totalorder %s11, 0
    %p52 = por %p50, %p51
    %p53 = scmp.ne.s32.totalorder %s45, %s47
    %p54 = scmp.eq.s32.totalorder %s16, 1
    %p55 = por %p53, %p54
    %p56 = scmp.ne.s32.totalorder %s47, %s48
    %p57 = scmp.eq.s32.totalorder %s16, 0
    %p58 = por %p56, %p57
    %p59 = scmp.ne.s32.totalorder %s47, %s48
    %p60 = scmp.eq.s32.totalorder %s17, 1
    %p61 = por %p59, %p60
    %p63 = scmp.ne.s32.totalorder %s48, %s62
    %p64 = scmp.eq.s32.totalorder %s17, 0
    %p65 = por %p63, %p64
    %s67 = sadd.s32 %s66, 1
    %p70 = scmp.eq.s32.totalorder %s11, 1
    %p71 = scmp.ne.s32.totalorder %s66, %s68
    %p72 = scmp.eq.s32.totalorder %s11, 0
    %p73 = por %p71, %p72
    %p74 = scmp.ne.s32.totalorder %s66, %s68
    %p75 = scmp.eq.s32.totalorder %s16, 1
    %p76 = por %p74, %p75
    %p77 = scmp.ne.s32.totalorder %s68, %s69
    %p78 = scmp.eq.s32.totalorder %s16, 0
    %p79 = por %p77, %p78
    %p80 = scmp.ne.s32.totalorder %s68, %s69
    %p81 = scmp.eq.s32.totalorder %s17, 1
    %p82 = por %p80, %p81
    %p84 = scmp.ne.s32.totalorder %s69, %s83
    %p85 = scmp.eq.s32.totalorder %s17, 0
    %p86 = por %p84, %p85
    %s88 = sadd.s32 %s87, 1
    %p91 = scmp.eq.s32.totalorder %s11, 1
    %p92 = scmp.ne.s32.totalorder %s87, %s89
    %p93 = scmp.eq.s32.totalorder %s11, 0
    %p94 = por %p92, %p93
    %p95 = scmp.ne.s32.totalorder %s87, %s89
    %p96 = scmp.eq.s32.totalorder %s16, 1
    %p97 = por %p95, %p96
    %p98 = scmp.ne.s32.totalorder %s89, %s90
    %p99 = scmp.eq.s32.totalorder %s16, 0
    %p100 = por %p98, %p99
    %p101 = scmp.ne.s32.totalorder %s89, %s90
    %p102 = scmp.eq.s32.totalorder %s17, 1
    %p103 = por %p101, %p102
    %p105 = scmp.ne.s32.totalorder %s90, %s104
    %p106 = scmp.eq.s32.totalorder %s17, 0
    %p107 = por %p105, %p106
    %s109 = sadd.s32 %s108, 1
    %p112 = scmp.eq.s32.totalorder %s11, 1
    %p113 = scmp.ne.s32.totalorder %s108, %s110
    %p114 = scmp.eq.s32.totalorder %s11, 0
    %p115 = por %p113, %p114
    %p116 = scmp.ne.s32.totalorder %s108, %s110
    %p117 = scmp.eq.s32.totalorder %s16, 1
    %p118 = por %p116, %p117
    %p119 = scmp.ne.s32.totalorder %s110, %s111
    %p120 = scmp.eq.s32.totalorder %s16, 0
    %p121 = por %p119, %p120
    %p122 = scmp.ne.s32.totalorder %s110, %s111
    %p123 = scmp.eq.s32.totalorder %s17, 1
    %p124 = por %p122, %p123
    %p126 = scmp.ne.s32.totalorder %s111, %s125
    %p127 = scmp.eq.s32.totalorder %s17, 0
    %p128 = por %p126, %p127
    %s129 = ssub.s32 %s11, %s18
    %p130 = scmp.eq.s32.totalorder %s129, 0
    %s132 = sadd.s32 %s131, 1
    %s133 = scalar_select %p130, %s131, %s132
    %p136 = pneg %p130
    %p137 = scmp.eq.s32.totalorder %s11, 1
    %p138 = por %p136, %p137
    %p139 = scmp.ne.s32.totalorder %s131, %s134
    %p140 = scmp.eq.s32.totalorder %s11, 0
    %p141 = por %p139, %p140
    %p142 = scmp.ne.s32.totalorder %s131, %s134
    %p143 = scmp.eq.s32.totalorder %s16, 1
    %p144 = por %p142, %p143
    %p145 = scmp.ne.s32.totalorder %s134, %s135
    %p146 = scmp.eq.s32.totalorder %s16, 0
    %p147 = por %p145, %p146
    %p148 = scmp.ne.s32.totalorder %s134, %s135
    %p149 = scmp.eq.s32.totalorder %s17, 1
    %p150 = por %p148, %p149
    %p152 = scmp.ne.s32.totalorder %s135, %s151
    %p153 = scmp.eq.s32.totalorder %s17, 0
    %p154 = por %p152, %p153
    %p155 = scmp.le.s32.totalorder 1, %s11
    %p156 = scmp.lt.s32.totalorder %s11, 3
    %p157 = pnand %p155, %p156
    %p158 = pneg %p157
    // Predicated region
    $region9: #{forward.9} parent=5 // pred_check
      _
    $region10: #{forward.9} parent=5 // pred_check_branch
      %160 = sbr.rel (%p157) target = $region12
    $region11: #{forward.9} parent=5 // pred_region
      %s161 = ssub.s32 %s11, 1
      // Predicated region
      $region13: #{forward.9} parent=11 // pred_check
        %p162 = pneg %p58
      $region14: #{forward.9} parent=11 // pred_check_branch
        %164 = sbr.rel (%p162) target = $region16
      $region15: #{forward.9} parent=11 // pred_region
        _
      $region16: #{forward.9} parent=11 // pred_fallthru
        _
      // Predicated region
      $region17: #{forward.9} parent=11 // pred_check
        %p165 = pneg %p79
      $region18: #{forward.9} parent=11 // pred_check_branch
        %167 = sbr.rel (%p165) target = $region20
      $region19: #{forward.9} parent=11 // pred_region
        _
      $region20: #{forward.9} parent=11 // pred_fallthru
        _
      // Predicated region
      $region21: #{forward.9} parent=11 // pred_check
        %p168 = pneg %p100
      $region22: #{forward.9} parent=11 // pred_check_branch
        %170 = sbr.rel (%p168) target = $region24
      $region23: #{forward.9} parent=11 // pred_region
        _
      $region24: #{forward.9} parent=11 // pred_fallthru
        _
      // Predicated region
      $region25: #{forward.9} parent=11 // pred_check
        %p171 = pneg %p121
      $region26: #{forward.9} parent=11 // pred_check_branch
        %173 = sbr.rel (%p171) target = $region28
      $region27: #{forward.9} parent=11 // pred_region
        _
      $region28: #{forward.9} parent=11 // pred_fallthru
        _
    $region12: #{forward.9} parent=5 // pred_fallthru
      _
    %p174 = scmp.lt.s32.totalorder %s11, 2
    // Predicated region
    $region29: #{forward.9} parent=5 // pred_check
      %p175 = pneg %p174
    $region30: #{forward.9} parent=5 // pred_check_branch
      %177 = sbr.rel (%p175) target = $region32
    $region31: #{forward.9} parent=5 // pred_region
      // Predicated region
      $region33: #{forward.9} parent=31 // pred_check
        %p178 = pneg %p31
      $region34: #{forward.9} parent=31 // pred_check_branch
        %180 = sbr.rel (%p178) target = $region36
      $region35: #{forward.9} parent=31 // pred_region
        %p181 = scmp.lt.s32.totalorder %s11, 1
        %s182 = scalar_select %p181, %s11, 1
        %s183 = smul.addr %s182, 2
        %s184 = smul.addr %s183, 4
        %s185 = scalar_lea.vmem %s0, %s184
      $region36: #{forward.9} parent=31 // pred_fallthru
        _
    $region32: #{forward.9} parent=5 // pred_fallthru
      _
    %p186 = scmp.le.s32.totalorder 1, %s11
    %p187 = scmp.lt.s32.totalorder %s11, 3
    %p188 = pnand %p186, %p187
    %p189 = pneg %p188
    // Predicated region
    $region37: #{forward.9} parent=5 // pred_check
      _
    $region38: #{forward.9} parent=5 // pred_check_branch
      %191 = sbr.rel (%p188) target = $region40
    $region39: #{forward.9} parent=5 // pred_region
      %s192 = ssub.s32 %s11, 1
      %p193 = scmp.lt.s32.totalorder %s16, 1
      %s194 = scalar_select %p193, %s16, 1
      %s195 = smul.addr %s194, 2
      %s196 = smul.addr %s195, 4
      %s197 = scalar_lea.vmem %s0, %s196
      %p198 = pneg %p37
      %p199 = pneg %p34
      %p200 = pneg %p58
      %p201 = pneg %p55
      %p202 = pneg %p79
      %p203 = pneg %p76
      %p204 = pneg %p100
      %p205 = pneg %p97
      %p206 = pneg %p121
      %p207 = pneg %p118
      %p208 = pneg %p147
      %p209 = pneg %p144
      %p210 = scmp.lt.s32.totalorder %s16, 1
      %s211 = scalar_select %p210, %s16, 1
      %s212 = smul.addr %s211, 4
      %s213 = scalar_lea.vmem %s5, %s212
      %p214 = scmp.lt.s32.totalorder %s16, 1
      %s215 = scalar_select %p214, %s16, 1
      %s216 = smul.addr %s215, 2
      %s217 = smul.addr %s216, 4
      %s218 = scalar_lea.vmem %s0, %s217
      %p219 = scmp.lt.s32.totalorder %s16, 1
      %s220 = scalar_select %p219, %s16, 1
      %s221 = smul.addr %s220, 4
      %s222 = scalar_lea.vmem %s5, %s221
      %v224 = vld [vmem:[%s218] sm:$0xf]
      %v225 = vld [vmem:[%s218 + $0x4] sm:$0xf]
      %vm226 = vcmask 785408
      %227 = vst.msk [vmem:[#allocation2] sm:$0xff] %vm226, 0
      %v228 = vunpack.c.l.bf16 %v224
      %v229 = vunpack.c.l.bf16 %v225
      %vm232 = vcmask 1046528
      %v233 = vrot.slane %v228, 1
      %v234 = vrot.slane %v229, 1
      %v235 = vsel %vm232, %v233, %v234
      %v238 = vmax.f32 %v228, %v235
      %v239 = vmax.f32 %v229, %v234
      %vm240 = vcmask 1045504
      %v241 = vrot.slane %v228, 2
      %v242 = vrot.slane %v229, 2
      %v243 = vsel %vm240, %v241, %v242
      %v246 = vmax.f32 %v238, %v243
      %v247 = vmax.f32 %v239, %v242
      %v248 = vpack.c.bf16 %v247, %v246
      %v249 = vld [vmem:[%s1] sm:$0xf]
      %v250 = vld [vmem:[%s1 + $0x4] sm:$0xf]
      %v251 = vld [vmem:[%s1 + $0x8] sm:$0xf]
      %v252 = vld [vmem:[%s1 + $0xc] sm:$0xf]
      %v253 = vld [vmem:[%s1 + $0x10] sm:$0xf]
      %v254 = vld [vmem:[%s1 + $0x14] sm:$0xf]
      %v255 = vld [vmem:[%s1 + $0x18] sm:$0xf]
      %v256 = vld [vmem:[%s1 + $0x1c] sm:$0xf]
      %v257 = vld [vmem:[%s1 + $0x20] sm:$0xf]
      %v258 = vld [vmem:[%s1 + $0x24] sm:$0xf]
      %v259 = vld [vmem:[%s1 + $0x28] sm:$0xf]
      %v260 = vld [vmem:[%s1 + $0x2c] sm:$0xf]
      %v261 = vld [vmem:[%s2] sm:$0xf]
      %v262 = vld [vmem:[%s2 + $0x4] sm:$0xf]
      %v263 = vld [vmem:[%s2 + $0x8] sm:$0xf]
      %v264 = vld [vmem:[%s2 + $0xc] sm:$0xf]
      %v265 = vld [vmem:[%s2 + $0x10] sm:$0xf]
      %v266 = vld [vmem:[%s2 + $0x14] sm:$0xf]
      %v267 = vld [vmem:[%s2 + $0x18] sm:$0xf]
      %v268 = vld [vmem:[%s2 + $0x1c] sm:$0xf]
      %v269 = vld [vmem:[%s2 + $0x20] sm:$0xf]
      %v270 = vld [vmem:[%s2 + $0x24] sm:$0xf]
      %v271 = vld [vmem:[%s2 + $0x28] sm:$0xf]
      %v272 = vld [vmem:[%s2 + $0x2c] sm:$0xf]
      %v275 = vunpack.c.l.b16 %v224
      %v276 = vunpack.c.l.b16 %v225
      %v277 = vpack.c.b16 %v276, %v275
      %v290 = vunpack.c.l.b16 %v261
      %v291 = vunpack.c.l.b16 %v262
      %v292 = vunpack.c.l.b16 %v263
      %v293 = vunpack.c.l.b16 %v264
      %v294 = vunpack.c.l.b16 %v265
      %v295 = vunpack.c.l.b16 %v266
      %v296 = vunpack.c.l.b16 %v267
      %v297 = vunpack.c.l.b16 %v268
      %v298 = vunpack.c.l.b16 %v269
      %v299 = vunpack.c.l.b16 %v270
      %v300 = vunpack.c.l.b16 %v271
      %v301 = vunpack.c.l.b16 %v272
      %v302 = vpack.c.b16 %v291, %v290
      %v303 = vpack.c.b16 %v293, %v292
      %v304 = vpack.c.b16 %v295, %v294
      %v305 = vpack.c.b16 %v297, %v296
      %v306 = vpack.c.b16 %v299, %v298
      %v307 = vpack.c.b16 %v301, %v300
      %v315 = vsel %vm226, %v277, 0
      %317 = vmatprep.subr.bf16.mxu0 0
      %318 = vmatpush1.bf16.msra.mxu0 %v302
      %319 = vmatprep.subr.bf16.mxu0 0
      %320 = vmatpush1.bf16.msra.mxu0 %v303
      %321 = vmatprep.subr.bf16.mxu0 0
      %322 = vmatpush1.bf16.msra.mxu0 %v304
      %323 = vmatprep.subr.bf16.mxu0 0
      %324 = vmatpush1.bf16.msra.mxu0 %v305
      %325 = vmatprep.subr.bf16.mxu0 0
      %326 = vmatpush1.bf16.msra.mxu0 %v306
      %327 = vmatprep.subr.bf16.mxu0 0
      %328 = vmatpush1.bf16.msra.mxu0 %v307
      %329 = vmatprep.subr.bf16.mxu0 0
      %330 = vmatpush1.bf16.msra.mxu0 0
      %331 = vmatprep.subr.bf16.mxu0 0
      %332 = vmatpush1.bf16.msra.mxu0 0
      %333 = vmatprep.subr.bf16.mxu0 0
      %334 = vmatpush1.bf16.msra.mxu0 0
      %335 = vmatprep.subr.bf16.mxu0 0
      %336 = vmatpush1.bf16.msra.mxu0 0
      %337 = vmatprep.subr.bf16.mxu0 0
      %338 = vmatpush1.bf16.msra.mxu0 0
      %339 = vmatprep.subr.bf16.mxu0 0
      %340 = vmatpush1.bf16.msra.mxu0 0
      %341 = vmatprep.subr.bf16.mxu0 0
      %342 = vmatpush1.bf16.msra.mxu0 0
      %343 = vmatprep.subr.bf16.mxu0 0
      %344 = vmatpush1.bf16.msra.mxu0 0
      %345 = vmatprep.subr.bf16.mxu0 0
      %346 = vmatpush1.bf16.msra.mxu0 0
      %347 = vmatprep.subr.bf16.mxu0 0
      %348 = vmatpush1.bf16.msra.mxu0 0
      %349 = vmatprep.mubr.bf16.mxu0 0
      %350 = vmatmul.mubr.bf16.gmra.mrb[0].mxu0 %v315
      %v351 = vpop.f32.mrb[0].mxu0
      %v352 = vadd.f32 0.0, %v351
      %v353 = vpop.f32.mrb[0].mxu0
      %v354 = vpop.f32.mrb[0].mxu0
      %v355 = vadd.f32 0.0, %v354
      %v356 = vpop.f32.mrb[0].mxu0
      %357 = vdwg.mxu0
      %v358 = vpack.c.bf16 %v355, %v352
      %v359 = vld [vmem:[%s3] sm:$0xf]
      %v360 = vld [vmem:[%s3 + $0x4] sm:$0xf]
      %v361 = vld [vmem:[%s3 + $0x8] sm:$0xf]
      %v363 = vshrl.u32 %v358, 16
      %v365 = vshll.u32 %v358, 16
      %v367 = vrot.slane %v365, 1
      %v368 = vor.u32 %v363, %v367
      %v372 = vunpack.c.l.b16 %v359
      %v373 = vunpack.c.l.b16 %v360
      %v374 = vunpack.c.l.b16 %v361
      %v375 = vpack.c.b16 %v373, %v372
      %v376 = vpack.c.b16 %v374, %v374
      %vm378 = vcmask 195584
      %v380 = vsel %vm378, %v368, 0
      %vm382 = vcmask 1043456
      %v384 = vsel %vm382, %v376, 0
      %386 = vmatprep.subr.bf16.mxu0 0
      %387 = vmatpush1.bf16.msra.mxu0 %v375
      %388 = vmatprep.subr.bf16.mxu0 0
      %389 = vmatpush1.bf16.msra.mxu0 %v384
      %390 = vmatprep.subr.bf16.mxu0 0
      %391 = vmatpush1.bf16.msra.mxu0 0
      %392 = vmatprep.subr.bf16.mxu0 0
      %393 = vmatpush1.bf16.msra.mxu0 0
      %394 = vmatprep.subr.bf16.mxu0 0
      %395 = vmatpush1.bf16.msra.mxu0 0
      %396 = vmatprep.subr.bf16.mxu0 0
      %397 = vmatpush1.bf16.msra.mxu0 0
      %398 = vmatprep.subr.bf16.mxu0 0
      %399 = vmatpush1.bf16.msra.mxu0 0
      %400 = vmatprep.subr.bf16.mxu0 0
      %401 = vmatpush1.bf16.msra.mxu0 0
      %402 = vmatprep.subr.bf16.mxu0 0
      %403 = vmatpush1.bf16.msra.mxu0 0
      %404 = vmatprep.subr.bf16.mxu0 0
      %405 = vmatpush1.bf16.msra.mxu0 0
      %406 = vmatprep.subr.bf16.mxu0 0
      %407 = vmatpush1.bf16.msra.mxu0 0
      %408 = vmatprep.subr.bf16.mxu0 0
      %409 = vmatpush1.bf16.msra.mxu0 0
      %410 = vmatprep.subr.bf16.mxu0 0
      %411 = vmatpush1.bf16.msra.mxu0 0
      %412 = vmatprep.subr.bf16.mxu0 0
      %413 = vmatpush1.bf16.msra.mxu0 0
      %414 = vmatprep.subr.bf16.mxu0 0
      %415 = vmatpush1.bf16.msra.mxu0 0
      %416 = vmatprep.subr.bf16.mxu0 0
      %417 = vmatpush1.bf16.msra.mxu0 0
      %418 = vmatprep.mubr.bf16.mxu0 0
      %419 = vmatmul.mubr.bf16.gmra.mrb[0].mxu0 %v380
      %v420 = vpop.f32.mrb[0].mxu0
      %v421 = vadd.f32 0.0, %v420
      %v422 = vpop.f32.mrb[0].mxu0
      %v423 = vpop.f32.mrb[0].mxu0
      %v424 = vpop.f32.mrb[0].mxu0
      %425 = vdwg.mxu0
      %v427 = vshrl.u32 %v248, 16
      %v429 = vrot.slane %v427, 1
      %v430 = vshll.u32 %v248, 16
      %v432 = vrot.slane %v430, 2
      %v433 = vor.u32 %v429, %v432
      %v446 = vunpack.c.l.b16 %v249
      %v447 = vunpack.c.l.b16 %v250
      %v448 = vunpack.c.l.b16 %v251
      %v449 = vunpack.c.l.b16 %v252
      %v450 = vunpack.c.l.b16 %v253
      %v451 = vunpack.c.l.b16 %v254
      %v452 = vunpack.c.l.b16 %v255
      %v453 = vunpack.c.l.b16 %v256
      %v454 = vunpack.c.l.b16 %v257
      %v455 = vunpack.c.l.b16 %v258
      %v456 = vunpack.c.l.b16 %v259
      %v457 = vunpack.c.l.b16 %v260
      %v458 = vpack.c.b16 %v447, %v446
      %v459 = vpack.c.b16 %v449, %v448
      %v460 = vpack.c.b16 %v451, %v450
      %v461 = vpack.c.b16 %v453, %v452
      %v462 = vpack.c.b16 %v455, %v454
      %v463 = vpack.c.b16 %v457, %v456
      %v471 = vsel %vm226, %v433, 0
      %473 = vmatprep.subr.bf16.mxu0 0
      %474 = vmatpush1.bf16.msra.mxu0 %v458
      %475 = vmatprep.subr.bf16.mxu0 0
      %476 = vmatpush1.bf16.msra.mxu0 %v459
      %477 = vmatprep.subr.bf16.mxu0 0
      %478 = vmatpush1.bf16.msra.mxu0 %v460
      %479 = vmatprep.subr.bf16.mxu0 0
      %480 = vmatpush1.bf16.msra.mxu0 %v461
      %481 = vmatprep.subr.bf16.mxu0 0
      %482 = vmatpush1.bf16.msra.mxu0 %v462
      %483 = vmatprep.subr.bf16.mxu0 0
      %484 = vmatpush1.bf16.msra.mxu0 %v463
      %485 = vmatprep.subr.bf16.mxu0 0
      %486 = vmatpush1.bf16.msra.mxu0 0
      %487 = vmatprep.subr.bf16.mxu0 0
      %488 = vmatpush1.bf16.msra.mxu0 0
      %489 = vmatprep.subr.bf16.mxu0 0
      %490 = vmatpush1.bf16.msra.mxu0 0
      %491 = vmatprep.subr.bf16.mxu0 0
      %492 = vmatpush1.bf16.msra.mxu0 0
      %493 = vmatprep.subr.bf16.mxu0 0
      %494 = vmatpush1.bf16.msra.mxu0 0
      %495 = vmatprep.subr.bf16.mxu0 0
      %496 = vmatpush1.bf16.msra.mxu0 0
      %497 = vmatprep.subr.bf16.mxu0 0
      %498 = vmatpush1.bf16.msra.mxu0 0
      %499 = vmatprep.subr.bf16.mxu0 0
      %500 = vmatpush1.bf16.msra.mxu0 0
      %501 = vmatprep.subr.bf16.mxu0 0
      %502 = vmatpush1.bf16.msra.mxu0 0
      %503 = vmatprep.subr.bf16.mxu0 0
      %504 = vmatpush1.bf16.msra.mxu0 0
      %505 = vmatprep.mubr.bf16.mxu0 0
      %506 = vmatmul.mubr.bf16.gmra.mrb[0].mxu0 %v471
      %v507 = vpop.f32.mrb[0].mxu0
      %v508 = vadd.f32 %v421, %v507
      %v509 = vpop.f32.mrb[0].mxu0
      %v510 = vpop.f32.mrb[0].mxu0
      %v511 = vpop.f32.mrb[0].mxu0
      %512 = vdwg.mxu0
      %s513 = scalar_lea.vmem %s3, 12
      %v514 = vld [vmem:[%s513] sm:$0xf]
      %v515 = vld [vmem:[%s513 + $0x4] sm:$0xf]
      %v516 = vld [vmem:[%s513 + $0x8] sm:$0xf]
      %v518 = vrot.slane %v358, 1
      %v522 = vunpack.c.l.b16 %v514
      %v523 = vunpack.c.l.b16 %v515
      %v524 = vunpack.c.l.b16 %v516
      %v525 = vpack.c.b16 %v523, %v522
      %v526 = vpack.c.b16 %v524, %v524
      %v529 = vsel %vm378, %v518, 0
      %v532 = vsel %vm382, %v526, 0
      %534 = vmatprep.subr.bf16.mxu0 0
      %535 = vmatpush1.bf16.msra.mxu0 %v525
      %536 = vmatprep.subr.bf16.mxu0 0
      %537 = vmatpush1.bf16.msra.mxu0 %v532
      %538 = vmatprep.subr.bf16.mxu0 0
      %539 = vmatpush1.bf16.msra.mxu0 0
      %540 = vmatprep.subr.bf16.mxu0 0
      %541 = vmatpush1.bf16.msra.mxu0 0
      %542 = vmatprep.subr.bf16.mxu0 0
      %543 = vmatpush1.bf16.msra.mxu0 0
      %544 = vmatprep.subr.bf16.mxu0 0
      %545 = vmatpush1.bf16.msra.mxu0 0
      %546 = vmatprep.subr.bf16.mxu0 0
      %547 = vmatpush1.bf16.msra.mxu0 0
      %548 = vmatprep.subr.bf16.mxu0 0
      %549 = vmatpush1.bf16.msra.mxu0 0
      %550 = vmatprep.subr.bf16.mxu0 0
      %551 = vmatpush1.bf16.msra.mxu0 0
      %552 = vmatprep.subr.bf16.mxu0 0
      %553 = vmatpush1.bf16.msra.mxu0 0
      %554 = vmatprep.subr.bf16.mxu0 0
      %555 = vmatpush1.bf16.msra.mxu0 0
      %556 = vmatprep.subr.bf16.mxu0 0
      %557 = vmatpush1.bf16.msra.mxu0 0
      %558 = vmatprep.subr.bf16.mxu0 0
      %559 = vmatpush1.bf16.msra.mxu0 0
      %560 = vmatprep.subr.bf16.mxu0 0
      %561 = vmatpush1.bf16.msra.mxu0 0
      %562 = vmatprep.subr.bf16.mxu0 0
      %563 = vmatpush1.bf16.msra.mxu0 0
      %564 = vmatprep.subr.bf16.mxu0 0
      %565 = vmatpush1.bf16.msra.mxu0 0
      %566 = vmatprep.mubr.bf16.mxu0 0
      %567 = vmatmul.mubr.bf16.gmra.mrb[0].mxu0 %v529
      %v568 = vpop.f32.mrb[0].mxu0
      %v569 = vadd.f32 0.0, %v568
      %v570 = vpop.f32.mrb[0].mxu0
      %v571 = vpop.f32.mrb[0].mxu0
      %v572 = vpop.f32.mrb[0].mxu0
      %573 = vdwg.mxu0
      %v574 = vadd.f32 %v508, %v569
      %s575 = scalar_lea.vmem %s3, 24
      %v576 = vld [vmem:[%s575] sm:$0xf]
      %v577 = vld [vmem:[%s575 + $0x4] sm:$0xf]
      %v578 = vld [vmem:[%s575 + $0x8] sm:$0xf]
      %v579 = vrot.slane %v363, 1
      %v580 = vrot.slane %v365, 2
      %v581 = vor.u32 %v579, %v580
      %v585 = vunpack.c.l.b16 %v576
      %v586 = vunpack.c.l.b16 %v577
      %v587 = vunpack.c.l.b16 %v578
      %v588 = vpack.c.b16 %v586, %v585
      %v589 = vpack.c.b16 %v587, %v587
      %v592 = vsel %vm378, %v581, 0
      %v595 = vsel %vm382, %v589, 0
      %597 = vmatprep.subr.bf16.mxu0 0
      %598 = vmatpush1.bf16.msra.mxu0 %v588
      %599 = vmatprep.subr.bf16.mxu0 0
      %600 = vmatpush1.bf16.msra.mxu0 %v595
      %601 = vmatprep.subr.bf16.mxu0 0
      %602 = vmatpush1.bf16.msra.mxu0 0
      %603 = vmatprep.subr.bf16.mxu0 0
      %604 = vmatpush1.bf16.msra.mxu0 0
      %605 = vmatprep.subr.bf16.mxu0 0
      %606 = vmatpush1.bf16.msra.mxu0 0
      %607 = vmatprep.subr.bf16.mxu0 0
      %608 = vmatpush1.bf16.msra.mxu0 0
      %609 = vmatprep.subr.bf16.mxu0 0
      %610 = vmatpush1.bf16.msra.mxu0 0
      %611 = vmatprep.subr.bf16.mxu0 0
      %612 = vmatpush1.bf16.msra.mxu0 0
      %613 = vmatprep.subr.bf16.mxu0 0
      %614 = vmatpush1.bf16.msra.mxu0 0
      %615 = vmatprep.subr.bf16.mxu0 0
      %616 = vmatpush1.bf16.msra.mxu0 0
      %617 = vmatprep.subr.bf16.mxu0 0
      %618 = vmatpush1.bf16.msra.mxu0 0
      %619 = vmatprep.subr.bf16.mxu0 0
      %620 = vmatpush1.bf16.msra.mxu0 0
      %621 = vmatprep.subr.bf16.mxu0 0
      %622 = vmatpush1.bf16.msra.mxu0 0
      %623 = vmatprep.subr.bf16.mxu0 0
      %624 = vmatpush1.bf16.msra.mxu0 0
      %625 = vmatprep.subr.bf16.mxu0 0
      %626 = vmatpush1.bf16.msra.mxu0 0
      %627 = vmatprep.subr.bf16.mxu0 0
      %628 = vmatpush1.bf16.msra.mxu0 0
      %629 = vmatprep.mubr.bf16.mxu0 0
      %630 = vmatmul.mubr.bf16.gmra.mrb[0].mxu0 %v592
      %v631 = vpop.f32.mrb[0].mxu0
      %v632 = vadd.f32 0.0, %v631
      %v633 = vpop.f32.mrb[0].mxu0
      %v634 = vpop.f32.mrb[0].mxu0
      %v635 = vpop.f32.mrb[0].mxu0
      %636 = vdwg.mxu0
      %v637 = vadd.f32 %v574, %v632
      %s638 = scalar_lea.vmem %s3, 36
      %v639 = vld [vmem:[%s638] sm:$0xf]
      %v640 = vld [vmem:[%s638 + $0x4] sm:$0xf]
      %v641 = vld [vmem:[%s638 + $0x8] sm:$0xf]
      %v642 = vrot.slane %v358, 2
      %v646 = vunpack.c.l.b16 %v639
      %v647 = vunpack.c.l.b16 %v640
      %v648 = vunpack.c.l.b16 %v641
      %v649 = vpack.c.b16 %v647, %v646
      %v650 = vpack.c.b16 %v648, %v648
      %v653 = vsel %vm378, %v642, 0
      %v656 = vsel %vm382, %v650, 0
      %658 = vmatprep.subr.bf16.mxu0 0
      %659 = vmatpush1.bf16.msra.mxu0 %v649
      %660 = vmatprep.subr.bf16.mxu0 0
      %661 = vmatpush1.bf16.msra.mxu0 %v656
      %662 = vmatprep.subr.bf16.mxu0 0
      %663 = vmatpush1.bf16.msra.mxu0 0
      %664 = vmatprep.subr.bf16.mxu0 0
      %665 = vmatpush1.bf16.msra.mxu0 0
      %666 = vmatprep.subr.bf16.mxu0 0
      %667 = vmatpush1.bf16.msra.mxu0 0
      %668 = vmatprep.subr.bf16.mxu0 0
      %669 = vmatpush1.bf16.msra.mxu0 0
      %670 = vmatprep.subr.bf16.mxu0 0
      %671 = vmatpush1.bf16.msra.mxu0 0
      %672 = vmatprep.subr.bf16.mxu0 0
      %673 = vmatpush1.bf16.msra.mxu0 0
      %674 = vmatprep.subr.bf16.mxu0 0
      %675 = vmatpush1.bf16.msra.mxu0 0
      %676 = vmatprep.subr.bf16.mxu0 0
      %677 = vmatpush1.bf16.msra.mxu0 0
      %678 = vmatprep.subr.bf16.mxu0 0
      %679 = vmatpush1.bf16.msra.mxu0 0
      %680 = vmatprep.subr.bf16.mxu0 0
      %681 = vmatpush1.bf16.msra.mxu0 0
      %682 = vmatprep.subr.bf16.mxu0 0
      %683 = vmatpush1.bf16.msra.mxu0 0
      %684 = vmatprep.subr.bf16.mxu0 0
      %685 = vmatpush1.bf16.msra.mxu0 0
      %686 = vmatprep.subr.bf16.mxu0 0
      %687 = vmatpush1.bf16.msra.mxu0 0
      %688 = vmatprep.subr.bf16.mxu0 0
      %689 = vmatpush1.bf16.msra.mxu0 0
      %690 = vmatprep.mubr.bf16.mxu0 0
      %691 = vmatmul.mubr.bf16.gmra.mrb[0].mxu0 %v653
      %v692 = vpop.f32.mrb[0].mxu0
      %v693 = vadd.f32 0.0, %v692
      %v694 = vpop.f32.mrb[0].mxu0
      %v695 = vpop.f32.mrb[0].mxu0
      %v696 = vpop.f32.mrb[0].mxu0
      %697 = vdwg.mxu0
      %v698 = vadd.f32 %v637, %v693
      %s699 = scalar_lea.vmem %s3, 48
      %v700 = vld [vmem:[%s699] sm:$0xf]
      %v701 = vld [vmem:[%s699 + $0x4] sm:$0xf]
      %v702 = vld [vmem:[%s699 + $0x8] sm:$0xf]
      %v703 = vrot.slane %v363, 2
      %v704 = vrot.slane %v365, 3
      %v705 = vor.u32 %v703, %v704
      %v709 = vunpack.c.l.b16 %v700
      %v710 = vunpack.c.l.b16 %v701
      %v711 = vunpack.c.l.b16 %v702
      %v712 = vpack.c.b16 %v710, %v709
      %v713 = vpack.c.b16 %v711, %v711
      %v716 = vsel %vm378, %v705, 0
      %v719 = vsel %vm382, %v713, 0
      %721 = vmatprep.subr.bf16.mxu0 0
      %722 = vmatpush1.bf16.msra.mxu0 %v712
      %723 = vmatprep.subr.bf16.mxu0 0
      %724 = vmatpush1.bf16.msra.mxu0 %v719
      %725 = vmatprep.subr.bf16.mxu0 0
      %726 = vmatpush1.bf16.msra.mxu0 0
      %727 = vmatprep.subr.bf16.mxu0 0
      %728 = vmatpush1.bf16.msra.mxu0 0
      %729 = vmatprep.subr.bf16.mxu0 0
      %730 = vmatpush1.bf16.msra.mxu0 0
      %731 = vmatprep.subr.bf16.mxu0 0
      %732 = vmatpush1.bf16.msra.mxu0 0
      %733 = vmatprep.subr.bf16.mxu0 0
      %734 = vmatpush1.bf16.msra.mxu0 0
      %735 = vmatprep.subr.bf16.mxu0 0
      %736 = vmatpush1.bf16.msra.mxu0 0
      %737 = vmatprep.subr.bf16.mxu0 0
      %738 = vmatpush1.bf16.msra.mxu0 0
      %739 = vmatprep.subr.bf16.mxu0 0
      %740 = vmatpush1.bf16.msra.mxu0 0
      %741 = vmatprep.subr.bf16.mxu0 0
      %742 = vmatpush1.bf16.msra.mxu0 0
      %743 = vmatprep.subr.bf16.mxu0 0
      %744 = vmatpush1.bf16.msra.mxu0 0
      %745 = vmatprep.subr.bf16.mxu0 0
      %746 = vmatpush1.bf16.msra.mxu0 0
      %747 = vmatprep.subr.bf16.mxu0 0
      %748 = vmatpush1.bf16.msra.mxu0 0
      %749 = vmatprep.subr.bf16.mxu0 0
      %750 = vmatpush1.bf16.msra.mxu0 0
      %751 = vmatprep.subr.bf16.mxu0 0
      %752 = vmatpush1.bf16.msra.mxu0 0
      %753 = vmatprep.mubr.bf16.mxu0 0
      %754 = vmatmul.mubr.bf16.gmra.mrb[0].mxu0 %v716
      %v755 = vpop.f32.mrb[0].mxu0
      %v756 = vadd.f32 0.0, %v755
      %v757 = vpop.f32.mrb[0].mxu0
      %v758 = vpop.f32.mrb[0].mxu0
      %v759 = vpop.f32.mrb[0].mxu0
      %760 = vdwg.mxu0
      %v761 = vadd.f32 %v698, %v756
      %s762 = scalar_lea.vmem %s3, 60
      %v763 = vld [vmem:[%s762] sm:$0xf]
      %v764 = vld [vmem:[%s762 + $0x4] sm:$0xf]
      %v765 = vld [vmem:[%s762 + $0x8] sm:$0xf]
      %v766 = vrot.slane %v358, 3
      %v770 = vunpack.c.l.b16 %v763
      %v771 = vunpack.c.l.b16 %v764
      %v772 = vunpack.c.l.b16 %v765
      %v773 = vpack.c.b16 %v771, %v770
      %v774 = vpack.c.b16 %v772, %v772
      %v777 = vsel %vm378, %v766, 0
      %v780 = vsel %vm382, %v774, 0
      %782 = vmatprep.subr.bf16.mxu0 0
      %783 = vmatpush1.bf16.msra.mxu0 %v773
      %784 = vmatprep.subr.bf16.mxu0 0
      %785 = vmatpush1.bf16.msra.mxu0 %v780
      %786 = vmatprep.subr.bf16.mxu0 0
      %787 = vmatpush1.bf16.msra.mxu0 0
      %788 = vmatprep.subr.bf16.mxu0 0
      %789 = vmatpush1.bf16.msra.mxu0 0
      %790 = vmatprep.subr.bf16.mxu0 0
      %791 = vmatpush1.bf16.msra.mxu0 0
      %792 = vmatprep.subr.bf16.mxu0 0
      %793 = vmatpush1.bf16.msra.mxu0 0
      %794 = vmatprep.subr.bf16.mxu0 0
      %795 = vmatpush1.bf16.msra.mxu0 0
      %796 = vmatprep.subr.bf16.mxu0 0
      %797 = vmatpush1.bf16.msra.mxu0 0
      %798 = vmatprep.subr.bf16.mxu0 0
      %799 = vmatpush1.bf16.msra.mxu0 0
      %800 = vmatprep.subr.bf16.mxu0 0
      %801 = vmatpush1.bf16.msra.mxu0 0
      %802 = vmatprep.subr.bf16.mxu0 0
      %803 = vmatpush1.bf16.msra.mxu0 0
      %804 = vmatprep.subr.bf16.mxu0 0
      %805 = vmatpush1.bf16.msra.mxu0 0
      %806 = vmatprep.subr.bf16.mxu0 0
      %807 = vmatpush1.bf16.msra.mxu0 0
      %808 = vmatprep.subr.bf16.mxu0 0
      %809 = vmatpush1.bf16.msra.mxu0 0
      %810 = vmatprep.subr.bf16.mxu0 0
      %811 = vmatpush1.bf16.msra.mxu0 0
      %812 = vmatprep.subr.bf16.mxu0 0
      %813 = vmatpush1.bf16.msra.mxu0 0
      %814 = vmatprep.mubr.bf16.mxu0 0
      %815 = vmatmul.mubr.bf16.gmra.mrb[0].mxu0 %v777
      %v816 = vpop.f32.mrb[0].mxu0
      %v817 = vadd.f32 0.0, %v816
      %v818 = vpop.f32.mrb[0].mxu0
      %v819 = vpop.f32.mrb[0].mxu0
      %v820 = vpop.f32.mrb[0].mxu0
      %821 = vdwg.mxu0
      %v822 = vadd.f32 %v761, %v817
      %s823 = scalar_lea.vmem %s3, 72
      %v824 = vld [vmem:[%s823] sm:$0xf]
      %v825 = vld [vmem:[%s823 + $0x4] sm:$0xf]
      %v826 = vld [vmem:[%s823 + $0x8] sm:$0xf]
      %v827 = vrot.slane %v363, 3
      %v828 = vrot.slane %v365, 4
      %v829 = vor.u32 %v827, %v828
      %v833 = vunpack.c.l.b16 %v824
      %v834 = vunpack.c.l.b16 %v825
      %v835 = vunpack.c.l.b16 %v826
      %v836 = vpack.c.b16 %v834, %v833
      %v837 = vpack.c.b16 %v835, %v835
      %v840 = vsel %vm378, %v829, 0
      %v843 = vsel %vm382, %v837, 0
      %845 = vmatprep.subr.bf16.mxu0 0
      %846 = vmatpush1.bf16.msra.mxu0 %v836
      %847 = vmatprep.subr.bf16.mxu0 0
      %848 = vmatpush1.bf16.msra.mxu0 %v843
      %849 = vmatprep.subr.bf16.mxu0 0
      %850 = vmatpush1.bf16.msra.mxu0 0
      %851 = vmatprep.subr.bf16.mxu0 0
      %852 = vmatpush1.bf16.msra.mxu0 0
      %853 = vmatprep.subr.bf16.mxu0 0
      %854 = vmatpush1.bf16.msra.mxu0 0
      %855 = vmatprep.subr.bf16.mxu0 0
      %856 = vmatpush1.bf16.msra.mxu0 0
      %857 = vmatprep.subr.bf16.mxu0 0
      %858 = vmatpush1.bf16.msra.mxu0 0
      %859 = vmatprep.subr.bf16.mxu0 0
      %860 = vmatpush1.bf16.msra.mxu0 0
      %861 = vmatprep.subr.bf16.mxu0 0
      %862 = vmatpush1.bf16.msra.mxu0 0
      %863 = vmatprep.subr.bf16.mxu0 0
      %864 = vmatpush1.bf16.msra.mxu0 0
      %865 = vmatprep.subr.bf16.mxu0 0
      %866 = vmatpush1.bf16.msra.mxu0 0
      %867 = vmatprep.subr.bf16.mxu0 0
      %868 = vmatpush1.bf16.msra.mxu0 0
      %869 = vmatprep.subr.bf16.mxu0 0
      %870 = vmatpush1.bf16.msra.mxu0 0
      %871 = vmatprep.subr.bf16.mxu0 0
      %872 = vmatpush1.bf16.msra.mxu0 0
      %873 = vmatprep.subr.bf16.mxu0 0
      %874 = vmatpush1.bf16.msra.mxu0 0
      %875 = vmatprep.subr.bf16.mxu0 0
      %876 = vmatpush1.bf16.msra.mxu0 0
      %877 = vmatprep.mubr.bf16.mxu0 0
      %878 = vmatmul.mubr.bf16.gmra.mrb[0].mxu0 %v840
      %v879 = vpop.f32.mrb[0].mxu0
      %v880 = vadd.f32 0.0, %v879
      %v881 = vpop.f32.mrb[0].mxu0
      %v882 = vpop.f32.mrb[0].mxu0
      %v883 = vpop.f32.mrb[0].mxu0
      %884 = vdwg.mxu0
      %v885 = vadd.f32 %v822, %v880
      %v886 = vld [vmem:[%s4] sm:$0x1]
      %v888 = vlaneseq
      %v889 = vshrl.u32 %v888, 7
      %v890 = vsub.s32 0, %v889
      %v891 = vrot.slane %v886, %v890
      %v893 = vadd.f32 %v885, %v891
      %v894 = vmax.f32 %v893, 0.0
      %v895 = vpack.c.bf16 %v894, %v894
      %v897 = vrot.slane %v895, 6
      %vm899 = vcmask 783362
      %900 = vst.msk [vmem:[#allocation2] sm:$0x3c] %vm899, %v897
      %v901 = vld [vmem:[#allocation2] sm:$0xff]
      %v902 = vunpack.c.l.bf16 %v901
      %v903 = vunpack.c.h.bf16 %v901
      %v906 = vrot.slane %v902, 1
      %v907 = vrot.slane %v903, 1
      %v908 = vsel %vm232, %v906, %v907
      %v911 = vmax.f32 %v902, %v908
      %v912 = vmax.f32 %v903, %v907
      %v913 = vrot.slane %v902, 2
      %v914 = vrot.slane %v903, 2
      %v915 = vsel %vm240, %v913, %v914
      %v918 = vmax.f32 %v911, %v915
      %v919 = vmax.f32 %v912, %v914
      %v920 = vpack.c.bf16 %v919, %v918
      %s921 = scalar_lea.vmem %s1, 48
      %v922 = vld [vmem:[%s921] sm:$0xf]
      %v923 = vld [vmem:[%s921 + $0x4] sm:$0xf]
      %v924 = vld [vmem:[%s921 + $0x8] sm:$0xf]
      %v925 = vld [vmem:[%s921 + $0xc] sm:$0xf]
      %v926 = vld [vmem:[%s921 + $0x10] sm:$0xf]
      %v927 = vld [vmem:[%s921 + $0x14] sm:$0xf]
      %v928 = vld [vmem:[%s921 + $0x18] sm:$0xf]
      %v929 = vld [vmem:[%s921 + $0x1c] sm:$0xf]
      %v930 = vld [vmem:[%s921 + $0x20] sm:$0xf]
      %v931 = vld [vmem:[%s921 + $0x24] sm:$0xf]
      %v932 = vld [vmem:[%s921 + $0x28] sm:$0xf]
      %v933 = vld [vmem:[%s921 + $0x2c] sm:$0xf]
      %s934 = scalar_lea.vmem %s2, 48
      %v935 = vld [vmem:[%s934] sm:$0xf]
      %v936 = vld [vmem:[%s934 + $0x4] sm:$0xf]
      %v937 = vld [vmem:[%s934 + $0x8] sm:$0xf]
      %v938 = vld [vmem:[%s934 + $0xc] sm:$0xf]
      %v939 = vld [vmem:[%s934 + $0x10] sm:$0xf]
      %v940 = vld [vmem:[%s934 + $0x14] sm:$0xf]
      %v941 = vld [vmem:[%s934 + $0x18] sm:$0xf]
      %v942 = vld [vmem:[%s934 + $0x1c] sm:$0xf]
      %v943 = vld [vmem:[%s934 + $0x20] sm:$0xf]
      %v944 = vld [vmem:[%s934 + $0x24] sm:$0xf]
      %v945 = vld [vmem:[%s934 + $0x28] sm:$0xf]
      %v946 = vld [vmem:[%s934 + $0x2c] sm:$0xf]
      %v959 = vunpack.c.l.b16 %v935
      %v960 = vunpack.c.l.b16 %v936
      %v961 = vunpack.c.l.b16 %v937
      %v962 = vunpack.c.l.b16 %v938
      %v963 = vunpack.c.l.b16 %v939
      %v964 = vunpack.c.l.b16 %v940
      %v965 = vunpack.c.l.b16 %v941
      %v966 = vunpack.c.l.b16 %v942
      %v967 = vunpack.c.l.b16 %v943
      %v968 = vunpack.c.l.b16 %v944
      %v969 = vunpack.c.l.b16 %v945
      %v970 = vunpack.c.l.b16 %v946
      %v971 = vpack.c.b16 %v960, %v959
      %v972 = vpack.c.b16 %v962, %v961
      %v973 = vpack.c.b16 %v964, %v963
      %v974 = vpack.c.b16 %v966, %v965
      %v975 = vpack.c.b16 %v968, %v967
      %v976 = vpack.c.b16 %v970, %v969
      %v984 = vsel %vm226, %v901, 0
      %986 = vmatprep.subr.bf16.mxu0 0
      %987 = vmatpush1.bf16.msra.mxu0 %v971
      %988 = vmatprep.subr.bf16.mxu0 0
      %989 = vmatpush1.bf16.msra.mxu0 %v972
      %990 = vmatprep.subr.bf16.mxu0 0
      %991 = vmatpush1.bf16.msra.mxu0 %v973
      %992 = vmatprep.subr.bf16.mxu0 0
      %993 = vmatpush1.bf16.msra.mxu0 %v974
      %994 = vmatprep.subr.bf16.mxu0 0
      %995 = vmatpush1.bf16.msra.mxu0 %v975
      %996 = vmatprep.subr.bf16.mxu0 0
      %997 = vmatpush1.bf16.msra.mxu0 %v976
      %998 = vmatprep.subr.bf16.mxu0 0
      %999 = vmatpush1.bf16.msra.mxu0 0
      %1000 = vmatprep.subr.bf16.mxu0 0
      %1001 = vmatpush1.bf16.msra.mxu0 0
      %1002 = vmatprep.subr.bf16.mxu0 0
      %1003 = vmatpush1.bf16.msra.mxu0 0
      %1004 = vmatprep.subr.bf16.mxu0 0
      %1005 = vmatpush1.bf16.msra.mxu0 0
      %1006 = vmatprep.subr.bf16.mxu0 0
      %1007 = vmatpush1.bf16.msra.mxu0 0
      %1008 = vmatprep.subr.bf16.mxu0 0
      %1009 = vmatpush1.bf16.msra.mxu0 0
      %1010 = vmatprep.subr.bf16.mxu0 0
      %1011 = vmatpush1.bf16.msra.mxu0 0
      %1012 = vmatprep.subr.bf16.mxu0 0
      %1013 = vmatpush1.bf16.msra.mxu0 0
      %1014 = vmatprep.subr.bf16.mxu0 0
      %1015 = vmatpush1.bf16.msra.mxu0 0
      %1016 = vmatprep.subr.bf16.mxu0 0
      %1017 = vmatpush1.bf16.msra.mxu0 0
      %1018 = vmatprep.mubr.bf16.mxu0 0
      %1019 = vmatmul.mubr.bf16.gmra.mrb[0].mxu0 %v984
      %v1020 = vpop.f32.mrb[0].mxu0
      %v1021 = vadd.f32 0.0, %v1020
      %v1022 = vpop.f32.mrb[0].mxu0
      %v1023 = vpop.f32.mrb[0].mxu0
      %v1024 = vadd.f32 0.0, %v1023
      %v1025 = vpop.f32.mrb[0].mxu0
      %1026 = vdwg.mxu0
      %v1027 = vpack.c.bf16 %v1024, %v1021
      %s1028 = scalar_lea.vmem %s3, 84
      %v1029 = vld [vmem:[%s1028] sm:$0xf]
      %v1030 = vld [vmem:[%s1028 + $0x4] sm:$0xf]
      %v1031 = vld [vmem:[%s1028 + $0x8] sm:$0xf]
      %v1033 = vshrl.u32 %v1027, 16
      %v1035 = vshll.u32 %v1027, 16
      %v1037 = vrot.slane %v1035, 1
      %v1038 = vor.u32 %v1033, %v1037
      %v1042 = vunpack.c.l.b16 %v1029
      %v1043 = vunpack.c.l.b16 %v1030
      %v1044 = vunpack.c.l.b16 %v1031
      %v1045 = vpack.c.b16 %v1043, %v1042
      %v1046 = vpack.c.b16 %v1044, %v1044
      %v1049 = vsel %vm378, %v1038, 0
      %v1052 = vsel %vm382, %v1046, 0
      %1054 = vmatprep.subr.bf16.mxu0 0
      %1055 = vmatpush1.bf16.msra.mxu0 %v1045
      %1056 = vmatprep.subr.bf16.mxu0 0
      %1057 = vmatpush1.bf16.msra.mxu0 %v1052
      %1058 = vmatprep.subr.bf16.mxu0 0
      %1059 = vmatpush1.bf16.msra.mxu0 0
      %1060 = vmatprep.subr.bf16.mxu0 0
      %1061 = vmatpush1.bf16.msra.mxu0 0
      %1062 = vmatprep.subr.bf16.mxu0 0
      %1063 = vmatpush1.bf16.msra.mxu0 0
      %1064 = vmatprep.subr.bf16.mxu0 0
      %1065 = vmatpush1.bf16.msra.mxu0 0
      %1066 = vmatprep.subr.bf16.mxu0 0
      %1067 = vmatpush1.bf16.msra.mxu0 0
      %1068 = vmatprep.subr.bf16.mxu0 0
      %1069 = vmatpush1.bf16.msra.mxu0 0
      %1070 = vmatprep.subr.bf16.mxu0 0
      %1071 = vmatpush1.bf16.msra.mxu0 0
      %1072 = vmatprep.subr.bf16.mxu0 0
      %1073 = vmatpush1.bf16.msra.mxu0 0
      %1074 = vmatprep.subr.bf16.mxu0 0
      %1075 = vmatpush1.bf16.msra.mxu0 0
      %1076 = vmatprep.subr.bf16.mxu0 0
      %1077 = vmatpush1.bf16.msra.mxu0 0
      %1078 = vmatprep.subr.bf16.mxu0 0
      %1079 = vmatpush1.bf16.msra.mxu0 0
      %1080 = vmatprep.subr.bf16.mxu0 0
      %1081 = vmatpush1.bf16.msra.mxu0 0
      %1082 = vmatprep.subr.bf16.mxu0 0
      %1083 = vmatpush1.bf16.msra.mxu0 0
      %1084 = vmatprep.subr.bf16.mxu0 0
      %1085 = vmatpush1.bf16.msra.mxu0 0
      %1086 = vmatprep.mubr.bf16.mxu0 0
      %1087 = vmatmul.mubr.bf16.gmra.mrb[0].mxu0 %v1049
      %v1088 = vpop.f32.mrb[0].mxu0
      %v1089 = vadd.f32 0.0, %v1088
      %v1090 = vpop.f32.mrb[0].mxu0
      %v1091 = vpop.f32.mrb[0].mxu0
      %v1092 = vpop.f32.mrb[0].mxu0
      %1093 = vdwg.mxu0
      %v1095 = vshrl.u32 %v920, 16
      %v1097 = vrot.slane %v1095, 1
      %v1098 = vshll.u32 %v920, 16
      %v1100 = vrot.slane %v1098, 2
      %v1101 = vor.u32 %v1097, %v1100
      %v1114 = vunpack.c.l.b16 %v922
      %v1115 = vunpack.c.l.b16 %v923
      %v1116 = vunpack.c.l.b16 %v924
      %v1117 = vunpack.c.l.b16 %v925
      %v1118 = vunpack.c.l.b16 %v926
      %v1119 = vunpack.c.l.b16 %v927
      %v1120 = vunpack.c.l.b16 %v928
      %v1121 = vunpack.c.l.b16 %v929
      %v1122 = vunpack.c.l.b16 %v930
      %v1123 = vunpack.c.l.b16 %v931
      %v1124 = vunpack.c.l.b16 %v932
      %v1125 = vunpack.c.l.b16 %v933
      %v1126 = vpack.c.b16 %v1115, %v1114
      %v1127 = vpack.c.b16 %v1117, %v1116
      %v1128 = vpack.c.b16 %v1119, %v1118
      %v1129 = vpack.c.b16 %v1121, %v1120
      %v1130 = vpack.c.b16 %v1123, %v1122
      %v1131 = vpack.c.b16 %v1125, %v1124
      %v1139 = vsel %vm226, %v1101, 0
      %1141 = vmatprep.subr.bf16.mxu0 0
      %1142 = vmatpush1.bf16.msra.mxu0 %v1126
      %1143 = vmatprep.subr.bf16.mxu0 0
      %1144 = vmatpush1.bf16.msra.mxu0 %v1127
      %1145 = vmatprep.subr.bf16.mxu0 0
      %1146 = vmatpush1.bf16.msra.mxu0 %v1128
      %1147 = vmatprep.subr.bf16.mxu0 0
      %1148 = vmatpush1.bf16.msra.mxu0 %v1129
      %1149 = vmatprep.subr.bf16.mxu0 0
      %1150 = vmatpush1.bf16.msra.mxu0 %v1130
      %1151 = vmatprep.subr.bf16.mxu0 0
      %1152 = vmatpush1.bf16.msra.mxu0 %v1131
      %1153 = vmatprep.subr.bf16.mxu0 0
      %1154 = vmatpush1.bf16.msra.mxu0 0
      %1155 = vmatprep.subr.bf16.mxu0 0
      %1156 = vmatpush1.bf16.msra.mxu0 0
      %1157 = vmatprep.subr.bf16.mxu0 0
      %1158 = vmatpush1.bf16.msra.mxu0 0
      %1159 = vmatprep.subr.bf16.mxu0 0
      %1160 = vmatpush1.bf16.msra.mxu0 0
      %1161 = vmatprep.subr.bf16.mxu0 0
      %1162 = vmatpush1.bf16.msra.mxu0 0
      %1163 = vmatprep.subr.bf16.mxu0 0
      %1164 = vmatpush1.bf16.msra.mxu0 0
      %1165 = vmatprep.subr.bf16.mxu0 0
      %1166 = vmatpush1.bf16.msra.mxu0 0
      %1167 = vmatprep.subr.bf16.mxu0 0
      %1168 = vmatpush1.bf16.msra.mxu0 0
      %1169 = vmatprep.subr.bf16.mxu0 0
      %1170 = vmatpush1.bf16.msra.mxu0 0
      %1171 = vmatprep.subr.bf16.mxu0 0
      %1172 = vmatpush1.bf16.msra.mxu0 0
      %1173 = vmatprep.mubr.bf16.mxu0 0
      %1174 = vmatmul.mubr.bf16.gmra.mrb[0].mxu0 %v1139
      %v1175 = vpop.f32.mrb[0].mxu0
      %v1176 = vadd.f32 %v1089, %v1175
      %v1177 = vpop.f32.mrb[0].mxu0
      %v1178 = vpop.f32.mrb[0].mxu0
      %v1179 = vpop.f32.mrb[0].mxu0
      %1180 = vdwg.mxu0
      %s1181 = scalar_lea.vmem %s3, 96
      %v1182 = vld [vmem:[%s1181] sm:$0xf]
      %v1183 = vld [vmem:[%s1181 + $0x4] sm:$0xf]
      %v1184 = vld [vmem:[%s1181 + $0x8] sm:$0xf]
      %v1186 = vrot.slane %v1027, 1
      %v1190 = vunpack.c.l.b16 %v1182
      %v1191 = vunpack.c.l.b16 %v1183
      %v1192 = vunpack.c.l.b16 %v1184
      %v1193 = vpack.c.b16 %v1191, %v1190
      %v1194 = vpack.c.b16 %v1192, %v1192
      %v1197 = vsel %vm378, %v1186, 0
      %v1200 = vsel %vm382, %v1194, 0
      %1202 = vmatprep.subr.bf16.mxu0 0
      %1203 = vmatpush1.bf16.msra.mxu0 %v1193
      %1204 = vmatprep.subr.bf16.mxu0 0
      %1205 = vmatpush1.bf16.msra.mxu0 %v1200
      %1206 = vmatprep.subr.bf16.mxu0 0
      %1207 = vmatpush1.bf16.msra.mxu0 0
      %1208 = vmatprep.subr.bf16.mxu0 0
      %1209 = vmatpush1.bf16.msra.mxu0 0
      %1210 = vmatprep.subr.bf16.mxu0 0
      %1211 = vmatpush1.bf16.msra.mxu0 0
      %1212 = vmatprep.subr.bf16.mxu0 0
      %1213 = vmatpush1.bf16.msra.mxu0 0
      %1214 = vmatprep.subr.bf16.mxu0 0
      %1215 = vmatpush1.bf16.msra.mxu0 0
      %1216 = vmatprep.subr.bf16.mxu0 0
      %1217 = vmatpush1.bf16.msra.mxu0 0
      %1218 = vmatprep.subr.bf16.mxu0 0
      %1219 = vmatpush1.bf16.msra.mxu0 0
      %1220 = vmatprep.subr.bf16.mxu0 0
      %1221 = vmatpush1.bf16.msra.mxu0 0
      %1222 = vmatprep.subr.bf16.mxu0 0
      %1223 = vmatpush1.bf16.msra.mxu0 0
      %1224 = vmatprep.subr.bf16.mxu0 0
      %1225 = vmatpush1.bf16.msra.mxu0 0
      %1226 = vmatprep.subr.bf16.mxu0 0
      %1227 = vmatpush1.bf16.msra.mxu0 0
      %1228 = vmatprep.subr.bf16.mxu0 0
      %1229 = vmatpush1.bf16.msra.mxu0 0
      %1230 = vmatprep.subr.bf16.mxu0 0
      %1231 = vmatpush1.bf16.msra.mxu0 0
      %1232 = vmatprep.subr.bf16.mxu0 0
      %1233 = vmatpush1.bf16.msra.mxu0 0
      %1234 = vmatprep.mubr.bf16.mxu0 0
      %1235 = vmatmul.mubr.bf16.gmra.mrb[0].mxu0 %v1197
      %v1236 = vpop.f32.mrb[0].mxu0
      %v1237 = vadd.f32 0.0, %v1236
      %v1238 = vpop.f32.mrb[0].mxu0
      %v1239 = vpop.f32.mrb[0].mxu0
      %v1240 = vpop.f32.mrb[0].mxu0
      %1241 = vdwg.mxu0
      %v1242 = vadd.f32 %v1176, %v1237
      %s1243 = scalar_lea.vmem %s3, 108
      %v1244 = vld [vmem:[%s1243] sm:$0xf]
      %v1245 = vld [vmem:[%s1243 + $0x4] sm:$0xf]
      %v1246 = vld [vmem:[%s1243 + $0x8] sm:$0xf]
      %v1247 = vrot.slane %v1033, 1
      %v1248 = vrot.slane %v1035, 2
      %v1249 = vor.u32 %v1247, %v1248
      %v1253 = vunpack.c.l.b16 %v1244
      %v1254 = vunpack.c.l.b16 %v1245
      %v1255 = vunpack.c.l.b16 %v1246
      %v1256 = vpack.c.b16 %v1254, %v1253
      %v1257 = vpack.c.b16 %v1255, %v1255
      %v1260 = vsel %vm378, %v1249, 0
      %v1263 = vsel %vm382, %v1257, 0
      %1265 = vmatprep.subr.bf16.mxu0 0
      %1266 = vmatpush1.bf16.msra.mxu0 %v1256
      %1267 = vmatprep.subr.bf16.mxu0 0
      %1268 = vmatpush1.bf16.msra.mxu0 %v1263
      %1269 = vmatprep.subr.bf16.mxu0 0
      %1270 = vmatpush1.bf16.msra.mxu0 0
      %1271 = vmatprep.subr.bf16.mxu0 0
      %1272 = vmatpush1.bf16.msra.mxu0 0
      %1273 = vmatprep.subr.bf16.mxu0 0
      %1274 = vmatpush1.bf16.msra.mxu0 0
      %1275 = vmatprep.subr.bf16.mxu0 0
      %1276 = vmatpush1.bf16.msra.mxu0 0
      %1277 = vmatprep.subr.bf16.mxu0 0
      %1278 = vmatpush1.bf16.msra.mxu0 0
      %1279 = vmatprep.subr.bf16.mxu0 0
      %1280 = vmatpush1.bf16.msra.mxu0 0
      %1281 = vmatprep.subr.bf16.mxu0 0
      %1282 = vmatpush1.bf16.msra.mxu0 0
      %1283 = vmatprep.subr.bf16.mxu0 0
      %1284 = vmatpush1.bf16.msra.mxu0 0
      %1285 = vmatprep.subr.bf16.mxu0 0
      %1286 = vmatpush1.bf16.msra.mxu0 0
      %1287 = vmatprep.subr.bf16.mxu0 0
      %1288 = vmatpush1.bf16.msra.mxu0 0
      %1289 = vmatprep.subr.bf16.mxu0 0
      %1290 = vmatpush1.bf16.msra.mxu0 0
      %1291 = vmatprep.subr.bf16.mxu0 0
      %1292 = vmatpush1.bf16.msra.mxu0 0
      %1293 = vmatprep.subr.bf16.mxu0 0
      %1294 = vmatpush1.bf16.msra.mxu0 0
      %1295 = vmatprep.subr.bf16.mxu0 0
      %1296 = vmatpush1.bf16.msra.mxu0 0
      %1297 = vmatprep.mubr.bf16.mxu0 0
      %1298 = vmatmul.mubr.bf16.gmra.mrb[0].mxu0 %v1260
      %v1299 = vpop.f32.mrb[0].mxu0
      %v1300 = vadd.f32 0.0, %v1299
      %v1301 = vpop.f32.mrb[0].mxu0
      %v1302 = vpop.f32.mrb[0].mxu0
      %v1303 = vpop.f32.mrb[0].mxu0
      %1304 = vdwg.mxu0
      %v1305 = vadd.f32 %v1242, %v1300
      %s1306 = scalar_lea.vmem %s3, 120
      %v1307 = vld [vmem:[%s1306] sm:$0xf]
      %v1308 = vld [vmem:[%s1306 + $0x4] sm:$0xf]
      %v1309 = vld [vmem:[%s1306 + $0x8] sm:$0xf]
      %v1310 = vrot.slane %v1027, 2
      %v1314 = vunpack.c.l.b16 %v1307
      %v1315 = vunpack.c.l.b16 %v1308
      %v1316 = vunpack.c.l.b16 %v1309
      %v1317 = vpack.c.b16 %v1315, %v1314
      %v1318 = vpack.c.b16 %v1316, %v1316
      %v1321 = vsel %vm378, %v1310, 0
      %v1324 = vsel %vm382, %v1318, 0
      %1326 = vmatprep.subr.bf16.mxu0 0
      %1327 = vmatpush1.bf16.msra.mxu0 %v1317
      %1328 = vmatprep.subr.bf16.mxu0 0
      %1329 = vmatpush1.bf16.msra.mxu0 %v1324
      %1330 = vmatprep.subr.bf16.mxu0 0
      %1331 = vmatpush1.bf16.msra.mxu0 0
      %1332 = vmatprep.subr.bf16.mxu0 0
      %1333 = vmatpush1.bf16.msra.mxu0 0
      %1334 = vmatprep.subr.bf16.mxu0 0
      %1335 = vmatpush1.bf16.msra.mxu0 0
      %1336 = vmatprep.subr.bf16.mxu0 0
      %1337 = vmatpush1.bf16.msra.mxu0 0
      %1338 = vmatprep.subr.bf16.mxu0 0
      %1339 = vmatpush1.bf16.msra.mxu0 0
      %1340 = vmatprep.subr.bf16.mxu0 0
      %1341 = vmatpush1.bf16.msra.mxu0 0
      %1342 = vmatprep.subr.bf16.mxu0 0
      %1343 = vmatpush1.bf16.msra.mxu0 0
      %1344 = vmatprep.subr.bf16.mxu0 0
      %1345 = vmatpush1.bf16.msra.mxu0 0
      %1346 = vmatprep.subr.bf16.mxu0 0
      %1347 = vmatpush1.bf16.msra.mxu0 0
      %1348 = vmatprep.subr.bf16.mxu0 0
      %1349 = vmatpush1.bf16.msra.mxu0 0
      %1350 = vmatprep.subr.bf16.mxu0 0
      %1351 = vmatpush1.bf16.msra.mxu0 0
      %1352 = vmatprep.subr.bf16.mxu0 0
      %1353 = vmatpush1.bf16.msra.mxu0 0
      %1354 = vmatprep.subr.bf16.mxu0 0
      %1355 = vmatpush1.bf16.msra.mxu0 0
      %1356 = vmatprep.subr.bf16.mxu0 0
      %1357 = vmatpush1.bf16.msra.mxu0 0
      %1358 = vmatprep.mubr.bf16.mxu0 0
      %1359 = vmatmul.mubr.bf16.gmra.mrb[0].mxu0 %v1321
      %v1360 = vpop.f32.mrb[0].mxu0
      %v1361 = vadd.f32 0.0, %v1360
      %v1362 = vpop.f32.mrb[0].mxu0
      %v1363 = vpop.f32.mrb[0].mxu0
      %v1364 = vpop.f32.mrb[0].mxu0
      %1365 = vdwg.mxu0
      %v1366 = vadd.f32 %v1305, %v1361
      %s1367 = scalar_lea.vmem %s3, 132
      %v1368 = vld [vmem:[%s1367] sm:$0xf]
      %v1369 = vld [vmem:[%s1367 + $0x4] sm:$0xf]
      %v1370 = vld [vmem:[%s1367 + $0x8] sm:$0xf]
      %v1371 = vrot.slane %v1033, 2
      %v1372 = vrot.slane %v1035, 3
      %v1373 = vor.u32 %v1371, %v1372
      %v1377 = vunpack.c.l.b16 %v1368
      %v1378 = vunpack.c.l.b16 %v1369
      %v1379 = vunpack.c.l.b16 %v1370
      %v1380 = vpack.c.b16 %v1378, %v1377
      %v1381 = vpack.c.b16 %v1379, %v1379
      %v1384 = vsel %vm378, %v1373, 0
      %v1387 = vsel %vm382, %v1381, 0
      %1389 = vmatprep.subr.bf16.mxu0 0
      %1390 = vmatpush1.bf16.msra.mxu0 %v1380
      %1391 = vmatprep.subr.bf16.mxu0 0
      %1392 = vmatpush1.bf16.msra.mxu0 %v1387
      %1393 = vmatprep.subr.bf16.mxu0 0
      %1394 = vmatpush1.bf16.msra.mxu0 0
      %1395 = vmatprep.subr.bf16.mxu0 0
      %1396 = vmatpush1.bf16.msra.mxu0 0
      %1397 = vmatprep.subr.bf16.mxu0 0
      %1398 = vmatpush1.bf16.msra.mxu0 0
      %1399 = vmatprep.subr.bf16.mxu0 0
      %1400 = vmatpush1.bf16.msra.mxu0 0
      %1401 = vmatprep.subr.bf16.mxu0 0
      %1402 = vmatpush1.bf16.msra.mxu0 0
      %1403 = vmatprep.subr.bf16.mxu0 0
      %1404 = vmatpush1.bf16.msra.mxu0 0
      %1405 = vmatprep.subr.bf16.mxu0 0
      %1406 = vmatpush1.bf16.msra.mxu0 0
      %1407 = vmatprep.subr.bf16.mxu0 0
      %1408 = vmatpush1.bf16.msra.mxu0 0
      %1409 = vmatprep.subr.bf16.mxu0 0
      %1410 = vmatpush1.bf16.msra.mxu0 0
      %1411 = vmatprep.subr.bf16.mxu0 0
      %1412 = vmatpush1.bf16.msra.mxu0 0
      %1413 = vmatprep.subr.bf16.mxu0 0
      %1414 = vmatpush1.bf16.msra.mxu0 0
      %1415 = vmatprep.subr.bf16.mxu0 0
      %1416 = vmatpush1.bf16.msra.mxu0 0
      %1417 = vmatprep.subr.bf16.mxu0 0
      %1418 = vmatpush1.bf16.msra.mxu0 0
      %1419 = vmatprep.subr.bf16.mxu0 0
      %1420 = vmatpush1.bf16.msra.mxu0 0
      %1421 = vmatprep.mubr.bf16.mxu0 0
      %1422 = vmatmul.mubr.bf16.gmra.mrb[0].mxu0 %v1384
      %v1423 = vpop.f32.mrb[0].mxu0
      %v1424 = vadd.f32 0.0, %v1423
      %v1425 = vpop.f32.mrb[0].mxu0
      %v1426 = vpop.f32.mrb[0].mxu0
      %v1427 = vpop.f32.mrb[0].mxu0
      %1428 = vdwg.mxu0
      %v1429 = vadd.f32 %v1366, %v1424
      %s1430 = scalar_lea.vmem %s3, 144
      %v1431 = vld [vmem:[%s1430] sm:$0xf]
      %v1432 = vld [vmem:[%s1430 + $0x4] sm:$0xf]
      %v1433 = vld [vmem:[%s1430 + $0x8] sm:$0xf]
      %v1434 = vrot.slane %v1027, 3
      %v1438 = vunpack.c.l.b16 %v1431
      %v1439 = vunpack.c.l.b16 %v1432
      %v1440 = vunpack.c.l.b16 %v1433
      %v1441 = vpack.c.b16 %v1439, %v1438
      %v1442 = vpack.c.b16 %v1440, %v1440
      %v1445 = vsel %vm378, %v1434, 0
      %v1448 = vsel %vm382, %v1442, 0
      %1450 = vmatprep.subr.bf16.mxu0 0
      %1451 = vmatpush1.bf16.msra.mxu0 %v1441
      %1452 = vmatprep.subr.bf16.mxu0 0
      %1453 = vmatpush1.bf16.msra.mxu0 %v1448
      %1454 = vmatprep.subr.bf16.mxu0 0
      %1455 = vmatpush1.bf16.msra.mxu0 0
      %1456 = vmatprep.subr.bf16.mxu0 0
      %1457 = vmatpush1.bf16.msra.mxu0 0
      %1458 = vmatprep.subr.bf16.mxu0 0
      %1459 = vmatpush1.bf16.msra.mxu0 0
      %1460 = vmatprep.subr.bf16.mxu0 0
      %1461 = vmatpush1.bf16.msra.mxu0 0
      %1462 = vmatprep.subr.bf16.mxu0 0
      %1463 = vmatpush1.bf16.msra.mxu0 0
      %1464 = vmatprep.subr.bf16.mxu0 0
      %1465 = vmatpush1.bf16.msra.mxu0 0
      %1466 = vmatprep.subr.bf16.mxu0 0
      %1467 = vmatpush1.bf16.msra.mxu0 0
      %1468 = vmatprep.subr.bf16.mxu0 0
      %1469 = vmatpush1.bf16.msra.mxu0 0
      %1470 = vmatprep.subr.bf16.mxu0 0
      %1471 = vmatpush1.bf16.msra.mxu0 0
      %1472 = vmatprep.subr.bf16.mxu0 0
      %1473 = vmatpush1.bf16.msra.mxu0 0
      %1474 = vmatprep.subr.bf16.mxu0 0
      %1475 = vmatpush1.bf16.msra.mxu0 0
      %1476 = vmatprep.subr.bf16.mxu0 0
      %1477 = vmatpush1.bf16.msra.mxu0 0
      %1478 = vmatprep.subr.bf16.mxu0 0
      %1479 = vmatpush1.bf16.msra.mxu0 0
      %1480 = vmatprep.subr.bf16.mxu0 0
      %1481 = vmatpush1.bf16.msra.mxu0 0
      %1482 = vmatprep.mubr.bf16.mxu0 0
      %1483 = vmatmul.mubr.bf16.gmra.mrb[0].mxu0 %v1445
      %v1484 = vpop.f32.mrb[0].mxu0
      %v1485 = vadd.f32 0.0, %v1484
      %v1486 = vpop.f32.mrb[0].mxu0
      %v1487 = vpop.f32.mrb[0].mxu0
      %v1488 = vpop.f32.mrb[0].mxu0
      %1489 = vdwg.mxu0
      %v1490 = vadd.f32 %v1429, %v1485
      %s1491 = scalar_lea.vmem %s3, 156
      %v1492 = vld [vmem:[%s1491] sm:$0xf]
      %v1493 = vld [vmem:[%s1491 + $0x4] sm:$0xf]
      %v1494 = vld [vmem:[%s1491 + $0x8] sm:$0xf]
      %v1495 = vrot.slane %v1033, 3
      %v1496 = vrot.slane %v1035, 4
      %v1497 = vor.u32 %v1495, %v1496
      %v1501 = vunpack.c.l.b16 %v1492
      %v1502 = vunpack.c.l.b16 %v1493
      %v1503 = vunpack.c.l.b16 %v1494
      %v1504 = vpack.c.b16 %v1502, %v1501
      %v1505 = vpack.c.b16 %v1503, %v1503
      %v1508 = vsel %vm378, %v1497, 0
      %v1511 = vsel %vm382, %v1505, 0
      %1513 = vmatprep.subr.bf16.mxu0 0
      %1514 = vmatpush1.bf16.msra.mxu0 %v1504
      %1515 = vmatprep.subr.bf16.mxu0 0
      %1516 = vmatpush1.bf16.msra.mxu0 %v1511
      %1517 = vmatprep.subr.bf16.mxu0 0
      %1518 = vmatpush1.bf16.msra.mxu0 0
      %1519 = vmatprep.subr.bf16.mxu0 0
      %1520 = vmatpush1.bf16.msra.mxu0 0
      %1521 = vmatprep.subr.bf16.mxu0 0
      %1522 = vmatpush1.bf16.msra.mxu0 0
      %1523 = vmatprep.subr.bf16.mxu0 0
      %1524 = vmatpush1.bf16.msra.mxu0 0
      %1525 = vmatprep.subr.bf16.mxu0 0
      %1526 = vmatpush1.bf16.msra.mxu0 0
      %1527 = vmatprep.subr.bf16.mxu0 0
      %1528 = vmatpush1.bf16.msra.mxu0 0
      %1529 = vmatprep.subr.bf16.mxu0 0
      %1530 = vmatpush1.bf16.msra.mxu0 0
      %1531 = vmatprep.subr.bf16.mxu0 0
      %1532 = vmatpush1.bf16.msra.mxu0 0
      %1533 = vmatprep.subr.bf16.mxu0 0
      %1534 = vmatpush1.bf16.msra.mxu0 0
      %1535 = vmatprep.subr.bf16.mxu0 0
      %1536 = vmatpush1.bf16.msra.mxu0 0
      %1537 = vmatprep.subr.bf16.mxu0 0
      %1538 = vmatpush1.bf16.msra.mxu0 0
      %1539 = vmatprep.subr.bf16.mxu0 0
      %1540 = vmatpush1.bf16.msra.mxu0 0
      %1541 = vmatprep.subr.bf16.mxu0 0
      %1542 = vmatpush1.bf16.msra.mxu0 0
      %1543 = vmatprep.subr.bf16.mxu0 0
      %1544 = vmatpush1.bf16.msra.mxu0 0
      %1545 = vmatprep.mubr.bf16.mxu0 0
      %1546 = vmatmul.mubr.bf16.gmra.mrb[0].mxu0 %v1508
      %v1547 = vpop.f32.mrb[0].mxu0
      %v1548 = vadd.f32 0.0, %v1547
      %v1549 = vpop.f32.mrb[0].mxu0
      %v1550 = vpop.f32.mrb[0].mxu0
      %v1551 = vpop.f32.mrb[0].mxu0
      %1552 = vdwg.mxu0
      %v1553 = vadd.f32 %v1490, %v1548
      %s1554 = scalar_lea.vmem %s4, 1
      %v1555 = vld [vmem:[%s1554] sm:$0x1]
      %v1557 = vlaneseq
      %v1558 = vshrl.u32 %v1557, 7
      %v1559 = vsub.s32 0, %v1558
      %v1560 = vrot.slane %v1555, %v1559
      %v1562 = vadd.f32 %v1553, %v1560
      %v1563 = vmax.f32 %v1562, 0.0
      %v1564 = vpack.c.bf16 %v1563, %v1563
      %v1566 = vrot.slane %v1564, 6
      %1568 = vst.msk [vmem:[#allocation2] sm:$0x3c] %vm899, %v1566
      %v1569 = vld [vmem:[#allocation2] sm:$0xff]
      %v1570 = vunpack.c.l.bf16 %v1569
      %v1571 = vunpack.c.h.bf16 %v1569
      %v1574 = vrot.slane %v1570, 1
      %v1575 = vrot.slane %v1571, 1
      %v1576 = vsel %vm232, %v1574, %v1575
      %v1579 = vmax.f32 %v1570, %v1576
      %v1580 = vmax.f32 %v1571, %v1575
      %v1581 = vrot.slane %v1570, 2
      %v1582 = vrot.slane %v1571, 2
      %v1583 = vsel %vm240, %v1581, %v1582
      %v1586 = vmax.f32 %v1579, %v1583
      %v1587 = vmax.f32 %v1580, %v1582
      %v1588 = vpack.c.bf16 %v1587, %v1586
      %s1589 = scalar_lea.vmem %s1, 96
      %v1590 = vld [vmem:[%s1589] sm:$0xf]
      %v1591 = vld [vmem:[%s1589 + $0x4] sm:$0xf]
      %v1592 = vld [vmem:[%s1589 + $0x8] sm:$0xf]
      %v1593 = vld [vmem:[%s1589 + $0xc] sm:$0xf]
      %v1594 = vld [vmem:[%s1589 + $0x10] sm:$0xf]
      %v1595 = vld [vmem:[%s1589 + $0x14] sm:$0xf]
      %v1596 = vld [vmem:[%s1589 + $0x18] sm:$0xf]
      %v1597 = vld [vmem:[%s1589 + $0x1c] sm:$0xf]
      %v1598 = vld [vmem:[%s1589 + $0x20] sm:$0xf]
      %v1599 = vld [vmem:[%s1589 + $0x24] sm:$0xf]
      %v1600 = vld [vmem:[%s1589 + $0x28] sm:$0xf]
      %v1601 = vld [vmem:[%s1589 + $0x2c] sm:$0xf]
      %s1602 = scalar_lea.vmem %s2, 96
      %v1603 = vld [vmem:[%s1602] sm:$0xf]
      %v1604 = vld [vmem:[%s1602 + $0x4] sm:$0xf]
      %v1605 = vld [vmem:[%s1602 + $0x8] sm:$0xf]
      %v1606 = vld [vmem:[%s1602 + $0xc] sm:$0xf]
      %v1607 = vld [vmem:[%s1602 + $0x10] sm:$0xf]
      %v1608 = vld [vmem:[%s1602 + $0x14] sm:$0xf]
      %v1609 = vld [vmem:[%s1602 + $0x18] sm:$0xf]
      %v1610 = vld [vmem:[%s1602 + $0x1c] sm:$0xf]
      %v1611 = vld [vmem:[%s1602 + $0x20] sm:$0xf]
      %v1612 = vld [vmem:[%s1602 + $0x24] sm:$0xf]
      %v1613 = vld [vmem:[%s1602 + $0x28] sm:$0xf]
      %v1614 = vld [vmem:[%s1602 + $0x2c] sm:$0xf]
      %v1627 = vunpack.c.l.b16 %v1603
      %v1628 = vunpack.c.l.b16 %v1604
      %v1629 = vunpack.c.l.b16 %v1605
      %v1630 = vunpack.c.l.b16 %v1606
      %v1631 = vunpack.c.l.b16 %v1607
      %v1632 = vunpack.c.l.b16 %v1608
      %v1633 = vunpack.c.l.b16 %v1609
      %v1634 = vunpack.c.l.b16 %v1610
      %v1635 = vunpack.c.l.b16 %v1611
      %v1636 = vunpack.c.l.b16 %v1612
      %v1637 = vunpack.c.l.b16 %v1613
      %v1638 = vunpack.c.l.b16 %v1614
      %v1639 = vpack.c.b16 %v1628, %v1627
      %v1640 = vpack.c.b16 %v1630, %v1629
      %v1641 = vpack.c.b16 %v1632, %v1631
      %v1642 = vpack.c.b16 %v1634, %v1633
      %v1643 = vpack.c.b16 %v1636, %v1635
      %v1644 = vpack.c.b16 %v1638, %v1637
      %v1652 = vsel %vm226, %v1569, 0
      %1654 = vmatprep.subr.bf16.mxu0 0
      %1655 = vmatpush1.bf16.msra.mxu0 %v1639
      %1656 = vmatprep.subr.bf16.mxu0 0
      %1657 = vmatpush1.bf16.msra.mxu0 %v1640
      %1658 = vmatprep.subr.bf16.mxu0 0
      %1659 = vmatpush1.bf16.msra.mxu0 %v1641
      %1660 = vmatprep.subr.bf16.mxu0 0
      %1661 = vmatpush1.bf16.msra.mxu0 %v1642
      %1662 = vmatprep.subr.bf16.mxu0 0
      %1663 = vmatpush1.bf16.msra.mxu0 %v1643
      %1664 = vmatprep.subr.bf16.mxu0 0
      %1665 = vmatpush1.bf16.msra.mxu0 %v1644
      %1666 = vmatprep.subr.bf16.mxu0 0
      %1667 = vmatpush1.bf16.msra.mxu0 0
      %1668 = vmatprep.subr.bf16.mxu0 0
      %1669 = vmatpush1.bf16.msra.mxu0 0
      %1670 = vmatprep.subr.bf16.mxu0 0
      %1671 = vmatpush1.bf16.msra.mxu0 0
      %1672 = vmatprep.subr.bf16.mxu0 0
      %1673 = vmatpush1.bf16.msra.mxu0 0
      %1674 = vmatprep.subr.bf16.mxu0 0
      %1675 = vmatpush1.bf16.msra.mxu0 0
      %1676 = vmatprep.subr.bf16.mxu0 0
      %1677 = vmatpush1.bf16.msra.mxu0 0
      %1678 = vmatprep.subr.bf16.mxu0 0
      %1679 = vmatpush1.bf16.msra.mxu0 0
      %1680 = vmatprep.subr.bf16.mxu0 0
      %1681 = vmatpush1.bf16.msra.mxu0 0
      %1682 = vmatprep.subr.bf16.mxu0 0
      %1683 = vmatpush1.bf16.msra.mxu0 0
      %1684 = vmatprep.subr.bf16.mxu0 0
      %1685 = vmatpush1.bf16.msra.mxu0 0
      %1686 = vmatprep.mubr.bf16.mxu0 0
      %1687 = vmatmul.mubr.bf16.gmra.mrb[0].mxu0 %v1652
      %v1688 = vpop.f32.mrb[0].mxu0
      %v1689 = vadd.f32 0.0, %v1688
      %v1690 = vpop.f32.mrb[0].mxu0
      %v1691 = vpop.f32.mrb[0].mxu0
      %v1692 = vadd.f32 0.0, %v1691
      %v1693 = vpop.f32.mrb[0].mxu0
      %1694 = vdwg.mxu0
      %v1695 = vpack.c.bf16 %v1692, %v1689
      %s1696 = scalar_lea.vmem %s3, 168
      %v1697 = vld [vmem:[%s1696] sm:$0xf]
      %v1698 = vld [vmem:[%s1696 + $0x4] sm:$0xf]
      %v1699 = vld [vmem:[%s1696 + $0x8] sm:$0xf]
      %v1701 = vshrl.u32 %v1695, 16
      %v1703 = vshll.u32 %v1695, 16
      %v1705 = vrot.slane %v1703, 1
      %v1706 = vor.u32 %v1701, %v1705
      %v1710 = vunpack.c.l.b16 %v1697
      %v1711 = vunpack.c.l.b16 %v1698
      %v1712 = vunpack.c.l.b16 %v1699
      %v1713 = vpack.c.b16 %v1711, %v1710
      %v1714 = vpack.c.b16 %v1712, %v1712
      %v1717 = vsel %vm378, %v1706, 0
      %v1720 = vsel %vm382, %v1714, 0
      %1722 = vmatprep.subr.bf16.mxu0 0
      %1723 = vmatpush1.bf16.msra.mxu0 %v1713
      %1724 = vmatprep.subr.bf16.mxu0 0
      %1725 = vmatpush1.bf16.msra.mxu0 %v1720
      %1726 = vmatprep.subr.bf16.mxu0 0
      %1727 = vmatpush1.bf16.msra.mxu0 0
      %1728 = vmatprep.subr.bf16.mxu0 0
      %1729 = vmatpush1.bf16.msra.mxu0 0
      %1730 = vmatprep.subr.bf16.mxu0 0
      %1731 = vmatpush1.bf16.msra.mxu0 0
      %1732 = vmatprep.subr.bf16.mxu0 0
      %1733 = vmatpush1.bf16.msra.mxu0 0
      %1734 = vmatprep.subr.bf16.mxu0 0
      %1735 = vmatpush1.bf16.msra.mxu0 0
      %1736 = vmatprep.subr.bf16.mxu0 0
      %1737 = vmatpush1.bf16.msra.mxu0 0
      %1738 = vmatprep.subr.bf16.mxu0 0
      %1739 = vmatpush1.bf16.msra.mxu0 0
      %1740 = vmatprep.subr.bf16.mxu0 0
      %1741 = vmatpush1.bf16.msra.mxu0 0
      %1742 = vmatprep.subr.bf16.mxu0 0
      %1743 = vmatpush1.bf16.msra.mxu0 0
      %1744 = vmatprep.subr.bf16.mxu0 0
      %1745 = vmatpush1.bf16.msra.mxu0 0
      %1746 = vmatprep.subr.bf16.mxu0 0
      %1747 = vmatpush1.bf16.msra.mxu0 0
      %1748 = vmatprep.subr.bf16.mxu0 0
      %1749 = vmatpush1.bf16.msra.mxu0 0
      %1750 = vmatprep.subr.bf16.mxu0 0
      %1751 = vmatpush1.bf16.msra.mxu0 0
      %1752 = vmatprep.subr.bf16.mxu0 0
      %1753 = vmatpush1.bf16.msra.mxu0 0
      %1754 = vmatprep.mubr.bf16.mxu0 0
      %1755 = vmatmul.mubr.bf16.gmra.mrb[0].mxu0 %v1717
      %v1756 = vpop.f32.mrb[0].mxu0
      %v1757 = vadd.f32 0.0, %v1756
      %v1758 = vpop.f32.mrb[0].mxu0
      %v1759 = vpop.f32.mrb[0].mxu0
      %v1760 = vpop.f32.mrb[0].mxu0
      %1761 = vdwg.mxu0
      %v1763 = vshrl.u32 %v1588, 16
      %v1765 = vrot.slane %v1763, 1
      %v1766 = vshll.u32 %v1588, 16
      %v1768 = vrot.slane %v1766, 2
      %v1769 = vor.u32 %v1765, %v1768
      %v1782 = vunpack.c.l.b16 %v1590
      %v1783 = vunpack.c.l.b16 %v1591
      %v1784 = vunpack.c.l.b16 %v1592
      %v1785 = vunpack.c.l.b16 %v1593
      %v1786 = vunpack.c.l.b16 %v1594
      %v1787 = vunpack.c.l.b16 %v1595
      %v1788 = vunpack.c.l.b16 %v1596
      %v1789 = vunpack.c.l.b16 %v1597
      %v1790 = vunpack.c.l.b16 %v1598
      %v1791 = vunpack.c.l.b16 %v1599
      %v1792 = vunpack.c.l.b16 %v1600
      %v1793 = vunpack.c.l.b16 %v1601
      %v1794 = vpack.c.b16 %v1783, %v1782
      %v1795 = vpack.c.b16 %v1785, %v1784
      %v1796 = vpack.c.b16 %v1787, %v1786
      %v1797 = vpack.c.b16 %v1789, %v1788
      %v1798 = vpack.c.b16 %v1791, %v1790
      %v1799 = vpack.c.b16 %v1793, %v1792
      %v1807 = vsel %vm226, %v1769, 0
      %1809 = vmatprep.subr.bf16.mxu0 0
      %1810 = vmatpush1.bf16.msra.mxu0 %v1794
      %1811 = vmatprep.subr.bf16.mxu0 0
      %1812 = vmatpush1.bf16.msra.mxu0 %v1795
      %1813 = vmatprep.subr.bf16.mxu0 0
      %1814 = vmatpush1.bf16.msra.mxu0 %v1796
      %1815 = vmatprep.subr.bf16.mxu0 0
      %1816 = vmatpush1.bf16.msra.mxu0 %v1797
      %1817 = vmatprep.subr.bf16.mxu0 0
      %1818 = vmatpush1.bf16.msra.mxu0 %v1798
      %1819 = vmatprep.subr.bf16.mxu0 0
      %1820 = vmatpush1.bf16.msra.mxu0 %v1799
      %1821 = vmatprep.subr.bf16.mxu0 0
      %1822 = vmatpush1.bf16.msra.mxu0 0
      %1823 = vmatprep.subr.bf16.mxu0 0
      %1824 = vmatpush1.bf16.msra.mxu0 0
      %1825 = vmatprep.subr.bf16.mxu0 0
      %1826 = vmatpush1.bf16.msra.mxu0 0
      %1827 = vmatprep.subr.bf16.mxu0 0
      %1828 = vmatpush1.bf16.msra.mxu0 0
      %1829 = vmatprep.subr.bf16.mxu0 0
      %1830 = vmatpush1.bf16.msra.mxu0 0
      %1831 = vmatprep.subr.bf16.mxu0 0
      %1832 = vmatpush1.bf16.msra.mxu0 0
      %1833 = vmatprep.subr.bf16.mxu0 0
      %1834 = vmatpush1.bf16.msra.mxu0 0
      %1835 = vmatprep.subr.bf16.mxu0 0
      %1836 = vmatpush1.bf16.msra.mxu0 0
      %1837 = vmatprep.subr.bf16.mxu0 0
      %1838 = vmatpush1.bf16.msra.mxu0 0
      %1839 = vmatprep.subr.bf16.mxu0 0
      %1840 = vmatpush1.bf16.msra.mxu0 0
      %1841 = vmatprep.mubr.bf16.mxu0 0
      %1842 = vmatmul.mubr.bf16.gmra.mrb[0].mxu0 %v1807
      %v1843 = vpop.f32.mrb[0].mxu0
      %v1844 = vadd.f32 %v1757, %v1843
      %v1845 = vpop.f32.mrb[0].mxu0
      %v1846 = vpop.f32.mrb[0].mxu0
      %v1847 = vpop.f32.mrb[0].mxu0
      %1848 = vdwg.mxu0
      %s1849 = scalar_lea.vmem %s3, 180
      %v1850 = vld [vmem:[%s1849] sm:$0xf]
      %v1851 = vld [vmem:[%s1849 + $0x4] sm:$0xf]
      %v1852 = vld [vmem:[%s1849 + $0x8] sm:$0xf]
      %v1854 = vrot.slane %v1695, 1
      %v1858 = vunpack.c.l.b16 %v1850
      %v1859 = vunpack.c.l.b16 %v1851
      %v1860 = vunpack.c.l.b16 %v1852
      %v1861 = vpack.c.b16 %v1859, %v1858
      %v1862 = vpack.c.b16 %v1860, %v1860
      %v1865 = vsel %vm378, %v1854, 0
      %v1868 = vsel %vm382, %v1862, 0
      %1870 = vmatprep.subr.bf16.mxu0 0
      %1871 = vmatpush1.bf16.msra.mxu0 %v1861
      %1872 = vmatprep.subr.bf16.mxu0 0
      %1873 = vmatpush1.bf16.msra.mxu0 %v1868
      %1874 = vmatprep.subr.bf16.mxu0 0
      %1875 = vmatpush1.bf16.msra.mxu0 0
      %1876 = vmatprep.subr.bf16.mxu0 0
      %1877 = vmatpush1.bf16.msra.mxu0 0
      %1878 = vmatprep.subr.bf16.mxu0 0
      %1879 = vmatpush1.bf16.msra.mxu0 0
      %1880 = vmatprep.subr.bf16.mxu0 0
      %1881 = vmatpush1.bf16.msra.mxu0 0
      %1882 = vmatprep.subr.bf16.mxu0 0
      %1883 = vmatpush1.bf16.msra.mxu0 0
      %1884 = vmatprep.subr.bf16.mxu0 0
      %1885 = vmatpush1.bf16.msra.mxu0 0
      %1886 = vmatprep.subr.bf16.mxu0 0
      %1887 = vmatpush1.bf16.msra.mxu0 0
      %1888 = vmatprep.subr.bf16.mxu0 0
      %1889 = vmatpush1.bf16.msra.mxu0 0
      %1890 = vmatprep.subr.bf16.mxu0 0
      %1891 = vmatpush1.bf16.msra.mxu0 0
      %1892 = vmatprep.subr.bf16.mxu0 0
      %1893 = vmatpush1.bf16.msra.mxu0 0
      %1894 = vmatprep.subr.bf16.mxu0 0
      %1895 = vmatpush1.bf16.msra.mxu0 0
      %1896 = vmatprep.subr.bf16.mxu0 0
      %1897 = vmatpush1.bf16.msra.mxu0 0
      %1898 = vmatprep.subr.bf16.mxu0 0
      %1899 = vmatpush1.bf16.msra.mxu0 0
      %1900 = vmatprep.subr.bf16.mxu0 0
      %1901 = vmatpush1.bf16.msra.mxu0 0
      %1902 = vmatprep.mubr.bf16.mxu0 0
      %1903 = vmatmul.mubr.bf16.gmra.mrb[0].mxu0 %v1865
      %v1904 = vpop.f32.mrb[0].mxu0
      %v1905 = vadd.f32 0.0, %v1904
      %v1906 = vpop.f32.mrb[0].mxu0
      %v1907 = vpop.f32.mrb[0].mxu0
      %v1908 = vpop.f32.mrb[0].mxu0
      %1909 = vdwg.mxu0
      %v1910 = vadd.f32 %v1844, %v1905
      %s1911 = scalar_lea.vmem %s3, 192
      %v1912 = vld [vmem:[%s1911] sm:$0xf]
      %v1913 = vld [vmem:[%s1911 + $0x4] sm:$0xf]
      %v1914 = vld [vmem:[%s1911 + $0x8] sm:$0xf]
      %v1915 = vrot.slane %v1701, 1
      %v1916 = vrot.slane %v1703, 2
      %v1917 = vor.u32 %v1915, %v1916
      %v1921 = vunpack.c.l.b16 %v1912
      %v1922 = vunpack.c.l.b16 %v1913
      %v1923 = vunpack.c.l.b16 %v1914
      %v1924 = vpack.c.b16 %v1922, %v1921
      %v1925 = vpack.c.b16 %v1923, %v1923
      %v1928 = vsel %vm378, %v1917, 0
      %v1931 = vsel %vm382, %v1925, 0
      %1933 = vmatprep.subr.bf16.mxu0 0
      %1934 = vmatpush1.bf16.msra.mxu0 %v1924
      %1935 = vmatprep.subr.bf16.mxu0 0
      %1936 = vmatpush1.bf16.msra.mxu0 %v1931
      %1937 = vmatprep.subr.bf16.mxu0 0
      %1938 = vmatpush1.bf16.msra.mxu0 0
      %1939 = vmatprep.subr.bf16.mxu0 0
      %1940 = vmatpush1.bf16.msra.mxu0 0
      %1941 = vmatprep.subr.bf16.mxu0 0
      %1942 = vmatpush1.bf16.msra.mxu0 0
      %1943 = vmatprep.subr.bf16.mxu0 0
      %1944 = vmatpush1.bf16.msra.mxu0 0
      %1945 = vmatprep.subr.bf16.mxu0 0
      %1946 = vmatpush1.bf16.msra.mxu0 0
      %1947 = vmatprep.subr.bf16.mxu0 0
      %1948 = vmatpush1.bf16.msra.mxu0 0
      %1949 = vmatprep.subr.bf16.mxu0 0
      %1950 = vmatpush1.bf16.msra.mxu0 0
      %1951 = vmatprep.subr.bf16.mxu0 0
      %1952 = vmatpush1.bf16.msra.mxu0 0
      %1953 = vmatprep.subr.bf16.mxu0 0
      %1954 = vmatpush1.bf16.msra.mxu0 0
      %1955 = vmatprep.subr.bf16.mxu0 0
      %1956 = vmatpush1.bf16.msra.mxu0 0
      %1957 = vmatprep.subr.bf16.mxu0 0
      %1958 = vmatpush1.bf16.msra.mxu0 0
      %1959 = vmatprep.subr.bf16.mxu0 0
      %1960 = vmatpush1.bf16.msra.mxu0 0
      %1961 = vmatprep.subr.bf16.mxu0 0
      %1962 = vmatpush1.bf16.msra.mxu0 0
      %1963 = vmatprep.subr.bf16.mxu0 0
      %1964 = vmatpush1.bf16.msra.mxu0 0
      %1965 = vmatprep.mubr.bf16.mxu0 0
      %1966 = vmatmul.mubr.bf16.gmra.mrb[0].mxu0 %v1928
      %v1967 = vpop.f32.mrb[0].mxu0
      %v1968 = vadd.f32 0.0, %v1967
      %v1969 = vpop.f32.mrb[0].mxu0
      %v1970 = vpop.f32.mrb[0].mxu0
      %v1971 = vpop.f32.mrb[0].mxu0
      %1972 = vdwg.mxu0
      %v1973 = vadd.f32 %v1910, %v1968
      %s1974 = scalar_lea.vmem %s3, 204
      %v1975 = vld [vmem:[%s1974] sm:$0xf]
      %v1976 = vld [vmem:[%s1974 + $0x4] sm:$0xf]
      %v1977 = vld [vmem:[%s1974 + $0x8] sm:$0xf]
      %v1978 = vrot.slane %v1695, 2
      %v1982 = vunpack.c.l.b16 %v1975
      %v1983 = vunpack.c.l.b16 %v1976
      %v1984 = vunpack.c.l.b16 %v1977
      %v1985 = vpack.c.b16 %v1983, %v1982
      %v1986 = vpack.c.b16 %v1984, %v1984
      %v1989 = vsel %vm378, %v1978, 0
      %v1992 = vsel %vm382, %v1986, 0
      %1994 = vmatprep.subr.bf16.mxu0 0
      %1995 = vmatpush1.bf16.msra.mxu0 %v1985
      %1996 = vmatprep.subr.bf16.mxu0 0
      %1997 = vmatpush1.bf16.msra.mxu0 %v1992
      %1998 = vmatprep.subr.bf16.mxu0 0
      %1999 = vmatpush1.bf16.msra.mxu0 0
      %2000 = vmatprep.subr.bf16.mxu0 0
      %2001 = vmatpush1.bf16.msra.mxu0 0
      %2002 = vmatprep.subr.bf16.mxu0 0
      %2003 = vmatpush1.bf16.msra.mxu0 0
      %2004 = vmatprep.subr.bf16.mxu0 0
      %2005 = vmatpush1.bf16.msra.mxu0 0
      %2006 = vmatprep.subr.bf16.mxu0 0
      %2007 = vmatpush1.bf16.msra.mxu0 0
      %2008 = vmatprep.subr.bf16.mxu0 0
      %2009 = vmatpush1.bf16.msra.mxu0 0
      %2010 = vmatprep.subr.bf16.mxu0 0
      %2011 = vmatpush1.bf16.msra.mxu0 0
      %2012 = vmatprep.subr.bf16.mxu0 0
      %2013 = vmatpush1.bf16.msra.mxu0 0
      %2014 = vmatprep.subr.bf16.mxu0 0
      %2015 = vmatpush1.bf16.msra.mxu0 0
      %2016 = vmatprep.subr.bf16.mxu0 0
      %2017 = vmatpush1.bf16.msra.mxu0 0
      %2018 = vmatprep.subr.bf16.mxu0 0
      %2019 = vmatpush1.bf16.msra.mxu0 0
      %2020 = vmatprep.subr.bf16.mxu0 0
      %2021 = vmatpush1.bf16.msra.mxu0 0
      %2022 = vmatprep.subr.bf16.mxu0 0
      %2023 = vmatpush1.bf16.msra.mxu0 0
      %2024 = vmatprep.subr.bf16.mxu0 0
      %2025 = vmatpush1.bf16.msra.mxu0 0
      %2026 = vmatprep.mubr.bf16.mxu0 0
      %2027 = vmatmul.mubr.bf16.gmra.mrb[0].mxu0 %v1989
      %v2028 = vpop.f32.mrb[0].mxu0
      %v2029 = vadd.f32 0.0, %v2028
      %v2030 = vpop.f32.mrb[0].mxu0
      %v2031 = vpop.f32.mrb[0].mxu0
      %v2032 = vpop.f32.mrb[0].mxu0
      %2033 = vdwg.mxu0
      %v2034 = vadd.f32 %v1973, %v2029
      %s2035 = scalar_lea.vmem %s3, 216
      %v2036 = vld [vmem:[%s2035] sm:$0xf]
      %v2037 = vld [vmem:[%s2035 + $0x4] sm:$0xf]
      %v2038 = vld [vmem:[%s2035 + $0x8] sm:$0xf]
      %v2039 = vrot.slane %v1701, 2
      %v2040 = vrot.slane %v1703, 3
      %v2041 = vor.u32 %v2039, %v2040
      %v2045 = vunpack.c.l.b16 %v2036
      %v2046 = vunpack.c.l.b16 %v2037
      %v2047 = vunpack.c.l.b16 %v2038
      %v2048 = vpack.c.b16 %v2046, %v2045
      %v2049 = vpack.c.b16 %v2047, %v2047
      %v2052 = vsel %vm378, %v2041, 0
      %v2055 = vsel %vm382, %v2049, 0
      %2057 = vmatprep.subr.bf16.mxu0 0
      %2058 = vmatpush1.bf16.msra.mxu0 %v2048
      %2059 = vmatprep.subr.bf16.mxu0 0
      %2060 = vmatpush1.bf16.msra.mxu0 %v2055
      %2061 = vmatprep.subr.bf16.mxu0 0
      %2062 = vmatpush1.bf16.msra.mxu0 0
      %2063 = vmatprep.subr.bf16.mxu0 0
      %2064 = vmatpush1.bf16.msra.mxu0 0
      %2065 = vmatprep.subr.bf16.mxu0 0
      %2066 = vmatpush1.bf16.msra.mxu0 0
      %2067 = vmatprep.subr.bf16.mxu0 0
      %2068 = vmatpush1.bf16.msra.mxu0 0
      %2069 = vmatprep.subr.bf16.mxu0 0
      %2070 = vmatpush1.bf16.msra.mxu0 0
      %2071 = vmatprep.subr.bf16.mxu0 0
      %2072 = vmatpush1.bf16.msra.mxu0 0
      %2073 = vmatprep.subr.bf16.mxu0 0
      %2074 = vmatpush1.bf16.msra.mxu0 0
      %2075 = vmatprep.subr.bf16.mxu0 0
      %2076 = vmatpush1.bf16.msra.mxu0 0
      %2077 = vmatprep.subr.bf16.mxu0 0
      %2078 = vmatpush1.bf16.msra.mxu0 0
      %2079 = vmatprep.subr.bf16.mxu0 0
      %2080 = vmatpush1.bf16.msra.mxu0 0
      %2081 = vmatprep.subr.bf16.mxu0 0
      %2082 = vmatpush1.bf16.msra.mxu0 0
      %2083 = vmatprep.subr.bf16.mxu0 0
      %2084 = vmatpush1.bf16.msra.mxu0 0
      %2085 = vmatprep.subr.bf16.mxu0 0
      %2086 = vmatpush1.bf16.msra.mxu0 0
      %2087 = vmatprep.subr.bf16.mxu0 0
      %2088 = vmatpush1.bf16.msra.mxu0 0
      %2089 = vmatprep.mubr.bf16.mxu0 0
      %2090 = vmatmul.mubr.bf16.gmra.mrb[0].mxu0 %v2052
      %v2091 = vpop.f32.mrb[0].mxu0
      %v2092 = vadd.f32 0.0, %v2091
      %v2093 = vpop.f32.mrb[0].mxu0
      %v2094 = vpop.f32.mrb[0].mxu0
      %v2095 = vpop.f32.mrb[0].mxu0
      %2096 = vdwg.mxu0
      %v2097 = vadd.f32 %v2034, %v2092
      %s2098 = scalar_lea.vmem %s3, 228
      %v2099 = vld [vmem:[%s2098] sm:$0xf]
      %v2100 = vld [vmem:[%s2098 + $0x4] sm:$0xf]
      %v2101 = vld [vmem:[%s2098 + $0x8] sm:$0xf]
      %v2102 = vrot.slane %v1695, 3
      %v2106 = vunpack.c.l.b16 %v2099
      %v2107 = vunpack.c.l.b16 %v2100
      %v2108 = vunpack.c.l.b16 %v2101
      %v2109 = vpack.c.b16 %v2107, %v2106
      %v2110 = vpack.c.b16 %v2108, %v2108
      %v2113 = vsel %vm378, %v2102, 0
      %v2116 = vsel %vm382, %v2110, 0
      %2118 = vmatprep.subr.bf16.mxu0 0
      %2119 = vmatpush1.bf16.msra.mxu0 %v2109
      %2120 = vmatprep.subr.bf16.mxu0 0
      %2121 = vmatpush1.bf16.msra.mxu0 %v2116
      %2122 = vmatprep.subr.bf16.mxu0 0
      %2123 = vmatpush1.bf16.msra.mxu0 0
      %2124 = vmatprep.subr.bf16.mxu0 0
      %2125 = vmatpush1.bf16.msra.mxu0 0
      %2126 = vmatprep.subr.bf16.mxu0 0
      %2127 = vmatpush1.bf16.msra.mxu0 0
      %2128 = vmatprep.subr.bf16.mxu0 0
      %2129 = vmatpush1.bf16.msra.mxu0 0
      %2130 = vmatprep.subr.bf16.mxu0 0
      %2131 = vmatpush1.bf16.msra.mxu0 0
      %2132 = vmatprep.subr.bf16.mxu0 0
      %2133 = vmatpush1.bf16.msra.mxu0 0
      %2134 = vmatprep.subr.bf16.mxu0 0
      %2135 = vmatpush1.bf16.msra.mxu0 0
      %2136 = vmatprep.subr.bf16.mxu0 0
      %2137 = vmatpush1.bf16.msra.mxu0 0
      %2138 = vmatprep.subr.bf16.mxu0 0
      %2139 = vmatpush1.bf16.msra.mxu0 0
      %2140 = vmatprep.subr.bf16.mxu0 0
      %2141 = vmatpush1.bf16.msra.mxu0 0
      %2142 = vmatprep.subr.bf16.mxu0 0
      %2143 = vmatpush1.bf16.msra.mxu0 0
      %2144 = vmatprep.subr.bf16.mxu0 0
      %2145 = vmatpush1.bf16.msra.mxu0 0
      %2146 = vmatprep.subr.bf16.mxu0 0
      %2147 = vmatpush1.bf16.msra.mxu0 0
      %2148 = vmatprep.subr.bf16.mxu0 0
      %2149 = vmatpush1.bf16.msra.mxu0 0
      %2150 = vmatprep.mubr.bf16.mxu0 0
      %2151 = vmatmul.mubr.bf16.gmra.mrb[0].mxu0 %v2113
      %v2152 = vpop.f32.mrb[0].mxu0
      %v2153 = vadd.f32 0.0, %v2152
      %v2154 = vpop.f32.mrb[0].mxu0
      %v2155 = vpop.f32.mrb[0].mxu0
      %v2156 = vpop.f32.mrb[0].mxu0
      %2157 = vdwg.mxu0
      %v2158 = vadd.f32 %v2097, %v2153
      %s2159 = scalar_lea.vmem %s3, 240
      %v2160 = vld [vmem:[%s2159] sm:$0xf]
      %v2161 = vld [vmem:[%s2159 + $0x4] sm:$0xf]
      %v2162 = vld [vmem:[%s2159 + $0x8] sm:$0xf]
      %v2163 = vrot.slane %v1701, 3
      %v2164 = vrot.slane %v1703, 4
      %v2165 = vor.u32 %v2163, %v2164
      %v2169 = vunpack.c.l.b16 %v2160
      %v2170 = vunpack.c.l.b16 %v2161
      %v2171 = vunpack.c.l.b16 %v2162
      %v2172 = vpack.c.b16 %v2170, %v2169
      %v2173 = vpack.c.b16 %v2171, %v2171
      %v2176 = vsel %vm378, %v2165, 0
      %v2179 = vsel %vm382, %v2173, 0
      %2181 = vmatprep.subr.bf16.mxu0 0
      %2182 = vmatpush1.bf16.msra.mxu0 %v2172
      %2183 = vmatprep.subr.bf16.mxu0 0
      %2184 = vmatpush1.bf16.msra.mxu0 %v2179
      %2185 = vmatprep.subr.bf16.mxu0 0
      %2186 = vmatpush1.bf16.msra.mxu0 0
      %2187 = vmatprep.subr.bf16.mxu0 0
      %2188 = vmatpush1.bf16.msra.mxu0 0
      %2189 = vmatprep.subr.bf16.mxu0 0
      %2190 = vmatpush1.bf16.msra.mxu0 0
      %2191 = vmatprep.subr.bf16.mxu0 0
      %2192 = vmatpush1.bf16.msra.mxu0 0
      %2193 = vmatprep.subr.bf16.mxu0 0
      %2194 = vmatpush1.bf16.msra.mxu0 0
      %2195 = vmatprep.subr.bf16.mxu0 0
      %2196 = vmatpush1.bf16.msra.mxu0 0
      %2197 = vmatprep.subr.bf16.mxu0 0
      %2198 = vmatpush1.bf16.msra.mxu0 0
      %2199 = vmatprep.subr.bf16.mxu0 0
      %2200 = vmatpush1.bf16.msra.mxu0 0
      %2201 = vmatprep.subr.bf16.mxu0 0
      %2202 = vmatpush1.bf16.msra.mxu0 0
      %2203 = vmatprep.subr.bf16.mxu0 0
      %2204 = vmatpush1.bf16.msra.mxu0 0
      %2205 = vmatprep.subr.bf16.mxu0 0
      %2206 = vmatpush1.bf16.msra.mxu0 0
      %2207 = vmatprep.subr.bf16.mxu0 0
      %2208 = vmatpush1.bf16.msra.mxu0 0
      %2209 = vmatprep.subr.bf16.mxu0 0
      %2210 = vmatpush1.bf16.msra.mxu0 0
      %2211 = vmatprep.subr.bf16.mxu0 0
      %2212 = vmatpush1.bf16.msra.mxu0 0
      %2213 = vmatprep.mubr.bf16.mxu0 0
      %2214 = vmatmul.mubr.bf16.gmra.mrb[0].mxu0 %v2176
      %v2215 = vpop.f32.mrb[0].mxu0
      %v2216 = vadd.f32 0.0, %v2215
      %v2217 = vpop.f32.mrb[0].mxu0
      %v2218 = vpop.f32.mrb[0].mxu0
      %v2219 = vpop.f32.mrb[0].mxu0
      %2220 = vdwg.mxu0
      %v2221 = vadd.f32 %v2158, %v2216
      %s2222 = scalar_lea.vmem %s4, 2
      %v2223 = vld [vmem:[%s2222] sm:$0x1]
      %v2225 = vlaneseq
      %v2226 = vshrl.u32 %v2225, 7
      %v2227 = vsub.s32 0, %v2226
      %v2228 = vrot.slane %v2223, %v2227
      %v2230 = vadd.f32 %v2221, %v2228
      %v2231 = vmax.f32 %v2230, 0.0
      %v2232 = vrot.slane %v228, 4
      %v2233 = vrot.slane %v229, 4
      %v2234 = vsel %vm382, %v2232, %v2233
      %v2236 = vadd.f32 %v2231, %v2234
      %v2237 = vpack.c.bf16 %v2236, %v2236
      %vm2238 = vcmask 781312
      %2239 = vst.msk [vmem:[%s222] sm:$0xf] %vm2238, %v2237
      %p2240 = scmp.lt.s32.totalorder %s16, 1
      %s2241 = scalar_select %p2240, %s16, 1
      %s2242 = smul.addr %s2241, 4
      %s2243 = scalar_lea.vmem %s5, %s2242
      // Predicated region
      $region41: #{forward.9} parent=39 // pred_check
        %p2244 = pneg %p144
      $region42: #{forward.9} parent=39 // pred_check_branch
        %2246 = sbr.rel (%p2244) target = $region44
      $region43: #{forward.9} parent=39 // pred_region
        _
      $region44: #{forward.9} parent=39 // pred_fallthru
        _
    $region40: #{forward.9} parent=5 // pred_fallthru
      _
    %p2247 = scmp.le.s32.totalorder 2, %s11
    // Predicated region
    $region45: #{forward.9} parent=5 // pred_check
      %p2248 = pneg %p2247
    $region46: #{forward.9} parent=5 // pred_check_branch
      %2250 = sbr.rel (%p2248) target = $region48
    $region47: #{forward.9} parent=5 // pred_region
      %s2251 = ssub.s32 %s11, 2
      // Predicated region
      $region49: #{forward.9} parent=47 // pred_check
        %p2252 = pneg %p150
      $region50: #{forward.9} parent=47 // pred_check_branch
        %2254 = sbr.rel (%p2252) target = $region52
      $region51: #{forward.9} parent=47 // pred_region
        %p2255 = scmp.lt.s32.totalorder %s17, 1
        %s2256 = scalar_select %p2255, %s17, 1
        %s2257 = smul.addr %s2256, 4
        %s2258 = scalar_lea.vmem %s5, %s2257
      $region52: #{forward.9} parent=47 // pred_fallthru
        _
    $region48: #{forward.9} parent=5 // pred_fallthru
      _
  $region6: #{forward.9} parent=0 // loop_footer
    %s15 = sadd.s32 1, %s11
  $region7: #{forward.9} parent=0 // loop_footer_branch
    %10 = sbr.rel target = $region3
  $region8: #{forward.9} parent=0 // loop_exit
    _

// kernel: forward.11
$region0: #{forward.11}
  #allocation0 [shape = 'u32[]', space=smem, size = 0x4, offset = 0x4, fixed_abs, tag = 'smem constant byte address 0x4 - core index']
  #allocation1 [shape = 'u32[144,128]{1,0:T(1,128)}', space=vmem, size = 0x12000, scoped, tag = 'internal scratch']
  %s0 = inlined_call_operand.vmem [shape: bf16[2,4,128], index: 0, kind: input, shape index: {}]
  %s1 = inlined_call_operand.vmem [shape: f32[128,4], index: 1, kind: input, shape index: {}]
  %s2 = inlined_call_operand.vmem [shape: f32[1,4], index: 2, kind: input, shape index: {}]
  %s3 = inlined_call_operand.hbm [shape: f32[2,4], index: 3, kind: output, shape index: {}]
  %s4 = sld [smem:[#allocation0]]
  $region22: #{forward.11} parent=0
    _
  %s6 = ssub.s32 1, %s4
  %s7 = scalar_select 0, %s6, %s4
  $region1: #{forward.11} parent=0
    #allocation2 [shape = 'u8[1024]{0}', space=vmem, size = 0x400, scoped, tag = 'output window, operand 0, single buffered']
    #allocation3 [shape = 's32[1]{0}', space=sflag, size = 0x4, scoped, tag = 'scoped memory for forward.11']
    %8 = vsyncpa [#allocation3], 0
    // Predicated region
    $region2: #{forward.11} parent=1 // pred_check
      _
    $region3: #{forward.11} parent=1 // pred_check_branch
      %10 = sbr.rel (0) target = $region5
    $region4: #{forward.11} parent=1 // pred_region
      _
    $region5: #{forward.11} parent=1 // pred_fallthru
      _
    // Predicated region
    $region6: #{forward.11} parent=1 // pred_check
      _
    $region7: #{forward.11} parent=1 // pred_check_branch
      %12 = sbr.rel (0) target = $region9
    $region8: #{forward.11} parent=1 // pred_region
      _
    $region9: #{forward.11} parent=1 // pred_fallthru
      _
    // Predicated region
    $region10: #{forward.11} parent=1 // pred_check
      _
    $region11: #{forward.11} parent=1 // pred_check_branch
      %14 = sbr.rel (0) target = $region13
    $region12: #{forward.11} parent=1 // pred_region
      _
    $region13: #{forward.11} parent=1 // pred_fallthru
      _
    %v15 = vld [vmem:[%s0] sm:$0x3]
    %v16 = vld [vmem:[%s0 + $0x2] sm:$0x3]
    %v17 = vunpack.c.l.bf16 %v15
    %v18 = vunpack.c.l.bf16 %v16
    %vm19 = vcmask 1043456
    %v20 = vsel %vm19, %v17, 0.0
    %v21 = vrot.slane %v20, 4
    %v22 = vadd.f32 %v20, %v21
    %v23 = vrot.slane %v22, 2
    %v24 = vadd.f32 %v22, %v23
    %v25 = vrot.slane %v24, 1
    %v26 = vadd.f32 %v24, %v25
    %v27 = vsel %vm19, %v18, 0.0
    %v28 = vrot.slane %v27, 4
    %v29 = vadd.f32 %v27, %v28
    %v30 = vrot.slane %v29, 2
    %v31 = vadd.f32 %v29, %v30
    %v32 = vrot.slane %v31, 1
    %v33 = vadd.f32 %v31, %v32
    %v34 = vrcp.pop 4.0
    %v35 = vmul.f32 %v26, %v34
    %v36 = vmul.f32 %v33, %v34
    %v37 = vld [vmem:[%s1] sm:$0xff]
    %v38 = vld [vmem:[%s1 + $0x8] sm:$0xff]
    %v39 = vld [vmem:[%s1 + $0x10] sm:$0xff]
    %v40 = vld [vmem:[%s1 + $0x18] sm:$0xff]
    %v41 = vld [vmem:[%s1 + $0x20] sm:$0xff]
    %v42 = vld [vmem:[%s1 + $0x28] sm:$0xff]
    %v43 = vld [vmem:[%s1 + $0x30] sm:$0xff]
    %v44 = vld [vmem:[%s1 + $0x38] sm:$0xff]
    %v45 = vld [vmem:[%s1 + $0x40] sm:$0xff]
    %v46 = vld [vmem:[%s1 + $0x48] sm:$0xff]
    %v47 = vld [vmem:[%s1 + $0x50] sm:$0xff]
    %v48 = vld [vmem:[%s1 + $0x58] sm:$0xff]
    %v49 = vld [vmem:[%s1 + $0x60] sm:$0xff]
    %v50 = vld [vmem:[%s1 + $0x68] sm:$0xff]
    %v51 = vld [vmem:[%s1 + $0x70] sm:$0xff]
    %v52 = vld [vmem:[%s1 + $0x78] sm:$0xff]
    %v53 = vld [vmem:[%s2] sm:$0x1]
    %v55 = vlaneseq
    %v56 = vshrl.u32 %v55, 7
    %v57 = vsub.s32 0, %v56
    %v58 = vrot.slane %v53, %v57
    %vm62 = vcmask 1041409
    %v63 = vsel %vm62, %v36, %v35
    %65 = vmatprep.subr.mxu0 0.0
    %66 = vmatpush1.msra.mxu0 %v37
    %67 = vmatprep.subr.mxu0 0.0
    %68 = vmatpush1.msra.mxu0 %v38
    %69 = vmatprep.subr.mxu0 0.0
    %70 = vmatpush1.msra.mxu0 %v39
    %71 = vmatprep.subr.mxu0 0.0
    %72 = vmatpush1.msra.mxu0 %v40
    %73 = vmatprep.subr.mxu0 0.0
    %74 = vmatpush1.msra.mxu0 %v41
    %75 = vmatprep.subr.mxu0 0.0
    %76 = vmatpush1.msra.mxu0 %v42
    %77 = vmatprep.subr.mxu0 0.0
    %78 = vmatpush1.msra.mxu0 %v43
    %79 = vmatprep.subr.mxu0 0.0
    %80 = vmatpush1.msra.mxu0 %v44
    %81 = vmatprep.subr.mxu0 0.0
    %82 = vmatpush1.msra.mxu0 %v45
    %83 = vmatprep.subr.mxu0 0.0
    %84 = vmatpush1.msra.mxu0 %v46
    %85 = vmatprep.subr.mxu0 0.0
    %86 = vmatpush1.msra.mxu0 %v47
    %87 = vmatprep.subr.mxu0 0.0
    %88 = vmatpush1.msra.mxu0 %v48
    %89 = vmatprep.subr.mxu0 0.0
    %90 = vmatpush1.msra.mxu0 %v49
    %91 = vmatprep.subr.mxu0 0.0
    %92 = vmatpush1.msra.mxu0 %v50
    %93 = vmatprep.subr.mxu0 0.0
    %94 = vmatpush1.msra.mxu0 %v51
    %95 = vmatprep.subr.mxu0 0.0
    %96 = vmatpush1.msra.mxu0 %v52
    %97 = vmatprep.subr.mxu0 0.0
    %98 = vmatpush1.msra.mxu0 0.0
    %99 = vmatprep.subr.mxu0 0.0
    %100 = vmatpush1.msra.mxu0 0.0
    %101 = vmatprep.subr.mxu0 0.0
    %102 = vmatpush1.msra.mxu0 0.0
    %103 = vmatprep.subr.mxu0 0.0
    %104 = vmatpush1.msra.mxu0 0.0
    %105 = vmatprep.subr.mxu0 0.0
    %106 = vmatpush1.msra.mxu0 0.0
    %107 = vmatprep.subr.mxu0 0.0
    %108 = vmatpush1.msra.mxu0 0.0
    %109 = vmatprep.subr.mxu0 0.0
    %110 = vmatpush1.msra.mxu0 0.0
    %111 = vmatprep.subr.mxu0 0.0
    %112 = vmatpush1.msra.mxu0 0.0
    %113 = vmatprep.subr.mxu0 0.0
    %114 = vmatpush1.msra.mxu0 0.0
    %115 = vmatprep.subr.mxu0 0.0
    %116 = vmatpush1.msra.mxu0 0.0
    %117 = vmatprep.subr.mxu0 0.0
    %118 = vmatpush1.msra.mxu0 0.0
    %119 = vmatprep.subr.mxu0 0.0
    %120 = vmatpush1.msra.mxu0 0.0
    %121 = vmatprep.subr.mxu0 0.0
    %122 = vmatpush1.msra.mxu0 0.0
    %123 = vmatprep.subr.mxu0 0.0
    %124 = vmatpush1.msra.mxu0 0.0
    %125 = vmatprep.subr.mxu0 0.0
    %126 = vmatpush1.msra.mxu0 0.0
    %127 = vmatprep.subr.mxu0 0.0
    %128 = vmatpush1.msra.mxu0 0.0
    %129 = vmatprep.mubr.f32.mxu0 0.0
    %130 = vmatmul.mubr.f32.gmra.mrb[0].mxu0 %v63
    %v131 = vpop.f32.mrb[0].mxu0
    %v132 = vadd.f32 %v58, %v131
    %v133 = vpop.f32.mrb[0].mxu0
    %134 = vdwg.mxu0
    %vm135 = vcmask 25600
    %136 = vst.msk [vmem:[#allocation2] sm:$0x3] %vm135, %v132
    // Predicated region
    $region14: #{forward.11} parent=1 // pred_check
      _
    $region15: #{forward.11} parent=1 // pred_check_branch
      %138 = sbr.rel (0) target = $region17
    $region16: #{forward.11} parent=1 // pred_region
      %s140 = ssub.s32 32, 32
      %141 = vsyncadd [#allocation3], %s140
      %s143 = sshll.u32 [#allocation2], 4
      %s144 = int_to_ptr.vmem [resolvable:$true] %s143
      %146 = dma.vmem_to_hbm [thread:$0]  %s144, 32, %s3, [#allocation3]
    $region17: #{forward.11} parent=1 // pred_fallthru
      _
    // Predicated region
    $region18: #{forward.11} parent=1 // pred_check
      _
    $region19: #{forward.11} parent=1 // pred_check_branch
      %148 = sbr.rel (0) target = $region21
    $region20: #{forward.11} parent=1 // pred_region
      %149 = dma.done [#allocation3], 32
    $region21: #{forward.11} parent=1 // pred_fallthru
      _
    %150 = vsyncpa [#allocation3], 1

</llo_original>
